<compile_context>
chip_gen: v7x
topology: tpu7x:2x2x1
jax: 0.10.0
libtpu: 0.0.40
codegen_flags: <defaults>
</compile_context>

<pallas_src>
import functools

import jax
import jax.numpy as jnp
import numpy as np
from jax.experimental import pallas as pl
from jax.experimental.pallas import tpu as pltpu

W1 = 0.3
W2 = 0.01
EPS = 1e-8

# 3x3 one-hot kernel positions used by get_kernel() (center excluded), in order.
_KPOS = [(0, 0), (0, 1), (0, 2), (1, 0), (1, 2), (2, 0), (2, 1), (2, 2)]


def offsets_from_dilations(dilations):
    """Neighbor (dy, dx) offsets matching get_dilated_neighbors ordering."""
    offs = []
    for d in dilations:
        for (ki, kj) in _KPOS:
            offs.append(((ki - 1) * d, (kj - 1) * d))
    return tuple(offs)


# ------------------------------ fused kernel --------------------------------

def _par_fused_kernel(img_ref, mask_ref, l_ref, out_ref, aff_scr, tmp_scr,
                      *, offsets, pad, h, w, num_iter, w1, w2):
    """Affinity (streamed over K) + softmax combine + num_iter propagation."""
    x_pad = img_ref[0]                                   # (C, H+2P, W+2P), VMEM
    c = x_pad.shape[0]
    k = len(offsets)
    kinv = 1.0 / k
    cinv = 1.0 / c

    def nb(dy, dx):
        # Replicate-pad neighbor = static slice of the pre-padded tile.
        return x_pad[:, pad + dy: pad + dy + h, pad + dx: pad + dx + w]

    # ---- pass 1: mean over the K neighbors (no (K,C,H,W) stack) ------------
    s = nb(*offsets[0])
    for kk in range(1, k):
        s = s + nb(*offsets[kk])
    mean = s * kinv                                      # (C,H,W)

    # ---- pass 2: unbiased variance over K + per-k spatial-TV "temp" --------
    row = jax.lax.broadcasted_iota(jnp.int32, (1, h, w), 1)
    col = jax.lax.broadcasted_iota(jnp.int32, (1, h, w), 2)
    not_last_row = row < (h - 1)
    not_last_col = col < (w - 1)
    var = jnp.zeros_like(mean)
    for kk in range(k):
        dy, dx = offsets[kk]
        v = nb(dy, dx)
        d = v - mean
        var = var + d * d
        # TV of the neighbor map. The reference replicates the neighbor's own
        # last row/col (difference exactly 0 there); the iota masks enforce
        # that, so the down/right reads can come straight from the padded tile.
        d1 = jnp.where(not_last_row, v - nb(dy + 1, dx), 0.0)
        d2 = jnp.where(not_last_col, v - nb(dy, dx + 1), 0.0)
        tmp_scr[kk] = jnp.sum(d1 * d1 + d2 * d2, axis=0) * cinv
    std = jnp.sqrt(var * (1.0 / (k - 1)))                # (C,H,W)
    # Exact reciprocal: std ~ 0 in flat regions, approx would be unsafe here.
    inv = pl.reciprocal(std + EPS, approx=False) * (1.0 / w1)
    inv2 = inv * inv                                     # |diff|^2*inv^2, no abs

    # ---- pass 3: per-k affinity (channel mean) ------------------------------
    xc = nb(0, 0)                                        # original (unpadded) image
    for kk in range(k):
        dy, dx = offsets[kk]
        d = nb(dy, dx) - xc
        aff_scr[kk] = -(jnp.sum(d * d * inv2, axis=0) * cinv)

    # ---- K-softmaxes, combine, pre-scale by 1/(l+1) (divide hoisted) --------
    def softmax_k(v):
        m = jnp.max(v, axis=0, keepdims=True)
        e = jnp.exp(v - m)
        # Denominator >= 1: approx reciprocal rides the otherwise-idle EUP slot.
        return e * pl.reciprocal(jnp.sum(e, axis=0, keepdims=True), approx=True)

    inv_denom = 1.0 / (l_ref[0] + 1.0)
    aff_scr[...] = (softmax_k(aff_scr[...]) - w2 * softmax_k(tmp_scr[...])) * inv_denom

    # ---- propagation: num_iter steps, mask + affinity resident in VMEM ------
    dmax = max(max(abs(dy), abs(dx)) for dy, dx in offsets)

    def prop_step(_, cur):
        # Replicate-pad the current mask once per iteration (2 concats total),
        # then every neighbor is a cheap static slice of the padded value.
        p = jnp.concatenate([cur[:, :1, :]] * dmax + [cur] + [cur[:, -1:, :]] * dmax,
                            axis=1)
        p = jnp.concatenate([p[:, :, :1]] * dmax + [p] + [p[:, :, -1:]] * dmax,
                            axis=2)
        dy0, dx0 = offsets[0]
        acc = (p[:, dmax + dy0: dmax + dy0 + h, dmax + dx0: dmax + dx0 + w]
               * aff_scr[0][None])
        for kk in range(1, k):
            dy, dx = offsets[kk]
            acc = acc + (p[:, dmax + dy: dmax + dy + h, dmax + dx: dmax + dx + w]
                         * aff_scr[kk][None])
        return acc                                       # aff pre-scaled: no divide

    cur = jax.lax.fori_loop(0, num_iter, prop_step, mask_ref[0])
    out_ref[0] = cur


# ------------------------------ kernel wrapper -------------------------------

def par_fused(imgs_pad, masks_r, l, offsets, pad, num_iter):
    b, c, hp, wp = imgs_pad.shape
    _, cm, h, w = masks_r.shape
    k = len(offsets)
    l_arr = jnp.reshape(l, (1,)).astype(jnp.float32)
    kern = functools.partial(_par_fused_kernel, offsets=offsets, pad=pad,
                             h=h, w=w, num_iter=num_iter, w1=W1, w2=W2)
    return pl.pallas_call(
        kern,
        out_shape=jax.ShapeDtypeStruct((b, cm, h, w), jnp.float32),
        grid=(b,),
        in_specs=[
            pl.BlockSpec((1, c, hp, wp), lambda i: (i, 0, 0, 0)),
            pl.BlockSpec((1, cm, h, w), lambda i: (i, 0, 0, 0)),
            pl.BlockSpec(memory_space=pltpu.MemorySpace.SMEM),   # scalar l
        ],
        out_specs=pl.BlockSpec((1, cm, h, w), lambda i: (i, 0, 0, 0)),
        scratch_shapes=[
            pltpu.VMEM((k, h, w), jnp.float32),   # affinity (stays on-chip)
            pltpu.VMEM((k, h, w), jnp.float32),   # spatial-TV "temp"
        ],
        compiler_params=pltpu.CompilerParams(dimension_semantics=("parallel",)),
    )(imgs_pad, masks_r, l_arr)


# ------------------------------ plain-JAX glue --------------------------------

def tv_loss(x):
    t1 = jnp.concatenate([x[:, :, 1:, :], x[:, :, -1:, :]], axis=2)
    t2 = jnp.concatenate([x[:, :, :, 1:], x[:, :, :, -1:]], axis=3)
    return jnp.sum((x - t1) ** 2 + (x - t2) ** 2)


def resize_bilinear_ac(x, out_h, out_w):
    """Bilinear resize (last two dims), align_corners=True (F.interpolate)."""
    h, w = x.shape[-2], x.shape[-1]
    ys = jnp.linspace(0.0, float(h - 1), out_h)
    xs = jnp.linspace(0.0, float(w - 1), out_w)
    y0 = jnp.clip(jnp.floor(ys).astype(jnp.int32), 0, h - 1)
    y1 = jnp.clip(y0 + 1, 0, h - 1)
    wy = ys - y0.astype(jnp.float32)
    x0 = jnp.clip(jnp.floor(xs).astype(jnp.int32), 0, w - 1)
    x1 = jnp.clip(x0 + 1, 0, w - 1)
    wx = xs - x0.astype(jnp.float32)

    top = jnp.take(x, y0, axis=-2)
    bot = jnp.take(x, y1, axis=-2)
    wy_b = wy.reshape((1,) * (x.ndim - 2) + (out_h, 1))
    rows = top * (1.0 - wy_b) + bot * wy_b
    left = jnp.take(rows, x0, axis=-1)
    right = jnp.take(rows, x1, axis=-1)
    wx_b = wx.reshape((1,) * (x.ndim - 1) + (out_w,))
    return left * (1.0 - wx_b) + right * wx_b


def dilated_neighbors_ref(x, dilations):
    """Reference get_dilated_neighbors: (b,c,h,w) -> (b,c,K,h,w)."""
    b, c, h, w = x.shape
    outs = []
    for d in dilations:
        xp = jnp.pad(x, ((0, 0), (0, 0), (d, d), (d, d)), mode="edge")
        for (ki, kj) in _KPOS:
            outs.append(xp[:, :, ki * d: ki * d + h, kj * d: kj * d + w])
    return jnp.stack(outs, axis=2)


def _ref_forward_core(imgs, masks_r, l, dilations, num_iter):
    """Pure-jnp mirror of the PyTorch forward (for self-check)."""
    _imgs = dilated_neighbors_ref(imgs, dilations)                   # (b,c,K,h,w)
    t1 = jnp.concatenate([_imgs[:, :, :, 1:, :], _imgs[:, :, :, -1:, :]], axis=3)
    t2 = jnp.concatenate([_imgs[:, :, :, :, 1:], _imgs[:, :, :, :, -1:]], axis=4)
    temp = (_imgs - t1) ** 2 + (_imgs - t2) ** 2
    diff = jnp.abs(_imgs - imgs[:, :, None])
    k = _imgs.shape[2]
    mean = jnp.mean(_imgs, axis=2, keepdims=True)
    std = jnp.sqrt(jnp.sum((_imgs - mean) ** 2, axis=2, keepdims=True) / (k - 1))
    aff = -(diff / (std + EPS) / W1) ** 2
    aff = jnp.mean(aff, axis=1, keepdims=True)
    temp = jnp.mean(temp, axis=1, keepdims=True)
    aff = jax.nn.softmax(aff, axis=2) - W2 * jax.nn.softmax(temp, axis=2)
    cur = masks_r
    for _ in range(num_iter):
        nbs = dilated_neighbors_ref(cur, dilations)                  # (b,cm,K,h,w)
        cur = jnp.sum(nbs * aff, axis=2) / (l + 1.0)
    return cur


# ------------------------------- full forward ---------------------------------

def par3b1_forward(imgs, masks, dilations, num_iter, use_pallas=True):
    _, cm, hm, wm = masks.shape
    h, w = imgs.shape[-2], imgs.shape[-1]
    # NOTE: matches PyTorch operator precedence `tv_loss(masks) / h * w`
    # i.e. (tv/h)*w, intentionally.
    l = tv_loss(masks) / hm * wm
    masks_r = resize_bilinear_ac(masks, h, w)             # (b, cm, h, w)
    if use_pallas:
        offsets = offsets_from_dilations(dilations)
        # Pad once with replicate semantics; +1 covers the TV down/right reads.
        pad = max(dilations) + 1
        imgs_pad = jnp.pad(imgs, ((0, 0), (0, 0), (pad, pad), (pad, pad)),
                           mode="edge")
        return par_fused(imgs_pad, masks_r, l, offsets, pad, num_iter)
    return _ref_forward_core(imgs, masks_r, l, dilations, num_iter)


# ---------------------------------- main ---------------------------------------

if __name__ == "__main__":
    dilations = (1, 2)
    num_iter = 2

    key = jax.random.PRNGKey(0)
    k_img, k_msk = jax.random.split(key)
    imgs = jax.random.normal(k_img, (2, 3, 16, 16), dtype=jnp.float32)
    masks = jax.random.uniform(k_msk, (2, 4, 8, 8), dtype=jnp.float32)

    fwd = jax.jit(par3b1_forward, static_argnums=(2, 3, 4))
    out = jax.block_until_ready(fwd(imgs, masks, dilations, num_iter, True))

    # self-check: fused Pallas kernel vs pure-jnp mirror of the torch math
    ref = jax.block_until_ready(fwd(imgs, masks, dilations, num_iter, False))
    assert out.shape == (2, 4, 16, 16)
    np.testing.assert_allclose(np.asarray(out), np.asarray(ref), rtol=1e-4, atol=1e-5)

    print("KERNEL_OK")
</pallas_src>

<mosaic_0001>
module attributes {stable_mosaic.version = 11 : i64} {
  func.func @_par_fused_kernel(%arg0: i32, %arg1: memref<1x3x22x22xf32, #tpu.memory_space<vmem>>, %arg2: memref<1x4x16x16xf32, #tpu.memory_space<vmem>>, %arg3: memref<1xf32, #tpu.memory_space<smem>>, %arg4: memref<1x4x16x16xf32, #tpu.memory_space<vmem>>, %arg5: memref<16x16x16xf32, #tpu.memory_space<vmem>>, %arg6: memref<16x16x16xf32, #tpu.memory_space<vmem>>) attributes {dimension_semantics = [#tpu.dimension_semantics<parallel>], iteration_bounds = array<i64: 2>, scalar_prefetch = 0 : i64, scratch_operands = 2 : i64, tpu.core_type = #tpu.core_type<tc>, window_params = [{transform_indices = @transform_0, window_bounds = array<i64: 1, 3, 22, 22>}, {transform_indices = @transform_1, window_bounds = array<i64: 1, 4, 16, 16>}, {transform_indices = @transform_2, window_bounds = array<i64: 1>}, {transform_indices = @transform_3, window_bounds = array<i64: 1, 4, 16, 16>}]} {
    %c0 = arith.constant 0 : index
    %c0_0 = arith.constant 0 : index
    %c0_1 = arith.constant 0 : index
    %c0_2 = arith.constant 0 : index
    %0 = vector.load %arg1[%c0, %c0_0, %c0_1, %c0_2] : memref<1x3x22x22xf32, #tpu.memory_space<vmem>>, vector<1x3x22x22xf32>
    %1 = vector.shape_cast %0 : vector<1x3x22x22xf32> to vector<3x22x22xf32>
    %2 = vector.extract_strided_slice %1 {offsets = [0, 2, 2], sizes = [3, 16, 16], strides = [1, 1, 1]} : vector<3x22x22xf32> to vector<3x16x16xf32>
    %3 = vector.extract_strided_slice %1 {offsets = [0, 2, 3], sizes = [3, 16, 16], strides = [1, 1, 1]} : vector<3x22x22xf32> to vector<3x16x16xf32>
    %4 = arith.addf %2, %3 : vector<3x16x16xf32>
    %5 = vector.extract_strided_slice %1 {offsets = [0, 2, 4], sizes = [3, 16, 16], strides = [1, 1, 1]} : vector<3x22x22xf32> to vector<3x16x16xf32>
    %6 = arith.addf %4, %5 : vector<3x16x16xf32>
    %7 = vector.extract_strided_slice %1 {offsets = [0, 3, 2], sizes = [3, 16, 16], strides = [1, 1, 1]} : vector<3x22x22xf32> to vector<3x16x16xf32>
    %8 = arith.addf %6, %7 : vector<3x16x16xf32>
    %9 = vector.extract_strided_slice %1 {offsets = [0, 3, 4], sizes = [3, 16, 16], strides = [1, 1, 1]} : vector<3x22x22xf32> to vector<3x16x16xf32>
    %10 = arith.addf %8, %9 : vector<3x16x16xf32>
    %11 = vector.extract_strided_slice %1 {offsets = [0, 4, 2], sizes = [3, 16, 16], strides = [1, 1, 1]} : vector<3x22x22xf32> to vector<3x16x16xf32>
    %12 = arith.addf %10, %11 : vector<3x16x16xf32>
    %13 = vector.extract_strided_slice %1 {offsets = [0, 4, 3], sizes = [3, 16, 16], strides = [1, 1, 1]} : vector<3x22x22xf32> to vector<3x16x16xf32>
    %14 = arith.addf %12, %13 : vector<3x16x16xf32>
    %15 = vector.extract_strided_slice %1 {offsets = [0, 4, 4], sizes = [3, 16, 16], strides = [1, 1, 1]} : vector<3x22x22xf32> to vector<3x16x16xf32>
    %16 = arith.addf %14, %15 : vector<3x16x16xf32>
    %17 = vector.extract_strided_slice %1 {offsets = [0, 1, 1], sizes = [3, 16, 16], strides = [1, 1, 1]} : vector<3x22x22xf32> to vector<3x16x16xf32>
    %18 = arith.addf %16, %17 : vector<3x16x16xf32>
    %19 = vector.extract_strided_slice %1 {offsets = [0, 1, 3], sizes = [3, 16, 16], strides = [1, 1, 1]} : vector<3x22x22xf32> to vector<3x16x16xf32>
    %20 = arith.addf %18, %19 : vector<3x16x16xf32>
    %21 = vector.extract_strided_slice %1 {offsets = [0, 1, 5], sizes = [3, 16, 16], strides = [1, 1, 1]} : vector<3x22x22xf32> to vector<3x16x16xf32>
    %22 = arith.addf %20, %21 : vector<3x16x16xf32>
    %23 = vector.extract_strided_slice %1 {offsets = [0, 3, 1], sizes = [3, 16, 16], strides = [1, 1, 1]} : vector<3x22x22xf32> to vector<3x16x16xf32>
    %24 = arith.addf %22, %23 : vector<3x16x16xf32>
    %25 = vector.extract_strided_slice %1 {offsets = [0, 3, 5], sizes = [3, 16, 16], strides = [1, 1, 1]} : vector<3x22x22xf32> to vector<3x16x16xf32>
    %26 = arith.addf %24, %25 : vector<3x16x16xf32>
    %27 = vector.extract_strided_slice %1 {offsets = [0, 5, 1], sizes = [3, 16, 16], strides = [1, 1, 1]} : vector<3x22x22xf32> to vector<3x16x16xf32>
    %28 = arith.addf %26, %27 : vector<3x16x16xf32>
    %29 = vector.extract_strided_slice %1 {offsets = [0, 5, 3], sizes = [3, 16, 16], strides = [1, 1, 1]} : vector<3x22x22xf32> to vector<3x16x16xf32>
    %30 = arith.addf %28, %29 : vector<3x16x16xf32>
    %31 = vector.extract_strided_slice %1 {offsets = [0, 5, 5], sizes = [3, 16, 16], strides = [1, 1, 1]} : vector<3x22x22xf32> to vector<3x16x16xf32>
    %32 = arith.addf %30, %31 : vector<3x16x16xf32>
    %cst = arith.constant 6.250000e-02 : f32
    %33 = vector.broadcast %cst : f32 to vector<3x16x16xf32>
    %34 = arith.mulf %32, %33 : vector<3x16x16xf32>
    %35 = tpu.iota {dimensions = array<i32: 1>} : vector<1x16x16xi32>
    %36 = tpu.iota {dimensions = array<i32: 2>} : vector<1x16x16xi32>
    %c15_i32 = arith.constant 15 : i32
    %37 = vector.broadcast %c15_i32 : i32 to vector<1x16x16xi32>
    %38 = arith.cmpi slt, %35, %37 : vector<1x16x16xi32>
    %c15_i32_3 = arith.constant 15 : i32
    %39 = vector.broadcast %c15_i32_3 : i32 to vector<1x16x16xi32>
    %40 = arith.cmpi slt, %36, %39 : vector<1x16x16xi32>
    %cst_4 = arith.constant 0.000000e+00 : f32
    %41 = vector.broadcast %cst_4 : f32 to vector<3x16x16xf32>
    %42 = vector.extract_strided_slice %1 {offsets = [0, 2, 2], sizes = [3, 16, 16], strides = [1, 1, 1]} : vector<3x22x22xf32> to vector<3x16x16xf32>
    %43 = arith.subf %42, %34 : vector<3x16x16xf32>
    %44 = arith.mulf %43, %43 : vector<3x16x16xf32>
    %45 = arith.addf %41, %44 : vector<3x16x16xf32>
    %46 = vector.extract_strided_slice %1 {offsets = [0, 3, 2], sizes = [3, 16, 16], strides = [1, 1, 1]} : vector<3x22x22xf32> to vector<3x16x16xf32>
    %47 = arith.subf %42, %46 : vector<3x16x16xf32>
    %cst_5 = arith.constant 0.000000e+00 : f32
    %48 = vector.shape_cast %38 : vector<1x16x16xi1> to vector<1x16x16xi1>
    %49 = vector.broadcast %48 : vector<1x16x16xi1> to vector<3x16x16xi1>
    %50 = vector.broadcast %cst_5 : f32 to vector<3x16x16xf32>
    %51 = arith.select %49, %47, %50 : vector<3x16x16xi1>, vector<3x16x16xf32>
    %52 = vector.extract_strided_slice %1 {offsets = [0, 2, 3], sizes = [3, 16, 16], strides = [1, 1, 1]} : vector<3x22x22xf32> to vector<3x16x16xf32>
    %53 = arith.subf %42, %52 : vector<3x16x16xf32>
    %cst_6 = arith.constant 0.000000e+00 : f32
    %54 = vector.shape_cast %40 : vector<1x16x16xi1> to vector<1x16x16xi1>
    %55 = vector.broadcast %54 : vector<1x16x16xi1> to vector<3x16x16xi1>
    %56 = vector.broadcast %cst_6 : f32 to vector<3x16x16xf32>
    %57 = arith.select %55, %53, %56 : vector<3x16x16xi1>, vector<3x16x16xf32>
    %58 = arith.mulf %51, %51 : vector<3x16x16xf32>
    %59 = arith.mulf %57, %57 : vector<3x16x16xf32>
    %60 = arith.addf %58, %59 : vector<3x16x16xf32>
    %cst_7 = arith.constant dense<0.000000e+00> : vector<16x16xf32>
    %61 = vector.multi_reduction <add>, %60, %cst_7 [0] : vector<3x16x16xf32> to vector<16x16xf32>
    %cst_8 = arith.constant 0.333333343 : f32
    %62 = vector.broadcast %cst_8 : f32 to vector<16x16xf32>
    %63 = arith.mulf %61, %62 : vector<16x16xf32>
    %c0_9 = arith.constant 0 : index
    %c0_10 = arith.constant 0 : index
    %c0_11 = arith.constant 0 : index
    %64 = vector.load %arg6[%c0_9, %c0_10, %c0_11] : memref<16x16x16xf32, #tpu.memory_space<vmem>>, vector<1x16x16xf32>
    %65 = vector.shape_cast %64 : vector<1x16x16xf32> to vector<16x16xf32>
    %66 = vector.shape_cast %63 : vector<16x16xf32> to vector<1x16x16xf32>
    tpu.vector_store %arg6[%c0_9, %c0_10, %c0_11], %66 {strides = array<i32>} : memref<16x16x16xf32, #tpu.memory_space<vmem>>, vector<1x16x16xf32>,
    %67 = vector.extract_strided_slice %1 {offsets = [0, 2, 3], sizes = [3, 16, 16], strides = [1, 1, 1]} : vector<3x22x22xf32> to vector<3x16x16xf32>
    %68 = arith.subf %67, %34 : vector<3x16x16xf32>
    %69 = arith.mulf %68, %68 : vector<3x16x16xf32>
    %70 = arith.addf %45, %69 : vector<3x16x16xf32>
    %71 = vector.extract_strided_slice %1 {offsets = [0, 3, 3], sizes = [3, 16, 16], strides = [1, 1, 1]} : vector<3x22x22xf32> to vector<3x16x16xf32>
    %72 = arith.subf %67, %71 : vector<3x16x16xf32>
    %cst_12 = arith.constant 0.000000e+00 : f32
    %73 = vector.shape_cast %38 : vector<1x16x16xi1> to vector<1x16x16xi1>
    %74 = vector.broadcast %73 : vector<1x16x16xi1> to vector<3x16x16xi1>
    %75 = vector.broadcast %cst_12 : f32 to vector<3x16x16xf32>
    %76 = arith.select %74, %72, %75 : vector<3x16x16xi1>, vector<3x16x16xf32>
    %77 = vector.extract_strided_slice %1 {offsets = [0, 2, 4], sizes = [3, 16, 16], strides = [1, 1, 1]} : vector<3x22x22xf32> to vector<3x16x16xf32>
    %78 = arith.subf %67, %77 : vector<3x16x16xf32>
    %cst_13 = arith.constant 0.000000e+00 : f32
    %79 = vector.shape_cast %40 : vector<1x16x16xi1> to vector<1x16x16xi1>
    %80 = vector.broadcast %79 : vector<1x16x16xi1> to vector<3x16x16xi1>
    %81 = vector.broadcast %cst_13 : f32 to vector<3x16x16xf32>
    %82 = arith.select %80, %78, %81 : vector<3x16x16xi1>, vector<3x16x16xf32>
    %83 = arith.mulf %76, %76 : vector<3x16x16xf32>
    %84 = arith.mulf %82, %82 : vector<3x16x16xf32>
    %85 = arith.addf %83, %84 : vector<3x16x16xf32>
    %cst_14 = arith.constant dense<0.000000e+00> : vector<16x16xf32>
    %86 = vector.multi_reduction <add>, %85, %cst_14 [0] : vector<3x16x16xf32> to vector<16x16xf32>
    %cst_15 = arith.constant 0.333333343 : f32
    %87 = vector.broadcast %cst_15 : f32 to vector<16x16xf32>
    %88 = arith.mulf %86, %87 : vector<16x16xf32>
    %c1 = arith.constant 1 : index
    %c0_16 = arith.constant 0 : index
    %c0_17 = arith.constant 0 : index
    %89 = vector.load %arg6[%c1, %c0_16, %c0_17] : memref<16x16x16xf32, #tpu.memory_space<vmem>>, vector<1x16x16xf32>
    %90 = vector.shape_cast %89 : vector<1x16x16xf32> to vector<16x16xf32>
    %91 = vector.shape_cast %88 : vector<16x16xf32> to vector<1x16x16xf32>
    tpu.vector_store %arg6[%c1, %c0_16, %c0_17], %91 {strides = array<i32>} : memref<16x16x16xf32, #tpu.memory_space<vmem>>, vector<1x16x16xf32>,
    %92 = vector.extract_strided_slice %1 {offsets = [0, 2, 4], sizes = [3, 16, 16], strides = [1, 1, 1]} : vector<3x22x22xf32> to vector<3x16x16xf32>
    %93 = arith.subf %92, %34 : vector<3x16x16xf32>
    %94 = arith.mulf %93, %93 : vector<3x16x16xf32>
    %95 = arith.addf %70, %94 : vector<3x16x16xf32>
    %96 = vector.extract_strided_slice %1 {offsets = [0, 3, 4], sizes = [3, 16, 16], strides = [1, 1, 1]} : vector<3x22x22xf32> to vector<3x16x16xf32>
    %97 = arith.subf %92, %96 : vector<3x16x16xf32>
    %cst_18 = arith.constant 0.000000e+00 : f32
    %98 = vector.shape_cast %38 : vector<1x16x16xi1> to vector<1x16x16xi1>
    %99 = vector.broadcast %98 : vector<1x16x16xi1> to vector<3x16x16xi1>
    %100 = vector.broadcast %cst_18 : f32 to vector<3x16x16xf32>
    %101 = arith.select %99, %97, %100 : vector<3x16x16xi1>, vector<3x16x16xf32>
    %102 = vector.extract_strided_slice %1 {offsets = [0, 2, 5], sizes = [3, 16, 16], strides = [1, 1, 1]} : vector<3x22x22xf32> to vector<3x16x16xf32>
    %103 = arith.subf %92, %102 : vector<3x16x16xf32>
    %cst_19 = arith.constant 0.000000e+00 : f32
    %104 = vector.shape_cast %40 : vector<1x16x16xi1> to vector<1x16x16xi1>
    %105 = vector.broadcast %104 : vector<1x16x16xi1> to vector<3x16x16xi1>
    %106 = vector.broadcast %cst_19 : f32 to vector<3x16x16xf32>
    %107 = arith.select %105, %103, %106 : vector<3x16x16xi1>, vector<3x16x16xf32>
    %108 = arith.mulf %101, %101 : vector<3x16x16xf32>
    %109 = arith.mulf %107, %107 : vector<3x16x16xf32>
    %110 = arith.addf %108, %109 : vector<3x16x16xf32>
    %cst_20 = arith.constant dense<0.000000e+00> : vector<16x16xf32>
    %111 = vector.multi_reduction <add>, %110, %cst_20 [0] : vector<3x16x16xf32> to vector<16x16xf32>
    %cst_21 = arith.constant 0.333333343 : f32
    %112 = vector.broadcast %cst_21 : f32 to vector<16x16xf32>
    %113 = arith.mulf %111, %112 : vector<16x16xf32>
    %c2 = arith.constant 2 : index
    %c0_22 = arith.constant 0 : index
    %c0_23 = arith.constant 0 : index
    %114 = vector.load %arg6[%c2, %c0_22, %c0_23] : memref<16x16x16xf32, #tpu.memory_space<vmem>>, vector<1x16x16xf32>
    %115 = vector.shape_cast %114 : vector<1x16x16xf32> to vector<16x16xf32>
    %116 = vector.shape_cast %113 : vector<16x16xf32> to vector<1x16x16xf32>
    tpu.vector_store %arg6[%c2, %c0_22, %c0_23], %116 {strides = array<i32>} : memref<16x16x16xf32, #tpu.memory_space<vmem>>, vector<1x16x16xf32>,
    %117 = vector.extract_strided_slice %1 {offsets = [0, 3, 2], sizes = [3, 16, 16], strides = [1, 1, 1]} : vector<3x22x22xf32> to vector<3x16x16xf32>
    %118 = arith.subf %117, %34 : vector<3x16x16xf32>
    %119 = arith.mulf %118, %118 : vector<3x16x16xf32>
    %120 = arith.addf %95, %119 : vector<3x16x16xf32>
    %121 = vector.extract_strided_slice %1 {offsets = [0, 4, 2], sizes = [3, 16, 16], strides = [1, 1, 1]} : vector<3x22x22xf32> to vector<3x16x16xf32>
    %122 = arith.subf %117, %121 : vector<3x16x16xf32>
    %cst_24 = arith.constant 0.000000e+00 : f32
    %123 = vector.shape_cast %38 : vector<1x16x16xi1> to vector<1x16x16xi1>
    %124 = vector.broadcast %123 : vector<1x16x16xi1> to vector<3x16x16xi1>
    %125 = vector.broadcast %cst_24 : f32 to vector<3x16x16xf32>
    %126 = arith.select %124, %122, %125 : vector<3x16x16xi1>, vector<3x16x16xf32>
    %127 = vector.extract_strided_slice %1 {offsets = [0, 3, 3], sizes = [3, 16, 16], strides = [1, 1, 1]} : vector<3x22x22xf32> to vector<3x16x16xf32>
    %128 = arith.subf %117, %127 : vector<3x16x16xf32>
    %cst_25 = arith.constant 0.000000e+00 : f32
    %129 = vector.shape_cast %40 : vector<1x16x16xi1> to vector<1x16x16xi1>
    %130 = vector.broadcast %129 : vector<1x16x16xi1> to vector<3x16x16xi1>
    %131 = vector.broadcast %cst_25 : f32 to vector<3x16x16xf32>
    %132 = arith.select %130, %128, %131 : vector<3x16x16xi1>, vector<3x16x16xf32>
    %133 = arith.mulf %126, %126 : vector<3x16x16xf32>
    %134 = arith.mulf %132, %132 : vector<3x16x16xf32>
    %135 = arith.addf %133, %134 : vector<3x16x16xf32>
    %cst_26 = arith.constant dense<0.000000e+00> : vector<16x16xf32>
    %136 = vector.multi_reduction <add>, %135, %cst_26 [0] : vector<3x16x16xf32> to vector<16x16xf32>
    %cst_27 = arith.constant 0.333333343 : f32
    %137 = vector.broadcast %cst_27 : f32 to vector<16x16xf32>
    %138 = arith.mulf %136, %137 : vector<16x16xf32>
    %c3 = arith.constant 3 : index
    %c0_28 = arith.constant 0 : index
    %c0_29 = arith.constant 0 : index
    %139 = vector.load %arg6[%c3, %c0_28, %c0_29] : memref<16x16x16xf32, #tpu.memory_space<vmem>>, vector<1x16x16xf32>
    %140 = vector.shape_cast %139 : vector<1x16x16xf32> to vector<16x16xf32>
    %141 = vector.shape_cast %138 : vector<16x16xf32> to vector<1x16x16xf32>
    tpu.vector_store %arg6[%c3, %c0_28, %c0_29], %141 {strides = array<i32>} : memref<16x16x16xf32, #tpu.memory_space<vmem>>, vector<1x16x16xf32>,
    %142 = vector.extract_strided_slice %1 {offsets = [0, 3, 4], sizes = [3, 16, 16], strides = [1, 1, 1]} : vector<3x22x22xf32> to vector<3x16x16xf32>
    %143 = arith.subf %142, %34 : vector<3x16x16xf32>
    %144 = arith.mulf %143, %143 : vector<3x16x16xf32>
    %145 = arith.addf %120, %144 : vector<3x16x16xf32>
    %146 = vector.extract_strided_slice %1 {offsets = [0, 4, 4], sizes = [3, 16, 16], strides = [1, 1, 1]} : vector<3x22x22xf32> to vector<3x16x16xf32>
    %147 = arith.subf %142, %146 : vector<3x16x16xf32>
    %cst_30 = arith.constant 0.000000e+00 : f32
    %148 = vector.shape_cast %38 : vector<1x16x16xi1> to vector<1x16x16xi1>
    %149 = vector.broadcast %148 : vector<1x16x16xi1> to vector<3x16x16xi1>
    %150 = vector.broadcast %cst_30 : f32 to vector<3x16x16xf32>
    %151 = arith.select %149, %147, %150 : vector<3x16x16xi1>, vector<3x16x16xf32>
    %152 = vector.extract_strided_slice %1 {offsets = [0, 3, 5], sizes = [3, 16, 16], strides = [1, 1, 1]} : vector<3x22x22xf32> to vector<3x16x16xf32>
    %153 = arith.subf %142, %152 : vector<3x16x16xf32>
    %cst_31 = arith.constant 0.000000e+00 : f32
    %154 = vector.shape_cast %40 : vector<1x16x16xi1> to vector<1x16x16xi1>
    %155 = vector.broadcast %154 : vector<1x16x16xi1> to vector<3x16x16xi1>
    %156 = vector.broadcast %cst_31 : f32 to vector<3x16x16xf32>
    %157 = arith.select %155, %153, %156 : vector<3x16x16xi1>, vector<3x16x16xf32>
    %158 = arith.mulf %151, %151 : vector<3x16x16xf32>
    %159 = arith.mulf %157, %157 : vector<3x16x16xf32>
    %160 = arith.addf %158, %159 : vector<3x16x16xf32>
    %cst_32 = arith.constant dense<0.000000e+00> : vector<16x16xf32>
    %161 = vector.multi_reduction <add>, %160, %cst_32 [0] : vector<3x16x16xf32> to vector<16x16xf32>
    %cst_33 = arith.constant 0.333333343 : f32
    %162 = vector.broadcast %cst_33 : f32 to vector<16x16xf32>
    %163 = arith.mulf %161, %162 : vector<16x16xf32>
    %c4 = arith.constant 4 : index
    %c0_34 = arith.constant 0 : index
    %c0_35 = arith.constant 0 : index
    %164 = vector.load %arg6[%c4, %c0_34, %c0_35] : memref<16x16x16xf32, #tpu.memory_space<vmem>>, vector<1x16x16xf32>
    %165 = vector.shape_cast %164 : vector<1x16x16xf32> to vector<16x16xf32>
    %166 = vector.shape_cast %163 : vector<16x16xf32> to vector<1x16x16xf32>
    tpu.vector_store %arg6[%c4, %c0_34, %c0_35], %166 {strides = array<i32>} : memref<16x16x16xf32, #tpu.memory_space<vmem>>, vector<1x16x16xf32>,
    %167 = vector.extract_strided_slice %1 {offsets = [0, 4, 2], sizes = [3, 16, 16], strides = [1, 1, 1]} : vector<3x22x22xf32> to vector<3x16x16xf32>
    %168 = arith.subf %167, %34 : vector<3x16x16xf32>
    %169 = arith.mulf %168, %168 : vector<3x16x16xf32>
    %170 = arith.addf %145, %169 : vector<3x16x16xf32>
    %171 = vector.extract_strided_slice %1 {offsets = [0, 5, 2], sizes = [3, 16, 16], strides = [1, 1, 1]} : vector<3x22x22xf32> to vector<3x16x16xf32>
    %172 = arith.subf %167, %171 : vector<3x16x16xf32>
    %cst_36 = arith.constant 0.000000e+00 : f32
    %173 = vector.shape_cast %38 : vector<1x16x16xi1> to vector<1x16x16xi1>
    %174 = vector.broadcast %173 : vector<1x16x16xi1> to vector<3x16x16xi1>
    %175 = vector.broadcast %cst_36 : f32 to vector<3x16x16xf32>
    %176 = arith.select %174, %172, %175 : vector<3x16x16xi1>, vector<3x16x16xf32>
    %177 = vector.extract_strided_slice %1 {offsets = [0, 4, 3], sizes = [3, 16, 16], strides = [1, 1, 1]} : vector<3x22x22xf32> to vector<3x16x16xf32>
    %178 = arith.subf %167, %177 : vector<3x16x16xf32>
    %cst_37 = arith.constant 0.000000e+00 : f32
    %179 = vector.shape_cast %40 : vector<1x16x16xi1> to vector<1x16x16xi1>
    %180 = vector.broadcast %179 : vector<1x16x16xi1> to vector<3x16x16xi1>
    %181 = vector.broadcast %cst_37 : f32 to vector<3x16x16xf32>
    %182 = arith.select %180, %178, %181 : vector<3x16x16xi1>, vector<3x16x16xf32>
    %183 = arith.mulf %176, %176 : vector<3x16x16xf32>
    %184 = arith.mulf %182, %182 : vector<3x16x16xf32>
    %185 = arith.addf %183, %184 : vector<3x16x16xf32>
    %cst_38 = arith.constant dense<0.000000e+00> : vector<16x16xf32>
    %186 = vector.multi_reduction <add>, %185, %cst_38 [0] : vector<3x16x16xf32> to vector<16x16xf32>
    %cst_39 = arith.constant 0.333333343 : f32
    %187 = vector.broadcast %cst_39 : f32 to vector<16x16xf32>
    %188 = arith.mulf %186, %187 : vector<16x16xf32>
    %c5 = arith.constant 5 : index
    %c0_40 = arith.constant 0 : index
    %c0_41 = arith.constant 0 : index
    %189 = vector.load %arg6[%c5, %c0_40, %c0_41] : memref<16x16x16xf32, #tpu.memory_space<vmem>>, vector<1x16x16xf32>
    %190 = vector.shape_cast %189 : vector<1x16x16xf32> to vector<16x16xf32>
    %191 = vector.shape_cast %188 : vector<16x16xf32> to vector<1x16x16xf32>
    tpu.vector_store %arg6[%c5, %c0_40, %c0_41], %191 {strides = array<i32>} : memref<16x16x16xf32, #tpu.memory_space<vmem>>, vector<1x16x16xf32>,
    %192 = vector.extract_strided_slice %1 {offsets = [0, 4, 3], sizes = [3, 16, 16], strides = [1, 1, 1]} : vector<3x22x22xf32> to vector<3x16x16xf32>
    %193 = arith.subf %192, %34 : vector<3x16x16xf32>
    %194 = arith.mulf %193, %193 : vector<3x16x16xf32>
    %195 = arith.addf %170, %194 : vector<3x16x16xf32>
    %196 = vector.extract_strided_slice %1 {offsets = [0, 5, 3], sizes = [3, 16, 16], strides = [1, 1, 1]} : vector<3x22x22xf32> to vector<3x16x16xf32>
    %197 = arith.subf %192, %196 : vector<3x16x16xf32>
    %cst_42 = arith.constant 0.000000e+00 : f32
    %198 = vector.shape_cast %38 : vector<1x16x16xi1> to vector<1x16x16xi1>
    %199 = vector.broadcast %198 : vector<1x16x16xi1> to vector<3x16x16xi1>
    %200 = vector.broadcast %cst_42 : f32 to vector<3x16x16xf32>
    %201 = arith.select %199, %197, %200 : vector<3x16x16xi1>, vector<3x16x16xf32>
    %202 = vector.extract_strided_slice %1 {offsets = [0, 4, 4], sizes = [3, 16, 16], strides = [1, 1, 1]} : vector<3x22x22xf32> to vector<3x16x16xf32>
    %203 = arith.subf %192, %202 : vector<3x16x16xf32>
    %cst_43 = arith.constant 0.000000e+00 : f32
    %204 = vector.shape_cast %40 : vector<1x16x16xi1> to vector<1x16x16xi1>
    %205 = vector.broadcast %204 : vector<1x16x16xi1> to vector<3x16x16xi1>
    %206 = vector.broadcast %cst_43 : f32 to vector<3x16x16xf32>
    %207 = arith.select %205, %203, %206 : vector<3x16x16xi1>, vector<3x16x16xf32>
    %208 = arith.mulf %201, %201 : vector<3x16x16xf32>
    %209 = arith.mulf %207, %207 : vector<3x16x16xf32>
    %210 = arith.addf %208, %209 : vector<3x16x16xf32>
    %cst_44 = arith.constant dense<0.000000e+00> : vector<16x16xf32>
    %211 = vector.multi_reduction <add>, %210, %cst_44 [0] : vector<3x16x16xf32> to vector<16x16xf32>
    %cst_45 = arith.constant 0.333333343 : f32
    %212 = vector.broadcast %cst_45 : f32 to vector<16x16xf32>
    %213 = arith.mulf %211, %212 : vector<16x16xf32>
    %c6 = arith.constant 6 : index
    %c0_46 = arith.constant 0 : index
    %c0_47 = arith.constant 0 : index
    %214 = vector.load %arg6[%c6, %c0_46, %c0_47] : memref<16x16x16xf32, #tpu.memory_space<vmem>>, vector<1x16x16xf32>
    %215 = vector.shape_cast %214 : vector<1x16x16xf32> to vector<16x16xf32>
    %216 = vector.shape_cast %213 : vector<16x16xf32> to vector<1x16x16xf32>
    tpu.vector_store %arg6[%c6, %c0_46, %c0_47], %216 {strides = array<i32>} : memref<16x16x16xf32, #tpu.memory_space<vmem>>, vector<1x16x16xf32>,
    %217 = vector.extract_strided_slice %1 {offsets = [0, 4, 4], sizes = [3, 16, 16], strides = [1, 1, 1]} : vector<3x22x22xf32> to vector<3x16x16xf32>
    %218 = arith.subf %217, %34 : vector<3x16x16xf32>
    %219 = arith.mulf %218, %218 : vector<3x16x16xf32>
    %220 = arith.addf %195, %219 : vector<3x16x16xf32>
    %221 = vector.extract_strided_slice %1 {offsets = [0, 5, 4], sizes = [3, 16, 16], strides = [1, 1, 1]} : vector<3x22x22xf32> to vector<3x16x16xf32>
    %222 = arith.subf %217, %221 : vector<3x16x16xf32>
    %cst_48 = arith.constant 0.000000e+00 : f32
    %223 = vector.shape_cast %38 : vector<1x16x16xi1> to vector<1x16x16xi1>
    %224 = vector.broadcast %223 : vector<1x16x16xi1> to vector<3x16x16xi1>
    %225 = vector.broadcast %cst_48 : f32 to vector<3x16x16xf32>
    %226 = arith.select %224, %222, %225 : vector<3x16x16xi1>, vector<3x16x16xf32>
    %227 = vector.extract_strided_slice %1 {offsets = [0, 4, 5], sizes = [3, 16, 16], strides = [1, 1, 1]} : vector<3x22x22xf32> to vector<3x16x16xf32>
    %228 = arith.subf %217, %227 : vector<3x16x16xf32>
    %cst_49 = arith.constant 0.000000e+00 : f32
    %229 = vector.shape_cast %40 : vector<1x16x16xi1> to vector<1x16x16xi1>
    %230 = vector.broadcast %229 : vector<1x16x16xi1> to vector<3x16x16xi1>
    %231 = vector.broadcast %cst_49 : f32 to vector<3x16x16xf32>
    %232 = arith.select %230, %228, %231 : vector<3x16x16xi1>, vector<3x16x16xf32>
    %233 = arith.mulf %226, %226 : vector<3x16x16xf32>
    %234 = arith.mulf %232, %232 : vector<3x16x16xf32>
    %235 = arith.addf %233, %234 : vector<3x16x16xf32>
    %cst_50 = arith.constant dense<0.000000e+00> : vector<16x16xf32>
    %236 = vector.multi_reduction <add>, %235, %cst_50 [0] : vector<3x16x16xf32> to vector<16x16xf32>
    %cst_51 = arith.constant 0.333333343 : f32
    %237 = vector.broadcast %cst_51 : f32 to vector<16x16xf32>
    %238 = arith.mulf %236, %237 : vector<16x16xf32>
    %c7 = arith.constant 7 : index
    %c0_52 = arith.constant 0 : index
    %c0_53 = arith.constant 0 : index
    %239 = vector.load %arg6[%c7, %c0_52, %c0_53] : memref<16x16x16xf32, #tpu.memory_space<vmem>>, vector<1x16x16xf32>
    %240 = vector.shape_cast %239 : vector<1x16x16xf32> to vector<16x16xf32>
    %241 = vector.shape_cast %238 : vector<16x16xf32> to vector<1x16x16xf32>
    tpu.vector_store %arg6[%c7, %c0_52, %c0_53], %241 {strides = array<i32>} : memref<16x16x16xf32, #tpu.memory_space<vmem>>, vector<1x16x16xf32>,
    %242 = vector.extract_strided_slice %1 {offsets = [0, 1, 1], sizes = [3, 16, 16], strides = [1, 1, 1]} : vector<3x22x22xf32> to vector<3x16x16xf32>
    %243 = arith.subf %242, %34 : vector<3x16x16xf32>
    %244 = arith.mulf %243, %243 : vector<3x16x16xf32>
    %245 = arith.addf %220, %244 : vector<3x16x16xf32>
    %246 = vector.extract_strided_slice %1 {offsets = [0, 2, 1], sizes = [3, 16, 16], strides = [1, 1, 1]} : vector<3x22x22xf32> to vector<3x16x16xf32>
    %247 = arith.subf %242, %246 : vector<3x16x16xf32>
    %cst_54 = arith.constant 0.000000e+00 : f32
    %248 = vector.shape_cast %38 : vector<1x16x16xi1> to vector<1x16x16xi1>
    %249 = vector.broadcast %248 : vector<1x16x16xi1> to vector<3x16x16xi1>
    %250 = vector.broadcast %cst_54 : f32 to vector<3x16x16xf32>
    %251 = arith.select %249, %247, %250 : vector<3x16x16xi1>, vector<3x16x16xf32>
    %252 = vector.extract_strided_slice %1 {offsets = [0, 1, 2], sizes = [3, 16, 16], strides = [1, 1, 1]} : vector<3x22x22xf32> to vector<3x16x16xf32>
    %253 = arith.subf %242, %252 : vector<3x16x16xf32>
    %cst_55 = arith.constant 0.000000e+00 : f32
    %254 = vector.shape_cast %40 : vector<1x16x16xi1> to vector<1x16x16xi1>
    %255 = vector.broadcast %254 : vector<1x16x16xi1> to vector<3x16x16xi1>
    %256 = vector.broadcast %cst_55 : f32 to vector<3x16x16xf32>
    %257 = arith.select %255, %253, %256 : vector<3x16x16xi1>, vector<3x16x16xf32>
    %258 = arith.mulf %251, %251 : vector<3x16x16xf32>
    %259 = arith.mulf %257, %257 : vector<3x16x16xf32>
    %260 = arith.addf %258, %259 : vector<3x16x16xf32>
    %cst_56 = arith.constant dense<0.000000e+00> : vector<16x16xf32>
    %261 = vector.multi_reduction <add>, %260, %cst_56 [0] : vector<3x16x16xf32> to vector<16x16xf32>
    %cst_57 = arith.constant 0.333333343 : f32
    %262 = vector.broadcast %cst_57 : f32 to vector<16x16xf32>
    %263 = arith.mulf %261, %262 : vector<16x16xf32>
    %c8 = arith.constant 8 : index
    %c0_58 = arith.constant 0 : index
    %c0_59 = arith.constant 0 : index
    %264 = vector.load %arg6[%c8, %c0_58, %c0_59] : memref<16x16x16xf32, #tpu.memory_space<vmem>>, vector<1x16x16xf32>
    %265 = vector.shape_cast %264 : vector<1x16x16xf32> to vector<16x16xf32>
    %266 = vector.shape_cast %263 : vector<16x16xf32> to vector<1x16x16xf32>
    tpu.vector_store %arg6[%c8, %c0_58, %c0_59], %266 {strides = array<i32>} : memref<16x16x16xf32, #tpu.memory_space<vmem>>, vector<1x16x16xf32>,
    %267 = vector.extract_strided_slice %1 {offsets = [0, 1, 3], sizes = [3, 16, 16], strides = [1, 1, 1]} : vector<3x22x22xf32> to vector<3x16x16xf32>
    %268 = arith.subf %267, %34 : vector<3x16x16xf32>
    %269 = arith.mulf %268, %268 : vector<3x16x16xf32>
    %270 = arith.addf %245, %269 : vector<3x16x16xf32>
    %271 = vector.extract_strided_slice %1 {offsets = [0, 2, 3], sizes = [3, 16, 16], strides = [1, 1, 1]} : vector<3x22x22xf32> to vector<3x16x16xf32>
    %272 = arith.subf %267, %271 : vector<3x16x16xf32>
    %cst_60 = arith.constant 0.000000e+00 : f32
    %273 = vector.shape_cast %38 : vector<1x16x16xi1> to vector<1x16x16xi1>
    %274 = vector.broadcast %273 : vector<1x16x16xi1> to vector<3x16x16xi1>
    %275 = vector.broadcast %cst_60 : f32 to vector<3x16x16xf32>
    %276 = arith.select %274, %272, %275 : vector<3x16x16xi1>, vector<3x16x16xf32>
    %277 = vector.extract_strided_slice %1 {offsets = [0, 1, 4], sizes = [3, 16, 16], strides = [1, 1, 1]} : vector<3x22x22xf32> to vector<3x16x16xf32>
    %278 = arith.subf %267, %277 : vector<3x16x16xf32>
    %cst_61 = arith.constant 0.000000e+00 : f32
    %279 = vector.shape_cast %40 : vector<1x16x16xi1> to vector<1x16x16xi1>
    %280 = vector.broadcast %279 : vector<1x16x16xi1> to vector<3x16x16xi1>
    %281 = vector.broadcast %cst_61 : f32 to vector<3x16x16xf32>
    %282 = arith.select %280, %278, %281 : vector<3x16x16xi1>, vector<3x16x16xf32>
    %283 = arith.mulf %276, %276 : vector<3x16x16xf32>
    %284 = arith.mulf %282, %282 : vector<3x16x16xf32>
    %285 = arith.addf %283, %284 : vector<3x16x16xf32>
    %cst_62 = arith.constant dense<0.000000e+00> : vector<16x16xf32>
    %286 = vector.multi_reduction <add>, %285, %cst_62 [0] : vector<3x16x16xf32> to vector<16x16xf32>
    %cst_63 = arith.constant 0.333333343 : f32
    %287 = vector.broadcast %cst_63 : f32 to vector<16x16xf32>
    %288 = arith.mulf %286, %287 : vector<16x16xf32>
    %c9 = arith.constant 9 : index
    %c0_64 = arith.constant 0 : index
    %c0_65 = arith.constant 0 : index
    %289 = vector.load %arg6[%c9, %c0_64, %c0_65] : memref<16x16x16xf32, #tpu.memory_space<vmem>>, vector<1x16x16xf32>
    %290 = vector.shape_cast %289 : vector<1x16x16xf32> to vector<16x16xf32>
    %291 = vector.shape_cast %288 : vector<16x16xf32> to vector<1x16x16xf32>
    tpu.vector_store %arg6[%c9, %c0_64, %c0_65], %291 {strides = array<i32>} : memref<16x16x16xf32, #tpu.memory_space<vmem>>, vector<1x16x16xf32>,
    %292 = vector.extract_strided_slice %1 {offsets = [0, 1, 5], sizes = [3, 16, 16], strides = [1, 1, 1]} : vector<3x22x22xf32> to vector<3x16x16xf32>
    %293 = arith.subf %292, %34 : vector<3x16x16xf32>
    %294 = arith.mulf %293, %293 : vector<3x16x16xf32>
    %295 = arith.addf %270, %294 : vector<3x16x16xf32>
    %296 = vector.extract_strided_slice %1 {offsets = [0, 2, 5], sizes = [3, 16, 16], strides = [1, 1, 1]} : vector<3x22x22xf32> to vector<3x16x16xf32>
    %297 = arith.subf %292, %296 : vector<3x16x16xf32>
    %cst_66 = arith.constant 0.000000e+00 : f32
    %298 = vector.shape_cast %38 : vector<1x16x16xi1> to vector<1x16x16xi1>
    %299 = vector.broadcast %298 : vector<1x16x16xi1> to vector<3x16x16xi1>
    %300 = vector.broadcast %cst_66 : f32 to vector<3x16x16xf32>
    %301 = arith.select %299, %297, %300 : vector<3x16x16xi1>, vector<3x16x16xf32>
    %302 = vector.extract_strided_slice %1 {offsets = [0, 1, 6], sizes = [3, 16, 16], strides = [1, 1, 1]} : vector<3x22x22xf32> to vector<3x16x16xf32>
    %303 = arith.subf %292, %302 : vector<3x16x16xf32>
    %cst_67 = arith.constant 0.000000e+00 : f32
    %304 = vector.shape_cast %40 : vector<1x16x16xi1> to vector<1x16x16xi1>
    %305 = vector.broadcast %304 : vector<1x16x16xi1> to vector<3x16x16xi1>
    %306 = vector.broadcast %cst_67 : f32 to vector<3x16x16xf32>
    %307 = arith.select %305, %303, %306 : vector<3x16x16xi1>, vector<3x16x16xf32>
    %308 = arith.mulf %301, %301 : vector<3x16x16xf32>
    %309 = arith.mulf %307, %307 : vector<3x16x16xf32>
    %310 = arith.addf %308, %309 : vector<3x16x16xf32>
    %cst_68 = arith.constant dense<0.000000e+00> : vector<16x16xf32>
    %311 = vector.multi_reduction <add>, %310, %cst_68 [0] : vector<3x16x16xf32> to vector<16x16xf32>
    %cst_69 = arith.constant 0.333333343 : f32
    %312 = vector.broadcast %cst_69 : f32 to vector<16x16xf32>
    %313 = arith.mulf %311, %312 : vector<16x16xf32>
    %c10 = arith.constant 10 : index
    %c0_70 = arith.constant 0 : index
    %c0_71 = arith.constant 0 : index
    %314 = vector.load %arg6[%c10, %c0_70, %c0_71] : memref<16x16x16xf32, #tpu.memory_space<vmem>>, vector<1x16x16xf32>
    %315 = vector.shape_cast %314 : vector<1x16x16xf32> to vector<16x16xf32>
    %316 = vector.shape_cast %313 : vector<16x16xf32> to vector<1x16x16xf32>
    tpu.vector_store %arg6[%c10, %c0_70, %c0_71], %316 {strides = array<i32>} : memref<16x16x16xf32, #tpu.memory_space<vmem>>, vector<1x16x16xf32>,
    %317 = vector.extract_strided_slice %1 {offsets = [0, 3, 1], sizes = [3, 16, 16], strides = [1, 1, 1]} : vector<3x22x22xf32> to vector<3x16x16xf32>
    %318 = arith.subf %317, %34 : vector<3x16x16xf32>
    %319 = arith.mulf %318, %318 : vector<3x16x16xf32>
    %320 = arith.addf %295, %319 : vector<3x16x16xf32>
    %321 = vector.extract_strided_slice %1 {offsets = [0, 4, 1], sizes = [3, 16, 16], strides = [1, 1, 1]} : vector<3x22x22xf32> to vector<3x16x16xf32>
    %322 = arith.subf %317, %321 : vector<3x16x16xf32>
    %cst_72 = arith.constant 0.000000e+00 : f32
    %323 = vector.shape_cast %38 : vector<1x16x16xi1> to vector<1x16x16xi1>
    %324 = vector.broadcast %323 : vector<1x16x16xi1> to vector<3x16x16xi1>
    %325 = vector.broadcast %cst_72 : f32 to vector<3x16x16xf32>
    %326 = arith.select %324, %322, %325 : vector<3x16x16xi1>, vector<3x16x16xf32>
    %327 = vector.extract_strided_slice %1 {offsets = [0, 3, 2], sizes = [3, 16, 16], strides = [1, 1, 1]} : vector<3x22x22xf32> to vector<3x16x16xf32>
    %328 = arith.subf %317, %327 : vector<3x16x16xf32>
    %cst_73 = arith.constant 0.000000e+00 : f32
    %329 = vector.shape_cast %40 : vector<1x16x16xi1> to vector<1x16x16xi1>
    %330 = vector.broadcast %329 : vector<1x16x16xi1> to vector<3x16x16xi1>
    %331 = vector.broadcast %cst_73 : f32 to vector<3x16x16xf32>
    %332 = arith.select %330, %328, %331 : vector<3x16x16xi1>, vector<3x16x16xf32>
    %333 = arith.mulf %326, %326 : vector<3x16x16xf32>
    %334 = arith.mulf %332, %332 : vector<3x16x16xf32>
    %335 = arith.addf %333, %334 : vector<3x16x16xf32>
    %cst_74 = arith.constant dense<0.000000e+00> : vector<16x16xf32>
    %336 = vector.multi_reduction <add>, %335, %cst_74 [0] : vector<3x16x16xf32> to vector<16x16xf32>
    %cst_75 = arith.constant 0.333333343 : f32
    %337 = vector.broadcast %cst_75 : f32 to vector<16x16xf32>
    %338 = arith.mulf %336, %337 : vector<16x16xf32>
    %c11 = arith.constant 11 : index
    %c0_76 = arith.constant 0 : index
    %c0_77 = arith.constant 0 : index
    %339 = vector.load %arg6[%c11, %c0_76, %c0_77] : memref<16x16x16xf32, #tpu.memory_space<vmem>>, vector<1x16x16xf32>
    %340 = vector.shape_cast %339 : vector<1x16x16xf32> to vector<16x16xf32>
    %341 = vector.shape_cast %338 : vector<16x16xf32> to vector<1x16x16xf32>
    tpu.vector_store %arg6[%c11, %c0_76, %c0_77], %341 {strides = array<i32>} : memref<16x16x16xf32, #tpu.memory_space<vmem>>, vector<1x16x16xf32>,
    %342 = vector.extract_strided_slice %1 {offsets = [0, 3, 5], sizes = [3, 16, 16], strides = [1, 1, 1]} : vector<3x22x22xf32> to vector<3x16x16xf32>
    %343 = arith.subf %342, %34 : vector<3x16x16xf32>
    %344 = arith.mulf %343, %343 : vector<3x16x16xf32>
    %345 = arith.addf %320, %344 : vector<3x16x16xf32>
    %346 = vector.extract_strided_slice %1 {offsets = [0, 4, 5], sizes = [3, 16, 16], strides = [1, 1, 1]} : vector<3x22x22xf32> to vector<3x16x16xf32>
    %347 = arith.subf %342, %346 : vector<3x16x16xf32>
    %cst_78 = arith.constant 0.000000e+00 : f32
    %348 = vector.shape_cast %38 : vector<1x16x16xi1> to vector<1x16x16xi1>
    %349 = vector.broadcast %348 : vector<1x16x16xi1> to vector<3x16x16xi1>
    %350 = vector.broadcast %cst_78 : f32 to vector<3x16x16xf32>
    %351 = arith.select %349, %347, %350 : vector<3x16x16xi1>, vector<3x16x16xf32>
    %352 = vector.extract_strided_slice %1 {offsets = [0, 3, 6], sizes = [3, 16, 16], strides = [1, 1, 1]} : vector<3x22x22xf32> to vector<3x16x16xf32>
    %353 = arith.subf %342, %352 : vector<3x16x16xf32>
    %cst_79 = arith.constant 0.000000e+00 : f32
    %354 = vector.shape_cast %40 : vector<1x16x16xi1> to vector<1x16x16xi1>
    %355 = vector.broadcast %354 : vector<1x16x16xi1> to vector<3x16x16xi1>
    %356 = vector.broadcast %cst_79 : f32 to vector<3x16x16xf32>
    %357 = arith.select %355, %353, %356 : vector<3x16x16xi1>, vector<3x16x16xf32>
    %358 = arith.mulf %351, %351 : vector<3x16x16xf32>
    %359 = arith.mulf %357, %357 : vector<3x16x16xf32>
    %360 = arith.addf %358, %359 : vector<3x16x16xf32>
    %cst_80 = arith.constant dense<0.000000e+00> : vector<16x16xf32>
    %361 = vector.multi_reduction <add>, %360, %cst_80 [0] : vector<3x16x16xf32> to vector<16x16xf32>
    %cst_81 = arith.constant 0.333333343 : f32
    %362 = vector.broadcast %cst_81 : f32 to vector<16x16xf32>
    %363 = arith.mulf %361, %362 : vector<16x16xf32>
    %c12 = arith.constant 12 : index
    %c0_82 = arith.constant 0 : index
    %c0_83 = arith.constant 0 : index
    %364 = vector.load %arg6[%c12, %c0_82, %c0_83] : memref<16x16x16xf32, #tpu.memory_space<vmem>>, vector<1x16x16xf32>
    %365 = vector.shape_cast %364 : vector<1x16x16xf32> to vector<16x16xf32>
    %366 = vector.shape_cast %363 : vector<16x16xf32> to vector<1x16x16xf32>
    tpu.vector_store %arg6[%c12, %c0_82, %c0_83], %366 {strides = array<i32>} : memref<16x16x16xf32, #tpu.memory_space<vmem>>, vector<1x16x16xf32>,
    %367 = vector.extract_strided_slice %1 {offsets = [0, 5, 1], sizes = [3, 16, 16], strides = [1, 1, 1]} : vector<3x22x22xf32> to vector<3x16x16xf32>
    %368 = arith.subf %367, %34 : vector<3x16x16xf32>
    %369 = arith.mulf %368, %368 : vector<3x16x16xf32>
    %370 = arith.addf %345, %369 : vector<3x16x16xf32>
    %371 = vector.extract_strided_slice %1 {offsets = [0, 6, 1], sizes = [3, 16, 16], strides = [1, 1, 1]} : vector<3x22x22xf32> to vector<3x16x16xf32>
    %372 = arith.subf %367, %371 : vector<3x16x16xf32>
    %cst_84 = arith.constant 0.000000e+00 : f32
    %373 = vector.shape_cast %38 : vector<1x16x16xi1> to vector<1x16x16xi1>
    %374 = vector.broadcast %373 : vector<1x16x16xi1> to vector<3x16x16xi1>
    %375 = vector.broadcast %cst_84 : f32 to vector<3x16x16xf32>
    %376 = arith.select %374, %372, %375 : vector<3x16x16xi1>, vector<3x16x16xf32>
    %377 = vector.extract_strided_slice %1 {offsets = [0, 5, 2], sizes = [3, 16, 16], strides = [1, 1, 1]} : vector<3x22x22xf32> to vector<3x16x16xf32>
    %378 = arith.subf %367, %377 : vector<3x16x16xf32>
    %cst_85 = arith.constant 0.000000e+00 : f32
    %379 = vector.shape_cast %40 : vector<1x16x16xi1> to vector<1x16x16xi1>
    %380 = vector.broadcast %379 : vector<1x16x16xi1> to vector<3x16x16xi1>
    %381 = vector.broadcast %cst_85 : f32 to vector<3x16x16xf32>
    %382 = arith.select %380, %378, %381 : vector<3x16x16xi1>, vector<3x16x16xf32>
    %383 = arith.mulf %376, %376 : vector<3x16x16xf32>
    %384 = arith.mulf %382, %382 : vector<3x16x16xf32>
    %385 = arith.addf %383, %384 : vector<3x16x16xf32>
    %cst_86 = arith.constant dense<0.000000e+00> : vector<16x16xf32>
    %386 = vector.multi_reduction <add>, %385, %cst_86 [0] : vector<3x16x16xf32> to vector<16x16xf32>
    %cst_87 = arith.constant 0.333333343 : f32
    %387 = vector.broadcast %cst_87 : f32 to vector<16x16xf32>
    %388 = arith.mulf %386, %387 : vector<16x16xf32>
    %c13 = arith.constant 13 : index
    %c0_88 = arith.constant 0 : index
    %c0_89 = arith.constant 0 : index
    %389 = vector.load %arg6[%c13, %c0_88, %c0_89] : memref<16x16x16xf32, #tpu.memory_space<vmem>>, vector<1x16x16xf32>
    %390 = vector.shape_cast %389 : vector<1x16x16xf32> to vector<16x16xf32>
    %391 = vector.shape_cast %388 : vector<16x16xf32> to vector<1x16x16xf32>
    tpu.vector_store %arg6[%c13, %c0_88, %c0_89], %391 {strides = array<i32>} : memref<16x16x16xf32, #tpu.memory_space<vmem>>, vector<1x16x16xf32>,
    %392 = vector.extract_strided_slice %1 {offsets = [0, 5, 3], sizes = [3, 16, 16], strides = [1, 1, 1]} : vector<3x22x22xf32> to vector<3x16x16xf32>
    %393 = arith.subf %392, %34 : vector<3x16x16xf32>
    %394 = arith.mulf %393, %393 : vector<3x16x16xf32>
    %395 = arith.addf %370, %394 : vector<3x16x16xf32>
    %396 = vector.extract_strided_slice %1 {offsets = [0, 6, 3], sizes = [3, 16, 16], strides = [1, 1, 1]} : vector<3x22x22xf32> to vector<3x16x16xf32>
    %397 = arith.subf %392, %396 : vector<3x16x16xf32>
    %cst_90 = arith.constant 0.000000e+00 : f32
    %398 = vector.shape_cast %38 : vector<1x16x16xi1> to vector<1x16x16xi1>
    %399 = vector.broadcast %398 : vector<1x16x16xi1> to vector<3x16x16xi1>
    %400 = vector.broadcast %cst_90 : f32 to vector<3x16x16xf32>
    %401 = arith.select %399, %397, %400 : vector<3x16x16xi1>, vector<3x16x16xf32>
    %402 = vector.extract_strided_slice %1 {offsets = [0, 5, 4], sizes = [3, 16, 16], strides = [1, 1, 1]} : vector<3x22x22xf32> to vector<3x16x16xf32>
    %403 = arith.subf %392, %402 : vector<3x16x16xf32>
    %cst_91 = arith.constant 0.000000e+00 : f32
    %404 = vector.shape_cast %40 : vector<1x16x16xi1> to vector<1x16x16xi1>
    %405 = vector.broadcast %404 : vector<1x16x16xi1> to vector<3x16x16xi1>
    %406 = vector.broadcast %cst_91 : f32 to vector<3x16x16xf32>
    %407 = arith.select %405, %403, %406 : vector<3x16x16xi1>, vector<3x16x16xf32>
    %408 = arith.mulf %401, %401 : vector<3x16x16xf32>
    %409 = arith.mulf %407, %407 : vector<3x16x16xf32>
    %410 = arith.addf %408, %409 : vector<3x16x16xf32>
    %cst_92 = arith.constant dense<0.000000e+00> : vector<16x16xf32>
    %411 = vector.multi_reduction <add>, %410, %cst_92 [0] : vector<3x16x16xf32> to vector<16x16xf32>
    %cst_93 = arith.constant 0.333333343 : f32
    %412 = vector.broadcast %cst_93 : f32 to vector<16x16xf32>
    %413 = arith.mulf %411, %412 : vector<16x16xf32>
    %c14 = arith.constant 14 : index
    %c0_94 = arith.constant 0 : index
    %c0_95 = arith.constant 0 : index
    %414 = vector.load %arg6[%c14, %c0_94, %c0_95] : memref<16x16x16xf32, #tpu.memory_space<vmem>>, vector<1x16x16xf32>
    %415 = vector.shape_cast %414 : vector<1x16x16xf32> to vector<16x16xf32>
    %416 = vector.shape_cast %413 : vector<16x16xf32> to vector<1x16x16xf32>
    tpu.vector_store %arg6[%c14, %c0_94, %c0_95], %416 {strides = array<i32>} : memref<16x16x16xf32, #tpu.memory_space<vmem>>, vector<1x16x16xf32>,
    %417 = vector.extract_strided_slice %1 {offsets = [0, 5, 5], sizes = [3, 16, 16], strides = [1, 1, 1]} : vector<3x22x22xf32> to vector<3x16x16xf32>
    %418 = arith.subf %417, %34 : vector<3x16x16xf32>
    %419 = arith.mulf %418, %418 : vector<3x16x16xf32>
    %420 = arith.addf %395, %419 : vector<3x16x16xf32>
    %421 = vector.extract_strided_slice %1 {offsets = [0, 6, 5], sizes = [3, 16, 16], strides = [1, 1, 1]} : vector<3x22x22xf32> to vector<3x16x16xf32>
    %422 = arith.subf %417, %421 : vector<3x16x16xf32>
    %cst_96 = arith.constant 0.000000e+00 : f32
    %423 = vector.shape_cast %38 : vector<1x16x16xi1> to vector<1x16x16xi1>
    %424 = vector.broadcast %423 : vector<1x16x16xi1> to vector<3x16x16xi1>
    %425 = vector.broadcast %cst_96 : f32 to vector<3x16x16xf32>
    %426 = arith.select %424, %422, %425 : vector<3x16x16xi1>, vector<3x16x16xf32>
    %427 = vector.extract_strided_slice %1 {offsets = [0, 5, 6], sizes = [3, 16, 16], strides = [1, 1, 1]} : vector<3x22x22xf32> to vector<3x16x16xf32>
    %428 = arith.subf %417, %427 : vector<3x16x16xf32>
    %cst_97 = arith.constant 0.000000e+00 : f32
    %429 = vector.shape_cast %40 : vector<1x16x16xi1> to vector<1x16x16xi1>
    %430 = vector.broadcast %429 : vector<1x16x16xi1> to vector<3x16x16xi1>
    %431 = vector.broadcast %cst_97 : f32 to vector<3x16x16xf32>
    %432 = arith.select %430, %428, %431 : vector<3x16x16xi1>, vector<3x16x16xf32>
    %433 = arith.mulf %426, %426 : vector<3x16x16xf32>
    %434 = arith.mulf %432, %432 : vector<3x16x16xf32>
    %435 = arith.addf %433, %434 : vector<3x16x16xf32>
    %cst_98 = arith.constant dense<0.000000e+00> : vector<16x16xf32>
    %436 = vector.multi_reduction <add>, %435, %cst_98 [0] : vector<3x16x16xf32> to vector<16x16xf32>
    %cst_99 = arith.constant 0.333333343 : f32
    %437 = vector.broadcast %cst_99 : f32 to vector<16x16xf32>
    %438 = arith.mulf %436, %437 : vector<16x16xf32>
    %c15 = arith.constant 15 : index
    %c0_100 = arith.constant 0 : index
    %c0_101 = arith.constant 0 : index
    %439 = vector.load %arg6[%c15, %c0_100, %c0_101] : memref<16x16x16xf32, #tpu.memory_space<vmem>>, vector<1x16x16xf32>
    %440 = vector.shape_cast %439 : vector<1x16x16xf32> to vector<16x16xf32>
    %441 = vector.shape_cast %438 : vector<16x16xf32> to vector<1x16x16xf32>
    tpu.vector_store %arg6[%c15, %c0_100, %c0_101], %441 {strides = array<i32>} : memref<16x16x16xf32, #tpu.memory_space<vmem>>, vector<1x16x16xf32>,
    %cst_102 = arith.constant 0.0666666701 : f32
    %442 = vector.broadcast %cst_102 : f32 to vector<3x16x16xf32>
    %443 = arith.mulf %420, %442 : vector<3x16x16xf32>
    %444 = math.sqrt %443 : vector<3x16x16xf32>
    %cst_103 = arith.constant 9.99999993E-9 : f32
    %445 = vector.broadcast %cst_103 : f32 to vector<3x16x16xf32>
    %446 = arith.addf %444, %445 : vector<3x16x16xf32>
    %447 = tpu.reciprocal %446 : vector<3x16x16xf32> -> vector<3x16x16xf32>
    %cst_104 = arith.constant 3.33333325 : f32
    %448 = vector.broadcast %cst_104 : f32 to vector<3x16x16xf32>
    %449 = arith.mulf %447, %448 : vector<3x16x16xf32>
    %450 = arith.mulf %449, %449 : vector<3x16x16xf32>
    %451 = vector.extract_strided_slice %1 {offsets = [0, 3, 3], sizes = [3, 16, 16], strides = [1, 1, 1]} : vector<3x22x22xf32> to vector<3x16x16xf32>
    %452 = vector.extract_strided_slice %1 {offsets = [0, 2, 2], sizes = [3, 16, 16], strides = [1, 1, 1]} : vector<3x22x22xf32> to vector<3x16x16xf32>
    %453 = arith.subf %452, %451 : vector<3x16x16xf32>
    %454 = arith.mulf %453, %453 : vector<3x16x16xf32>
    %455 = arith.mulf %454, %450 : vector<3x16x16xf32>
    %cst_105 = arith.constant dense<0.000000e+00> : vector<16x16xf32>
    %456 = vector.multi_reduction <add>, %455, %cst_105 [0] : vector<3x16x16xf32> to vector<16x16xf32>
    %cst_106 = arith.constant 0.333333343 : f32
    %457 = vector.broadcast %cst_106 : f32 to vector<16x16xf32>
    %458 = arith.mulf %456, %457 : vector<16x16xf32>
    %cst_107 = arith.constant 0.000000e+00 : f32
    %459 = vector.broadcast %cst_107 : f32 to vector<16x16xf32>
    %460 = arith.subf %459, %458 : vector<16x16xf32>
    %c0_108 = arith.constant 0 : index
    %c0_109 = arith.constant 0 : index
    %c0_110 = arith.constant 0 : index
    %461 = vector.load %arg5[%c0_108, %c0_109, %c0_110] : memref<16x16x16xf32, #tpu.memory_space<vmem>>, vector<1x16x16xf32>
    %462 = vector.shape_cast %461 : vector<1x16x16xf32> to vector<16x16xf32>
    %463 = vector.shape_cast %460 : vector<16x16xf32> to vector<1x16x16xf32>
    tpu.vector_store %arg5[%c0_108, %c0_109, %c0_110], %463 {strides = array<i32>} : memref<16x16x16xf32, #tpu.memory_space<vmem>>, vector<1x16x16xf32>,
    %464 = vector.extract_strided_slice %1 {offsets = [0, 2, 3], sizes = [3, 16, 16], strides = [1, 1, 1]} : vector<3x22x22xf32> to vector<3x16x16xf32>
    %465 = arith.subf %464, %451 : vector<3x16x16xf32>
    %466 = arith.mulf %465, %465 : vector<3x16x16xf32>
    %467 = arith.mulf %466, %450 : vector<3x16x16xf32>
    %cst_111 = arith.constant dense<0.000000e+00> : vector<16x16xf32>
    %468 = vector.multi_reduction <add>, %467, %cst_111 [0] : vector<3x16x16xf32> to vector<16x16xf32>
    %cst_112 = arith.constant 0.333333343 : f32
    %469 = vector.broadcast %cst_112 : f32 to vector<16x16xf32>
    %470 = arith.mulf %468, %469 : vector<16x16xf32>
    %cst_113 = arith.constant 0.000000e+00 : f32
    %471 = vector.broadcast %cst_113 : f32 to vector<16x16xf32>
    %472 = arith.subf %471, %470 : vector<16x16xf32>
    %c1_114 = arith.constant 1 : index
    %c0_115 = arith.constant 0 : index
    %c0_116 = arith.constant 0 : index
    %473 = vector.load %arg5[%c1_114, %c0_115, %c0_116] : memref<16x16x16xf32, #tpu.memory_space<vmem>>, vector<1x16x16xf32>
    %474 = vector.shape_cast %473 : vector<1x16x16xf32> to vector<16x16xf32>
    %475 = vector.shape_cast %472 : vector<16x16xf32> to vector<1x16x16xf32>
    tpu.vector_store %arg5[%c1_114, %c0_115, %c0_116], %475 {strides = array<i32>} : memref<16x16x16xf32, #tpu.memory_space<vmem>>, vector<1x16x16xf32>,
    %476 = vector.extract_strided_slice %1 {offsets = [0, 2, 4], sizes = [3, 16, 16], strides = [1, 1, 1]} : vector<3x22x22xf32> to vector<3x16x16xf32>
    %477 = arith.subf %476, %451 : vector<3x16x16xf32>
    %478 = arith.mulf %477, %477 : vector<3x16x16xf32>
    %479 = arith.mulf %478, %450 : vector<3x16x16xf32>
    %cst_117 = arith.constant dense<0.000000e+00> : vector<16x16xf32>
    %480 = vector.multi_reduction <add>, %479, %cst_117 [0] : vector<3x16x16xf32> to vector<16x16xf32>
    %cst_118 = arith.constant 0.333333343 : f32
    %481 = vector.broadcast %cst_118 : f32 to vector<16x16xf32>
    %482 = arith.mulf %480, %481 : vector<16x16xf32>
    %cst_119 = arith.constant 0.000000e+00 : f32
    %483 = vector.broadcast %cst_119 : f32 to vector<16x16xf32>
    %484 = arith.subf %483, %482 : vector<16x16xf32>
    %c2_120 = arith.constant 2 : index
    %c0_121 = arith.constant 0 : index
    %c0_122 = arith.constant 0 : index
    %485 = vector.load %arg5[%c2_120, %c0_121, %c0_122] : memref<16x16x16xf32, #tpu.memory_space<vmem>>, vector<1x16x16xf32>
    %486 = vector.shape_cast %485 : vector<1x16x16xf32> to vector<16x16xf32>
    %487 = vector.shape_cast %484 : vector<16x16xf32> to vector<1x16x16xf32>
    tpu.vector_store %arg5[%c2_120, %c0_121, %c0_122], %487 {strides = array<i32>} : memref<16x16x16xf32, #tpu.memory_space<vmem>>, vector<1x16x16xf32>,
    %488 = vector.extract_strided_slice %1 {offsets = [0, 3, 2], sizes = [3, 16, 16], strides = [1, 1, 1]} : vector<3x22x22xf32> to vector<3x16x16xf32>
    %489 = arith.subf %488, %451 : vector<3x16x16xf32>
    %490 = arith.mulf %489, %489 : vector<3x16x16xf32>
    %491 = arith.mulf %490, %450 : vector<3x16x16xf32>
    %cst_123 = arith.constant dense<0.000000e+00> : vector<16x16xf32>
    %492 = vector.multi_reduction <add>, %491, %cst_123 [0] : vector<3x16x16xf32> to vector<16x16xf32>
    %cst_124 = arith.constant 0.333333343 : f32
    %493 = vector.broadcast %cst_124 : f32 to vector<16x16xf32>
    %494 = arith.mulf %492, %493 : vector<16x16xf32>
    %cst_125 = arith.constant 0.000000e+00 : f32
    %495 = vector.broadcast %cst_125 : f32 to vector<16x16xf32>
    %496 = arith.subf %495, %494 : vector<16x16xf32>
    %c3_126 = arith.constant 3 : index
    %c0_127 = arith.constant 0 : index
    %c0_128 = arith.constant 0 : index
    %497 = vector.load %arg5[%c3_126, %c0_127, %c0_128] : memref<16x16x16xf32, #tpu.memory_space<vmem>>, vector<1x16x16xf32>
    %498 = vector.shape_cast %497 : vector<1x16x16xf32> to vector<16x16xf32>
    %499 = vector.shape_cast %496 : vector<16x16xf32> to vector<1x16x16xf32>
    tpu.vector_store %arg5[%c3_126, %c0_127, %c0_128], %499 {strides = array<i32>} : memref<16x16x16xf32, #tpu.memory_space<vmem>>, vector<1x16x16xf32>,
    %500 = vector.extract_strided_slice %1 {offsets = [0, 3, 4], sizes = [3, 16, 16], strides = [1, 1, 1]} : vector<3x22x22xf32> to vector<3x16x16xf32>
    %501 = arith.subf %500, %451 : vector<3x16x16xf32>
    %502 = arith.mulf %501, %501 : vector<3x16x16xf32>
    %503 = arith.mulf %502, %450 : vector<3x16x16xf32>
    %cst_129 = arith.constant dense<0.000000e+00> : vector<16x16xf32>
    %504 = vector.multi_reduction <add>, %503, %cst_129 [0] : vector<3x16x16xf32> to vector<16x16xf32>
    %cst_130 = arith.constant 0.333333343 : f32
    %505 = vector.broadcast %cst_130 : f32 to vector<16x16xf32>
    %506 = arith.mulf %504, %505 : vector<16x16xf32>
    %cst_131 = arith.constant 0.000000e+00 : f32
    %507 = vector.broadcast %cst_131 : f32 to vector<16x16xf32>
    %508 = arith.subf %507, %506 : vector<16x16xf32>
    %c4_132 = arith.constant 4 : index
    %c0_133 = arith.constant 0 : index
    %c0_134 = arith.constant 0 : index
    %509 = vector.load %arg5[%c4_132, %c0_133, %c0_134] : memref<16x16x16xf32, #tpu.memory_space<vmem>>, vector<1x16x16xf32>
    %510 = vector.shape_cast %509 : vector<1x16x16xf32> to vector<16x16xf32>
    %511 = vector.shape_cast %508 : vector<16x16xf32> to vector<1x16x16xf32>
    tpu.vector_store %arg5[%c4_132, %c0_133, %c0_134], %511 {strides = array<i32>} : memref<16x16x16xf32, #tpu.memory_space<vmem>>, vector<1x16x16xf32>,
    %512 = vector.extract_strided_slice %1 {offsets = [0, 4, 2], sizes = [3, 16, 16], strides = [1, 1, 1]} : vector<3x22x22xf32> to vector<3x16x16xf32>
    %513 = arith.subf %512, %451 : vector<3x16x16xf32>
    %514 = arith.mulf %513, %513 : vector<3x16x16xf32>
    %515 = arith.mulf %514, %450 : vector<3x16x16xf32>
    %cst_135 = arith.constant dense<0.000000e+00> : vector<16x16xf32>
    %516 = vector.multi_reduction <add>, %515, %cst_135 [0] : vector<3x16x16xf32> to vector<16x16xf32>
    %cst_136 = arith.constant 0.333333343 : f32
    %517 = vector.broadcast %cst_136 : f32 to vector<16x16xf32>
    %518 = arith.mulf %516, %517 : vector<16x16xf32>
    %cst_137 = arith.constant 0.000000e+00 : f32
    %519 = vector.broadcast %cst_137 : f32 to vector<16x16xf32>
    %520 = arith.subf %519, %518 : vector<16x16xf32>
    %c5_138 = arith.constant 5 : index
    %c0_139 = arith.constant 0 : index
    %c0_140 = arith.constant 0 : index
    %521 = vector.load %arg5[%c5_138, %c0_139, %c0_140] : memref<16x16x16xf32, #tpu.memory_space<vmem>>, vector<1x16x16xf32>
    %522 = vector.shape_cast %521 : vector<1x16x16xf32> to vector<16x16xf32>
    %523 = vector.shape_cast %520 : vector<16x16xf32> to vector<1x16x16xf32>
    tpu.vector_store %arg5[%c5_138, %c0_139, %c0_140], %523 {strides = array<i32>} : memref<16x16x16xf32, #tpu.memory_space<vmem>>, vector<1x16x16xf32>,
    %524 = vector.extract_strided_slice %1 {offsets = [0, 4, 3], sizes = [3, 16, 16], strides = [1, 1, 1]} : vector<3x22x22xf32> to vector<3x16x16xf32>
    %525 = arith.subf %524, %451 : vector<3x16x16xf32>
    %526 = arith.mulf %525, %525 : vector<3x16x16xf32>
    %527 = arith.mulf %526, %450 : vector<3x16x16xf32>
    %cst_141 = arith.constant dense<0.000000e+00> : vector<16x16xf32>
    %528 = vector.multi_reduction <add>, %527, %cst_141 [0] : vector<3x16x16xf32> to vector<16x16xf32>
    %cst_142 = arith.constant 0.333333343 : f32
    %529 = vector.broadcast %cst_142 : f32 to vector<16x16xf32>
    %530 = arith.mulf %528, %529 : vector<16x16xf32>
    %cst_143 = arith.constant 0.000000e+00 : f32
    %531 = vector.broadcast %cst_143 : f32 to vector<16x16xf32>
    %532 = arith.subf %531, %530 : vector<16x16xf32>
    %c6_144 = arith.constant 6 : index
    %c0_145 = arith.constant 0 : index
    %c0_146 = arith.constant 0 : index
    %533 = vector.load %arg5[%c6_144, %c0_145, %c0_146] : memref<16x16x16xf32, #tpu.memory_space<vmem>>, vector<1x16x16xf32>
    %534 = vector.shape_cast %533 : vector<1x16x16xf32> to vector<16x16xf32>
    %535 = vector.shape_cast %532 : vector<16x16xf32> to vector<1x16x16xf32>
    tpu.vector_store %arg5[%c6_144, %c0_145, %c0_146], %535 {strides = array<i32>} : memref<16x16x16xf32, #tpu.memory_space<vmem>>, vector<1x16x16xf32>,
    %536 = vector.extract_strided_slice %1 {offsets = [0, 4, 4], sizes = [3, 16, 16], strides = [1, 1, 1]} : vector<3x22x22xf32> to vector<3x16x16xf32>
    %537 = arith.subf %536, %451 : vector<3x16x16xf32>
    %538 = arith.mulf %537, %537 : vector<3x16x16xf32>
    %539 = arith.mulf %538, %450 : vector<3x16x16xf32>
    %cst_147 = arith.constant dense<0.000000e+00> : vector<16x16xf32>
    %540 = vector.multi_reduction <add>, %539, %cst_147 [0] : vector<3x16x16xf32> to vector<16x16xf32>
    %cst_148 = arith.constant 0.333333343 : f32
    %541 = vector.broadcast %cst_148 : f32 to vector<16x16xf32>
    %542 = arith.mulf %540, %541 : vector<16x16xf32>
    %cst_149 = arith.constant 0.000000e+00 : f32
    %543 = vector.broadcast %cst_149 : f32 to vector<16x16xf32>
    %544 = arith.subf %543, %542 : vector<16x16xf32>
    %c7_150 = arith.constant 7 : index
    %c0_151 = arith.constant 0 : index
    %c0_152 = arith.constant 0 : index
    %545 = vector.load %arg5[%c7_150, %c0_151, %c0_152] : memref<16x16x16xf32, #tpu.memory_space<vmem>>, vector<1x16x16xf32>
    %546 = vector.shape_cast %545 : vector<1x16x16xf32> to vector<16x16xf32>
    %547 = vector.shape_cast %544 : vector<16x16xf32> to vector<1x16x16xf32>
    tpu.vector_store %arg5[%c7_150, %c0_151, %c0_152], %547 {strides = array<i32>} : memref<16x16x16xf32, #tpu.memory_space<vmem>>, vector<1x16x16xf32>,
    %548 = vector.extract_strided_slice %1 {offsets = [0, 1, 1], sizes = [3, 16, 16], strides = [1, 1, 1]} : vector<3x22x22xf32> to vector<3x16x16xf32>
    %549 = arith.subf %548, %451 : vector<3x16x16xf32>
    %550 = arith.mulf %549, %549 : vector<3x16x16xf32>
    %551 = arith.mulf %550, %450 : vector<3x16x16xf32>
    %cst_153 = arith.constant dense<0.000000e+00> : vector<16x16xf32>
    %552 = vector.multi_reduction <add>, %551, %cst_153 [0] : vector<3x16x16xf32> to vector<16x16xf32>
    %cst_154 = arith.constant 0.333333343 : f32
    %553 = vector.broadcast %cst_154 : f32 to vector<16x16xf32>
    %554 = arith.mulf %552, %553 : vector<16x16xf32>
    %cst_155 = arith.constant 0.000000e+00 : f32
    %555 = vector.broadcast %cst_155 : f32 to vector<16x16xf32>
    %556 = arith.subf %555, %554 : vector<16x16xf32>
    %c8_156 = arith.constant 8 : index
    %c0_157 = arith.constant 0 : index
    %c0_158 = arith.constant 0 : index
    %557 = vector.load %arg5[%c8_156, %c0_157, %c0_158] : memref<16x16x16xf32, #tpu.memory_space<vmem>>, vector<1x16x16xf32>
    %558 = vector.shape_cast %557 : vector<1x16x16xf32> to vector<16x16xf32>
    %559 = vector.shape_cast %556 : vector<16x16xf32> to vector<1x16x16xf32>
    tpu.vector_store %arg5[%c8_156, %c0_157, %c0_158], %559 {strides = array<i32>} : memref<16x16x16xf32, #tpu.memory_space<vmem>>, vector<1x16x16xf32>,
    %560 = vector.extract_strided_slice %1 {offsets = [0, 1, 3], sizes = [3, 16, 16], strides = [1, 1, 1]} : vector<3x22x22xf32> to vector<3x16x16xf32>
    %561 = arith.subf %560, %451 : vector<3x16x16xf32>
    %562 = arith.mulf %561, %561 : vector<3x16x16xf32>
    %563 = arith.mulf %562, %450 : vector<3x16x16xf32>
    %cst_159 = arith.constant dense<0.000000e+00> : vector<16x16xf32>
    %564 = vector.multi_reduction <add>, %563, %cst_159 [0] : vector<3x16x16xf32> to vector<16x16xf32>
    %cst_160 = arith.constant 0.333333343 : f32
    %565 = vector.broadcast %cst_160 : f32 to vector<16x16xf32>
    %566 = arith.mulf %564, %565 : vector<16x16xf32>
    %cst_161 = arith.constant 0.000000e+00 : f32
    %567 = vector.broadcast %cst_161 : f32 to vector<16x16xf32>
    %568 = arith.subf %567, %566 : vector<16x16xf32>
    %c9_162 = arith.constant 9 : index
    %c0_163 = arith.constant 0 : index
    %c0_164 = arith.constant 0 : index
    %569 = vector.load %arg5[%c9_162, %c0_163, %c0_164] : memref<16x16x16xf32, #tpu.memory_space<vmem>>, vector<1x16x16xf32>
    %570 = vector.shape_cast %569 : vector<1x16x16xf32> to vector<16x16xf32>
    %571 = vector.shape_cast %568 : vector<16x16xf32> to vector<1x16x16xf32>
    tpu.vector_store %arg5[%c9_162, %c0_163, %c0_164], %571 {strides = array<i32>} : memref<16x16x16xf32, #tpu.memory_space<vmem>>, vector<1x16x16xf32>,
    %572 = vector.extract_strided_slice %1 {offsets = [0, 1, 5], sizes = [3, 16, 16], strides = [1, 1, 1]} : vector<3x22x22xf32> to vector<3x16x16xf32>
    %573 = arith.subf %572, %451 : vector<3x16x16xf32>
    %574 = arith.mulf %573, %573 : vector<3x16x16xf32>
    %575 = arith.mulf %574, %450 : vector<3x16x16xf32>
    %cst_165 = arith.constant dense<0.000000e+00> : vector<16x16xf32>
    %576 = vector.multi_reduction <add>, %575, %cst_165 [0] : vector<3x16x16xf32> to vector<16x16xf32>
    %cst_166 = arith.constant 0.333333343 : f32
    %577 = vector.broadcast %cst_166 : f32 to vector<16x16xf32>
    %578 = arith.mulf %576, %577 : vector<16x16xf32>
    %cst_167 = arith.constant 0.000000e+00 : f32
    %579 = vector.broadcast %cst_167 : f32 to vector<16x16xf32>
    %580 = arith.subf %579, %578 : vector<16x16xf32>
    %c10_168 = arith.constant 10 : index
    %c0_169 = arith.constant 0 : index
    %c0_170 = arith.constant 0 : index
    %581 = vector.load %arg5[%c10_168, %c0_169, %c0_170] : memref<16x16x16xf32, #tpu.memory_space<vmem>>, vector<1x16x16xf32>
    %582 = vector.shape_cast %581 : vector<1x16x16xf32> to vector<16x16xf32>
    %583 = vector.shape_cast %580 : vector<16x16xf32> to vector<1x16x16xf32>
    tpu.vector_store %arg5[%c10_168, %c0_169, %c0_170], %583 {strides = array<i32>} : memref<16x16x16xf32, #tpu.memory_space<vmem>>, vector<1x16x16xf32>,
    %584 = vector.extract_strided_slice %1 {offsets = [0, 3, 1], sizes = [3, 16, 16], strides = [1, 1, 1]} : vector<3x22x22xf32> to vector<3x16x16xf32>
    %585 = arith.subf %584, %451 : vector<3x16x16xf32>
    %586 = arith.mulf %585, %585 : vector<3x16x16xf32>
    %587 = arith.mulf %586, %450 : vector<3x16x16xf32>
    %cst_171 = arith.constant dense<0.000000e+00> : vector<16x16xf32>
    %588 = vector.multi_reduction <add>, %587, %cst_171 [0] : vector<3x16x16xf32> to vector<16x16xf32>
    %cst_172 = arith.constant 0.333333343 : f32
    %589 = vector.broadcast %cst_172 : f32 to vector<16x16xf32>
    %590 = arith.mulf %588, %589 : vector<16x16xf32>
    %cst_173 = arith.constant 0.000000e+00 : f32
    %591 = vector.broadcast %cst_173 : f32 to vector<16x16xf32>
    %592 = arith.subf %591, %590 : vector<16x16xf32>
    %c11_174 = arith.constant 11 : index
    %c0_175 = arith.constant 0 : index
    %c0_176 = arith.constant 0 : index
    %593 = vector.load %arg5[%c11_174, %c0_175, %c0_176] : memref<16x16x16xf32, #tpu.memory_space<vmem>>, vector<1x16x16xf32>
    %594 = vector.shape_cast %593 : vector<1x16x16xf32> to vector<16x16xf32>
    %595 = vector.shape_cast %592 : vector<16x16xf32> to vector<1x16x16xf32>
    tpu.vector_store %arg5[%c11_174, %c0_175, %c0_176], %595 {strides = array<i32>} : memref<16x16x16xf32, #tpu.memory_space<vmem>>, vector<1x16x16xf32>,
    %596 = vector.extract_strided_slice %1 {offsets = [0, 3, 5], sizes = [3, 16, 16], strides = [1, 1, 1]} : vector<3x22x22xf32> to vector<3x16x16xf32>
    %597 = arith.subf %596, %451 : vector<3x16x16xf32>
    %598 = arith.mulf %597, %597 : vector<3x16x16xf32>
    %599 = arith.mulf %598, %450 : vector<3x16x16xf32>
    %cst_177 = arith.constant dense<0.000000e+00> : vector<16x16xf32>
    %600 = vector.multi_reduction <add>, %599, %cst_177 [0] : vector<3x16x16xf32> to vector<16x16xf32>
    %cst_178 = arith.constant 0.333333343 : f32
    %601 = vector.broadcast %cst_178 : f32 to vector<16x16xf32>
    %602 = arith.mulf %600, %601 : vector<16x16xf32>
    %cst_179 = arith.constant 0.000000e+00 : f32
    %603 = vector.broadcast %cst_179 : f32 to vector<16x16xf32>
    %604 = arith.subf %603, %602 : vector<16x16xf32>
    %c12_180 = arith.constant 12 : index
    %c0_181 = arith.constant 0 : index
    %c0_182 = arith.constant 0 : index
    %605 = vector.load %arg5[%c12_180, %c0_181, %c0_182] : memref<16x16x16xf32, #tpu.memory_space<vmem>>, vector<1x16x16xf32>
    %606 = vector.shape_cast %605 : vector<1x16x16xf32> to vector<16x16xf32>
    %607 = vector.shape_cast %604 : vector<16x16xf32> to vector<1x16x16xf32>
    tpu.vector_store %arg5[%c12_180, %c0_181, %c0_182], %607 {strides = array<i32>} : memref<16x16x16xf32, #tpu.memory_space<vmem>>, vector<1x16x16xf32>,
    %608 = vector.extract_strided_slice %1 {offsets = [0, 5, 1], sizes = [3, 16, 16], strides = [1, 1, 1]} : vector<3x22x22xf32> to vector<3x16x16xf32>
    %609 = arith.subf %608, %451 : vector<3x16x16xf32>
    %610 = arith.mulf %609, %609 : vector<3x16x16xf32>
    %611 = arith.mulf %610, %450 : vector<3x16x16xf32>
    %cst_183 = arith.constant dense<0.000000e+00> : vector<16x16xf32>
    %612 = vector.multi_reduction <add>, %611, %cst_183 [0] : vector<3x16x16xf32> to vector<16x16xf32>
    %cst_184 = arith.constant 0.333333343 : f32
    %613 = vector.broadcast %cst_184 : f32 to vector<16x16xf32>
    %614 = arith.mulf %612, %613 : vector<16x16xf32>
    %cst_185 = arith.constant 0.000000e+00 : f32
    %615 = vector.broadcast %cst_185 : f32 to vector<16x16xf32>
    %616 = arith.subf %615, %614 : vector<16x16xf32>
    %c13_186 = arith.constant 13 : index
    %c0_187 = arith.constant 0 : index
    %c0_188 = arith.constant 0 : index
    %617 = vector.load %arg5[%c13_186, %c0_187, %c0_188] : memref<16x16x16xf32, #tpu.memory_space<vmem>>, vector<1x16x16xf32>
    %618 = vector.shape_cast %617 : vector<1x16x16xf32> to vector<16x16xf32>
    %619 = vector.shape_cast %616 : vector<16x16xf32> to vector<1x16x16xf32>
    tpu.vector_store %arg5[%c13_186, %c0_187, %c0_188], %619 {strides = array<i32>} : memref<16x16x16xf32, #tpu.memory_space<vmem>>, vector<1x16x16xf32>,
    %620 = vector.extract_strided_slice %1 {offsets = [0, 5, 3], sizes = [3, 16, 16], strides = [1, 1, 1]} : vector<3x22x22xf32> to vector<3x16x16xf32>
    %621 = arith.subf %620, %451 : vector<3x16x16xf32>
    %622 = arith.mulf %621, %621 : vector<3x16x16xf32>
    %623 = arith.mulf %622, %450 : vector<3x16x16xf32>
    %cst_189 = arith.constant dense<0.000000e+00> : vector<16x16xf32>
    %624 = vector.multi_reduction <add>, %623, %cst_189 [0] : vector<3x16x16xf32> to vector<16x16xf32>
    %cst_190 = arith.constant 0.333333343 : f32
    %625 = vector.broadcast %cst_190 : f32 to vector<16x16xf32>
    %626 = arith.mulf %624, %625 : vector<16x16xf32>
    %cst_191 = arith.constant 0.000000e+00 : f32
    %627 = vector.broadcast %cst_191 : f32 to vector<16x16xf32>
    %628 = arith.subf %627, %626 : vector<16x16xf32>
    %c14_192 = arith.constant 14 : index
    %c0_193 = arith.constant 0 : index
    %c0_194 = arith.constant 0 : index
    %629 = vector.load %arg5[%c14_192, %c0_193, %c0_194] : memref<16x16x16xf32, #tpu.memory_space<vmem>>, vector<1x16x16xf32>
    %630 = vector.shape_cast %629 : vector<1x16x16xf32> to vector<16x16xf32>
    %631 = vector.shape_cast %628 : vector<16x16xf32> to vector<1x16x16xf32>
    tpu.vector_store %arg5[%c14_192, %c0_193, %c0_194], %631 {strides = array<i32>} : memref<16x16x16xf32, #tpu.memory_space<vmem>>, vector<1x16x16xf32>,
    %632 = vector.extract_strided_slice %1 {offsets = [0, 5, 5], sizes = [3, 16, 16], strides = [1, 1, 1]} : vector<3x22x22xf32> to vector<3x16x16xf32>
    %633 = arith.subf %632, %451 : vector<3x16x16xf32>
    %634 = arith.mulf %633, %633 : vector<3x16x16xf32>
    %635 = arith.mulf %634, %450 : vector<3x16x16xf32>
    %cst_195 = arith.constant dense<0.000000e+00> : vector<16x16xf32>
    %636 = vector.multi_reduction <add>, %635, %cst_195 [0] : vector<3x16x16xf32> to vector<16x16xf32>
    %cst_196 = arith.constant 0.333333343 : f32
    %637 = vector.broadcast %cst_196 : f32 to vector<16x16xf32>
    %638 = arith.mulf %636, %637 : vector<16x16xf32>
    %cst_197 = arith.constant 0.000000e+00 : f32
    %639 = vector.broadcast %cst_197 : f32 to vector<16x16xf32>
    %640 = arith.subf %639, %638 : vector<16x16xf32>
    %c15_198 = arith.constant 15 : index
    %c0_199 = arith.constant 0 : index
    %c0_200 = arith.constant 0 : index
    %641 = vector.load %arg5[%c15_198, %c0_199, %c0_200] : memref<16x16x16xf32, #tpu.memory_space<vmem>>, vector<1x16x16xf32>
    %642 = vector.shape_cast %641 : vector<1x16x16xf32> to vector<16x16xf32>
    %643 = vector.shape_cast %640 : vector<16x16xf32> to vector<1x16x16xf32>
    tpu.vector_store %arg5[%c15_198, %c0_199, %c0_200], %643 {strides = array<i32>} : memref<16x16x16xf32, #tpu.memory_space<vmem>>, vector<1x16x16xf32>,
    %c0_201 = arith.constant 0 : index
    %644 = memref.load %arg3[%c0_201] : memref<1xf32, #tpu.memory_space<smem>>
    %cst_202 = arith.constant 1.000000e+00 : f32
    %645 = arith.addf %644, %cst_202 : f32
    %cst_203 = arith.constant 1.000000e+00 : f32
    %646 = arith.divf %cst_203, %645 : f32
    %c0_204 = arith.constant 0 : index
    %c0_205 = arith.constant 0 : index
    %c0_206 = arith.constant 0 : index
    %647 = vector.load %arg5[%c0_204, %c0_205, %c0_206] : memref<16x16x16xf32, #tpu.memory_space<vmem>>, vector<16x16x16xf32>
    %cst_207 = arith.constant dense<0xFF800000> : vector<16x16xf32>
    %648 = vector.multi_reduction <maximumf>, %647, %cst_207 [0] : vector<16x16x16xf32> to vector<16x16xf32>
    %649 = vector.shape_cast %648 : vector<16x16xf32> to vector<1x16x16xf32>
    %650 = vector.broadcast %649 : vector<1x16x16xf32> to vector<16x16x16xf32>
    %651 = arith.subf %647, %650 : vector<16x16x16xf32>
    %652 = math.exp %651 : vector<16x16x16xf32>
    %cst_208 = arith.constant dense<0.000000e+00> : vector<16x16xf32>
    %653 = vector.multi_reduction <add>, %652, %cst_208 [0] : vector<16x16x16xf32> to vector<16x16xf32>
    %654 = vector.shape_cast %653 : vector<16x16xf32> to vector<1x16x16xf32>
    %655 = tpu.reciprocal %654 {approx = true} : vector<1x16x16xf32> -> vector<1x16x16xf32>
    %656 = vector.broadcast %655 : vector<1x16x16xf32> to vector<16x16x16xf32>
    %657 = arith.mulf %652, %656 : vector<16x16x16xf32>
    %c0_209 = arith.constant 0 : index
    %c0_210 = arith.constant 0 : index
    %c0_211 = arith.constant 0 : index
    %658 = vector.load %arg6[%c0_209, %c0_210, %c0_211] : memref<16x16x16xf32, #tpu.memory_space<vmem>>, vector<16x16x16xf32>
    %cst_212 = arith.constant dense<0xFF800000> : vector<16x16xf32>
    %659 = vector.multi_reduction <maximumf>, %658, %cst_212 [0] : vector<16x16x16xf32> to vector<16x16xf32>
    %660 = vector.shape_cast %659 : vector<16x16xf32> to vector<1x16x16xf32>
    %661 = vector.broadcast %660 : vector<1x16x16xf32> to vector<16x16x16xf32>
    %662 = arith.subf %658, %661 : vector<16x16x16xf32>
    %663 = math.exp %662 : vector<16x16x16xf32>
    %cst_213 = arith.constant dense<0.000000e+00> : vector<16x16xf32>
    %664 = vector.multi_reduction <add>, %663, %cst_213 [0] : vector<16x16x16xf32> to vector<16x16xf32>
    %665 = vector.shape_cast %664 : vector<16x16xf32> to vector<1x16x16xf32>
    %666 = tpu.reciprocal %665 {approx = true} : vector<1x16x16xf32> -> vector<1x16x16xf32>
    %667 = vector.broadcast %666 : vector<1x16x16xf32> to vector<16x16x16xf32>
    %668 = arith.mulf %663, %667 : vector<16x16x16xf32>
    %cst_214 = arith.constant 0.00999999977 : f32
    %669 = vector.broadcast %cst_214 : f32 to vector<16x16x16xf32>
    %670 = arith.mulf %669, %668 : vector<16x16x16xf32>
    %671 = arith.subf %657, %670 : vector<16x16x16xf32>
    %672 = vector.broadcast %646 : f32 to vector<16x16x16xf32>
    %673 = arith.mulf %671, %672 : vector<16x16x16xf32>
    %c0_215 = arith.constant 0 : index
    %c0_216 = arith.constant 0 : index
    %c0_217 = arith.constant 0 : index
    %674 = vector.load %arg5[%c0_215, %c0_216, %c0_217] : memref<16x16x16xf32, #tpu.memory_space<vmem>>, vector<16x16x16xf32>
    tpu.vector_store %arg5[%c0_215, %c0_216, %c0_217], %673 {strides = array<i32>} : memref<16x16x16xf32, #tpu.memory_space<vmem>>, vector<16x16x16xf32>,
    %c0_218 = arith.constant 0 : index
    %c0_219 = arith.constant 0 : index
    %c0_220 = arith.constant 0 : index
    %c0_221 = arith.constant 0 : index
    %675 = vector.load %arg2[%c0_218, %c0_219, %c0_220, %c0_221] : memref<1x4x16x16xf32, #tpu.memory_space<vmem>>, vector<1x4x16x16xf32>
    %676 = vector.shape_cast %675 : vector<1x4x16x16xf32> to vector<4x16x16xf32>
    %c0_i32 = arith.constant 0 : i32
    %c2_i32 = arith.constant 2 : i32
    %677 = arith.addi %c0_i32, %c2_i32 : i32
    %c1_i32 = arith.constant 1 : i32
    %678 = scf.for %arg7 = %c0_i32 to %677 step %c1_i32 iter_args(%arg8 = %676) -> (vector<4x16x16xf32>)  : i32 {
      %682 = vector.extract_strided_slice %arg8 {offsets = [0, 0, 0], sizes = [4, 1, 16], strides = [1, 1, 1]} : vector<4x16x16xf32> to vector<4x1x16xf32>
      %683 = vector.extract_strided_slice %arg8 {offsets = [0, 15, 0], sizes = [4, 1, 16], strides = [1, 1, 1]} : vector<4x16x16xf32> to vector<4x1x16xf32>
      %684 = tpu.concatenate %682, %682, %arg8, %683, %683 in 1 : vector<4x1x16xf32>, vector<4x1x16xf32>, vector<4x16x16xf32>, vector<4x1x16xf32>, vector<4x1x16xf32> -> vector<4x20x16xf32>
      %685 = vector.extract_strided_slice %684 {offsets = [0, 0, 0], sizes = [4, 20, 1], strides = [1, 1, 1]} : vector<4x20x16xf32> to vector<4x20x1xf32>
      %686 = vector.extract_strided_slice %684 {offsets = [0, 0, 15], sizes = [4, 20, 1], strides = [1, 1, 1]} : vector<4x20x16xf32> to vector<4x20x1xf32>
      %687 = tpu.concatenate %685, %685, %684, %686, %686 in 2 : vector<4x20x1xf32>, vector<4x20x1xf32>, vector<4x20x16xf32>, vector<4x20x1xf32>, vector<4x20x1xf32> -> vector<4x20x20xf32>
      %688 = vector.extract_strided_slice %687 {offsets = [0, 1, 1], sizes = [4, 16, 16], strides = [1, 1, 1]} : vector<4x20x20xf32> to vector<4x16x16xf32>
      %c0_226 = arith.constant 0 : index
      %c0_227 = arith.constant 0 : index
      %c0_228 = arith.constant 0 : index
      %689 = vector.load %arg5[%c0_226, %c0_227, %c0_228] : memref<16x16x16xf32, #tpu.memory_space<vmem>>, vector<1x16x16xf32>
      %690 = vector.shape_cast %689 : vector<1x16x16xf32> to vector<16x16xf32>
      %691 = vector.shape_cast %690 : vector<16x16xf32> to vector<1x16x16xf32>
      %692 = vector.broadcast %691 : vector<1x16x16xf32> to vector<4x16x16xf32>
      %693 = arith.mulf %688, %692 : vector<4x16x16xf32>
      %694 = vector.extract_strided_slice %687 {offsets = [0, 1, 2], sizes = [4, 16, 16], strides = [1, 1, 1]} : vector<4x20x20xf32> to vector<4x16x16xf32>
      %c1_229 = arith.constant 1 : index
      %c0_230 = arith.constant 0 : index
      %c0_231 = arith.constant 0 : index
      %695 = vector.load %arg5[%c1_229, %c0_230, %c0_231] : memref<16x16x16xf32, #tpu.memory_space<vmem>>, vector<1x16x16xf32>
      %696 = vector.shape_cast %695 : vector<1x16x16xf32> to vector<16x16xf32>
      %697 = vector.shape_cast %696 : vector<16x16xf32> to vector<1x16x16xf32>
      %698 = vector.broadcast %697 : vector<1x16x16xf32> to vector<4x16x16xf32>
      %699 = arith.mulf %694, %698 : vector<4x16x16xf32>
      %700 = arith.addf %693, %699 : vector<4x16x16xf32>
      %701 = vector.extract_strided_slice %687 {offsets = [0, 1, 3], sizes = [4, 16, 16], strides = [1, 1, 1]} : vector<4x20x20xf32> to vector<4x16x16xf32>
      %c2_232 = arith.constant 2 : index
      %c0_233 = arith.constant 0 : index
      %c0_234 = arith.constant 0 : index
      %702 = vector.load %arg5[%c2_232, %c0_233, %c0_234] : memref<16x16x16xf32, #tpu.memory_space<vmem>>, vector<1x16x16xf32>
      %703 = vector.shape_cast %702 : vector<1x16x16xf32> to vector<16x16xf32>
      %704 = vector.shape_cast %703 : vector<16x16xf32> to vector<1x16x16xf32>
      %705 = vector.broadcast %704 : vector<1x16x16xf32> to vector<4x16x16xf32>
      %706 = arith.mulf %701, %705 : vector<4x16x16xf32>
      %707 = arith.addf %700, %706 : vector<4x16x16xf32>
      %708 = vector.extract_strided_slice %687 {offsets = [0, 2, 1], sizes = [4, 16, 16], strides = [1, 1, 1]} : vector<4x20x20xf32> to vector<4x16x16xf32>
      %c3_235 = arith.constant 3 : index
      %c0_236 = arith.constant 0 : index
      %c0_237 = arith.constant 0 : index
      %709 = vector.load %arg5[%c3_235, %c0_236, %c0_237] : memref<16x16x16xf32, #tpu.memory_space<vmem>>, vector<1x16x16xf32>
      %710 = vector.shape_cast %709 : vector<1x16x16xf32> to vector<16x16xf32>
      %711 = vector.shape_cast %710 : vector<16x16xf32> to vector<1x16x16xf32>
      %712 = vector.broadcast %711 : vector<1x16x16xf32> to vector<4x16x16xf32>
      %713 = arith.mulf %708, %712 : vector<4x16x16xf32>
      %714 = arith.addf %707, %713 : vector<4x16x16xf32>
      %715 = vector.extract_strided_slice %687 {offsets = [0, 2, 3], sizes = [4, 16, 16], strides = [1, 1, 1]} : vector<4x20x20xf32> to vector<4x16x16xf32>
      %c4_238 = arith.constant 4 : index
      %c0_239 = arith.constant 0 : index
      %c0_240 = arith.constant 0 : index
      %716 = vector.load %arg5[%c4_238, %c0_239, %c0_240] : memref<16x16x16xf32, #tpu.memory_space<vmem>>, vector<1x16x16xf32>
      %717 = vector.shape_cast %716 : vector<1x16x16xf32> to vector<16x16xf32>
      %718 = vector.shape_cast %717 : vector<16x16xf32> to vector<1x16x16xf32>
      %719 = vector.broadcast %718 : vector<1x16x16xf32> to vector<4x16x16xf32>
      %720 = arith.mulf %715, %719 : vector<4x16x16xf32>
      %721 = arith.addf %714, %720 : vector<4x16x16xf32>
      %722 = vector.extract_strided_slice %687 {offsets = [0, 3, 1], sizes = [4, 16, 16], strides = [1, 1, 1]} : vector<4x20x20xf32> to vector<4x16x16xf32>
      %c5_241 = arith.constant 5 : index
      %c0_242 = arith.constant 0 : index
      %c0_243 = arith.constant 0 : index
      %723 = vector.load %arg5[%c5_241, %c0_242, %c0_243] : memref<16x16x16xf32, #tpu.memory_space<vmem>>, vector<1x16x16xf32>
      %724 = vector.shape_cast %723 : vector<1x16x16xf32> to vector<16x16xf32>
      %725 = vector.shape_cast %724 : vector<16x16xf32> to vector<1x16x16xf32>
      %726 = vector.broadcast %725 : vector<1x16x16xf32> to vector<4x16x16xf32>
      %727 = arith.mulf %722, %726 : vector<4x16x16xf32>
      %728 = arith.addf %721, %727 : vector<4x16x16xf32>
      %729 = vector.extract_strided_slice %687 {offsets = [0, 3, 2], sizes = [4, 16, 16], strides = [1, 1, 1]} : vector<4x20x20xf32> to vector<4x16x16xf32>
      %c6_244 = arith.constant 6 : index
      %c0_245 = arith.constant 0 : index
      %c0_246 = arith.constant 0 : index
      %730 = vector.load %arg5[%c6_244, %c0_245, %c0_246] : memref<16x16x16xf32, #tpu.memory_space<vmem>>, vector<1x16x16xf32>
      %731 = vector.shape_cast %730 : vector<1x16x16xf32> to vector<16x16xf32>
      %732 = vector.shape_cast %731 : vector<16x16xf32> to vector<1x16x16xf32>
      %733 = vector.broadcast %732 : vector<1x16x16xf32> to vector<4x16x16xf32>
      %734 = arith.mulf %729, %733 : vector<4x16x16xf32>
      %735 = arith.addf %728, %734 : vector<4x16x16xf32>
      %736 = vector.extract_strided_slice %687 {offsets = [0, 3, 3], sizes = [4, 16, 16], strides = [1, 1, 1]} : vector<4x20x20xf32> to vector<4x16x16xf32>
      %c7_247 = arith.constant 7 : index
      %c0_248 = arith.constant 0 : index
      %c0_249 = arith.constant 0 : index
      %737 = vector.load %arg5[%c7_247, %c0_248, %c0_249] : memref<16x16x16xf32, #tpu.memory_space<vmem>>, vector<1x16x16xf32>
      %738 = vector.shape_cast %737 : vector<1x16x16xf32> to vector<16x16xf32>
      %739 = vector.shape_cast %738 : vector<16x16xf32> to vector<1x16x16xf32>
      %740 = vector.broadcast %739 : vector<1x16x16xf32> to vector<4x16x16xf32>
      %741 = arith.mulf %736, %740 : vector<4x16x16xf32>
      %742 = arith.addf %735, %741 : vector<4x16x16xf32>
      %743 = vector.extract_strided_slice %687 {offsets = [0, 0, 0], sizes = [4, 16, 16], strides = [1, 1, 1]} : vector<4x20x20xf32> to vector<4x16x16xf32>
      %c8_250 = arith.constant 8 : index
      %c0_251 = arith.constant 0 : index
      %c0_252 = arith.constant 0 : index
      %744 = vector.load %arg5[%c8_250, %c0_251, %c0_252] : memref<16x16x16xf32, #tpu.memory_space<vmem>>, vector<1x16x16xf32>
      %745 = vector.shape_cast %744 : vector<1x16x16xf32> to vector<16x16xf32>
      %746 = vector.shape_cast %745 : vector<16x16xf32> to vector<1x16x16xf32>
      %747 = vector.broadcast %746 : vector<1x16x16xf32> to vector<4x16x16xf32>
      %748 = arith.mulf %743, %747 : vector<4x16x16xf32>
      %749 = arith.addf %742, %748 : vector<4x16x16xf32>
      %750 = vector.extract_strided_slice %687 {offsets = [0, 0, 2], sizes = [4, 16, 16], strides = [1, 1, 1]} : vector<4x20x20xf32> to vector<4x16x16xf32>
      %c9_253 = arith.constant 9 : index
      %c0_254 = arith.constant 0 : index
      %c0_255 = arith.constant 0 : index
      %751 = vector.load %arg5[%c9_253, %c0_254, %c0_255] : memref<16x16x16xf32, #tpu.memory_space<vmem>>, vector<1x16x16xf32>
      %752 = vector.shape_cast %751 : vector<1x16x16xf32> to vector<16x16xf32>
      %753 = vector.shape_cast %752 : vector<16x16xf32> to vector<1x16x16xf32>
      %754 = vector.broadcast %753 : vector<1x16x16xf32> to vector<4x16x16xf32>
      %755 = arith.mulf %750, %754 : vector<4x16x16xf32>
      %756 = arith.addf %749, %755 : vector<4x16x16xf32>
      %757 = vector.extract_strided_slice %687 {offsets = [0, 0, 4], sizes = [4, 16, 16], strides = [1, 1, 1]} : vector<4x20x20xf32> to vector<4x16x16xf32>
      %c10_256 = arith.constant 10 : index
      %c0_257 = arith.constant 0 : index
      %c0_258 = arith.constant 0 : index
      %758 = vector.load %arg5[%c10_256, %c0_257, %c0_258] : memref<16x16x16xf32, #tpu.memory_space<vmem>>, vector<1x16x16xf32>
      %759 = vector.shape_cast %758 : vector<1x16x16xf32> to vector<16x16xf32>
      %760 = vector.shape_cast %759 : vector<16x16xf32> to vector<1x16x16xf32>
      %761 = vector.broadcast %760 : vector<1x16x16xf32> to vector<4x16x16xf32>
      %762 = arith.mulf %757, %761 : vector<4x16x16xf32>
      %763 = arith.addf %756, %762 : vector<4x16x16xf32>
      %764 = vector.extract_strided_slice %687 {offsets = [0, 2, 0], sizes = [4, 16, 16], strides = [1, 1, 1]} : vector<4x20x20xf32> to vector<4x16x16xf32>
      %c11_259 = arith.constant 11 : index
      %c0_260 = arith.constant 0 : index
      %c0_261 = arith.constant 0 : index
      %765 = vector.load %arg5[%c11_259, %c0_260, %c0_261] : memref<16x16x16xf32, #tpu.memory_space<vmem>>, vector<1x16x16xf32>
      %766 = vector.shape_cast %765 : vector<1x16x16xf32> to vector<16x16xf32>
      %767 = vector.shape_cast %766 : vector<16x16xf32> to vector<1x16x16xf32>
      %768 = vector.broadcast %767 : vector<1x16x16xf32> to vector<4x16x16xf32>
      %769 = arith.mulf %764, %768 : vector<4x16x16xf32>
      %770 = arith.addf %763, %769 : vector<4x16x16xf32>
      %771 = vector.extract_strided_slice %687 {offsets = [0, 2, 4], sizes = [4, 16, 16], strides = [1, 1, 1]} : vector<4x20x20xf32> to vector<4x16x16xf32>
      %c12_262 = arith.constant 12 : index
      %c0_263 = arith.constant 0 : index
      %c0_264 = arith.constant 0 : index
      %772 = vector.load %arg5[%c12_262, %c0_263, %c0_264] : memref<16x16x16xf32, #tpu.memory_space<vmem>>, vector<1x16x16xf32>
      %773 = vector.shape_cast %772 : vector<1x16x16xf32> to vector<16x16xf32>
      %774 = vector.shape_cast %773 : vector<16x16xf32> to vector<1x16x16xf32>
      %775 = vector.broadcast %774 : vector<1x16x16xf32> to vector<4x16x16xf32>
      %776 = arith.mulf %771, %775 : vector<4x16x16xf32>
      %777 = arith.addf %770, %776 : vector<4x16x16xf32>
      %778 = vector.extract_strided_slice %687 {offsets = [0, 4, 0], sizes = [4, 16, 16], strides = [1, 1, 1]} : vector<4x20x20xf32> to vector<4x16x16xf32>
      %c13_265 = arith.constant 13 : index
      %c0_266 = arith.constant 0 : index
      %c0_267 = arith.constant 0 : index
      %779 = vector.load %arg5[%c13_265, %c0_266, %c0_267] : memref<16x16x16xf32, #tpu.memory_space<vmem>>, vector<1x16x16xf32>
      %780 = vector.shape_cast %779 : vector<1x16x16xf32> to vector<16x16xf32>
      %781 = vector.shape_cast %780 : vector<16x16xf32> to vector<1x16x16xf32>
      %782 = vector.broadcast %781 : vector<1x16x16xf32> to vector<4x16x16xf32>
      %783 = arith.mulf %778, %782 : vector<4x16x16xf32>
      %784 = arith.addf %777, %783 : vector<4x16x16xf32>
      %785 = vector.extract_strided_slice %687 {offsets = [0, 4, 2], sizes = [4, 16, 16], strides = [1, 1, 1]} : vector<4x20x20xf32> to vector<4x16x16xf32>
      %c14_268 = arith.constant 14 : index
      %c0_269 = arith.constant 0 : index
      %c0_270 = arith.constant 0 : index
      %786 = vector.load %arg5[%c14_268, %c0_269, %c0_270] : memref<16x16x16xf32, #tpu.memory_space<vmem>>, vector<1x16x16xf32>
      %787 = vector.shape_cast %786 : vector<1x16x16xf32> to vector<16x16xf32>
      %788 = vector.shape_cast %787 : vector<16x16xf32> to vector<1x16x16xf32>
      %789 = vector.broadcast %788 : vector<1x16x16xf32> to vector<4x16x16xf32>
      %790 = arith.mulf %785, %789 : vector<4x16x16xf32>
      %791 = arith.addf %784, %790 : vector<4x16x16xf32>
      %792 = vector.extract_strided_slice %687 {offsets = [0, 4, 4], sizes = [4, 16, 16], strides = [1, 1, 1]} : vector<4x20x20xf32> to vector<4x16x16xf32>
      %c15_271 = arith.constant 15 : index
      %c0_272 = arith.constant 0 : index
      %c0_273 = arith.constant 0 : index
      %793 = vector.load %arg5[%c15_271, %c0_272, %c0_273] : memref<16x16x16xf32, #tpu.memory_space<vmem>>, vector<1x16x16xf32>
      %794 = vector.shape_cast %793 : vector<1x16x16xf32> to vector<16x16xf32>
      %795 = vector.shape_cast %794 : vector<16x16xf32> to vector<1x16x16xf32>
      %796 = vector.broadcast %795 : vector<1x16x16xf32> to vector<4x16x16xf32>
      %797 = arith.mulf %792, %796 : vector<4x16x16xf32>
      %798 = arith.addf %791, %797 : vector<4x16x16xf32>
      scf.yield %798 : vector<4x16x16xf32>
    }
    %c0_222 = arith.constant 0 : index
    %c0_223 = arith.constant 0 : index
    %c0_224 = arith.constant 0 : index
    %c0_225 = arith.constant 0 : index
    %679 = vector.load %arg4[%c0_222, %c0_223, %c0_224, %c0_225] : memref<1x4x16x16xf32, #tpu.memory_space<vmem>>, vector<1x4x16x16xf32>
    %680 = vector.shape_cast %679 : vector<1x4x16x16xf32> to vector<4x16x16xf32>
    %681 = vector.shape_cast %678 : vector<4x16x16xf32> to vector<1x4x16x16xf32>
    tpu.vector_store %arg4[%c0_222, %c0_223, %c0_224, %c0_225], %681 {strides = array<i32>} : memref<1x4x16x16xf32, #tpu.memory_space<vmem>>, vector<1x4x16x16xf32>,
    return
  }
  func.func @transform_0(%arg0: i32) -> (i32, i32, i32, i32) {
    %c0_i32 = arith.constant 0 : i32
    %c0_i32_0 = arith.constant 0 : i32
    %c0_i32_1 = arith.constant 0 : i32
    %c0_i32_2 = arith.constant 0 : i32
    return %arg0, %c0_i32, %c0_i32_0, %c0_i32_1 : i32, i32, i32, i32
  }
  func.func @transform_1(%arg0: i32) -> (i32, i32, i32, i32) {
    %c0_i32 = arith.constant 0 : i32
    %c0_i32_0 = arith.constant 0 : i32
    %c0_i32_1 = arith.constant 0 : i32
    %c0_i32_2 = arith.constant 0 : i32
    return %arg0, %c0_i32, %c0_i32_0, %c0_i32_1 : i32, i32, i32, i32
  }
  func.func @transform_2(%arg0: i32) -> i32 {
    %c0_i32 = arith.constant 0 : i32
    %c0_i32_0 = arith.constant 0 : i32
    return %c0_i32 : i32
  }
  func.func @transform_3(%arg0: i32) -> (i32, i32, i32, i32) {
    %c0_i32 = arith.constant 0 : i32
    %c0_i32_0 = arith.constant 0 : i32
    %c0_i32_1 = arith.constant 0 : i32
    %c0_i32_2 = arith.constant 0 : i32
    return %arg0, %c0_i32, %c0_i32_0, %c0_i32_1 : i32, i32, i32, i32
  }
}

</mosaic_0001>

<llo_original>
// kernel: par3b1_forward.1
$region0: #{par3b1_forward.1}
  #allocation0 [shape = 'u32[]', space=smem, size = 0x4, offset = 0x4, fixed_abs, tag = 'smem constant byte address 0x4 - core index']
  #allocation1 [shape = 'u32[144,128]{1,0:T(1,128)}', space=vmem, size = 0x12000, scoped, tag = 'internal scratch']
  #allocation2 [shape = 'f32[16,16,16]{2,1,0:T(8,128)}', space=vmem, size = 0x20000, scoped, tag = 'scratch operand']
  #allocation3 [shape = 'f32[16,16,16]{2,1,0:T(8,128)}', space=vmem, size = 0x20000, scoped, tag = 'scratch operand']
  #allocation4 [shape = 'f32[1]{0:T(128)S(6)}', space=smem, size = 0x200, scoped, tag = 'scoped memory for par3b1_forward.1']
  %s0 = inlined_call_operand.vmem [shape: f32[2,3,22,22], index: 0, kind: input, shape index: {}]
  %s1 = inlined_call_operand.vmem [shape: f32[2,4,16,16], index: 1, kind: input, shape index: {}]
  %s2 = inlined_call_operand.<no memory space> [shape: f32[1], index: 2, kind: input, shape index: {}]
  %s3 = inlined_call_operand.hbm [shape: f32[2,4,16,16], index: 3, kind: output, shape index: {}]
  %s4 = sld [smem:[#allocation0]]
  $region52: #{par3b1_forward.1} parent=0
    _
  %s6 = ssub.s32 1, %s4
  %s7 = scalar_select 0, %s6, %s4
  %8 = sst [smem:[#allocation4]] %s2
  $region1: #{par3b1_forward.1} parent=0
    #allocation5 [shape = 'u8[65536]{0}', space=vmem, size = 0x10000, scoped, tag = 'output window, operand 0']
    #allocation6 [shape = 's32[2]{0}', space=sflag, size = 0x8, scoped, tag = 'scoped memory for par3b1_forward.1']
    %9 = vsyncpa [#allocation6], 0
    %s10 = scalar_lea.sflag [#allocation6], 1
    %11 = vsyncpa %s10, 0
    loop: start=0, step=1, limit=4
    $region2: #{par3b1_forward.1} parent=1 // loop_pre_header
      _
    $region3: #{par3b1_forward.1} parent=1 // loop_header
      %s13 = sphi 0, %s17
      %p14 = scmp.ge.s32.totalorder %s13, 4
      %s23 = sphi 0, %s25
      %s26 = sphi 0, %s23
      %s27 = sphi 0, %s26
      %s43 = sphi 0, %s27
      %s49 = sphi 0, %s51
      %s52 = sphi 0, %s49
      %s53 = sphi 0, %s52
      %s69 = sphi 0, %s53
      %s73 = sphi 0, %s73
      %s75 = sphi 0, %s73
      %s76 = sphi 0, %s75
      %s90 = sphi 0, %s76
      %s96 = sphi 0, %s98
      %s99 = sphi 0, %s96
      %s100 = sphi 0, %s99
      %s116 = sphi 0, %s100
    $region4: #{par3b1_forward.1} parent=1 // loop_header_branch
      %16 = sbr.rel (%p14) target = $region8
    $region5: #{par3b1_forward.1} parent=1 // loop_body
      %s18 = ssub.s32 %s13, 1
      %s19 = ssub.s32 %s13, 2
      %s20 = sadd.s32 %s13, 1
      %s21 = ssub.s32 %s13, %s20
      %p22 = scmp.eq.s32.totalorder %s21, 0
      %s24 = sadd.s32 %s23, 1
      %s25 = scalar_select %p22, %s23, %s24
      %p28 = pneg %p22
      %p29 = scmp.eq.s32.totalorder %s13, 1
      %p30 = por %p28, %p29
      %p31 = scmp.ne.s32.totalorder %s23, %s26
      %p32 = scmp.eq.s32.totalorder %s13, 0
      %p33 = por %p31, %p32
      %p34 = scmp.ne.s32.totalorder %s23, %s26
      %p35 = scmp.eq.s32.totalorder %s18, 1
      %p36 = por %p34, %p35
      %p37 = scmp.ne.s32.totalorder %s26, %s27
      %p38 = scmp.eq.s32.totalorder %s18, 0
      %p39 = por %p37, %p38
      %p40 = scmp.ne.s32.totalorder %s26, %s27
      %p41 = scmp.eq.s32.totalorder %s19, 1
      %p42 = por %p40, %p41
      %p44 = scmp.ne.s32.totalorder %s27, %s43
      %p45 = scmp.eq.s32.totalorder %s19, 0
      %p46 = por %p44, %p45
      %s47 = ssub.s32 %s13, %s20
      %p48 = scmp.eq.s32.totalorder %s47, 0
      %s50 = sadd.s32 %s49, 1
      %s51 = scalar_select %p48, %s49, %s50
      %p54 = pneg %p48
      %p55 = scmp.eq.s32.totalorder %s13, 1
      %p56 = por %p54, %p55
      %p57 = scmp.ne.s32.totalorder %s49, %s52
      %p58 = scmp.eq.s32.totalorder %s13, 0
      %p59 = por %p57, %p58
      %p60 = scmp.ne.s32.totalorder %s49, %s52
      %p61 = scmp.eq.s32.totalorder %s18, 1
      %p62 = por %p60, %p61
      %p63 = scmp.ne.s32.totalorder %s52, %s53
      %p64 = scmp.eq.s32.totalorder %s18, 0
      %p65 = por %p63, %p64
      %p66 = scmp.ne.s32.totalorder %s52, %s53
      %p67 = scmp.eq.s32.totalorder %s19, 1
      %p68 = por %p66, %p67
      %p70 = scmp.ne.s32.totalorder %s53, %s69
      %p71 = scmp.eq.s32.totalorder %s19, 0
      %p72 = por %p70, %p71
      %s74 = sadd.s32 %s73, 1
      %p77 = scmp.eq.s32.totalorder %s13, 1
      %p78 = scmp.ne.s32.totalorder %s73, %s75
      %p79 = scmp.eq.s32.totalorder %s13, 0
      %p80 = por %p78, %p79
      %p81 = scmp.ne.s32.totalorder %s73, %s75
      %p82 = scmp.eq.s32.totalorder %s18, 1
      %p83 = por %p81, %p82
      %p84 = scmp.ne.s32.totalorder %s75, %s76
      %p85 = scmp.eq.s32.totalorder %s18, 0
      %p86 = por %p84, %p85
      %p87 = scmp.ne.s32.totalorder %s75, %s76
      %p88 = scmp.eq.s32.totalorder %s19, 1
      %p89 = por %p87, %p88
      %p91 = scmp.ne.s32.totalorder %s76, %s90
      %p92 = scmp.eq.s32.totalorder %s19, 0
      %p93 = por %p91, %p92
      %s94 = ssub.s32 %s13, %s20
      %p95 = scmp.eq.s32.totalorder %s94, 0
      %s97 = sadd.s32 %s96, 1
      %s98 = scalar_select %p95, %s96, %s97
      %p101 = pneg %p95
      %p102 = scmp.eq.s32.totalorder %s13, 1
      %p103 = por %p101, %p102
      %p104 = scmp.ne.s32.totalorder %s96, %s99
      %p105 = scmp.eq.s32.totalorder %s13, 0
      %p106 = por %p104, %p105
      %p107 = scmp.ne.s32.totalorder %s96, %s99
      %p108 = scmp.eq.s32.totalorder %s18, 1
      %p109 = por %p107, %p108
      %p110 = scmp.ne.s32.totalorder %s99, %s100
      %p111 = scmp.eq.s32.totalorder %s18, 0
      %p112 = por %p110, %p111
      %p113 = scmp.ne.s32.totalorder %s99, %s100
      %p114 = scmp.eq.s32.totalorder %s19, 1
      %p115 = por %p113, %p114
      %p117 = scmp.ne.s32.totalorder %s100, %s116
      %p118 = scmp.eq.s32.totalorder %s19, 0
      %p119 = por %p117, %p118
      %p120 = scmp.le.s32.totalorder 1, %s13
      %p121 = scmp.lt.s32.totalorder %s13, 3
      %p122 = pnand %p120, %p121
      %p123 = pneg %p122
      // Predicated region
      $region9: #{par3b1_forward.1} parent=5 // pred_check
        _
      $region10: #{par3b1_forward.1} parent=5 // pred_check_branch
        %125 = sbr.rel (%p122) target = $region12
      $region11: #{par3b1_forward.1} parent=5 // pred_region
        %s126 = ssub.s32 %s13, 1
        // Predicated region
        $region13: #{par3b1_forward.1} parent=11 // pred_check
          %p127 = pneg %p86
        $region14: #{par3b1_forward.1} parent=11 // pred_check_branch
          %129 = sbr.rel (%p127) target = $region16
        $region15: #{par3b1_forward.1} parent=11 // pred_region
          _
        $region16: #{par3b1_forward.1} parent=11 // pred_fallthru
          _
      $region12: #{par3b1_forward.1} parent=5 // pred_fallthru
        _
      %p130 = scmp.lt.s32.totalorder %s13, 2
      // Predicated region
      $region17: #{par3b1_forward.1} parent=5 // pred_check
        %p131 = pneg %p130
      $region18: #{par3b1_forward.1} parent=5 // pred_check_branch
        %133 = sbr.rel (%p131) target = $region20
      $region19: #{par3b1_forward.1} parent=5 // pred_region
        // Predicated region
        $region21: #{par3b1_forward.1} parent=19 // pred_check
          %p134 = pneg %p33
        $region22: #{par3b1_forward.1} parent=19 // pred_check_branch
          %136 = sbr.rel (%p134) target = $region24
        $region23: #{par3b1_forward.1} parent=19 // pred_region
          %p137 = scmp.lt.s32.totalorder %s13, 1
          %s138 = scalar_select %p137, %s13, 1
          %s139 = smul.addr %s138, 9
          %s140 = smul.addr %s139, 8
          %s141 = scalar_lea.vmem %s0, %s140
        $region24: #{par3b1_forward.1} parent=19 // pred_fallthru
          _
        // Predicated region
        $region25: #{par3b1_forward.1} parent=19 // pred_check
          %p142 = pneg %p59
        $region26: #{par3b1_forward.1} parent=19 // pred_check_branch
          %144 = sbr.rel (%p142) target = $region28
        $region27: #{par3b1_forward.1} parent=19 // pred_region
          %p145 = scmp.lt.s32.totalorder %s13, 1
          %s146 = scalar_select %p145, %s13, 1
          %s147 = smul.addr %s146, 8
          %s148 = smul.addr %s147, 8
          %s149 = scalar_lea.vmem %s1, %s148
        $region28: #{par3b1_forward.1} parent=19 // pred_fallthru
          _
      $region20: #{par3b1_forward.1} parent=5 // pred_fallthru
        _
      %p150 = scmp.le.s32.totalorder 1, %s13
      %p151 = scmp.lt.s32.totalorder %s13, 3
      %p152 = pnand %p150, %p151
      %p153 = pneg %p152
      // Predicated region
      $region29: #{par3b1_forward.1} parent=5 // pred_check
        _
      $region30: #{par3b1_forward.1} parent=5 // pred_check_branch
        %155 = sbr.rel (%p152) target = $region32
      $region31: #{par3b1_forward.1} parent=5 // pred_region
        %s156 = ssub.s32 %s13, 1
        %p157 = scmp.lt.s32.totalorder %s18, 1
        %s158 = scalar_select %p157, %s18, 1
        %s159 = smul.addr %s158, 9
        %s160 = smul.addr %s159, 8
        %s161 = scalar_lea.vmem %s0, %s160
        %p162 = pneg %p39
        %p163 = pneg %p36
        %p164 = scmp.lt.s32.totalorder %s18, 1
        %s165 = scalar_select %p164, %s18, 1
        %s166 = smul.addr %s165, 8
        %s167 = smul.addr %s166, 8
        %s168 = scalar_lea.vmem %s1, %s167
        %p169 = pneg %p65
        %p170 = pneg %p62
        %p171 = pneg %p86
        %p172 = pneg %p83
        %p173 = pneg %p112
        %p174 = pneg %p109
        %s175 = sand.u32 %s99, 1
        %s176 = scalar_lea.sflag [#allocation6], %s175
        %s177 = sand.u32 %s99, 1
        %s178 = smul.addr %s177, 64
        %s179 = scalar_lea.vmem [#allocation5], %s178
        %p180 = scmp.lt.s32.totalorder %s18, 1
        %s181 = scalar_select %p180, %s18, 1
        %s182 = smul.addr %s181, 9
        %s183 = smul.addr %s182, 8
        %s184 = scalar_lea.vmem %s0, %s183
        %p185 = scmp.lt.s32.totalorder %s18, 1
        %s186 = scalar_select %p185, %s18, 1
        %s187 = smul.addr %s186, 8
        %s188 = smul.addr %s187, 8
        %s189 = scalar_lea.vmem %s1, %s188
        %v190 = vld [vmem:[%s184] sm:$0xff]
        %v191 = vld [vmem:[%s184 + $0x8] sm:$0xff]
        %v192 = vld [vmem:[%s184 + $0x10] sm:$0x3f]
        %v193 = vld [vmem:[%s184 + $0x18] sm:$0xff]
        %v194 = vld [vmem:[%s184 + $0x20] sm:$0xff]
        %v195 = vld [vmem:[%s184 + $0x28] sm:$0x3f]
        %v196 = vld [vmem:[%s184 + $0x30] sm:$0xff]
        %v197 = vld [vmem:[%s184 + $0x38] sm:$0xff]
        %v198 = vld [vmem:[%s184 + $0x40] sm:$0x3f]
        %208 = vrot.lane.b32.xlu0 %v190, 127
        %v209 = vpop.permute.xlu0 %208
        %210 = vrot.lane.b32.xlu0 %v191, 127
        %v211 = vpop.permute.xlu0 %210
        %212 = vrot.lane.b32.xlu0 %v192, 127
        %v213 = vpop.permute.xlu0 %212
        %214 = vrot.lane.b32.xlu0 %v193, 127
        %v215 = vpop.permute.xlu0 %214
        %216 = vrot.lane.b32.xlu0 %v194, 127
        %v217 = vpop.permute.xlu0 %216
        %218 = vrot.lane.b32.xlu0 %v195, 127
        %v219 = vpop.permute.xlu0 %218
        %220 = vrot.lane.b32.xlu0 %v196, 127
        %v221 = vpop.permute.xlu0 %220
        %222 = vrot.lane.b32.xlu0 %v197, 127
        %v223 = vpop.permute.xlu0 %222
        %224 = vrot.lane.b32.xlu0 %v198, 127
        %v225 = vpop.permute.xlu0 %224
        %v235 = vadd.f32 %v190, %v209
        %v236 = vadd.f32 %v191, %v211
        %v237 = vadd.f32 %v192, %v213
        %v238 = vadd.f32 %v193, %v215
        %v239 = vadd.f32 %v194, %v217
        %v240 = vadd.f32 %v195, %v219
        %v241 = vadd.f32 %v196, %v221
        %v242 = vadd.f32 %v197, %v223
        %v243 = vadd.f32 %v198, %v225
        %244 = vrot.lane.b32.xlu0 %v190, 126
        %v245 = vpop.permute.xlu0 %244
        %246 = vrot.lane.b32.xlu0 %v191, 126
        %v247 = vpop.permute.xlu0 %246
        %248 = vrot.lane.b32.xlu0 %v192, 126
        %v249 = vpop.permute.xlu0 %248
        %250 = vrot.lane.b32.xlu0 %v193, 126
        %v251 = vpop.permute.xlu0 %250
        %252 = vrot.lane.b32.xlu0 %v194, 126
        %v253 = vpop.permute.xlu0 %252
        %254 = vrot.lane.b32.xlu0 %v195, 126
        %v255 = vpop.permute.xlu0 %254
        %256 = vrot.lane.b32.xlu0 %v196, 126
        %v257 = vpop.permute.xlu0 %256
        %258 = vrot.lane.b32.xlu0 %v197, 126
        %v259 = vpop.permute.xlu0 %258
        %260 = vrot.lane.b32.xlu0 %v198, 126
        %v261 = vpop.permute.xlu0 %260
        %v271 = vadd.f32 %v235, %v245
        %v272 = vadd.f32 %v236, %v247
        %v273 = vadd.f32 %v237, %v249
        %v274 = vadd.f32 %v238, %v251
        %v275 = vadd.f32 %v239, %v253
        %v276 = vadd.f32 %v240, %v255
        %v277 = vadd.f32 %v241, %v257
        %v278 = vadd.f32 %v242, %v259
        %v279 = vadd.f32 %v243, %v261
        %vm280 = vcmask 1046528
        %v281 = vrot.slane %v190, 1
        %v282 = vrot.slane %v191, 1
        %v283 = vsel %vm280, %v281, %v282
        %v284 = vrot.slane %v192, 1
        %v285 = vsel %vm280, %v282, %v284
        %v286 = vrot.slane %v193, 1
        %v287 = vrot.slane %v194, 1
        %v288 = vsel %vm280, %v286, %v287
        %v289 = vrot.slane %v195, 1
        %v290 = vsel %vm280, %v287, %v289
        %v291 = vrot.slane %v196, 1
        %v292 = vrot.slane %v197, 1
        %v293 = vsel %vm280, %v291, %v292
        %v294 = vrot.slane %v198, 1
        %v295 = vsel %vm280, %v292, %v294
        %v305 = vadd.f32 %v271, %v283
        %v306 = vadd.f32 %v272, %v285
        %v307 = vadd.f32 %v273, %v284
        %v308 = vadd.f32 %v274, %v288
        %v309 = vadd.f32 %v275, %v290
        %v310 = vadd.f32 %v276, %v289
        %v311 = vadd.f32 %v277, %v293
        %v312 = vadd.f32 %v278, %v295
        %v313 = vadd.f32 %v279, %v294
        %314 = vrot.lane.b32.xlu0 %v283, 126
        %v315 = vpop.permute.xlu0 %314
        %316 = vrot.lane.b32.xlu0 %v285, 126
        %v317 = vpop.permute.xlu0 %316
        %318 = vrot.lane.b32.xlu0 %v284, 126
        %v319 = vpop.permute.xlu0 %318
        %320 = vrot.lane.b32.xlu0 %v288, 126
        %v321 = vpop.permute.xlu0 %320
        %322 = vrot.lane.b32.xlu0 %v290, 126
        %v323 = vpop.permute.xlu0 %322
        %324 = vrot.lane.b32.xlu0 %v289, 126
        %v325 = vpop.permute.xlu0 %324
        %326 = vrot.lane.b32.xlu0 %v293, 126
        %v327 = vpop.permute.xlu0 %326
        %328 = vrot.lane.b32.xlu0 %v295, 126
        %v329 = vpop.permute.xlu0 %328
        %330 = vrot.lane.b32.xlu0 %v294, 126
        %v331 = vpop.permute.xlu0 %330
        %v341 = vadd.f32 %v305, %v315
        %v342 = vadd.f32 %v306, %v317
        %v343 = vadd.f32 %v307, %v319
        %v344 = vadd.f32 %v308, %v321
        %v345 = vadd.f32 %v309, %v323
        %v346 = vadd.f32 %v310, %v325
        %v347 = vadd.f32 %v311, %v327
        %v348 = vadd.f32 %v312, %v329
        %v349 = vadd.f32 %v313, %v331
        %vm350 = vcmask 1045504
        %v351 = vrot.slane %v190, 2
        %v352 = vrot.slane %v191, 2
        %v353 = vsel %vm350, %v351, %v352
        %v354 = vrot.slane %v192, 2
        %v355 = vsel %vm350, %v352, %v354
        %v356 = vrot.slane %v193, 2
        %v357 = vrot.slane %v194, 2
        %v358 = vsel %vm350, %v356, %v357
        %v359 = vrot.slane %v195, 2
        %v360 = vsel %vm350, %v357, %v359
        %v361 = vrot.slane %v196, 2
        %v362 = vrot.slane %v197, 2
        %v363 = vsel %vm350, %v361, %v362
        %v364 = vrot.slane %v198, 2
        %v365 = vsel %vm350, %v362, %v364
        %v375 = vadd.f32 %v341, %v353
        %v376 = vadd.f32 %v342, %v355
        %v377 = vadd.f32 %v343, %v354
        %v378 = vadd.f32 %v344, %v358
        %v379 = vadd.f32 %v345, %v360
        %v380 = vadd.f32 %v346, %v359
        %v381 = vadd.f32 %v347, %v363
        %v382 = vadd.f32 %v348, %v365
        %v383 = vadd.f32 %v349, %v364
        %384 = vrot.lane.b32.xlu0 %v353, 127
        %v385 = vpop.permute.xlu0 %384
        %386 = vrot.lane.b32.xlu0 %v355, 127
        %v387 = vpop.permute.xlu0 %386
        %388 = vrot.lane.b32.xlu0 %v354, 127
        %v389 = vpop.permute.xlu0 %388
        %390 = vrot.lane.b32.xlu0 %v358, 127
        %v391 = vpop.permute.xlu0 %390
        %392 = vrot.lane.b32.xlu0 %v360, 127
        %v393 = vpop.permute.xlu0 %392
        %394 = vrot.lane.b32.xlu0 %v359, 127
        %v395 = vpop.permute.xlu0 %394
        %396 = vrot.lane.b32.xlu0 %v363, 127
        %v397 = vpop.permute.xlu0 %396
        %398 = vrot.lane.b32.xlu0 %v365, 127
        %v399 = vpop.permute.xlu0 %398
        %400 = vrot.lane.b32.xlu0 %v364, 127
        %v401 = vpop.permute.xlu0 %400
        %v411 = vadd.f32 %v375, %v385
        %v412 = vadd.f32 %v376, %v387
        %v413 = vadd.f32 %v377, %v389
        %v414 = vadd.f32 %v378, %v391
        %v415 = vadd.f32 %v379, %v393
        %v416 = vadd.f32 %v380, %v395
        %v417 = vadd.f32 %v381, %v397
        %v418 = vadd.f32 %v382, %v399
        %v419 = vadd.f32 %v383, %v401
        %420 = vrot.lane.b32.xlu0 %v353, 126
        %v421 = vpop.permute.xlu0 %420
        %422 = vrot.lane.b32.xlu0 %v355, 126
        %v423 = vpop.permute.xlu0 %422
        %424 = vrot.lane.b32.xlu0 %v354, 126
        %v425 = vpop.permute.xlu0 %424
        %426 = vrot.lane.b32.xlu0 %v358, 126
        %v427 = vpop.permute.xlu0 %426
        %428 = vrot.lane.b32.xlu0 %v360, 126
        %v429 = vpop.permute.xlu0 %428
        %430 = vrot.lane.b32.xlu0 %v359, 126
        %v431 = vpop.permute.xlu0 %430
        %432 = vrot.lane.b32.xlu0 %v363, 126
        %v433 = vpop.permute.xlu0 %432
        %434 = vrot.lane.b32.xlu0 %v365, 126
        %v435 = vpop.permute.xlu0 %434
        %436 = vrot.lane.b32.xlu0 %v364, 126
        %v437 = vpop.permute.xlu0 %436
        %v447 = vadd.f32 %v411, %v421
        %v448 = vadd.f32 %v412, %v423
        %v449 = vadd.f32 %v413, %v425
        %v450 = vadd.f32 %v414, %v427
        %v451 = vadd.f32 %v415, %v429
        %v452 = vadd.f32 %v416, %v431
        %v453 = vadd.f32 %v417, %v433
        %v454 = vadd.f32 %v418, %v435
        %v455 = vadd.f32 %v419, %v437
        %vm456 = vcmask 1040384
        %v457 = vrot.slane %v190, 7
        %v458 = vrot.slane %v191, 7
        %v459 = vsel %vm456, %v457, %v458
        %v460 = vrot.slane %v192, 7
        %v461 = vsel %vm456, %v458, %v460
        %v462 = vrot.slane %v193, 7
        %v463 = vrot.slane %v194, 7
        %v464 = vsel %vm456, %v462, %v463
        %v465 = vrot.slane %v195, 7
        %v466 = vsel %vm456, %v463, %v465
        %v467 = vrot.slane %v196, 7
        %v468 = vrot.slane %v197, 7
        %v469 = vsel %vm456, %v467, %v468
        %v470 = vrot.slane %v198, 7
        %v471 = vsel %vm456, %v468, %v470
        %472 = vrot.lane.b32.xlu0 %v457, 1
        %v473 = vpop.permute.xlu0 %472
        %474 = vrot.lane.b32.xlu0 %v459, 1
        %v475 = vpop.permute.xlu0 %474
        %476 = vrot.lane.b32.xlu0 %v461, 1
        %v477 = vpop.permute.xlu0 %476
        %478 = vrot.lane.b32.xlu0 %v462, 1
        %v479 = vpop.permute.xlu0 %478
        %480 = vrot.lane.b32.xlu0 %v464, 1
        %v481 = vpop.permute.xlu0 %480
        %482 = vrot.lane.b32.xlu0 %v466, 1
        %v483 = vpop.permute.xlu0 %482
        %484 = vrot.lane.b32.xlu0 %v467, 1
        %v485 = vpop.permute.xlu0 %484
        %486 = vrot.lane.b32.xlu0 %v469, 1
        %v487 = vpop.permute.xlu0 %486
        %488 = vrot.lane.b32.xlu0 %v471, 1
        %v489 = vpop.permute.xlu0 %488
        %v499 = vadd.f32 %v447, %v473
        %v500 = vadd.f32 %v448, %v475
        %v501 = vadd.f32 %v449, %v477
        %v502 = vadd.f32 %v450, %v479
        %v503 = vadd.f32 %v451, %v481
        %v504 = vadd.f32 %v452, %v483
        %v505 = vadd.f32 %v453, %v485
        %v506 = vadd.f32 %v454, %v487
        %v507 = vadd.f32 %v455, %v489
        %508 = vrot.lane.b32.xlu0 %v457, 127
        %v509 = vpop.permute.xlu0 %508
        %510 = vrot.lane.b32.xlu0 %v459, 127
        %v511 = vpop.permute.xlu0 %510
        %512 = vrot.lane.b32.xlu0 %v461, 127
        %v513 = vpop.permute.xlu0 %512
        %514 = vrot.lane.b32.xlu0 %v462, 127
        %v515 = vpop.permute.xlu0 %514
        %516 = vrot.lane.b32.xlu0 %v464, 127
        %v517 = vpop.permute.xlu0 %516
        %518 = vrot.lane.b32.xlu0 %v466, 127
        %v519 = vpop.permute.xlu0 %518
        %520 = vrot.lane.b32.xlu0 %v467, 127
        %v521 = vpop.permute.xlu0 %520
        %522 = vrot.lane.b32.xlu0 %v469, 127
        %v523 = vpop.permute.xlu0 %522
        %524 = vrot.lane.b32.xlu0 %v471, 127
        %v525 = vpop.permute.xlu0 %524
        %v535 = vadd.f32 %v499, %v509
        %v536 = vadd.f32 %v500, %v511
        %v537 = vadd.f32 %v501, %v513
        %v538 = vadd.f32 %v502, %v515
        %v539 = vadd.f32 %v503, %v517
        %v540 = vadd.f32 %v504, %v519
        %v541 = vadd.f32 %v505, %v521
        %v542 = vadd.f32 %v506, %v523
        %v543 = vadd.f32 %v507, %v525
        %544 = vrot.lane.b32.xlu0 %v457, 125
        %v545 = vpop.permute.xlu0 %544
        %546 = vrot.lane.b32.xlu0 %v459, 125
        %v547 = vpop.permute.xlu0 %546
        %548 = vrot.lane.b32.xlu0 %v461, 125
        %v549 = vpop.permute.xlu0 %548
        %550 = vrot.lane.b32.xlu0 %v462, 125
        %v551 = vpop.permute.xlu0 %550
        %552 = vrot.lane.b32.xlu0 %v464, 125
        %v553 = vpop.permute.xlu0 %552
        %554 = vrot.lane.b32.xlu0 %v466, 125
        %v555 = vpop.permute.xlu0 %554
        %556 = vrot.lane.b32.xlu0 %v467, 125
        %v557 = vpop.permute.xlu0 %556
        %558 = vrot.lane.b32.xlu0 %v469, 125
        %v559 = vpop.permute.xlu0 %558
        %560 = vrot.lane.b32.xlu0 %v471, 125
        %v561 = vpop.permute.xlu0 %560
        %v571 = vadd.f32 %v535, %v545
        %v572 = vadd.f32 %v536, %v547
        %v573 = vadd.f32 %v537, %v549
        %v574 = vadd.f32 %v538, %v551
        %v575 = vadd.f32 %v539, %v553
        %v576 = vadd.f32 %v540, %v555
        %v577 = vadd.f32 %v541, %v557
        %v578 = vadd.f32 %v542, %v559
        %v579 = vadd.f32 %v543, %v561
        %580 = vrot.lane.b32.xlu0 %v283, 1
        %v581 = vpop.permute.xlu0 %580
        %582 = vrot.lane.b32.xlu0 %v285, 1
        %v583 = vpop.permute.xlu0 %582
        %584 = vrot.lane.b32.xlu0 %v284, 1
        %v585 = vpop.permute.xlu0 %584
        %586 = vrot.lane.b32.xlu0 %v288, 1
        %v587 = vpop.permute.xlu0 %586
        %588 = vrot.lane.b32.xlu0 %v290, 1
        %v589 = vpop.permute.xlu0 %588
        %590 = vrot.lane.b32.xlu0 %v289, 1
        %v591 = vpop.permute.xlu0 %590
        %592 = vrot.lane.b32.xlu0 %v293, 1
        %v593 = vpop.permute.xlu0 %592
        %594 = vrot.lane.b32.xlu0 %v295, 1
        %v595 = vpop.permute.xlu0 %594
        %596 = vrot.lane.b32.xlu0 %v294, 1
        %v597 = vpop.permute.xlu0 %596
        %v607 = vadd.f32 %v571, %v581
        %v608 = vadd.f32 %v572, %v583
        %v609 = vadd.f32 %v573, %v585
        %v610 = vadd.f32 %v574, %v587
        %v611 = vadd.f32 %v575, %v589
        %v612 = vadd.f32 %v576, %v591
        %v613 = vadd.f32 %v577, %v593
        %v614 = vadd.f32 %v578, %v595
        %v615 = vadd.f32 %v579, %v597
        %616 = vrot.lane.b32.xlu0 %v283, 125
        %v617 = vpop.permute.xlu0 %616
        %618 = vrot.lane.b32.xlu0 %v285, 125
        %v619 = vpop.permute.xlu0 %618
        %620 = vrot.lane.b32.xlu0 %v284, 125
        %v621 = vpop.permute.xlu0 %620
        %622 = vrot.lane.b32.xlu0 %v288, 125
        %v623 = vpop.permute.xlu0 %622
        %624 = vrot.lane.b32.xlu0 %v290, 125
        %v625 = vpop.permute.xlu0 %624
        %626 = vrot.lane.b32.xlu0 %v289, 125
        %v627 = vpop.permute.xlu0 %626
        %628 = vrot.lane.b32.xlu0 %v293, 125
        %v629 = vpop.permute.xlu0 %628
        %630 = vrot.lane.b32.xlu0 %v295, 125
        %v631 = vpop.permute.xlu0 %630
        %632 = vrot.lane.b32.xlu0 %v294, 125
        %v633 = vpop.permute.xlu0 %632
        %v643 = vadd.f32 %v607, %v617
        %v644 = vadd.f32 %v608, %v619
        %v645 = vadd.f32 %v609, %v621
        %v646 = vadd.f32 %v610, %v623
        %v647 = vadd.f32 %v611, %v625
        %v648 = vadd.f32 %v612, %v627
        %v649 = vadd.f32 %v613, %v629
        %v650 = vadd.f32 %v614, %v631
        %v651 = vadd.f32 %v615, %v633
        %vm652 = vcmask 1044480
        %v653 = vrot.slane %v190, 3
        %v654 = vrot.slane %v191, 3
        %v655 = vsel %vm652, %v653, %v654
        %v656 = vrot.slane %v192, 3
        %v657 = vsel %vm652, %v654, %v656
        %v658 = vrot.slane %v193, 3
        %v659 = vrot.slane %v194, 3
        %v660 = vsel %vm652, %v658, %v659
        %v661 = vrot.slane %v195, 3
        %v662 = vsel %vm652, %v659, %v661
        %v663 = vrot.slane %v196, 3
        %v664 = vrot.slane %v197, 3
        %v665 = vsel %vm652, %v663, %v664
        %v666 = vrot.slane %v198, 3
        %v667 = vsel %vm652, %v664, %v666
        %668 = vrot.lane.b32.xlu0 %v655, 1
        %v669 = vpop.permute.xlu0 %668
        %670 = vrot.lane.b32.xlu0 %v657, 1
        %v671 = vpop.permute.xlu0 %670
        %672 = vrot.lane.b32.xlu0 %v656, 1
        %v673 = vpop.permute.xlu0 %672
        %674 = vrot.lane.b32.xlu0 %v660, 1
        %v675 = vpop.permute.xlu0 %674
        %676 = vrot.lane.b32.xlu0 %v662, 1
        %v677 = vpop.permute.xlu0 %676
        %678 = vrot.lane.b32.xlu0 %v661, 1
        %v679 = vpop.permute.xlu0 %678
        %680 = vrot.lane.b32.xlu0 %v665, 1
        %v681 = vpop.permute.xlu0 %680
        %682 = vrot.lane.b32.xlu0 %v667, 1
        %v683 = vpop.permute.xlu0 %682
        %684 = vrot.lane.b32.xlu0 %v666, 1
        %v685 = vpop.permute.xlu0 %684
        %v695 = vadd.f32 %v643, %v669
        %v696 = vadd.f32 %v644, %v671
        %v697 = vadd.f32 %v645, %v673
        %v698 = vadd.f32 %v646, %v675
        %v699 = vadd.f32 %v647, %v677
        %v700 = vadd.f32 %v648, %v679
        %v701 = vadd.f32 %v649, %v681
        %v702 = vadd.f32 %v650, %v683
        %v703 = vadd.f32 %v651, %v685
        %704 = vrot.lane.b32.xlu0 %v655, 127
        %v705 = vpop.permute.xlu0 %704
        %706 = vrot.lane.b32.xlu0 %v657, 127
        %v707 = vpop.permute.xlu0 %706
        %708 = vrot.lane.b32.xlu0 %v656, 127
        %v709 = vpop.permute.xlu0 %708
        %710 = vrot.lane.b32.xlu0 %v660, 127
        %v711 = vpop.permute.xlu0 %710
        %712 = vrot.lane.b32.xlu0 %v662, 127
        %v713 = vpop.permute.xlu0 %712
        %714 = vrot.lane.b32.xlu0 %v661, 127
        %v715 = vpop.permute.xlu0 %714
        %716 = vrot.lane.b32.xlu0 %v665, 127
        %v717 = vpop.permute.xlu0 %716
        %718 = vrot.lane.b32.xlu0 %v667, 127
        %v719 = vpop.permute.xlu0 %718
        %720 = vrot.lane.b32.xlu0 %v666, 127
        %v721 = vpop.permute.xlu0 %720
        %v731 = vadd.f32 %v695, %v705
        %v732 = vadd.f32 %v696, %v707
        %v733 = vadd.f32 %v697, %v709
        %v734 = vadd.f32 %v698, %v711
        %v735 = vadd.f32 %v699, %v713
        %v736 = vadd.f32 %v700, %v715
        %v737 = vadd.f32 %v701, %v717
        %v738 = vadd.f32 %v702, %v719
        %v739 = vadd.f32 %v703, %v721
        %740 = vrot.lane.b32.xlu0 %v655, 125
        %v741 = vpop.permute.xlu0 %740
        %742 = vrot.lane.b32.xlu0 %v657, 125
        %v743 = vpop.permute.xlu0 %742
        %744 = vrot.lane.b32.xlu0 %v656, 125
        %v745 = vpop.permute.xlu0 %744
        %746 = vrot.lane.b32.xlu0 %v660, 125
        %v747 = vpop.permute.xlu0 %746
        %748 = vrot.lane.b32.xlu0 %v662, 125
        %v749 = vpop.permute.xlu0 %748
        %750 = vrot.lane.b32.xlu0 %v661, 125
        %v751 = vpop.permute.xlu0 %750
        %752 = vrot.lane.b32.xlu0 %v665, 125
        %v753 = vpop.permute.xlu0 %752
        %754 = vrot.lane.b32.xlu0 %v667, 125
        %v755 = vpop.permute.xlu0 %754
        %756 = vrot.lane.b32.xlu0 %v666, 125
        %v757 = vpop.permute.xlu0 %756
        %v767 = vadd.f32 %v731, %v741
        %v768 = vadd.f32 %v732, %v743
        %v769 = vadd.f32 %v733, %v745
        %v770 = vadd.f32 %v734, %v747
        %v771 = vadd.f32 %v735, %v749
        %v772 = vadd.f32 %v736, %v751
        %v773 = vadd.f32 %v737, %v753
        %v774 = vadd.f32 %v738, %v755
        %v775 = vadd.f32 %v739, %v757
        %v776 = vmul.f32 %v767, 0.0625
        %v777 = vmul.f32 %v768, 0.0625
        %v778 = vmul.f32 %v769, 0.0625
        %v779 = vmul.f32 %v770, 0.0625
        %v780 = vmul.f32 %v771, 0.0625
        %v781 = vmul.f32 %v772, 0.0625
        %v782 = vmul.f32 %v773, 0.0625
        %v783 = vmul.f32 %v774, 0.0625
        %v784 = vmul.f32 %v775, 0.0625
        %v785 = vlaneseq
        %v786 = vshrl.u32 %v785, 7
        %v787 = vadd.s32 %v786, 8
        %v788 = vlaneseq
        %v789 = vand.u32 %v788, 127
        %vm790 = vcmp.lt.s32.totalorder %v786, 15
        %vm791 = vcmp.lt.s32.totalorder %v787, 15
        %vm792 = vcmp.lt.s32.totalorder %v789, 15
        %v793 = vsub.f32 %v190, %v776
        %v794 = vsub.f32 %v191, %v777
        %v795 = vsub.f32 %v192, %v778
        %v796 = vsub.f32 %v193, %v779
        %v797 = vsub.f32 %v194, %v780
        %v798 = vsub.f32 %v195, %v781
        %v799 = vsub.f32 %v196, %v782
        %v800 = vsub.f32 %v197, %v783
        %v801 = vsub.f32 %v198, %v784
        %v802 = vmul.f32 %v793, %v793
        %v803 = vmul.f32 %v794, %v794
        %v804 = vmul.f32 %v795, %v795
        %v805 = vmul.f32 %v796, %v796
        %v806 = vmul.f32 %v797, %v797
        %v807 = vmul.f32 %v798, %v798
        %v808 = vmul.f32 %v799, %v799
        %v809 = vmul.f32 %v800, %v800
        %v810 = vmul.f32 %v801, %v801
        %v811 = vadd.f32 %v802, 0.0
        %v812 = vadd.f32 %v803, 0.0
        %v813 = vadd.f32 %v804, 0.0
        %v814 = vadd.f32 %v805, 0.0
        %v815 = vadd.f32 %v806, 0.0
        %v816 = vadd.f32 %v807, 0.0
        %v817 = vadd.f32 %v808, 0.0
        %v818 = vadd.f32 %v809, 0.0
        %v819 = vadd.f32 %v810, 0.0
        %v820 = vsub.f32 %v190, %v283
        %v821 = vsub.f32 %v191, %v285
        %v822 = vsub.f32 %v192, %v284
        %v823 = vsub.f32 %v193, %v288
        %v824 = vsub.f32 %v194, %v290
        %v825 = vsub.f32 %v195, %v289
        %v826 = vsub.f32 %v196, %v293
        %v827 = vsub.f32 %v197, %v295
        %v828 = vsub.f32 %v198, %v294
        %v829 = vsel %vm790, 1, 0
        %v830 = vsel %vm791, 1, 0
        %vm831 = vcmp.eq.s32.totalorder %v829, 1
        %vm832 = vcmp.eq.s32.totalorder %v830, 1
        %v842 = vrot.slane %v820, 2
        %v843 = vrot.slane %v821, 2
        %v844 = vsel %vm350, %v842, %v843
        %v845 = vrot.slane %v822, 2
        %v846 = vsel %vm350, %v843, %v845
        %v847 = vrot.slane %v823, 2
        %v848 = vrot.slane %v824, 2
        %v849 = vsel %vm350, %v847, %v848
        %v850 = vrot.slane %v825, 2
        %v851 = vsel %vm350, %v848, %v850
        %v852 = vrot.slane %v826, 2
        %v853 = vrot.slane %v827, 2
        %v854 = vsel %vm350, %v852, %v853
        %v855 = vrot.slane %v828, 2
        %v856 = vsel %vm350, %v853, %v855
        %857 = vrot.lane.b32.xlu0 %v844, 126
        %v858 = vpop.permute.xlu0 %857
        %859 = vrot.lane.b32.xlu0 %v846, 126
        %v860 = vpop.permute.xlu0 %859
        %861 = vrot.lane.b32.xlu0 %v849, 126
        %v862 = vpop.permute.xlu0 %861
        %863 = vrot.lane.b32.xlu0 %v851, 126
        %v864 = vpop.permute.xlu0 %863
        %865 = vrot.lane.b32.xlu0 %v854, 126
        %v866 = vpop.permute.xlu0 %865
        %867 = vrot.lane.b32.xlu0 %v856, 126
        %v868 = vpop.permute.xlu0 %867
        %v875 = vsel %vm831, %v858, 0.0
        %v876 = vsel %vm832, %v860, 0.0
        %v877 = vsel %vm831, %v862, 0.0
        %v878 = vsel %vm832, %v864, 0.0
        %v879 = vsel %vm831, %v866, 0.0
        %v880 = vsel %vm832, %v868, 0.0
        %v881 = vsub.f32 %v190, %v209
        %v882 = vsub.f32 %v191, %v211
        %v883 = vsub.f32 %v192, %v213
        %v884 = vsub.f32 %v193, %v215
        %v885 = vsub.f32 %v194, %v217
        %v886 = vsub.f32 %v195, %v219
        %v887 = vsub.f32 %v196, %v221
        %v888 = vsub.f32 %v197, %v223
        %v889 = vsub.f32 %v198, %v225
        %v890 = vsel %vm792, 1, 0
        %vm891 = vcmp.eq.s32.totalorder %v890, 1
        %v901 = vrot.slane %v881, 2
        %v902 = vrot.slane %v882, 2
        %v903 = vsel %vm350, %v901, %v902
        %v904 = vrot.slane %v883, 2
        %v905 = vsel %vm350, %v902, %v904
        %v906 = vrot.slane %v884, 2
        %v907 = vrot.slane %v885, 2
        %v908 = vsel %vm350, %v906, %v907
        %v909 = vrot.slane %v886, 2
        %v910 = vsel %vm350, %v907, %v909
        %v911 = vrot.slane %v887, 2
        %v912 = vrot.slane %v888, 2
        %v913 = vsel %vm350, %v911, %v912
        %v914 = vrot.slane %v889, 2
        %v915 = vsel %vm350, %v912, %v914
        %916 = vrot.lane.b32.xlu0 %v903, 126
        %v917 = vpop.permute.xlu0 %916
        %918 = vrot.lane.b32.xlu0 %v905, 126
        %v919 = vpop.permute.xlu0 %918
        %920 = vrot.lane.b32.xlu0 %v908, 126
        %v921 = vpop.permute.xlu0 %920
        %922 = vrot.lane.b32.xlu0 %v910, 126
        %v923 = vpop.permute.xlu0 %922
        %924 = vrot.lane.b32.xlu0 %v913, 126
        %v925 = vpop.permute.xlu0 %924
        %926 = vrot.lane.b32.xlu0 %v915, 126
        %v927 = vpop.permute.xlu0 %926
        %v934 = vsel %vm891, %v917, 0.0
        %v935 = vsel %vm891, %v919, 0.0
        %v936 = vsel %vm891, %v921, 0.0
        %v937 = vsel %vm891, %v923, 0.0
        %v938 = vsel %vm891, %v925, 0.0
        %v939 = vsel %vm891, %v927, 0.0
        %v940 = vmul.f32 %v875, %v875
        %v941 = vmul.f32 %v876, %v876
        %v942 = vmul.f32 %v877, %v877
        %v943 = vmul.f32 %v878, %v878
        %v944 = vmul.f32 %v879, %v879
        %v945 = vmul.f32 %v880, %v880
        %v946 = vmul.f32 %v934, %v934
        %v947 = vmul.f32 %v935, %v935
        %v948 = vmul.f32 %v936, %v936
        %v949 = vmul.f32 %v937, %v937
        %v950 = vmul.f32 %v938, %v938
        %v951 = vmul.f32 %v939, %v939
        %v952 = vadd.f32 %v940, %v946
        %v953 = vadd.f32 %v941, %v947
        %v954 = vadd.f32 %v942, %v948
        %v955 = vadd.f32 %v943, %v949
        %v956 = vadd.f32 %v944, %v950
        %v957 = vadd.f32 %v945, %v951
        %vm958 = vcmask 130048
        %v959 = vsel %vm958, %v952, 0.0
        %v960 = vsel %vm958, %v954, 0.0
        %v961 = vadd.f32 %v959, %v960
        %v962 = vsel %vm958, %v956, 0.0
        %v963 = vadd.f32 %v961, %v962
        %v964 = vsel %vm958, %v953, 0.0
        %v965 = vsel %vm958, %v955, 0.0
        %v966 = vadd.f32 %v964, %v965
        %v967 = vsel %vm958, %v957, 0.0
        %v968 = vadd.f32 %v966, %v967
        %v969 = vmul.f32 %v963, 0.33333334
        %v970 = vmul.f32 %v968, 0.33333334
        %971 = vst.msk [vmem:[#allocation3] sm:$0xff] %vm958, %v969
        %972 = vst.msk [vmem:[#allocation3 + $0x8] sm:$0xff] %vm958, %v970
        %982 = vrot.lane.b32.xlu0 %v776, 1
        %v983 = vpop.permute.xlu0 %982
        %984 = vrot.lane.b32.xlu0 %v777, 1
        %v985 = vpop.permute.xlu0 %984
        %986 = vrot.lane.b32.xlu0 %v778, 1
        %v987 = vpop.permute.xlu0 %986
        %988 = vrot.lane.b32.xlu0 %v779, 1
        %v989 = vpop.permute.xlu0 %988
        %990 = vrot.lane.b32.xlu0 %v780, 1
        %v991 = vpop.permute.xlu0 %990
        %992 = vrot.lane.b32.xlu0 %v781, 1
        %v993 = vpop.permute.xlu0 %992
        %994 = vrot.lane.b32.xlu0 %v782, 1
        %v995 = vpop.permute.xlu0 %994
        %996 = vrot.lane.b32.xlu0 %v783, 1
        %v997 = vpop.permute.xlu0 %996
        %998 = vrot.lane.b32.xlu0 %v784, 1
        %v999 = vpop.permute.xlu0 %998
        %v1009 = vsub.f32 %v190, %v983
        %v1010 = vsub.f32 %v191, %v985
        %v1011 = vsub.f32 %v192, %v987
        %v1012 = vsub.f32 %v193, %v989
        %v1013 = vsub.f32 %v194, %v991
        %v1014 = vsub.f32 %v195, %v993
        %v1015 = vsub.f32 %v196, %v995
        %v1016 = vsub.f32 %v197, %v997
        %v1017 = vsub.f32 %v198, %v999
        %v1018 = vmul.f32 %v1009, %v1009
        %v1019 = vmul.f32 %v1010, %v1010
        %v1020 = vmul.f32 %v1011, %v1011
        %v1021 = vmul.f32 %v1012, %v1012
        %v1022 = vmul.f32 %v1013, %v1013
        %v1023 = vmul.f32 %v1014, %v1014
        %v1024 = vmul.f32 %v1015, %v1015
        %v1025 = vmul.f32 %v1016, %v1016
        %v1026 = vmul.f32 %v1017, %v1017
        %1036 = vrot.lane.b32.xlu0 %v1018, 127
        %v1037 = vpop.permute.xlu0 %1036
        %1038 = vrot.lane.b32.xlu0 %v1019, 127
        %v1039 = vpop.permute.xlu0 %1038
        %1040 = vrot.lane.b32.xlu0 %v1020, 127
        %v1041 = vpop.permute.xlu0 %1040
        %1042 = vrot.lane.b32.xlu0 %v1021, 127
        %v1043 = vpop.permute.xlu0 %1042
        %1044 = vrot.lane.b32.xlu0 %v1022, 127
        %v1045 = vpop.permute.xlu0 %1044
        %1046 = vrot.lane.b32.xlu0 %v1023, 127
        %v1047 = vpop.permute.xlu0 %1046
        %1048 = vrot.lane.b32.xlu0 %v1024, 127
        %v1049 = vpop.permute.xlu0 %1048
        %1050 = vrot.lane.b32.xlu0 %v1025, 127
        %v1051 = vpop.permute.xlu0 %1050
        %1052 = vrot.lane.b32.xlu0 %v1026, 127
        %v1053 = vpop.permute.xlu0 %1052
        %v1063 = vadd.f32 %v811, %v1037
        %v1064 = vadd.f32 %v812, %v1039
        %v1065 = vadd.f32 %v813, %v1041
        %v1066 = vadd.f32 %v814, %v1043
        %v1067 = vadd.f32 %v815, %v1045
        %v1068 = vadd.f32 %v816, %v1047
        %v1069 = vadd.f32 %v817, %v1049
        %v1070 = vadd.f32 %v818, %v1051
        %v1071 = vadd.f32 %v819, %v1053
        %1072 = vrot.lane.b32.xlu0 %v844, 125
        %v1073 = vpop.permute.xlu0 %1072
        %1074 = vrot.lane.b32.xlu0 %v846, 125
        %v1075 = vpop.permute.xlu0 %1074
        %1076 = vrot.lane.b32.xlu0 %v849, 125
        %v1077 = vpop.permute.xlu0 %1076
        %1078 = vrot.lane.b32.xlu0 %v851, 125
        %v1079 = vpop.permute.xlu0 %1078
        %1080 = vrot.lane.b32.xlu0 %v854, 125
        %v1081 = vpop.permute.xlu0 %1080
        %1082 = vrot.lane.b32.xlu0 %v856, 125
        %v1083 = vpop.permute.xlu0 %1082
        %v1090 = vsel %vm831, %v1073, 0.0
        %v1091 = vsel %vm832, %v1075, 0.0
        %v1092 = vsel %vm831, %v1077, 0.0
        %v1093 = vsel %vm832, %v1079, 0.0
        %v1094 = vsel %vm831, %v1081, 0.0
        %v1095 = vsel %vm832, %v1083, 0.0
        %1096 = vrot.lane.b32.xlu0 %v903, 125
        %v1097 = vpop.permute.xlu0 %1096
        %1098 = vrot.lane.b32.xlu0 %v905, 125
        %v1099 = vpop.permute.xlu0 %1098
        %1100 = vrot.lane.b32.xlu0 %v908, 125
        %v1101 = vpop.permute.xlu0 %1100
        %1102 = vrot.lane.b32.xlu0 %v910, 125
        %v1103 = vpop.permute.xlu0 %1102
        %1104 = vrot.lane.b32.xlu0 %v913, 125
        %v1105 = vpop.permute.xlu0 %1104
        %1106 = vrot.lane.b32.xlu0 %v915, 125
        %v1107 = vpop.permute.xlu0 %1106
        %v1114 = vsel %vm891, %v1097, 0.0
        %v1115 = vsel %vm891, %v1099, 0.0
        %v1116 = vsel %vm891, %v1101, 0.0
        %v1117 = vsel %vm891, %v1103, 0.0
        %v1118 = vsel %vm891, %v1105, 0.0
        %v1119 = vsel %vm891, %v1107, 0.0
        %v1120 = vmul.f32 %v1090, %v1090
        %v1121 = vmul.f32 %v1091, %v1091
        %v1122 = vmul.f32 %v1092, %v1092
        %v1123 = vmul.f32 %v1093, %v1093
        %v1124 = vmul.f32 %v1094, %v1094
        %v1125 = vmul.f32 %v1095, %v1095
        %v1126 = vmul.f32 %v1114, %v1114
        %v1127 = vmul.f32 %v1115, %v1115
        %v1128 = vmul.f32 %v1116, %v1116
        %v1129 = vmul.f32 %v1117, %v1117
        %v1130 = vmul.f32 %v1118, %v1118
        %v1131 = vmul.f32 %v1119, %v1119
        %v1132 = vadd.f32 %v1120, %v1126
        %v1133 = vadd.f32 %v1121, %v1127
        %v1134 = vadd.f32 %v1122, %v1128
        %v1135 = vadd.f32 %v1123, %v1129
        %v1136 = vadd.f32 %v1124, %v1130
        %v1137 = vadd.f32 %v1125, %v1131
        %v1138 = vsel %vm958, %v1132, 0.0
        %v1139 = vsel %vm958, %v1134, 0.0
        %v1140 = vadd.f32 %v1138, %v1139
        %v1141 = vsel %vm958, %v1136, 0.0
        %v1142 = vadd.f32 %v1140, %v1141
        %v1143 = vsel %vm958, %v1133, 0.0
        %v1144 = vsel %vm958, %v1135, 0.0
        %v1145 = vadd.f32 %v1143, %v1144
        %v1146 = vsel %vm958, %v1137, 0.0
        %v1147 = vadd.f32 %v1145, %v1146
        %v1148 = vmul.f32 %v1142, 0.33333334
        %v1149 = vmul.f32 %v1147, 0.33333334
        %s1150 = scalar_lea.vmem [#allocation3], 16
        %1151 = vst.msk [vmem:[%s1150] sm:$0xff] %vm958, %v1148
        %1152 = vst.msk [vmem:[%s1150 + $0x8] sm:$0xff] %vm958, %v1149
        %1153 = vrot.lane.b32.xlu0 %v776, 2
        %v1154 = vpop.permute.xlu0 %1153
        %1155 = vrot.lane.b32.xlu0 %v777, 2
        %v1156 = vpop.permute.xlu0 %1155
        %1157 = vrot.lane.b32.xlu0 %v778, 2
        %v1158 = vpop.permute.xlu0 %1157
        %1159 = vrot.lane.b32.xlu0 %v779, 2
        %v1160 = vpop.permute.xlu0 %1159
        %1161 = vrot.lane.b32.xlu0 %v780, 2
        %v1162 = vpop.permute.xlu0 %1161
        %1163 = vrot.lane.b32.xlu0 %v781, 2
        %v1164 = vpop.permute.xlu0 %1163
        %1165 = vrot.lane.b32.xlu0 %v782, 2
        %v1166 = vpop.permute.xlu0 %1165
        %1167 = vrot.lane.b32.xlu0 %v783, 2
        %v1168 = vpop.permute.xlu0 %1167
        %1169 = vrot.lane.b32.xlu0 %v784, 2
        %v1170 = vpop.permute.xlu0 %1169
        %v1180 = vsub.f32 %v190, %v1154
        %v1181 = vsub.f32 %v191, %v1156
        %v1182 = vsub.f32 %v192, %v1158
        %v1183 = vsub.f32 %v193, %v1160
        %v1184 = vsub.f32 %v194, %v1162
        %v1185 = vsub.f32 %v195, %v1164
        %v1186 = vsub.f32 %v196, %v1166
        %v1187 = vsub.f32 %v197, %v1168
        %v1188 = vsub.f32 %v198, %v1170
        %v1189 = vmul.f32 %v1180, %v1180
        %v1190 = vmul.f32 %v1181, %v1181
        %v1191 = vmul.f32 %v1182, %v1182
        %v1192 = vmul.f32 %v1183, %v1183
        %v1193 = vmul.f32 %v1184, %v1184
        %v1194 = vmul.f32 %v1185, %v1185
        %v1195 = vmul.f32 %v1186, %v1186
        %v1196 = vmul.f32 %v1187, %v1187
        %v1197 = vmul.f32 %v1188, %v1188
        %1207 = vrot.lane.b32.xlu0 %v1189, 126
        %v1208 = vpop.permute.xlu0 %1207
        %1209 = vrot.lane.b32.xlu0 %v1190, 126
        %v1210 = vpop.permute.xlu0 %1209
        %1211 = vrot.lane.b32.xlu0 %v1191, 126
        %v1212 = vpop.permute.xlu0 %1211
        %1213 = vrot.lane.b32.xlu0 %v1192, 126
        %v1214 = vpop.permute.xlu0 %1213
        %1215 = vrot.lane.b32.xlu0 %v1193, 126
        %v1216 = vpop.permute.xlu0 %1215
        %1217 = vrot.lane.b32.xlu0 %v1194, 126
        %v1218 = vpop.permute.xlu0 %1217
        %1219 = vrot.lane.b32.xlu0 %v1195, 126
        %v1220 = vpop.permute.xlu0 %1219
        %1221 = vrot.lane.b32.xlu0 %v1196, 126
        %v1222 = vpop.permute.xlu0 %1221
        %1223 = vrot.lane.b32.xlu0 %v1197, 126
        %v1224 = vpop.permute.xlu0 %1223
        %v1234 = vadd.f32 %v1063, %v1208
        %v1235 = vadd.f32 %v1064, %v1210
        %v1236 = vadd.f32 %v1065, %v1212
        %v1237 = vadd.f32 %v1066, %v1214
        %v1238 = vadd.f32 %v1067, %v1216
        %v1239 = vadd.f32 %v1068, %v1218
        %v1240 = vadd.f32 %v1069, %v1220
        %v1241 = vadd.f32 %v1070, %v1222
        %v1242 = vadd.f32 %v1071, %v1224
        %1243 = vrot.lane.b32.xlu0 %v844, 124
        %v1244 = vpop.permute.xlu0 %1243
        %1245 = vrot.lane.b32.xlu0 %v846, 124
        %v1246 = vpop.permute.xlu0 %1245
        %1247 = vrot.lane.b32.xlu0 %v849, 124
        %v1248 = vpop.permute.xlu0 %1247
        %1249 = vrot.lane.b32.xlu0 %v851, 124
        %v1250 = vpop.permute.xlu0 %1249
        %1251 = vrot.lane.b32.xlu0 %v854, 124
        %v1252 = vpop.permute.xlu0 %1251
        %1253 = vrot.lane.b32.xlu0 %v856, 124
        %v1254 = vpop.permute.xlu0 %1253
        %v1261 = vsel %vm831, %v1244, 0.0
        %v1262 = vsel %vm832, %v1246, 0.0
        %v1263 = vsel %vm831, %v1248, 0.0
        %v1264 = vsel %vm832, %v1250, 0.0
        %v1265 = vsel %vm831, %v1252, 0.0
        %v1266 = vsel %vm832, %v1254, 0.0
        %1267 = vrot.lane.b32.xlu0 %v903, 124
        %v1268 = vpop.permute.xlu0 %1267
        %1269 = vrot.lane.b32.xlu0 %v905, 124
        %v1270 = vpop.permute.xlu0 %1269
        %1271 = vrot.lane.b32.xlu0 %v908, 124
        %v1272 = vpop.permute.xlu0 %1271
        %1273 = vrot.lane.b32.xlu0 %v910, 124
        %v1274 = vpop.permute.xlu0 %1273
        %1275 = vrot.lane.b32.xlu0 %v913, 124
        %v1276 = vpop.permute.xlu0 %1275
        %1277 = vrot.lane.b32.xlu0 %v915, 124
        %v1278 = vpop.permute.xlu0 %1277
        %v1285 = vsel %vm891, %v1268, 0.0
        %v1286 = vsel %vm891, %v1270, 0.0
        %v1287 = vsel %vm891, %v1272, 0.0
        %v1288 = vsel %vm891, %v1274, 0.0
        %v1289 = vsel %vm891, %v1276, 0.0
        %v1290 = vsel %vm891, %v1278, 0.0
        %v1291 = vmul.f32 %v1261, %v1261
        %v1292 = vmul.f32 %v1262, %v1262
        %v1293 = vmul.f32 %v1263, %v1263
        %v1294 = vmul.f32 %v1264, %v1264
        %v1295 = vmul.f32 %v1265, %v1265
        %v1296 = vmul.f32 %v1266, %v1266
        %v1297 = vmul.f32 %v1285, %v1285
        %v1298 = vmul.f32 %v1286, %v1286
        %v1299 = vmul.f32 %v1287, %v1287
        %v1300 = vmul.f32 %v1288, %v1288
        %v1301 = vmul.f32 %v1289, %v1289
        %v1302 = vmul.f32 %v1290, %v1290
        %v1303 = vadd.f32 %v1291, %v1297
        %v1304 = vadd.f32 %v1292, %v1298
        %v1305 = vadd.f32 %v1293, %v1299
        %v1306 = vadd.f32 %v1294, %v1300
        %v1307 = vadd.f32 %v1295, %v1301
        %v1308 = vadd.f32 %v1296, %v1302
        %v1309 = vsel %vm958, %v1303, 0.0
        %v1310 = vsel %vm958, %v1305, 0.0
        %v1311 = vadd.f32 %v1309, %v1310
        %v1312 = vsel %vm958, %v1307, 0.0
        %v1313 = vadd.f32 %v1311, %v1312
        %v1314 = vsel %vm958, %v1304, 0.0
        %v1315 = vsel %vm958, %v1306, 0.0
        %v1316 = vadd.f32 %v1314, %v1315
        %v1317 = vsel %vm958, %v1308, 0.0
        %v1318 = vadd.f32 %v1316, %v1317
        %v1319 = vmul.f32 %v1313, 0.33333334
        %v1320 = vmul.f32 %v1318, 0.33333334
        %s1321 = scalar_lea.vmem [#allocation3], 32
        %1322 = vst.msk [vmem:[%s1321] sm:$0xff] %vm958, %v1319
        %1323 = vst.msk [vmem:[%s1321 + $0x8] sm:$0xff] %vm958, %v1320
        %v1324 = vrot.slane %v776, 7
        %v1325 = vrot.slane %v777, 7
        %v1326 = vsel %vm456, %v1324, %v1325
        %v1327 = vrot.slane %v778, 7
        %v1328 = vsel %vm456, %v1325, %v1327
        %v1329 = vrot.slane %v779, 7
        %v1330 = vrot.slane %v780, 7
        %v1331 = vsel %vm456, %v1329, %v1330
        %v1332 = vrot.slane %v781, 7
        %v1333 = vsel %vm456, %v1330, %v1332
        %v1334 = vrot.slane %v782, 7
        %v1335 = vrot.slane %v783, 7
        %v1336 = vsel %vm456, %v1334, %v1335
        %v1337 = vrot.slane %v784, 7
        %v1338 = vsel %vm456, %v1335, %v1337
        %v1348 = vsub.f32 %v190, %v1324
        %v1349 = vsub.f32 %v191, %v1326
        %v1350 = vsub.f32 %v192, %v1328
        %v1351 = vsub.f32 %v193, %v1329
        %v1352 = vsub.f32 %v194, %v1331
        %v1353 = vsub.f32 %v195, %v1333
        %v1354 = vsub.f32 %v196, %v1334
        %v1355 = vsub.f32 %v197, %v1336
        %v1356 = vsub.f32 %v198, %v1338
        %v1357 = vmul.f32 %v1348, %v1348
        %v1358 = vmul.f32 %v1349, %v1349
        %v1359 = vmul.f32 %v1350, %v1350
        %v1360 = vmul.f32 %v1351, %v1351
        %v1361 = vmul.f32 %v1352, %v1352
        %v1362 = vmul.f32 %v1353, %v1353
        %v1363 = vmul.f32 %v1354, %v1354
        %v1364 = vmul.f32 %v1355, %v1355
        %v1365 = vmul.f32 %v1356, %v1356
        %v1375 = vrot.slane %v1357, 1
        %v1376 = vrot.slane %v1358, 1
        %v1377 = vsel %vm280, %v1375, %v1376
        %v1378 = vrot.slane %v1359, 1
        %v1379 = vsel %vm280, %v1376, %v1378
        %v1380 = vrot.slane %v1360, 1
        %v1381 = vrot.slane %v1361, 1
        %v1382 = vsel %vm280, %v1380, %v1381
        %v1383 = vrot.slane %v1362, 1
        %v1384 = vsel %vm280, %v1381, %v1383
        %v1385 = vrot.slane %v1363, 1
        %v1386 = vrot.slane %v1364, 1
        %v1387 = vsel %vm280, %v1385, %v1386
        %v1388 = vrot.slane %v1365, 1
        %v1389 = vsel %vm280, %v1386, %v1388
        %v1399 = vadd.f32 %v1234, %v1377
        %v1400 = vadd.f32 %v1235, %v1379
        %v1401 = vadd.f32 %v1236, %v1378
        %v1402 = vadd.f32 %v1237, %v1382
        %v1403 = vadd.f32 %v1238, %v1384
        %v1404 = vadd.f32 %v1239, %v1383
        %v1405 = vadd.f32 %v1240, %v1387
        %v1406 = vadd.f32 %v1241, %v1389
        %v1407 = vadd.f32 %v1242, %v1388
        %v1408 = vrot.slane %v820, 3
        %v1409 = vrot.slane %v821, 3
        %v1410 = vsel %vm652, %v1408, %v1409
        %v1411 = vrot.slane %v822, 3
        %v1412 = vsel %vm652, %v1409, %v1411
        %v1413 = vrot.slane %v823, 3
        %v1414 = vrot.slane %v824, 3
        %v1415 = vsel %vm652, %v1413, %v1414
        %v1416 = vrot.slane %v825, 3
        %v1417 = vsel %vm652, %v1414, %v1416
        %v1418 = vrot.slane %v826, 3
        %v1419 = vrot.slane %v827, 3
        %v1420 = vsel %vm652, %v1418, %v1419
        %v1421 = vrot.slane %v828, 3
        %v1422 = vsel %vm652, %v1419, %v1421
        %1423 = vrot.lane.b32.xlu0 %v1410, 126
        %v1424 = vpop.permute.xlu0 %1423
        %1425 = vrot.lane.b32.xlu0 %v1412, 126
        %v1426 = vpop.permute.xlu0 %1425
        %1427 = vrot.lane.b32.xlu0 %v1415, 126
        %v1428 = vpop.permute.xlu0 %1427
        %1429 = vrot.lane.b32.xlu0 %v1417, 126
        %v1430 = vpop.permute.xlu0 %1429
        %1431 = vrot.lane.b32.xlu0 %v1420, 126
        %v1432 = vpop.permute.xlu0 %1431
        %1433 = vrot.lane.b32.xlu0 %v1422, 126
        %v1434 = vpop.permute.xlu0 %1433
        %v1441 = vsel %vm831, %v1424, 0.0
        %v1442 = vsel %vm832, %v1426, 0.0
        %v1443 = vsel %vm831, %v1428, 0.0
        %v1444 = vsel %vm832, %v1430, 0.0
        %v1445 = vsel %vm831, %v1432, 0.0
        %v1446 = vsel %vm832, %v1434, 0.0
        %v1447 = vrot.slane %v881, 3
        %v1448 = vrot.slane %v882, 3
        %v1449 = vsel %vm652, %v1447, %v1448
        %v1450 = vrot.slane %v883, 3
        %v1451 = vsel %vm652, %v1448, %v1450
        %v1452 = vrot.slane %v884, 3
        %v1453 = vrot.slane %v885, 3
        %v1454 = vsel %vm652, %v1452, %v1453
        %v1455 = vrot.slane %v886, 3
        %v1456 = vsel %vm652, %v1453, %v1455
        %v1457 = vrot.slane %v887, 3
        %v1458 = vrot.slane %v888, 3
        %v1459 = vsel %vm652, %v1457, %v1458
        %v1460 = vrot.slane %v889, 3
        %v1461 = vsel %vm652, %v1458, %v1460
        %1462 = vrot.lane.b32.xlu0 %v1449, 126
        %v1463 = vpop.permute.xlu0 %1462
        %1464 = vrot.lane.b32.xlu0 %v1451, 126
        %v1465 = vpop.permute.xlu0 %1464
        %1466 = vrot.lane.b32.xlu0 %v1454, 126
        %v1467 = vpop.permute.xlu0 %1466
        %1468 = vrot.lane.b32.xlu0 %v1456, 126
        %v1469 = vpop.permute.xlu0 %1468
        %1470 = vrot.lane.b32.xlu0 %v1459, 126
        %v1471 = vpop.permute.xlu0 %1470
        %1472 = vrot.lane.b32.xlu0 %v1461, 126
        %v1473 = vpop.permute.xlu0 %1472
        %v1480 = vsel %vm891, %v1463, 0.0
        %v1481 = vsel %vm891, %v1465, 0.0
        %v1482 = vsel %vm891, %v1467, 0.0
        %v1483 = vsel %vm891, %v1469, 0.0
        %v1484 = vsel %vm891, %v1471, 0.0
        %v1485 = vsel %vm891, %v1473, 0.0
        %v1486 = vmul.f32 %v1441, %v1441
        %v1487 = vmul.f32 %v1442, %v1442
        %v1488 = vmul.f32 %v1443, %v1443
        %v1489 = vmul.f32 %v1444, %v1444
        %v1490 = vmul.f32 %v1445, %v1445
        %v1491 = vmul.f32 %v1446, %v1446
        %v1492 = vmul.f32 %v1480, %v1480
        %v1493 = vmul.f32 %v1481, %v1481
        %v1494 = vmul.f32 %v1482, %v1482
        %v1495 = vmul.f32 %v1483, %v1483
        %v1496 = vmul.f32 %v1484, %v1484
        %v1497 = vmul.f32 %v1485, %v1485
        %v1498 = vadd.f32 %v1486, %v1492
        %v1499 = vadd.f32 %v1487, %v1493
        %v1500 = vadd.f32 %v1488, %v1494
        %v1501 = vadd.f32 %v1489, %v1495
        %v1502 = vadd.f32 %v1490, %v1496
        %v1503 = vadd.f32 %v1491, %v1497
        %v1504 = vsel %vm958, %v1498, 0.0
        %v1505 = vsel %vm958, %v1500, 0.0
        %v1506 = vadd.f32 %v1504, %v1505
        %v1507 = vsel %vm958, %v1502, 0.0
        %v1508 = vadd.f32 %v1506, %v1507
        %v1509 = vsel %vm958, %v1499, 0.0
        %v1510 = vsel %vm958, %v1501, 0.0
        %v1511 = vadd.f32 %v1509, %v1510
        %v1512 = vsel %vm958, %v1503, 0.0
        %v1513 = vadd.f32 %v1511, %v1512
        %v1514 = vmul.f32 %v1508, 0.33333334
        %v1515 = vmul.f32 %v1513, 0.33333334
        %s1516 = scalar_lea.vmem [#allocation3], 48
        %1517 = vst.msk [vmem:[%s1516] sm:$0xff] %vm958, %v1514
        %1518 = vst.msk [vmem:[%s1516 + $0x8] sm:$0xff] %vm958, %v1515
        %1519 = vrot.lane.b32.xlu0 %v1324, 2
        %v1520 = vpop.permute.xlu0 %1519
        %1521 = vrot.lane.b32.xlu0 %v1326, 2
        %v1522 = vpop.permute.xlu0 %1521
        %1523 = vrot.lane.b32.xlu0 %v1328, 2
        %v1524 = vpop.permute.xlu0 %1523
        %1525 = vrot.lane.b32.xlu0 %v1329, 2
        %v1526 = vpop.permute.xlu0 %1525
        %1527 = vrot.lane.b32.xlu0 %v1331, 2
        %v1528 = vpop.permute.xlu0 %1527
        %1529 = vrot.lane.b32.xlu0 %v1333, 2
        %v1530 = vpop.permute.xlu0 %1529
        %1531 = vrot.lane.b32.xlu0 %v1334, 2
        %v1532 = vpop.permute.xlu0 %1531
        %1533 = vrot.lane.b32.xlu0 %v1336, 2
        %v1534 = vpop.permute.xlu0 %1533
        %1535 = vrot.lane.b32.xlu0 %v1338, 2
        %v1536 = vpop.permute.xlu0 %1535
        %v1546 = vsub.f32 %v190, %v1520
        %v1547 = vsub.f32 %v191, %v1522
        %v1548 = vsub.f32 %v192, %v1524
        %v1549 = vsub.f32 %v193, %v1526
        %v1550 = vsub.f32 %v194, %v1528
        %v1551 = vsub.f32 %v195, %v1530
        %v1552 = vsub.f32 %v196, %v1532
        %v1553 = vsub.f32 %v197, %v1534
        %v1554 = vsub.f32 %v198, %v1536
        %v1555 = vmul.f32 %v1546, %v1546
        %v1556 = vmul.f32 %v1547, %v1547
        %v1557 = vmul.f32 %v1548, %v1548
        %v1558 = vmul.f32 %v1549, %v1549
        %v1559 = vmul.f32 %v1550, %v1550
        %v1560 = vmul.f32 %v1551, %v1551
        %v1561 = vmul.f32 %v1552, %v1552
        %v1562 = vmul.f32 %v1553, %v1553
        %v1563 = vmul.f32 %v1554, %v1554
        %v1573 = vrot.slane %v1555, 1
        %v1574 = vrot.slane %v1556, 1
        %v1575 = vsel %vm280, %v1573, %v1574
        %v1576 = vrot.slane %v1557, 1
        %v1577 = vsel %vm280, %v1574, %v1576
        %v1578 = vrot.slane %v1558, 1
        %v1579 = vrot.slane %v1559, 1
        %v1580 = vsel %vm280, %v1578, %v1579
        %v1581 = vrot.slane %v1560, 1
        %v1582 = vsel %vm280, %v1579, %v1581
        %v1583 = vrot.slane %v1561, 1
        %v1584 = vrot.slane %v1562, 1
        %v1585 = vsel %vm280, %v1583, %v1584
        %v1586 = vrot.slane %v1563, 1
        %v1587 = vsel %vm280, %v1584, %v1586
        %1588 = vrot.lane.b32.xlu0 %v1575, 126
        %v1589 = vpop.permute.xlu0 %1588
        %1590 = vrot.lane.b32.xlu0 %v1577, 126
        %v1591 = vpop.permute.xlu0 %1590
        %1592 = vrot.lane.b32.xlu0 %v1576, 126
        %v1593 = vpop.permute.xlu0 %1592
        %1594 = vrot.lane.b32.xlu0 %v1580, 126
        %v1595 = vpop.permute.xlu0 %1594
        %1596 = vrot.lane.b32.xlu0 %v1582, 126
        %v1597 = vpop.permute.xlu0 %1596
        %1598 = vrot.lane.b32.xlu0 %v1581, 126
        %v1599 = vpop.permute.xlu0 %1598
        %1600 = vrot.lane.b32.xlu0 %v1585, 126
        %v1601 = vpop.permute.xlu0 %1600
        %1602 = vrot.lane.b32.xlu0 %v1587, 126
        %v1603 = vpop.permute.xlu0 %1602
        %1604 = vrot.lane.b32.xlu0 %v1586, 126
        %v1605 = vpop.permute.xlu0 %1604
        %v1615 = vadd.f32 %v1399, %v1589
        %v1616 = vadd.f32 %v1400, %v1591
        %v1617 = vadd.f32 %v1401, %v1593
        %v1618 = vadd.f32 %v1402, %v1595
        %v1619 = vadd.f32 %v1403, %v1597
        %v1620 = vadd.f32 %v1404, %v1599
        %v1621 = vadd.f32 %v1405, %v1601
        %v1622 = vadd.f32 %v1406, %v1603
        %v1623 = vadd.f32 %v1407, %v1605
        %1624 = vrot.lane.b32.xlu0 %v1410, 124
        %v1625 = vpop.permute.xlu0 %1624
        %1626 = vrot.lane.b32.xlu0 %v1412, 124
        %v1627 = vpop.permute.xlu0 %1626
        %1628 = vrot.lane.b32.xlu0 %v1415, 124
        %v1629 = vpop.permute.xlu0 %1628
        %1630 = vrot.lane.b32.xlu0 %v1417, 124
        %v1631 = vpop.permute.xlu0 %1630
        %1632 = vrot.lane.b32.xlu0 %v1420, 124
        %v1633 = vpop.permute.xlu0 %1632
        %1634 = vrot.lane.b32.xlu0 %v1422, 124
        %v1635 = vpop.permute.xlu0 %1634
        %v1642 = vsel %vm831, %v1625, 0.0
        %v1643 = vsel %vm832, %v1627, 0.0
        %v1644 = vsel %vm831, %v1629, 0.0
        %v1645 = vsel %vm832, %v1631, 0.0
        %v1646 = vsel %vm831, %v1633, 0.0
        %v1647 = vsel %vm832, %v1635, 0.0
        %1648 = vrot.lane.b32.xlu0 %v1449, 124
        %v1649 = vpop.permute.xlu0 %1648
        %1650 = vrot.lane.b32.xlu0 %v1451, 124
        %v1651 = vpop.permute.xlu0 %1650
        %1652 = vrot.lane.b32.xlu0 %v1454, 124
        %v1653 = vpop.permute.xlu0 %1652
        %1654 = vrot.lane.b32.xlu0 %v1456, 124
        %v1655 = vpop.permute.xlu0 %1654
        %1656 = vrot.lane.b32.xlu0 %v1459, 124
        %v1657 = vpop.permute.xlu0 %1656
        %1658 = vrot.lane.b32.xlu0 %v1461, 124
        %v1659 = vpop.permute.xlu0 %1658
        %v1666 = vsel %vm891, %v1649, 0.0
        %v1667 = vsel %vm891, %v1651, 0.0
        %v1668 = vsel %vm891, %v1653, 0.0
        %v1669 = vsel %vm891, %v1655, 0.0
        %v1670 = vsel %vm891, %v1657, 0.0
        %v1671 = vsel %vm891, %v1659, 0.0
        %v1672 = vmul.f32 %v1642, %v1642
        %v1673 = vmul.f32 %v1643, %v1643
        %v1674 = vmul.f32 %v1644, %v1644
        %v1675 = vmul.f32 %v1645, %v1645
        %v1676 = vmul.f32 %v1646, %v1646
        %v1677 = vmul.f32 %v1647, %v1647
        %v1678 = vmul.f32 %v1666, %v1666
        %v1679 = vmul.f32 %v1667, %v1667
        %v1680 = vmul.f32 %v1668, %v1668
        %v1681 = vmul.f32 %v1669, %v1669
        %v1682 = vmul.f32 %v1670, %v1670
        %v1683 = vmul.f32 %v1671, %v1671
        %v1684 = vadd.f32 %v1672, %v1678
        %v1685 = vadd.f32 %v1673, %v1679
        %v1686 = vadd.f32 %v1674, %v1680
        %v1687 = vadd.f32 %v1675, %v1681
        %v1688 = vadd.f32 %v1676, %v1682
        %v1689 = vadd.f32 %v1677, %v1683
        %v1690 = vsel %vm958, %v1684, 0.0
        %v1691 = vsel %vm958, %v1686, 0.0
        %v1692 = vadd.f32 %v1690, %v1691
        %v1693 = vsel %vm958, %v1688, 0.0
        %v1694 = vadd.f32 %v1692, %v1693
        %v1695 = vsel %vm958, %v1685, 0.0
        %v1696 = vsel %vm958, %v1687, 0.0
        %v1697 = vadd.f32 %v1695, %v1696
        %v1698 = vsel %vm958, %v1689, 0.0
        %v1699 = vadd.f32 %v1697, %v1698
        %v1700 = vmul.f32 %v1694, 0.33333334
        %v1701 = vmul.f32 %v1699, 0.33333334
        %s1702 = scalar_lea.vmem [#allocation3], 64
        %1703 = vst.msk [vmem:[%s1702] sm:$0xff] %vm958, %v1700
        %1704 = vst.msk [vmem:[%s1702 + $0x8] sm:$0xff] %vm958, %v1701
        %vm1705 = vcmask 1041408
        %v1706 = vrot.slane %v776, 6
        %v1707 = vrot.slane %v777, 6
        %v1708 = vsel %vm1705, %v1706, %v1707
        %v1709 = vrot.slane %v778, 6
        %v1710 = vsel %vm1705, %v1707, %v1709
        %v1711 = vrot.slane %v779, 6
        %v1712 = vrot.slane %v780, 6
        %v1713 = vsel %vm1705, %v1711, %v1712
        %v1714 = vrot.slane %v781, 6
        %v1715 = vsel %vm1705, %v1712, %v1714
        %v1716 = vrot.slane %v782, 6
        %v1717 = vrot.slane %v783, 6
        %v1718 = vsel %vm1705, %v1716, %v1717
        %v1719 = vrot.slane %v784, 6
        %v1720 = vsel %vm1705, %v1717, %v1719
        %v1730 = vsub.f32 %v190, %v1706
        %v1731 = vsub.f32 %v191, %v1708
        %v1732 = vsub.f32 %v192, %v1710
        %v1733 = vsub.f32 %v193, %v1711
        %v1734 = vsub.f32 %v194, %v1713
        %v1735 = vsub.f32 %v195, %v1715
        %v1736 = vsub.f32 %v196, %v1716
        %v1737 = vsub.f32 %v197, %v1718
        %v1738 = vsub.f32 %v198, %v1720
        %v1739 = vmul.f32 %v1730, %v1730
        %v1740 = vmul.f32 %v1731, %v1731
        %v1741 = vmul.f32 %v1732, %v1732
        %v1742 = vmul.f32 %v1733, %v1733
        %v1743 = vmul.f32 %v1734, %v1734
        %v1744 = vmul.f32 %v1735, %v1735
        %v1745 = vmul.f32 %v1736, %v1736
        %v1746 = vmul.f32 %v1737, %v1737
        %v1747 = vmul.f32 %v1738, %v1738
        %v1757 = vrot.slane %v1739, 2
        %v1758 = vrot.slane %v1740, 2
        %v1759 = vsel %vm350, %v1757, %v1758
        %v1760 = vrot.slane %v1741, 2
        %v1761 = vsel %vm350, %v1758, %v1760
        %v1762 = vrot.slane %v1742, 2
        %v1763 = vrot.slane %v1743, 2
        %v1764 = vsel %vm350, %v1762, %v1763
        %v1765 = vrot.slane %v1744, 2
        %v1766 = vsel %vm350, %v1763, %v1765
        %v1767 = vrot.slane %v1745, 2
        %v1768 = vrot.slane %v1746, 2
        %v1769 = vsel %vm350, %v1767, %v1768
        %v1770 = vrot.slane %v1747, 2
        %v1771 = vsel %vm350, %v1768, %v1770
        %v1781 = vadd.f32 %v1615, %v1759
        %v1782 = vadd.f32 %v1616, %v1761
        %v1783 = vadd.f32 %v1617, %v1760
        %v1784 = vadd.f32 %v1618, %v1764
        %v1785 = vadd.f32 %v1619, %v1766
        %v1786 = vadd.f32 %v1620, %v1765
        %v1787 = vadd.f32 %v1621, %v1769
        %v1788 = vadd.f32 %v1622, %v1771
        %v1789 = vadd.f32 %v1623, %v1770
        %vm1790 = vcmask 1043456
        %v1791 = vrot.slane %v820, 4
        %v1792 = vrot.slane %v821, 4
        %v1793 = vsel %vm1790, %v1791, %v1792
        %v1794 = vrot.slane %v822, 4
        %v1795 = vsel %vm1790, %v1792, %v1794
        %v1796 = vrot.slane %v823, 4
        %v1797 = vrot.slane %v824, 4
        %v1798 = vsel %vm1790, %v1796, %v1797
        %v1799 = vrot.slane %v825, 4
        %v1800 = vsel %vm1790, %v1797, %v1799
        %v1801 = vrot.slane %v826, 4
        %v1802 = vrot.slane %v827, 4
        %v1803 = vsel %vm1790, %v1801, %v1802
        %v1804 = vrot.slane %v828, 4
        %v1805 = vsel %vm1790, %v1802, %v1804
        %1806 = vrot.lane.b32.xlu0 %v1793, 126
        %v1807 = vpop.permute.xlu0 %1806
        %1808 = vrot.lane.b32.xlu0 %v1795, 126
        %v1809 = vpop.permute.xlu0 %1808
        %1810 = vrot.lane.b32.xlu0 %v1798, 126
        %v1811 = vpop.permute.xlu0 %1810
        %1812 = vrot.lane.b32.xlu0 %v1800, 126
        %v1813 = vpop.permute.xlu0 %1812
        %1814 = vrot.lane.b32.xlu0 %v1803, 126
        %v1815 = vpop.permute.xlu0 %1814
        %1816 = vrot.lane.b32.xlu0 %v1805, 126
        %v1817 = vpop.permute.xlu0 %1816
        %v1824 = vsel %vm831, %v1807, 0.0
        %v1825 = vsel %vm832, %v1809, 0.0
        %v1826 = vsel %vm831, %v1811, 0.0
        %v1827 = vsel %vm832, %v1813, 0.0
        %v1828 = vsel %vm831, %v1815, 0.0
        %v1829 = vsel %vm832, %v1817, 0.0
        %v1830 = vrot.slane %v881, 4
        %v1831 = vrot.slane %v882, 4
        %v1832 = vsel %vm1790, %v1830, %v1831
        %v1833 = vrot.slane %v883, 4
        %v1834 = vsel %vm1790, %v1831, %v1833
        %v1835 = vrot.slane %v884, 4
        %v1836 = vrot.slane %v885, 4
        %v1837 = vsel %vm1790, %v1835, %v1836
        %v1838 = vrot.slane %v886, 4
        %v1839 = vsel %vm1790, %v1836, %v1838
        %v1840 = vrot.slane %v887, 4
        %v1841 = vrot.slane %v888, 4
        %v1842 = vsel %vm1790, %v1840, %v1841
        %v1843 = vrot.slane %v889, 4
        %v1844 = vsel %vm1790, %v1841, %v1843
        %1845 = vrot.lane.b32.xlu0 %v1832, 126
        %v1846 = vpop.permute.xlu0 %1845
        %1847 = vrot.lane.b32.xlu0 %v1834, 126
        %v1848 = vpop.permute.xlu0 %1847
        %1849 = vrot.lane.b32.xlu0 %v1837, 126
        %v1850 = vpop.permute.xlu0 %1849
        %1851 = vrot.lane.b32.xlu0 %v1839, 126
        %v1852 = vpop.permute.xlu0 %1851
        %1853 = vrot.lane.b32.xlu0 %v1842, 126
        %v1854 = vpop.permute.xlu0 %1853
        %1855 = vrot.lane.b32.xlu0 %v1844, 126
        %v1856 = vpop.permute.xlu0 %1855
        %v1863 = vsel %vm891, %v1846, 0.0
        %v1864 = vsel %vm891, %v1848, 0.0
        %v1865 = vsel %vm891, %v1850, 0.0
        %v1866 = vsel %vm891, %v1852, 0.0
        %v1867 = vsel %vm891, %v1854, 0.0
        %v1868 = vsel %vm891, %v1856, 0.0
        %v1869 = vmul.f32 %v1824, %v1824
        %v1870 = vmul.f32 %v1825, %v1825
        %v1871 = vmul.f32 %v1826, %v1826
        %v1872 = vmul.f32 %v1827, %v1827
        %v1873 = vmul.f32 %v1828, %v1828
        %v1874 = vmul.f32 %v1829, %v1829
        %v1875 = vmul.f32 %v1863, %v1863
        %v1876 = vmul.f32 %v1864, %v1864
        %v1877 = vmul.f32 %v1865, %v1865
        %v1878 = vmul.f32 %v1866, %v1866
        %v1879 = vmul.f32 %v1867, %v1867
        %v1880 = vmul.f32 %v1868, %v1868
        %v1881 = vadd.f32 %v1869, %v1875
        %v1882 = vadd.f32 %v1870, %v1876
        %v1883 = vadd.f32 %v1871, %v1877
        %v1884 = vadd.f32 %v1872, %v1878
        %v1885 = vadd.f32 %v1873, %v1879
        %v1886 = vadd.f32 %v1874, %v1880
        %v1887 = vsel %vm958, %v1881, 0.0
        %v1888 = vsel %vm958, %v1883, 0.0
        %v1889 = vadd.f32 %v1887, %v1888
        %v1890 = vsel %vm958, %v1885, 0.0
        %v1891 = vadd.f32 %v1889, %v1890
        %v1892 = vsel %vm958, %v1882, 0.0
        %v1893 = vsel %vm958, %v1884, 0.0
        %v1894 = vadd.f32 %v1892, %v1893
        %v1895 = vsel %vm958, %v1886, 0.0
        %v1896 = vadd.f32 %v1894, %v1895
        %v1897 = vmul.f32 %v1891, 0.33333334
        %v1898 = vmul.f32 %v1896, 0.33333334
        %s1899 = scalar_lea.vmem [#allocation3], 80
        %1900 = vst.msk [vmem:[%s1899] sm:$0xff] %vm958, %v1897
        %1901 = vst.msk [vmem:[%s1899 + $0x8] sm:$0xff] %vm958, %v1898
        %1902 = vrot.lane.b32.xlu0 %v1706, 1
        %v1903 = vpop.permute.xlu0 %1902
        %1904 = vrot.lane.b32.xlu0 %v1708, 1
        %v1905 = vpop.permute.xlu0 %1904
        %1906 = vrot.lane.b32.xlu0 %v1710, 1
        %v1907 = vpop.permute.xlu0 %1906
        %1908 = vrot.lane.b32.xlu0 %v1711, 1
        %v1909 = vpop.permute.xlu0 %1908
        %1910 = vrot.lane.b32.xlu0 %v1713, 1
        %v1911 = vpop.permute.xlu0 %1910
        %1912 = vrot.lane.b32.xlu0 %v1715, 1
        %v1913 = vpop.permute.xlu0 %1912
        %1914 = vrot.lane.b32.xlu0 %v1716, 1
        %v1915 = vpop.permute.xlu0 %1914
        %1916 = vrot.lane.b32.xlu0 %v1718, 1
        %v1917 = vpop.permute.xlu0 %1916
        %1918 = vrot.lane.b32.xlu0 %v1720, 1
        %v1919 = vpop.permute.xlu0 %1918
        %v1929 = vsub.f32 %v190, %v1903
        %v1930 = vsub.f32 %v191, %v1905
        %v1931 = vsub.f32 %v192, %v1907
        %v1932 = vsub.f32 %v193, %v1909
        %v1933 = vsub.f32 %v194, %v1911
        %v1934 = vsub.f32 %v195, %v1913
        %v1935 = vsub.f32 %v196, %v1915
        %v1936 = vsub.f32 %v197, %v1917
        %v1937 = vsub.f32 %v198, %v1919
        %v1938 = vmul.f32 %v1929, %v1929
        %v1939 = vmul.f32 %v1930, %v1930
        %v1940 = vmul.f32 %v1931, %v1931
        %v1941 = vmul.f32 %v1932, %v1932
        %v1942 = vmul.f32 %v1933, %v1933
        %v1943 = vmul.f32 %v1934, %v1934
        %v1944 = vmul.f32 %v1935, %v1935
        %v1945 = vmul.f32 %v1936, %v1936
        %v1946 = vmul.f32 %v1937, %v1937
        %v1956 = vrot.slane %v1938, 2
        %v1957 = vrot.slane %v1939, 2
        %v1958 = vsel %vm350, %v1956, %v1957
        %v1959 = vrot.slane %v1940, 2
        %v1960 = vsel %vm350, %v1957, %v1959
        %v1961 = vrot.slane %v1941, 2
        %v1962 = vrot.slane %v1942, 2
        %v1963 = vsel %vm350, %v1961, %v1962
        %v1964 = vrot.slane %v1943, 2
        %v1965 = vsel %vm350, %v1962, %v1964
        %v1966 = vrot.slane %v1944, 2
        %v1967 = vrot.slane %v1945, 2
        %v1968 = vsel %vm350, %v1966, %v1967
        %v1969 = vrot.slane %v1946, 2
        %v1970 = vsel %vm350, %v1967, %v1969
        %1971 = vrot.lane.b32.xlu0 %v1958, 127
        %v1972 = vpop.permute.xlu0 %1971
        %1973 = vrot.lane.b32.xlu0 %v1960, 127
        %v1974 = vpop.permute.xlu0 %1973
        %1975 = vrot.lane.b32.xlu0 %v1959, 127
        %v1976 = vpop.permute.xlu0 %1975
        %1977 = vrot.lane.b32.xlu0 %v1963, 127
        %v1978 = vpop.permute.xlu0 %1977
        %1979 = vrot.lane.b32.xlu0 %v1965, 127
        %v1980 = vpop.permute.xlu0 %1979
        %1981 = vrot.lane.b32.xlu0 %v1964, 127
        %v1982 = vpop.permute.xlu0 %1981
        %1983 = vrot.lane.b32.xlu0 %v1968, 127
        %v1984 = vpop.permute.xlu0 %1983
        %1985 = vrot.lane.b32.xlu0 %v1970, 127
        %v1986 = vpop.permute.xlu0 %1985
        %1987 = vrot.lane.b32.xlu0 %v1969, 127
        %v1988 = vpop.permute.xlu0 %1987
        %v1998 = vadd.f32 %v1781, %v1972
        %v1999 = vadd.f32 %v1782, %v1974
        %v2000 = vadd.f32 %v1783, %v1976
        %v2001 = vadd.f32 %v1784, %v1978
        %v2002 = vadd.f32 %v1785, %v1980
        %v2003 = vadd.f32 %v1786, %v1982
        %v2004 = vadd.f32 %v1787, %v1984
        %v2005 = vadd.f32 %v1788, %v1986
        %v2006 = vadd.f32 %v1789, %v1988
        %2007 = vrot.lane.b32.xlu0 %v1793, 125
        %v2008 = vpop.permute.xlu0 %2007
        %2009 = vrot.lane.b32.xlu0 %v1795, 125
        %v2010 = vpop.permute.xlu0 %2009
        %2011 = vrot.lane.b32.xlu0 %v1798, 125
        %v2012 = vpop.permute.xlu0 %2011
        %2013 = vrot.lane.b32.xlu0 %v1800, 125
        %v2014 = vpop.permute.xlu0 %2013
        %2015 = vrot.lane.b32.xlu0 %v1803, 125
        %v2016 = vpop.permute.xlu0 %2015
        %2017 = vrot.lane.b32.xlu0 %v1805, 125
        %v2018 = vpop.permute.xlu0 %2017
        %v2025 = vsel %vm831, %v2008, 0.0
        %v2026 = vsel %vm832, %v2010, 0.0
        %v2027 = vsel %vm831, %v2012, 0.0
        %v2028 = vsel %vm832, %v2014, 0.0
        %v2029 = vsel %vm831, %v2016, 0.0
        %v2030 = vsel %vm832, %v2018, 0.0
        %2031 = vrot.lane.b32.xlu0 %v1832, 125
        %v2032 = vpop.permute.xlu0 %2031
        %2033 = vrot.lane.b32.xlu0 %v1834, 125
        %v2034 = vpop.permute.xlu0 %2033
        %2035 = vrot.lane.b32.xlu0 %v1837, 125
        %v2036 = vpop.permute.xlu0 %2035
        %2037 = vrot.lane.b32.xlu0 %v1839, 125
        %v2038 = vpop.permute.xlu0 %2037
        %2039 = vrot.lane.b32.xlu0 %v1842, 125
        %v2040 = vpop.permute.xlu0 %2039
        %2041 = vrot.lane.b32.xlu0 %v1844, 125
        %v2042 = vpop.permute.xlu0 %2041
        %v2049 = vsel %vm891, %v2032, 0.0
        %v2050 = vsel %vm891, %v2034, 0.0
        %v2051 = vsel %vm891, %v2036, 0.0
        %v2052 = vsel %vm891, %v2038, 0.0
        %v2053 = vsel %vm891, %v2040, 0.0
        %v2054 = vsel %vm891, %v2042, 0.0
        %v2055 = vmul.f32 %v2025, %v2025
        %v2056 = vmul.f32 %v2026, %v2026
        %v2057 = vmul.f32 %v2027, %v2027
        %v2058 = vmul.f32 %v2028, %v2028
        %v2059 = vmul.f32 %v2029, %v2029
        %v2060 = vmul.f32 %v2030, %v2030
        %v2061 = vmul.f32 %v2049, %v2049
        %v2062 = vmul.f32 %v2050, %v2050
        %v2063 = vmul.f32 %v2051, %v2051
        %v2064 = vmul.f32 %v2052, %v2052
        %v2065 = vmul.f32 %v2053, %v2053
        %v2066 = vmul.f32 %v2054, %v2054
        %v2067 = vadd.f32 %v2055, %v2061
        %v2068 = vadd.f32 %v2056, %v2062
        %v2069 = vadd.f32 %v2057, %v2063
        %v2070 = vadd.f32 %v2058, %v2064
        %v2071 = vadd.f32 %v2059, %v2065
        %v2072 = vadd.f32 %v2060, %v2066
        %v2073 = vsel %vm958, %v2067, 0.0
        %v2074 = vsel %vm958, %v2069, 0.0
        %v2075 = vadd.f32 %v2073, %v2074
        %v2076 = vsel %vm958, %v2071, 0.0
        %v2077 = vadd.f32 %v2075, %v2076
        %v2078 = vsel %vm958, %v2068, 0.0
        %v2079 = vsel %vm958, %v2070, 0.0
        %v2080 = vadd.f32 %v2078, %v2079
        %v2081 = vsel %vm958, %v2072, 0.0
        %v2082 = vadd.f32 %v2080, %v2081
        %v2083 = vmul.f32 %v2077, 0.33333334
        %v2084 = vmul.f32 %v2082, 0.33333334
        %s2085 = scalar_lea.vmem [#allocation3], 96
        %2086 = vst.msk [vmem:[%s2085] sm:$0xff] %vm958, %v2083
        %2087 = vst.msk [vmem:[%s2085 + $0x8] sm:$0xff] %vm958, %v2084
        %2088 = vrot.lane.b32.xlu0 %v1706, 2
        %v2089 = vpop.permute.xlu0 %2088
        %2090 = vrot.lane.b32.xlu0 %v1708, 2
        %v2091 = vpop.permute.xlu0 %2090
        %2092 = vrot.lane.b32.xlu0 %v1710, 2
        %v2093 = vpop.permute.xlu0 %2092
        %2094 = vrot.lane.b32.xlu0 %v1711, 2
        %v2095 = vpop.permute.xlu0 %2094
        %2096 = vrot.lane.b32.xlu0 %v1713, 2
        %v2097 = vpop.permute.xlu0 %2096
        %2098 = vrot.lane.b32.xlu0 %v1715, 2
        %v2099 = vpop.permute.xlu0 %2098
        %2100 = vrot.lane.b32.xlu0 %v1716, 2
        %v2101 = vpop.permute.xlu0 %2100
        %2102 = vrot.lane.b32.xlu0 %v1718, 2
        %v2103 = vpop.permute.xlu0 %2102
        %2104 = vrot.lane.b32.xlu0 %v1720, 2
        %v2105 = vpop.permute.xlu0 %2104
        %v2115 = vsub.f32 %v190, %v2089
        %v2116 = vsub.f32 %v191, %v2091
        %v2117 = vsub.f32 %v192, %v2093
        %v2118 = vsub.f32 %v193, %v2095
        %v2119 = vsub.f32 %v194, %v2097
        %v2120 = vsub.f32 %v195, %v2099
        %v2121 = vsub.f32 %v196, %v2101
        %v2122 = vsub.f32 %v197, %v2103
        %v2123 = vsub.f32 %v198, %v2105
        %v2124 = vmul.f32 %v2115, %v2115
        %v2125 = vmul.f32 %v2116, %v2116
        %v2126 = vmul.f32 %v2117, %v2117
        %v2127 = vmul.f32 %v2118, %v2118
        %v2128 = vmul.f32 %v2119, %v2119
        %v2129 = vmul.f32 %v2120, %v2120
        %v2130 = vmul.f32 %v2121, %v2121
        %v2131 = vmul.f32 %v2122, %v2122
        %v2132 = vmul.f32 %v2123, %v2123
        %v2142 = vrot.slane %v2124, 2
        %v2143 = vrot.slane %v2125, 2
        %v2144 = vsel %vm350, %v2142, %v2143
        %v2145 = vrot.slane %v2126, 2
        %v2146 = vsel %vm350, %v2143, %v2145
        %v2147 = vrot.slane %v2127, 2
        %v2148 = vrot.slane %v2128, 2
        %v2149 = vsel %vm350, %v2147, %v2148
        %v2150 = vrot.slane %v2129, 2
        %v2151 = vsel %vm350, %v2148, %v2150
        %v2152 = vrot.slane %v2130, 2
        %v2153 = vrot.slane %v2131, 2
        %v2154 = vsel %vm350, %v2152, %v2153
        %v2155 = vrot.slane %v2132, 2
        %v2156 = vsel %vm350, %v2153, %v2155
        %2157 = vrot.lane.b32.xlu0 %v2144, 126
        %v2158 = vpop.permute.xlu0 %2157
        %2159 = vrot.lane.b32.xlu0 %v2146, 126
        %v2160 = vpop.permute.xlu0 %2159
        %2161 = vrot.lane.b32.xlu0 %v2145, 126
        %v2162 = vpop.permute.xlu0 %2161
        %2163 = vrot.lane.b32.xlu0 %v2149, 126
        %v2164 = vpop.permute.xlu0 %2163
        %2165 = vrot.lane.b32.xlu0 %v2151, 126
        %v2166 = vpop.permute.xlu0 %2165
        %2167 = vrot.lane.b32.xlu0 %v2150, 126
        %v2168 = vpop.permute.xlu0 %2167
        %2169 = vrot.lane.b32.xlu0 %v2154, 126
        %v2170 = vpop.permute.xlu0 %2169
        %2171 = vrot.lane.b32.xlu0 %v2156, 126
        %v2172 = vpop.permute.xlu0 %2171
        %2173 = vrot.lane.b32.xlu0 %v2155, 126
        %v2174 = vpop.permute.xlu0 %2173
        %v2184 = vadd.f32 %v1998, %v2158
        %v2185 = vadd.f32 %v1999, %v2160
        %v2186 = vadd.f32 %v2000, %v2162
        %v2187 = vadd.f32 %v2001, %v2164
        %v2188 = vadd.f32 %v2002, %v2166
        %v2189 = vadd.f32 %v2003, %v2168
        %v2190 = vadd.f32 %v2004, %v2170
        %v2191 = vadd.f32 %v2005, %v2172
        %v2192 = vadd.f32 %v2006, %v2174
        %2193 = vrot.lane.b32.xlu0 %v1793, 124
        %v2194 = vpop.permute.xlu0 %2193
        %2195 = vrot.lane.b32.xlu0 %v1795, 124
        %v2196 = vpop.permute.xlu0 %2195
        %2197 = vrot.lane.b32.xlu0 %v1798, 124
        %v2198 = vpop.permute.xlu0 %2197
        %2199 = vrot.lane.b32.xlu0 %v1800, 124
        %v2200 = vpop.permute.xlu0 %2199
        %2201 = vrot.lane.b32.xlu0 %v1803, 124
        %v2202 = vpop.permute.xlu0 %2201
        %2203 = vrot.lane.b32.xlu0 %v1805, 124
        %v2204 = vpop.permute.xlu0 %2203
        %v2211 = vsel %vm831, %v2194, 0.0
        %v2212 = vsel %vm832, %v2196, 0.0
        %v2213 = vsel %vm831, %v2198, 0.0
        %v2214 = vsel %vm832, %v2200, 0.0
        %v2215 = vsel %vm831, %v2202, 0.0
        %v2216 = vsel %vm832, %v2204, 0.0
        %2217 = vrot.lane.b32.xlu0 %v1832, 124
        %v2218 = vpop.permute.xlu0 %2217
        %2219 = vrot.lane.b32.xlu0 %v1834, 124
        %v2220 = vpop.permute.xlu0 %2219
        %2221 = vrot.lane.b32.xlu0 %v1837, 124
        %v2222 = vpop.permute.xlu0 %2221
        %2223 = vrot.lane.b32.xlu0 %v1839, 124
        %v2224 = vpop.permute.xlu0 %2223
        %2225 = vrot.lane.b32.xlu0 %v1842, 124
        %v2226 = vpop.permute.xlu0 %2225
        %2227 = vrot.lane.b32.xlu0 %v1844, 124
        %v2228 = vpop.permute.xlu0 %2227
        %v2235 = vsel %vm891, %v2218, 0.0
        %v2236 = vsel %vm891, %v2220, 0.0
        %v2237 = vsel %vm891, %v2222, 0.0
        %v2238 = vsel %vm891, %v2224, 0.0
        %v2239 = vsel %vm891, %v2226, 0.0
        %v2240 = vsel %vm891, %v2228, 0.0
        %v2241 = vmul.f32 %v2211, %v2211
        %v2242 = vmul.f32 %v2212, %v2212
        %v2243 = vmul.f32 %v2213, %v2213
        %v2244 = vmul.f32 %v2214, %v2214
        %v2245 = vmul.f32 %v2215, %v2215
        %v2246 = vmul.f32 %v2216, %v2216
        %v2247 = vmul.f32 %v2235, %v2235
        %v2248 = vmul.f32 %v2236, %v2236
        %v2249 = vmul.f32 %v2237, %v2237
        %v2250 = vmul.f32 %v2238, %v2238
        %v2251 = vmul.f32 %v2239, %v2239
        %v2252 = vmul.f32 %v2240, %v2240
        %v2253 = vadd.f32 %v2241, %v2247
        %v2254 = vadd.f32 %v2242, %v2248
        %v2255 = vadd.f32 %v2243, %v2249
        %v2256 = vadd.f32 %v2244, %v2250
        %v2257 = vadd.f32 %v2245, %v2251
        %v2258 = vadd.f32 %v2246, %v2252
        %v2259 = vsel %vm958, %v2253, 0.0
        %v2260 = vsel %vm958, %v2255, 0.0
        %v2261 = vadd.f32 %v2259, %v2260
        %v2262 = vsel %vm958, %v2257, 0.0
        %v2263 = vadd.f32 %v2261, %v2262
        %v2264 = vsel %vm958, %v2254, 0.0
        %v2265 = vsel %vm958, %v2256, 0.0
        %v2266 = vadd.f32 %v2264, %v2265
        %v2267 = vsel %vm958, %v2258, 0.0
        %v2268 = vadd.f32 %v2266, %v2267
        %v2269 = vmul.f32 %v2263, 0.33333334
        %v2270 = vmul.f32 %v2268, 0.33333334
        %s2271 = scalar_lea.vmem [#allocation3], 112
        %2272 = vst.msk [vmem:[%s2271] sm:$0xff] %vm958, %v2269
        %2273 = vst.msk [vmem:[%s2271 + $0x8] sm:$0xff] %vm958, %v2270
        %v2274 = vrot.slane %v776, 1
        %v2275 = vrot.slane %v777, 1
        %v2276 = vsel %vm280, %v2274, %v2275
        %v2277 = vrot.slane %v778, 1
        %v2278 = vsel %vm280, %v2275, %v2277
        %v2279 = vrot.slane %v779, 1
        %v2280 = vrot.slane %v780, 1
        %v2281 = vsel %vm280, %v2279, %v2280
        %v2282 = vrot.slane %v781, 1
        %v2283 = vsel %vm280, %v2280, %v2282
        %v2284 = vrot.slane %v782, 1
        %v2285 = vrot.slane %v783, 1
        %v2286 = vsel %vm280, %v2284, %v2285
        %v2287 = vrot.slane %v784, 1
        %v2288 = vsel %vm280, %v2285, %v2287
        %2289 = vrot.lane.b32.xlu0 %v2276, 127
        %v2290 = vpop.permute.xlu0 %2289
        %2291 = vrot.lane.b32.xlu0 %v2278, 127
        %v2292 = vpop.permute.xlu0 %2291
        %2293 = vrot.lane.b32.xlu0 %v2277, 127
        %v2294 = vpop.permute.xlu0 %2293
        %2295 = vrot.lane.b32.xlu0 %v2281, 127
        %v2296 = vpop.permute.xlu0 %2295
        %2297 = vrot.lane.b32.xlu0 %v2283, 127
        %v2298 = vpop.permute.xlu0 %2297
        %2299 = vrot.lane.b32.xlu0 %v2282, 127
        %v2300 = vpop.permute.xlu0 %2299
        %2301 = vrot.lane.b32.xlu0 %v2286, 127
        %v2302 = vpop.permute.xlu0 %2301
        %2303 = vrot.lane.b32.xlu0 %v2288, 127
        %v2304 = vpop.permute.xlu0 %2303
        %2305 = vrot.lane.b32.xlu0 %v2287, 127
        %v2306 = vpop.permute.xlu0 %2305
        %v2316 = vsub.f32 %v190, %v2290
        %v2317 = vsub.f32 %v191, %v2292
        %v2318 = vsub.f32 %v192, %v2294
        %v2319 = vsub.f32 %v193, %v2296
        %v2320 = vsub.f32 %v194, %v2298
        %v2321 = vsub.f32 %v195, %v2300
        %v2322 = vsub.f32 %v196, %v2302
        %v2323 = vsub.f32 %v197, %v2304
        %v2324 = vsub.f32 %v198, %v2306
        %v2325 = vmul.f32 %v2316, %v2316
        %v2326 = vmul.f32 %v2317, %v2317
        %v2327 = vmul.f32 %v2318, %v2318
        %v2328 = vmul.f32 %v2319, %v2319
        %v2329 = vmul.f32 %v2320, %v2320
        %v2330 = vmul.f32 %v2321, %v2321
        %v2331 = vmul.f32 %v2322, %v2322
        %v2332 = vmul.f32 %v2323, %v2323
        %v2333 = vmul.f32 %v2324, %v2324
        %v2343 = vrot.slane %v2325, 7
        %v2344 = vrot.slane %v2326, 7
        %v2345 = vsel %vm456, %v2343, %v2344
        %v2346 = vrot.slane %v2327, 7
        %v2347 = vsel %vm456, %v2344, %v2346
        %v2348 = vrot.slane %v2328, 7
        %v2349 = vrot.slane %v2329, 7
        %v2350 = vsel %vm456, %v2348, %v2349
        %v2351 = vrot.slane %v2330, 7
        %v2352 = vsel %vm456, %v2349, %v2351
        %v2353 = vrot.slane %v2331, 7
        %v2354 = vrot.slane %v2332, 7
        %v2355 = vsel %vm456, %v2353, %v2354
        %v2356 = vrot.slane %v2333, 7
        %v2357 = vsel %vm456, %v2354, %v2356
        %2358 = vrot.lane.b32.xlu0 %v2343, 1
        %v2359 = vpop.permute.xlu0 %2358
        %2360 = vrot.lane.b32.xlu0 %v2345, 1
        %v2361 = vpop.permute.xlu0 %2360
        %2362 = vrot.lane.b32.xlu0 %v2347, 1
        %v2363 = vpop.permute.xlu0 %2362
        %2364 = vrot.lane.b32.xlu0 %v2348, 1
        %v2365 = vpop.permute.xlu0 %2364
        %2366 = vrot.lane.b32.xlu0 %v2350, 1
        %v2367 = vpop.permute.xlu0 %2366
        %2368 = vrot.lane.b32.xlu0 %v2352, 1
        %v2369 = vpop.permute.xlu0 %2368
        %2370 = vrot.lane.b32.xlu0 %v2353, 1
        %v2371 = vpop.permute.xlu0 %2370
        %2372 = vrot.lane.b32.xlu0 %v2355, 1
        %v2373 = vpop.permute.xlu0 %2372
        %2374 = vrot.lane.b32.xlu0 %v2357, 1
        %v2375 = vpop.permute.xlu0 %2374
        %v2385 = vadd.f32 %v2184, %v2359
        %v2386 = vadd.f32 %v2185, %v2361
        %v2387 = vadd.f32 %v2186, %v2363
        %v2388 = vadd.f32 %v2187, %v2365
        %v2389 = vadd.f32 %v2188, %v2367
        %v2390 = vadd.f32 %v2189, %v2369
        %v2391 = vadd.f32 %v2190, %v2371
        %v2392 = vadd.f32 %v2191, %v2373
        %v2393 = vadd.f32 %v2192, %v2375
        %v2394 = vrot.slane %v820, 1
        %v2395 = vrot.slane %v821, 1
        %v2396 = vsel %vm280, %v2394, %v2395
        %v2397 = vrot.slane %v822, 1
        %v2398 = vsel %vm280, %v2395, %v2397
        %v2399 = vrot.slane %v823, 1
        %v2400 = vrot.slane %v824, 1
        %v2401 = vsel %vm280, %v2399, %v2400
        %v2402 = vrot.slane %v825, 1
        %v2403 = vsel %vm280, %v2400, %v2402
        %v2404 = vrot.slane %v826, 1
        %v2405 = vrot.slane %v827, 1
        %v2406 = vsel %vm280, %v2404, %v2405
        %v2407 = vrot.slane %v828, 1
        %v2408 = vsel %vm280, %v2405, %v2407
        %2409 = vrot.lane.b32.xlu0 %v2396, 127
        %v2410 = vpop.permute.xlu0 %2409
        %2411 = vrot.lane.b32.xlu0 %v2398, 127
        %v2412 = vpop.permute.xlu0 %2411
        %2413 = vrot.lane.b32.xlu0 %v2401, 127
        %v2414 = vpop.permute.xlu0 %2413
        %2415 = vrot.lane.b32.xlu0 %v2403, 127
        %v2416 = vpop.permute.xlu0 %2415
        %2417 = vrot.lane.b32.xlu0 %v2406, 127
        %v2418 = vpop.permute.xlu0 %2417
        %2419 = vrot.lane.b32.xlu0 %v2408, 127
        %v2420 = vpop.permute.xlu0 %2419
        %v2427 = vsel %vm831, %v2410, 0.0
        %v2428 = vsel %vm832, %v2412, 0.0
        %v2429 = vsel %vm831, %v2414, 0.0
        %v2430 = vsel %vm832, %v2416, 0.0
        %v2431 = vsel %vm831, %v2418, 0.0
        %v2432 = vsel %vm832, %v2420, 0.0
        %v2433 = vrot.slane %v881, 1
        %v2434 = vrot.slane %v882, 1
        %v2435 = vsel %vm280, %v2433, %v2434
        %v2436 = vrot.slane %v883, 1
        %v2437 = vsel %vm280, %v2434, %v2436
        %v2438 = vrot.slane %v884, 1
        %v2439 = vrot.slane %v885, 1
        %v2440 = vsel %vm280, %v2438, %v2439
        %v2441 = vrot.slane %v886, 1
        %v2442 = vsel %vm280, %v2439, %v2441
        %v2443 = vrot.slane %v887, 1
        %v2444 = vrot.slane %v888, 1
        %v2445 = vsel %vm280, %v2443, %v2444
        %v2446 = vrot.slane %v889, 1
        %v2447 = vsel %vm280, %v2444, %v2446
        %2448 = vrot.lane.b32.xlu0 %v2435, 127
        %v2449 = vpop.permute.xlu0 %2448
        %2450 = vrot.lane.b32.xlu0 %v2437, 127
        %v2451 = vpop.permute.xlu0 %2450
        %2452 = vrot.lane.b32.xlu0 %v2440, 127
        %v2453 = vpop.permute.xlu0 %2452
        %2454 = vrot.lane.b32.xlu0 %v2442, 127
        %v2455 = vpop.permute.xlu0 %2454
        %2456 = vrot.lane.b32.xlu0 %v2445, 127
        %v2457 = vpop.permute.xlu0 %2456
        %2458 = vrot.lane.b32.xlu0 %v2447, 127
        %v2459 = vpop.permute.xlu0 %2458
        %v2466 = vsel %vm891, %v2449, 0.0
        %v2467 = vsel %vm891, %v2451, 0.0
        %v2468 = vsel %vm891, %v2453, 0.0
        %v2469 = vsel %vm891, %v2455, 0.0
        %v2470 = vsel %vm891, %v2457, 0.0
        %v2471 = vsel %vm891, %v2459, 0.0
        %v2472 = vmul.f32 %v2427, %v2427
        %v2473 = vmul.f32 %v2428, %v2428
        %v2474 = vmul.f32 %v2429, %v2429
        %v2475 = vmul.f32 %v2430, %v2430
        %v2476 = vmul.f32 %v2431, %v2431
        %v2477 = vmul.f32 %v2432, %v2432
        %v2478 = vmul.f32 %v2466, %v2466
        %v2479 = vmul.f32 %v2467, %v2467
        %v2480 = vmul.f32 %v2468, %v2468
        %v2481 = vmul.f32 %v2469, %v2469
        %v2482 = vmul.f32 %v2470, %v2470
        %v2483 = vmul.f32 %v2471, %v2471
        %v2484 = vadd.f32 %v2472, %v2478
        %v2485 = vadd.f32 %v2473, %v2479
        %v2486 = vadd.f32 %v2474, %v2480
        %v2487 = vadd.f32 %v2475, %v2481
        %v2488 = vadd.f32 %v2476, %v2482
        %v2489 = vadd.f32 %v2477, %v2483
        %v2490 = vsel %vm958, %v2484, 0.0
        %v2491 = vsel %vm958, %v2486, 0.0
        %v2492 = vadd.f32 %v2490, %v2491
        %v2493 = vsel %vm958, %v2488, 0.0
        %v2494 = vadd.f32 %v2492, %v2493
        %v2495 = vsel %vm958, %v2485, 0.0
        %v2496 = vsel %vm958, %v2487, 0.0
        %v2497 = vadd.f32 %v2495, %v2496
        %v2498 = vsel %vm958, %v2489, 0.0
        %v2499 = vadd.f32 %v2497, %v2498
        %v2500 = vmul.f32 %v2494, 0.33333334
        %v2501 = vmul.f32 %v2499, 0.33333334
        %s2502 = scalar_lea.vmem [#allocation3], 128
        %2503 = vst.msk [vmem:[%s2502] sm:$0xff] %vm958, %v2500
        %2504 = vst.msk [vmem:[%s2502 + $0x8] sm:$0xff] %vm958, %v2501
        %2505 = vrot.lane.b32.xlu0 %v2276, 1
        %v2506 = vpop.permute.xlu0 %2505
        %2507 = vrot.lane.b32.xlu0 %v2278, 1
        %v2508 = vpop.permute.xlu0 %2507
        %2509 = vrot.lane.b32.xlu0 %v2277, 1
        %v2510 = vpop.permute.xlu0 %2509
        %2511 = vrot.lane.b32.xlu0 %v2281, 1
        %v2512 = vpop.permute.xlu0 %2511
        %2513 = vrot.lane.b32.xlu0 %v2283, 1
        %v2514 = vpop.permute.xlu0 %2513
        %2515 = vrot.lane.b32.xlu0 %v2282, 1
        %v2516 = vpop.permute.xlu0 %2515
        %2517 = vrot.lane.b32.xlu0 %v2286, 1
        %v2518 = vpop.permute.xlu0 %2517
        %2519 = vrot.lane.b32.xlu0 %v2288, 1
        %v2520 = vpop.permute.xlu0 %2519
        %2521 = vrot.lane.b32.xlu0 %v2287, 1
        %v2522 = vpop.permute.xlu0 %2521
        %v2532 = vsub.f32 %v190, %v2506
        %v2533 = vsub.f32 %v191, %v2508
        %v2534 = vsub.f32 %v192, %v2510
        %v2535 = vsub.f32 %v193, %v2512
        %v2536 = vsub.f32 %v194, %v2514
        %v2537 = vsub.f32 %v195, %v2516
        %v2538 = vsub.f32 %v196, %v2518
        %v2539 = vsub.f32 %v197, %v2520
        %v2540 = vsub.f32 %v198, %v2522
        %v2541 = vmul.f32 %v2532, %v2532
        %v2542 = vmul.f32 %v2533, %v2533
        %v2543 = vmul.f32 %v2534, %v2534
        %v2544 = vmul.f32 %v2535, %v2535
        %v2545 = vmul.f32 %v2536, %v2536
        %v2546 = vmul.f32 %v2537, %v2537
        %v2547 = vmul.f32 %v2538, %v2538
        %v2548 = vmul.f32 %v2539, %v2539
        %v2549 = vmul.f32 %v2540, %v2540
        %v2559 = vrot.slane %v2541, 7
        %v2560 = vrot.slane %v2542, 7
        %v2561 = vsel %vm456, %v2559, %v2560
        %v2562 = vrot.slane %v2543, 7
        %v2563 = vsel %vm456, %v2560, %v2562
        %v2564 = vrot.slane %v2544, 7
        %v2565 = vrot.slane %v2545, 7
        %v2566 = vsel %vm456, %v2564, %v2565
        %v2567 = vrot.slane %v2546, 7
        %v2568 = vsel %vm456, %v2565, %v2567
        %v2569 = vrot.slane %v2547, 7
        %v2570 = vrot.slane %v2548, 7
        %v2571 = vsel %vm456, %v2569, %v2570
        %v2572 = vrot.slane %v2549, 7
        %v2573 = vsel %vm456, %v2570, %v2572
        %2574 = vrot.lane.b32.xlu0 %v2559, 127
        %v2575 = vpop.permute.xlu0 %2574
        %2576 = vrot.lane.b32.xlu0 %v2561, 127
        %v2577 = vpop.permute.xlu0 %2576
        %2578 = vrot.lane.b32.xlu0 %v2563, 127
        %v2579 = vpop.permute.xlu0 %2578
        %2580 = vrot.lane.b32.xlu0 %v2564, 127
        %v2581 = vpop.permute.xlu0 %2580
        %2582 = vrot.lane.b32.xlu0 %v2566, 127
        %v2583 = vpop.permute.xlu0 %2582
        %2584 = vrot.lane.b32.xlu0 %v2568, 127
        %v2585 = vpop.permute.xlu0 %2584
        %2586 = vrot.lane.b32.xlu0 %v2569, 127
        %v2587 = vpop.permute.xlu0 %2586
        %2588 = vrot.lane.b32.xlu0 %v2571, 127
        %v2589 = vpop.permute.xlu0 %2588
        %2590 = vrot.lane.b32.xlu0 %v2573, 127
        %v2591 = vpop.permute.xlu0 %2590
        %v2601 = vadd.f32 %v2385, %v2575
        %v2602 = vadd.f32 %v2386, %v2577
        %v2603 = vadd.f32 %v2387, %v2579
        %v2604 = vadd.f32 %v2388, %v2581
        %v2605 = vadd.f32 %v2389, %v2583
        %v2606 = vadd.f32 %v2390, %v2585
        %v2607 = vadd.f32 %v2391, %v2587
        %v2608 = vadd.f32 %v2392, %v2589
        %v2609 = vadd.f32 %v2393, %v2591
        %2610 = vrot.lane.b32.xlu0 %v2396, 125
        %v2611 = vpop.permute.xlu0 %2610
        %2612 = vrot.lane.b32.xlu0 %v2398, 125
        %v2613 = vpop.permute.xlu0 %2612
        %2614 = vrot.lane.b32.xlu0 %v2401, 125
        %v2615 = vpop.permute.xlu0 %2614
        %2616 = vrot.lane.b32.xlu0 %v2403, 125
        %v2617 = vpop.permute.xlu0 %2616
        %2618 = vrot.lane.b32.xlu0 %v2406, 125
        %v2619 = vpop.permute.xlu0 %2618
        %2620 = vrot.lane.b32.xlu0 %v2408, 125
        %v2621 = vpop.permute.xlu0 %2620
        %v2628 = vsel %vm831, %v2611, 0.0
        %v2629 = vsel %vm832, %v2613, 0.0
        %v2630 = vsel %vm831, %v2615, 0.0
        %v2631 = vsel %vm832, %v2617, 0.0
        %v2632 = vsel %vm831, %v2619, 0.0
        %v2633 = vsel %vm832, %v2621, 0.0
        %2634 = vrot.lane.b32.xlu0 %v2435, 125
        %v2635 = vpop.permute.xlu0 %2634
        %2636 = vrot.lane.b32.xlu0 %v2437, 125
        %v2637 = vpop.permute.xlu0 %2636
        %2638 = vrot.lane.b32.xlu0 %v2440, 125
        %v2639 = vpop.permute.xlu0 %2638
        %2640 = vrot.lane.b32.xlu0 %v2442, 125
        %v2641 = vpop.permute.xlu0 %2640
        %2642 = vrot.lane.b32.xlu0 %v2445, 125
        %v2643 = vpop.permute.xlu0 %2642
        %2644 = vrot.lane.b32.xlu0 %v2447, 125
        %v2645 = vpop.permute.xlu0 %2644
        %v2652 = vsel %vm891, %v2635, 0.0
        %v2653 = vsel %vm891, %v2637, 0.0
        %v2654 = vsel %vm891, %v2639, 0.0
        %v2655 = vsel %vm891, %v2641, 0.0
        %v2656 = vsel %vm891, %v2643, 0.0
        %v2657 = vsel %vm891, %v2645, 0.0
        %v2658 = vmul.f32 %v2628, %v2628
        %v2659 = vmul.f32 %v2629, %v2629
        %v2660 = vmul.f32 %v2630, %v2630
        %v2661 = vmul.f32 %v2631, %v2631
        %v2662 = vmul.f32 %v2632, %v2632
        %v2663 = vmul.f32 %v2633, %v2633
        %v2664 = vmul.f32 %v2652, %v2652
        %v2665 = vmul.f32 %v2653, %v2653
        %v2666 = vmul.f32 %v2654, %v2654
        %v2667 = vmul.f32 %v2655, %v2655
        %v2668 = vmul.f32 %v2656, %v2656
        %v2669 = vmul.f32 %v2657, %v2657
        %v2670 = vadd.f32 %v2658, %v2664
        %v2671 = vadd.f32 %v2659, %v2665
        %v2672 = vadd.f32 %v2660, %v2666
        %v2673 = vadd.f32 %v2661, %v2667
        %v2674 = vadd.f32 %v2662, %v2668
        %v2675 = vadd.f32 %v2663, %v2669
        %v2676 = vsel %vm958, %v2670, 0.0
        %v2677 = vsel %vm958, %v2672, 0.0
        %v2678 = vadd.f32 %v2676, %v2677
        %v2679 = vsel %vm958, %v2674, 0.0
        %v2680 = vadd.f32 %v2678, %v2679
        %v2681 = vsel %vm958, %v2671, 0.0
        %v2682 = vsel %vm958, %v2673, 0.0
        %v2683 = vadd.f32 %v2681, %v2682
        %v2684 = vsel %vm958, %v2675, 0.0
        %v2685 = vadd.f32 %v2683, %v2684
        %v2686 = vmul.f32 %v2680, 0.33333334
        %v2687 = vmul.f32 %v2685, 0.33333334
        %s2688 = scalar_lea.vmem [#allocation3], 144
        %2689 = vst.msk [vmem:[%s2688] sm:$0xff] %vm958, %v2686
        %2690 = vst.msk [vmem:[%s2688 + $0x8] sm:$0xff] %vm958, %v2687
        %2691 = vrot.lane.b32.xlu0 %v2276, 3
        %v2692 = vpop.permute.xlu0 %2691
        %2693 = vrot.lane.b32.xlu0 %v2278, 3
        %v2694 = vpop.permute.xlu0 %2693
        %2695 = vrot.lane.b32.xlu0 %v2277, 3
        %v2696 = vpop.permute.xlu0 %2695
        %2697 = vrot.lane.b32.xlu0 %v2281, 3
        %v2698 = vpop.permute.xlu0 %2697
        %2699 = vrot.lane.b32.xlu0 %v2283, 3
        %v2700 = vpop.permute.xlu0 %2699
        %2701 = vrot.lane.b32.xlu0 %v2282, 3
        %v2702 = vpop.permute.xlu0 %2701
        %2703 = vrot.lane.b32.xlu0 %v2286, 3
        %v2704 = vpop.permute.xlu0 %2703
        %2705 = vrot.lane.b32.xlu0 %v2288, 3
        %v2706 = vpop.permute.xlu0 %2705
        %2707 = vrot.lane.b32.xlu0 %v2287, 3
        %v2708 = vpop.permute.xlu0 %2707
        %v2718 = vsub.f32 %v190, %v2692
        %v2719 = vsub.f32 %v191, %v2694
        %v2720 = vsub.f32 %v192, %v2696
        %v2721 = vsub.f32 %v193, %v2698
        %v2722 = vsub.f32 %v194, %v2700
        %v2723 = vsub.f32 %v195, %v2702
        %v2724 = vsub.f32 %v196, %v2704
        %v2725 = vsub.f32 %v197, %v2706
        %v2726 = vsub.f32 %v198, %v2708
        %v2727 = vmul.f32 %v2718, %v2718
        %v2728 = vmul.f32 %v2719, %v2719
        %v2729 = vmul.f32 %v2720, %v2720
        %v2730 = vmul.f32 %v2721, %v2721
        %v2731 = vmul.f32 %v2722, %v2722
        %v2732 = vmul.f32 %v2723, %v2723
        %v2733 = vmul.f32 %v2724, %v2724
        %v2734 = vmul.f32 %v2725, %v2725
        %v2735 = vmul.f32 %v2726, %v2726
        %v2745 = vrot.slane %v2727, 7
        %v2746 = vrot.slane %v2728, 7
        %v2747 = vsel %vm456, %v2745, %v2746
        %v2748 = vrot.slane %v2729, 7
        %v2749 = vsel %vm456, %v2746, %v2748
        %v2750 = vrot.slane %v2730, 7
        %v2751 = vrot.slane %v2731, 7
        %v2752 = vsel %vm456, %v2750, %v2751
        %v2753 = vrot.slane %v2732, 7
        %v2754 = vsel %vm456, %v2751, %v2753
        %v2755 = vrot.slane %v2733, 7
        %v2756 = vrot.slane %v2734, 7
        %v2757 = vsel %vm456, %v2755, %v2756
        %v2758 = vrot.slane %v2735, 7
        %v2759 = vsel %vm456, %v2756, %v2758
        %2760 = vrot.lane.b32.xlu0 %v2745, 125
        %v2761 = vpop.permute.xlu0 %2760
        %2762 = vrot.lane.b32.xlu0 %v2747, 125
        %v2763 = vpop.permute.xlu0 %2762
        %2764 = vrot.lane.b32.xlu0 %v2749, 125
        %v2765 = vpop.permute.xlu0 %2764
        %2766 = vrot.lane.b32.xlu0 %v2750, 125
        %v2767 = vpop.permute.xlu0 %2766
        %2768 = vrot.lane.b32.xlu0 %v2752, 125
        %v2769 = vpop.permute.xlu0 %2768
        %2770 = vrot.lane.b32.xlu0 %v2754, 125
        %v2771 = vpop.permute.xlu0 %2770
        %2772 = vrot.lane.b32.xlu0 %v2755, 125
        %v2773 = vpop.permute.xlu0 %2772
        %2774 = vrot.lane.b32.xlu0 %v2757, 125
        %v2775 = vpop.permute.xlu0 %2774
        %2776 = vrot.lane.b32.xlu0 %v2759, 125
        %v2777 = vpop.permute.xlu0 %2776
        %v2787 = vadd.f32 %v2601, %v2761
        %v2788 = vadd.f32 %v2602, %v2763
        %v2789 = vadd.f32 %v2603, %v2765
        %v2790 = vadd.f32 %v2604, %v2767
        %v2791 = vadd.f32 %v2605, %v2769
        %v2792 = vadd.f32 %v2606, %v2771
        %v2793 = vadd.f32 %v2607, %v2773
        %v2794 = vadd.f32 %v2608, %v2775
        %v2795 = vadd.f32 %v2609, %v2777
        %2796 = vrot.lane.b32.xlu0 %v2396, 123
        %v2797 = vpop.permute.xlu0 %2796
        %2798 = vrot.lane.b32.xlu0 %v2398, 123
        %v2799 = vpop.permute.xlu0 %2798
        %2800 = vrot.lane.b32.xlu0 %v2401, 123
        %v2801 = vpop.permute.xlu0 %2800
        %2802 = vrot.lane.b32.xlu0 %v2403, 123
        %v2803 = vpop.permute.xlu0 %2802
        %2804 = vrot.lane.b32.xlu0 %v2406, 123
        %v2805 = vpop.permute.xlu0 %2804
        %2806 = vrot.lane.b32.xlu0 %v2408, 123
        %v2807 = vpop.permute.xlu0 %2806
        %v2814 = vsel %vm831, %v2797, 0.0
        %v2815 = vsel %vm832, %v2799, 0.0
        %v2816 = vsel %vm831, %v2801, 0.0
        %v2817 = vsel %vm832, %v2803, 0.0
        %v2818 = vsel %vm831, %v2805, 0.0
        %v2819 = vsel %vm832, %v2807, 0.0
        %2820 = vrot.lane.b32.xlu0 %v2435, 123
        %v2821 = vpop.permute.xlu0 %2820
        %2822 = vrot.lane.b32.xlu0 %v2437, 123
        %v2823 = vpop.permute.xlu0 %2822
        %2824 = vrot.lane.b32.xlu0 %v2440, 123
        %v2825 = vpop.permute.xlu0 %2824
        %2826 = vrot.lane.b32.xlu0 %v2442, 123
        %v2827 = vpop.permute.xlu0 %2826
        %2828 = vrot.lane.b32.xlu0 %v2445, 123
        %v2829 = vpop.permute.xlu0 %2828
        %2830 = vrot.lane.b32.xlu0 %v2447, 123
        %v2831 = vpop.permute.xlu0 %2830
        %v2838 = vsel %vm891, %v2821, 0.0
        %v2839 = vsel %vm891, %v2823, 0.0
        %v2840 = vsel %vm891, %v2825, 0.0
        %v2841 = vsel %vm891, %v2827, 0.0
        %v2842 = vsel %vm891, %v2829, 0.0
        %v2843 = vsel %vm891, %v2831, 0.0
        %v2844 = vmul.f32 %v2814, %v2814
        %v2845 = vmul.f32 %v2815, %v2815
        %v2846 = vmul.f32 %v2816, %v2816
        %v2847 = vmul.f32 %v2817, %v2817
        %v2848 = vmul.f32 %v2818, %v2818
        %v2849 = vmul.f32 %v2819, %v2819
        %v2850 = vmul.f32 %v2838, %v2838
        %v2851 = vmul.f32 %v2839, %v2839
        %v2852 = vmul.f32 %v2840, %v2840
        %v2853 = vmul.f32 %v2841, %v2841
        %v2854 = vmul.f32 %v2842, %v2842
        %v2855 = vmul.f32 %v2843, %v2843
        %v2856 = vadd.f32 %v2844, %v2850
        %v2857 = vadd.f32 %v2845, %v2851
        %v2858 = vadd.f32 %v2846, %v2852
        %v2859 = vadd.f32 %v2847, %v2853
        %v2860 = vadd.f32 %v2848, %v2854
        %v2861 = vadd.f32 %v2849, %v2855
        %v2862 = vsel %vm958, %v2856, 0.0
        %v2863 = vsel %vm958, %v2858, 0.0
        %v2864 = vadd.f32 %v2862, %v2863
        %v2865 = vsel %vm958, %v2860, 0.0
        %v2866 = vadd.f32 %v2864, %v2865
        %v2867 = vsel %vm958, %v2857, 0.0
        %v2868 = vsel %vm958, %v2859, 0.0
        %v2869 = vadd.f32 %v2867, %v2868
        %v2870 = vsel %vm958, %v2861, 0.0
        %v2871 = vadd.f32 %v2869, %v2870
        %v2872 = vmul.f32 %v2866, 0.33333334
        %v2873 = vmul.f32 %v2871, 0.33333334
        %s2874 = scalar_lea.vmem [#allocation3], 160
        %2875 = vst.msk [vmem:[%s2874] sm:$0xff] %vm958, %v2872
        %2876 = vst.msk [vmem:[%s2874 + $0x8] sm:$0xff] %vm958, %v2873
        %2877 = vrot.lane.b32.xlu0 %v1324, 127
        %v2878 = vpop.permute.xlu0 %2877
        %2879 = vrot.lane.b32.xlu0 %v1326, 127
        %v2880 = vpop.permute.xlu0 %2879
        %2881 = vrot.lane.b32.xlu0 %v1328, 127
        %v2882 = vpop.permute.xlu0 %2881
        %2883 = vrot.lane.b32.xlu0 %v1329, 127
        %v2884 = vpop.permute.xlu0 %2883
        %2885 = vrot.lane.b32.xlu0 %v1331, 127
        %v2886 = vpop.permute.xlu0 %2885
        %2887 = vrot.lane.b32.xlu0 %v1333, 127
        %v2888 = vpop.permute.xlu0 %2887
        %2889 = vrot.lane.b32.xlu0 %v1334, 127
        %v2890 = vpop.permute.xlu0 %2889
        %2891 = vrot.lane.b32.xlu0 %v1336, 127
        %v2892 = vpop.permute.xlu0 %2891
        %2893 = vrot.lane.b32.xlu0 %v1338, 127
        %v2894 = vpop.permute.xlu0 %2893
        %v2904 = vsub.f32 %v190, %v2878
        %v2905 = vsub.f32 %v191, %v2880
        %v2906 = vsub.f32 %v192, %v2882
        %v2907 = vsub.f32 %v193, %v2884
        %v2908 = vsub.f32 %v194, %v2886
        %v2909 = vsub.f32 %v195, %v2888
        %v2910 = vsub.f32 %v196, %v2890
        %v2911 = vsub.f32 %v197, %v2892
        %v2912 = vsub.f32 %v198, %v2894
        %v2913 = vmul.f32 %v2904, %v2904
        %v2914 = vmul.f32 %v2905, %v2905
        %v2915 = vmul.f32 %v2906, %v2906
        %v2916 = vmul.f32 %v2907, %v2907
        %v2917 = vmul.f32 %v2908, %v2908
        %v2918 = vmul.f32 %v2909, %v2909
        %v2919 = vmul.f32 %v2910, %v2910
        %v2920 = vmul.f32 %v2911, %v2911
        %v2921 = vmul.f32 %v2912, %v2912
        %v2931 = vrot.slane %v2913, 1
        %v2932 = vrot.slane %v2914, 1
        %v2933 = vsel %vm280, %v2931, %v2932
        %v2934 = vrot.slane %v2915, 1
        %v2935 = vsel %vm280, %v2932, %v2934
        %v2936 = vrot.slane %v2916, 1
        %v2937 = vrot.slane %v2917, 1
        %v2938 = vsel %vm280, %v2936, %v2937
        %v2939 = vrot.slane %v2918, 1
        %v2940 = vsel %vm280, %v2937, %v2939
        %v2941 = vrot.slane %v2919, 1
        %v2942 = vrot.slane %v2920, 1
        %v2943 = vsel %vm280, %v2941, %v2942
        %v2944 = vrot.slane %v2921, 1
        %v2945 = vsel %vm280, %v2942, %v2944
        %2946 = vrot.lane.b32.xlu0 %v2933, 1
        %v2947 = vpop.permute.xlu0 %2946
        %2948 = vrot.lane.b32.xlu0 %v2935, 1
        %v2949 = vpop.permute.xlu0 %2948
        %2950 = vrot.lane.b32.xlu0 %v2934, 1
        %v2951 = vpop.permute.xlu0 %2950
        %2952 = vrot.lane.b32.xlu0 %v2938, 1
        %v2953 = vpop.permute.xlu0 %2952
        %2954 = vrot.lane.b32.xlu0 %v2940, 1
        %v2955 = vpop.permute.xlu0 %2954
        %2956 = vrot.lane.b32.xlu0 %v2939, 1
        %v2957 = vpop.permute.xlu0 %2956
        %2958 = vrot.lane.b32.xlu0 %v2943, 1
        %v2959 = vpop.permute.xlu0 %2958
        %2960 = vrot.lane.b32.xlu0 %v2945, 1
        %v2961 = vpop.permute.xlu0 %2960
        %2962 = vrot.lane.b32.xlu0 %v2944, 1
        %v2963 = vpop.permute.xlu0 %2962
        %v2973 = vadd.f32 %v2787, %v2947
        %v2974 = vadd.f32 %v2788, %v2949
        %v2975 = vadd.f32 %v2789, %v2951
        %v2976 = vadd.f32 %v2790, %v2953
        %v2977 = vadd.f32 %v2791, %v2955
        %v2978 = vadd.f32 %v2792, %v2957
        %v2979 = vadd.f32 %v2793, %v2959
        %v2980 = vadd.f32 %v2794, %v2961
        %v2981 = vadd.f32 %v2795, %v2963
        %2982 = vrot.lane.b32.xlu0 %v1410, 127
        %v2983 = vpop.permute.xlu0 %2982
        %2984 = vrot.lane.b32.xlu0 %v1412, 127
        %v2985 = vpop.permute.xlu0 %2984
        %2986 = vrot.lane.b32.xlu0 %v1415, 127
        %v2987 = vpop.permute.xlu0 %2986
        %2988 = vrot.lane.b32.xlu0 %v1417, 127
        %v2989 = vpop.permute.xlu0 %2988
        %2990 = vrot.lane.b32.xlu0 %v1420, 127
        %v2991 = vpop.permute.xlu0 %2990
        %2992 = vrot.lane.b32.xlu0 %v1422, 127
        %v2993 = vpop.permute.xlu0 %2992
        %v3000 = vsel %vm831, %v2983, 0.0
        %v3001 = vsel %vm832, %v2985, 0.0
        %v3002 = vsel %vm831, %v2987, 0.0
        %v3003 = vsel %vm832, %v2989, 0.0
        %v3004 = vsel %vm831, %v2991, 0.0
        %v3005 = vsel %vm832, %v2993, 0.0
        %3006 = vrot.lane.b32.xlu0 %v1449, 127
        %v3007 = vpop.permute.xlu0 %3006
        %3008 = vrot.lane.b32.xlu0 %v1451, 127
        %v3009 = vpop.permute.xlu0 %3008
        %3010 = vrot.lane.b32.xlu0 %v1454, 127
        %v3011 = vpop.permute.xlu0 %3010
        %3012 = vrot.lane.b32.xlu0 %v1456, 127
        %v3013 = vpop.permute.xlu0 %3012
        %3014 = vrot.lane.b32.xlu0 %v1459, 127
        %v3015 = vpop.permute.xlu0 %3014
        %3016 = vrot.lane.b32.xlu0 %v1461, 127
        %v3017 = vpop.permute.xlu0 %3016
        %v3024 = vsel %vm891, %v3007, 0.0
        %v3025 = vsel %vm891, %v3009, 0.0
        %v3026 = vsel %vm891, %v3011, 0.0
        %v3027 = vsel %vm891, %v3013, 0.0
        %v3028 = vsel %vm891, %v3015, 0.0
        %v3029 = vsel %vm891, %v3017, 0.0
        %v3030 = vmul.f32 %v3000, %v3000
        %v3031 = vmul.f32 %v3001, %v3001
        %v3032 = vmul.f32 %v3002, %v3002
        %v3033 = vmul.f32 %v3003, %v3003
        %v3034 = vmul.f32 %v3004, %v3004
        %v3035 = vmul.f32 %v3005, %v3005
        %v3036 = vmul.f32 %v3024, %v3024
        %v3037 = vmul.f32 %v3025, %v3025
        %v3038 = vmul.f32 %v3026, %v3026
        %v3039 = vmul.f32 %v3027, %v3027
        %v3040 = vmul.f32 %v3028, %v3028
        %v3041 = vmul.f32 %v3029, %v3029
        %v3042 = vadd.f32 %v3030, %v3036
        %v3043 = vadd.f32 %v3031, %v3037
        %v3044 = vadd.f32 %v3032, %v3038
        %v3045 = vadd.f32 %v3033, %v3039
        %v3046 = vadd.f32 %v3034, %v3040
        %v3047 = vadd.f32 %v3035, %v3041
        %v3048 = vsel %vm958, %v3042, 0.0
        %v3049 = vsel %vm958, %v3044, 0.0
        %v3050 = vadd.f32 %v3048, %v3049
        %v3051 = vsel %vm958, %v3046, 0.0
        %v3052 = vadd.f32 %v3050, %v3051
        %v3053 = vsel %vm958, %v3043, 0.0
        %v3054 = vsel %vm958, %v3045, 0.0
        %v3055 = vadd.f32 %v3053, %v3054
        %v3056 = vsel %vm958, %v3047, 0.0
        %v3057 = vadd.f32 %v3055, %v3056
        %v3058 = vmul.f32 %v3052, 0.33333334
        %v3059 = vmul.f32 %v3057, 0.33333334
        %s3060 = scalar_lea.vmem [#allocation3], 176
        %3061 = vst.msk [vmem:[%s3060] sm:$0xff] %vm958, %v3058
        %3062 = vst.msk [vmem:[%s3060 + $0x8] sm:$0xff] %vm958, %v3059
        %3063 = vrot.lane.b32.xlu0 %v1324, 3
        %v3064 = vpop.permute.xlu0 %3063
        %3065 = vrot.lane.b32.xlu0 %v1326, 3
        %v3066 = vpop.permute.xlu0 %3065
        %3067 = vrot.lane.b32.xlu0 %v1328, 3
        %v3068 = vpop.permute.xlu0 %3067
        %3069 = vrot.lane.b32.xlu0 %v1329, 3
        %v3070 = vpop.permute.xlu0 %3069
        %3071 = vrot.lane.b32.xlu0 %v1331, 3
        %v3072 = vpop.permute.xlu0 %3071
        %3073 = vrot.lane.b32.xlu0 %v1333, 3
        %v3074 = vpop.permute.xlu0 %3073
        %3075 = vrot.lane.b32.xlu0 %v1334, 3
        %v3076 = vpop.permute.xlu0 %3075
        %3077 = vrot.lane.b32.xlu0 %v1336, 3
        %v3078 = vpop.permute.xlu0 %3077
        %3079 = vrot.lane.b32.xlu0 %v1338, 3
        %v3080 = vpop.permute.xlu0 %3079
        %v3090 = vsub.f32 %v190, %v3064
        %v3091 = vsub.f32 %v191, %v3066
        %v3092 = vsub.f32 %v192, %v3068
        %v3093 = vsub.f32 %v193, %v3070
        %v3094 = vsub.f32 %v194, %v3072
        %v3095 = vsub.f32 %v195, %v3074
        %v3096 = vsub.f32 %v196, %v3076
        %v3097 = vsub.f32 %v197, %v3078
        %v3098 = vsub.f32 %v198, %v3080
        %v3099 = vmul.f32 %v3090, %v3090
        %v3100 = vmul.f32 %v3091, %v3091
        %v3101 = vmul.f32 %v3092, %v3092
        %v3102 = vmul.f32 %v3093, %v3093
        %v3103 = vmul.f32 %v3094, %v3094
        %v3104 = vmul.f32 %v3095, %v3095
        %v3105 = vmul.f32 %v3096, %v3096
        %v3106 = vmul.f32 %v3097, %v3097
        %v3107 = vmul.f32 %v3098, %v3098
        %v3117 = vrot.slane %v3099, 1
        %v3118 = vrot.slane %v3100, 1
        %v3119 = vsel %vm280, %v3117, %v3118
        %v3120 = vrot.slane %v3101, 1
        %v3121 = vsel %vm280, %v3118, %v3120
        %v3122 = vrot.slane %v3102, 1
        %v3123 = vrot.slane %v3103, 1
        %v3124 = vsel %vm280, %v3122, %v3123
        %v3125 = vrot.slane %v3104, 1
        %v3126 = vsel %vm280, %v3123, %v3125
        %v3127 = vrot.slane %v3105, 1
        %v3128 = vrot.slane %v3106, 1
        %v3129 = vsel %vm280, %v3127, %v3128
        %v3130 = vrot.slane %v3107, 1
        %v3131 = vsel %vm280, %v3128, %v3130
        %3132 = vrot.lane.b32.xlu0 %v3119, 125
        %v3133 = vpop.permute.xlu0 %3132
        %3134 = vrot.lane.b32.xlu0 %v3121, 125
        %v3135 = vpop.permute.xlu0 %3134
        %3136 = vrot.lane.b32.xlu0 %v3120, 125
        %v3137 = vpop.permute.xlu0 %3136
        %3138 = vrot.lane.b32.xlu0 %v3124, 125
        %v3139 = vpop.permute.xlu0 %3138
        %3140 = vrot.lane.b32.xlu0 %v3126, 125
        %v3141 = vpop.permute.xlu0 %3140
        %3142 = vrot.lane.b32.xlu0 %v3125, 125
        %v3143 = vpop.permute.xlu0 %3142
        %3144 = vrot.lane.b32.xlu0 %v3129, 125
        %v3145 = vpop.permute.xlu0 %3144
        %3146 = vrot.lane.b32.xlu0 %v3131, 125
        %v3147 = vpop.permute.xlu0 %3146
        %3148 = vrot.lane.b32.xlu0 %v3130, 125
        %v3149 = vpop.permute.xlu0 %3148
        %v3159 = vadd.f32 %v2973, %v3133
        %v3160 = vadd.f32 %v2974, %v3135
        %v3161 = vadd.f32 %v2975, %v3137
        %v3162 = vadd.f32 %v2976, %v3139
        %v3163 = vadd.f32 %v2977, %v3141
        %v3164 = vadd.f32 %v2978, %v3143
        %v3165 = vadd.f32 %v2979, %v3145
        %v3166 = vadd.f32 %v2980, %v3147
        %v3167 = vadd.f32 %v2981, %v3149
        %3168 = vrot.lane.b32.xlu0 %v1410, 123
        %v3169 = vpop.permute.xlu0 %3168
        %3170 = vrot.lane.b32.xlu0 %v1412, 123
        %v3171 = vpop.permute.xlu0 %3170
        %3172 = vrot.lane.b32.xlu0 %v1415, 123
        %v3173 = vpop.permute.xlu0 %3172
        %3174 = vrot.lane.b32.xlu0 %v1417, 123
        %v3175 = vpop.permute.xlu0 %3174
        %3176 = vrot.lane.b32.xlu0 %v1420, 123
        %v3177 = vpop.permute.xlu0 %3176
        %3178 = vrot.lane.b32.xlu0 %v1422, 123
        %v3179 = vpop.permute.xlu0 %3178
        %v3186 = vsel %vm831, %v3169, 0.0
        %v3187 = vsel %vm832, %v3171, 0.0
        %v3188 = vsel %vm831, %v3173, 0.0
        %v3189 = vsel %vm832, %v3175, 0.0
        %v3190 = vsel %vm831, %v3177, 0.0
        %v3191 = vsel %vm832, %v3179, 0.0
        %3192 = vrot.lane.b32.xlu0 %v1449, 123
        %v3193 = vpop.permute.xlu0 %3192
        %3194 = vrot.lane.b32.xlu0 %v1451, 123
        %v3195 = vpop.permute.xlu0 %3194
        %3196 = vrot.lane.b32.xlu0 %v1454, 123
        %v3197 = vpop.permute.xlu0 %3196
        %3198 = vrot.lane.b32.xlu0 %v1456, 123
        %v3199 = vpop.permute.xlu0 %3198
        %3200 = vrot.lane.b32.xlu0 %v1459, 123
        %v3201 = vpop.permute.xlu0 %3200
        %3202 = vrot.lane.b32.xlu0 %v1461, 123
        %v3203 = vpop.permute.xlu0 %3202
        %v3210 = vsel %vm891, %v3193, 0.0
        %v3211 = vsel %vm891, %v3195, 0.0
        %v3212 = vsel %vm891, %v3197, 0.0
        %v3213 = vsel %vm891, %v3199, 0.0
        %v3214 = vsel %vm891, %v3201, 0.0
        %v3215 = vsel %vm891, %v3203, 0.0
        %v3216 = vmul.f32 %v3186, %v3186
        %v3217 = vmul.f32 %v3187, %v3187
        %v3218 = vmul.f32 %v3188, %v3188
        %v3219 = vmul.f32 %v3189, %v3189
        %v3220 = vmul.f32 %v3190, %v3190
        %v3221 = vmul.f32 %v3191, %v3191
        %v3222 = vmul.f32 %v3210, %v3210
        %v3223 = vmul.f32 %v3211, %v3211
        %v3224 = vmul.f32 %v3212, %v3212
        %v3225 = vmul.f32 %v3213, %v3213
        %v3226 = vmul.f32 %v3214, %v3214
        %v3227 = vmul.f32 %v3215, %v3215
        %v3228 = vadd.f32 %v3216, %v3222
        %v3229 = vadd.f32 %v3217, %v3223
        %v3230 = vadd.f32 %v3218, %v3224
        %v3231 = vadd.f32 %v3219, %v3225
        %v3232 = vadd.f32 %v3220, %v3226
        %v3233 = vadd.f32 %v3221, %v3227
        %v3234 = vsel %vm958, %v3228, 0.0
        %v3235 = vsel %vm958, %v3230, 0.0
        %v3236 = vadd.f32 %v3234, %v3235
        %v3237 = vsel %vm958, %v3232, 0.0
        %v3238 = vadd.f32 %v3236, %v3237
        %v3239 = vsel %vm958, %v3229, 0.0
        %v3240 = vsel %vm958, %v3231, 0.0
        %v3241 = vadd.f32 %v3239, %v3240
        %v3242 = vsel %vm958, %v3233, 0.0
        %v3243 = vadd.f32 %v3241, %v3242
        %v3244 = vmul.f32 %v3238, 0.33333334
        %v3245 = vmul.f32 %v3243, 0.33333334
        %s3246 = scalar_lea.vmem [#allocation3], 192
        %3247 = vst.msk [vmem:[%s3246] sm:$0xff] %vm958, %v3244
        %3248 = vst.msk [vmem:[%s3246 + $0x8] sm:$0xff] %vm958, %v3245
        %vm3249 = vcmask 1042432
        %v3250 = vrot.slane %v776, 5
        %v3251 = vrot.slane %v777, 5
        %v3252 = vsel %vm3249, %v3250, %v3251
        %v3253 = vrot.slane %v778, 5
        %v3254 = vsel %vm3249, %v3251, %v3253
        %v3255 = vrot.slane %v779, 5
        %v3256 = vrot.slane %v780, 5
        %v3257 = vsel %vm3249, %v3255, %v3256
        %v3258 = vrot.slane %v781, 5
        %v3259 = vsel %vm3249, %v3256, %v3258
        %v3260 = vrot.slane %v782, 5
        %v3261 = vrot.slane %v783, 5
        %v3262 = vsel %vm3249, %v3260, %v3261
        %v3263 = vrot.slane %v784, 5
        %v3264 = vsel %vm3249, %v3261, %v3263
        %3265 = vrot.lane.b32.xlu0 %v3250, 127
        %v3266 = vpop.permute.xlu0 %3265
        %3267 = vrot.lane.b32.xlu0 %v3252, 127
        %v3268 = vpop.permute.xlu0 %3267
        %3269 = vrot.lane.b32.xlu0 %v3254, 127
        %v3270 = vpop.permute.xlu0 %3269
        %3271 = vrot.lane.b32.xlu0 %v3255, 127
        %v3272 = vpop.permute.xlu0 %3271
        %3273 = vrot.lane.b32.xlu0 %v3257, 127
        %v3274 = vpop.permute.xlu0 %3273
        %3275 = vrot.lane.b32.xlu0 %v3259, 127
        %v3276 = vpop.permute.xlu0 %3275
        %3277 = vrot.lane.b32.xlu0 %v3260, 127
        %v3278 = vpop.permute.xlu0 %3277
        %3279 = vrot.lane.b32.xlu0 %v3262, 127
        %v3280 = vpop.permute.xlu0 %3279
        %3281 = vrot.lane.b32.xlu0 %v3264, 127
        %v3282 = vpop.permute.xlu0 %3281
        %v3292 = vsub.f32 %v190, %v3266
        %v3293 = vsub.f32 %v191, %v3268
        %v3294 = vsub.f32 %v192, %v3270
        %v3295 = vsub.f32 %v193, %v3272
        %v3296 = vsub.f32 %v194, %v3274
        %v3297 = vsub.f32 %v195, %v3276
        %v3298 = vsub.f32 %v196, %v3278
        %v3299 = vsub.f32 %v197, %v3280
        %v3300 = vsub.f32 %v198, %v3282
        %v3301 = vmul.f32 %v3292, %v3292
        %v3302 = vmul.f32 %v3293, %v3293
        %v3303 = vmul.f32 %v3294, %v3294
        %v3304 = vmul.f32 %v3295, %v3295
        %v3305 = vmul.f32 %v3296, %v3296
        %v3306 = vmul.f32 %v3297, %v3297
        %v3307 = vmul.f32 %v3298, %v3298
        %v3308 = vmul.f32 %v3299, %v3299
        %v3309 = vmul.f32 %v3300, %v3300
        %v3319 = vrot.slane %v3301, 3
        %v3320 = vrot.slane %v3302, 3
        %v3321 = vsel %vm652, %v3319, %v3320
        %v3322 = vrot.slane %v3303, 3
        %v3323 = vsel %vm652, %v3320, %v3322
        %v3324 = vrot.slane %v3304, 3
        %v3325 = vrot.slane %v3305, 3
        %v3326 = vsel %vm652, %v3324, %v3325
        %v3327 = vrot.slane %v3306, 3
        %v3328 = vsel %vm652, %v3325, %v3327
        %v3329 = vrot.slane %v3307, 3
        %v3330 = vrot.slane %v3308, 3
        %v3331 = vsel %vm652, %v3329, %v3330
        %v3332 = vrot.slane %v3309, 3
        %v3333 = vsel %vm652, %v3330, %v3332
        %3334 = vrot.lane.b32.xlu0 %v3321, 1
        %v3335 = vpop.permute.xlu0 %3334
        %3336 = vrot.lane.b32.xlu0 %v3323, 1
        %v3337 = vpop.permute.xlu0 %3336
        %3338 = vrot.lane.b32.xlu0 %v3322, 1
        %v3339 = vpop.permute.xlu0 %3338
        %3340 = vrot.lane.b32.xlu0 %v3326, 1
        %v3341 = vpop.permute.xlu0 %3340
        %3342 = vrot.lane.b32.xlu0 %v3328, 1
        %v3343 = vpop.permute.xlu0 %3342
        %3344 = vrot.lane.b32.xlu0 %v3327, 1
        %v3345 = vpop.permute.xlu0 %3344
        %3346 = vrot.lane.b32.xlu0 %v3331, 1
        %v3347 = vpop.permute.xlu0 %3346
        %3348 = vrot.lane.b32.xlu0 %v3333, 1
        %v3349 = vpop.permute.xlu0 %3348
        %3350 = vrot.lane.b32.xlu0 %v3332, 1
        %v3351 = vpop.permute.xlu0 %3350
        %v3361 = vadd.f32 %v3159, %v3335
        %v3362 = vadd.f32 %v3160, %v3337
        %v3363 = vadd.f32 %v3161, %v3339
        %v3364 = vadd.f32 %v3162, %v3341
        %v3365 = vadd.f32 %v3163, %v3343
        %v3366 = vadd.f32 %v3164, %v3345
        %v3367 = vadd.f32 %v3165, %v3347
        %v3368 = vadd.f32 %v3166, %v3349
        %v3369 = vadd.f32 %v3167, %v3351
        %v3370 = vrot.slane %v820, 5
        %v3371 = vrot.slane %v821, 5
        %v3372 = vsel %vm3249, %v3370, %v3371
        %v3373 = vrot.slane %v822, 5
        %v3374 = vsel %vm3249, %v3371, %v3373
        %v3375 = vrot.slane %v823, 5
        %v3376 = vrot.slane %v824, 5
        %v3377 = vsel %vm3249, %v3375, %v3376
        %v3378 = vrot.slane %v825, 5
        %v3379 = vsel %vm3249, %v3376, %v3378
        %v3380 = vrot.slane %v826, 5
        %v3381 = vrot.slane %v827, 5
        %v3382 = vsel %vm3249, %v3380, %v3381
        %v3383 = vrot.slane %v828, 5
        %v3384 = vsel %vm3249, %v3381, %v3383
        %3385 = vrot.lane.b32.xlu0 %v3372, 127
        %v3386 = vpop.permute.xlu0 %3385
        %3387 = vrot.lane.b32.xlu0 %v3374, 127
        %v3388 = vpop.permute.xlu0 %3387
        %3389 = vrot.lane.b32.xlu0 %v3377, 127
        %v3390 = vpop.permute.xlu0 %3389
        %3391 = vrot.lane.b32.xlu0 %v3379, 127
        %v3392 = vpop.permute.xlu0 %3391
        %3393 = vrot.lane.b32.xlu0 %v3382, 127
        %v3394 = vpop.permute.xlu0 %3393
        %3395 = vrot.lane.b32.xlu0 %v3384, 127
        %v3396 = vpop.permute.xlu0 %3395
        %v3403 = vsel %vm831, %v3386, 0.0
        %v3404 = vsel %vm832, %v3388, 0.0
        %v3405 = vsel %vm831, %v3390, 0.0
        %v3406 = vsel %vm832, %v3392, 0.0
        %v3407 = vsel %vm831, %v3394, 0.0
        %v3408 = vsel %vm832, %v3396, 0.0
        %v3409 = vrot.slane %v881, 5
        %v3410 = vrot.slane %v882, 5
        %v3411 = vsel %vm3249, %v3409, %v3410
        %v3412 = vrot.slane %v883, 5
        %v3413 = vsel %vm3249, %v3410, %v3412
        %v3414 = vrot.slane %v884, 5
        %v3415 = vrot.slane %v885, 5
        %v3416 = vsel %vm3249, %v3414, %v3415
        %v3417 = vrot.slane %v886, 5
        %v3418 = vsel %vm3249, %v3415, %v3417
        %v3419 = vrot.slane %v887, 5
        %v3420 = vrot.slane %v888, 5
        %v3421 = vsel %vm3249, %v3419, %v3420
        %v3422 = vrot.slane %v889, 5
        %v3423 = vsel %vm3249, %v3420, %v3422
        %3424 = vrot.lane.b32.xlu0 %v3411, 127
        %v3425 = vpop.permute.xlu0 %3424
        %3426 = vrot.lane.b32.xlu0 %v3413, 127
        %v3427 = vpop.permute.xlu0 %3426
        %3428 = vrot.lane.b32.xlu0 %v3416, 127
        %v3429 = vpop.permute.xlu0 %3428
        %3430 = vrot.lane.b32.xlu0 %v3418, 127
        %v3431 = vpop.permute.xlu0 %3430
        %3432 = vrot.lane.b32.xlu0 %v3421, 127
        %v3433 = vpop.permute.xlu0 %3432
        %3434 = vrot.lane.b32.xlu0 %v3423, 127
        %v3435 = vpop.permute.xlu0 %3434
        %v3442 = vsel %vm891, %v3425, 0.0
        %v3443 = vsel %vm891, %v3427, 0.0
        %v3444 = vsel %vm891, %v3429, 0.0
        %v3445 = vsel %vm891, %v3431, 0.0
        %v3446 = vsel %vm891, %v3433, 0.0
        %v3447 = vsel %vm891, %v3435, 0.0
        %v3448 = vmul.f32 %v3403, %v3403
        %v3449 = vmul.f32 %v3404, %v3404
        %v3450 = vmul.f32 %v3405, %v3405
        %v3451 = vmul.f32 %v3406, %v3406
        %v3452 = vmul.f32 %v3407, %v3407
        %v3453 = vmul.f32 %v3408, %v3408
        %v3454 = vmul.f32 %v3442, %v3442
        %v3455 = vmul.f32 %v3443, %v3443
        %v3456 = vmul.f32 %v3444, %v3444
        %v3457 = vmul.f32 %v3445, %v3445
        %v3458 = vmul.f32 %v3446, %v3446
        %v3459 = vmul.f32 %v3447, %v3447
        %v3460 = vadd.f32 %v3448, %v3454
        %v3461 = vadd.f32 %v3449, %v3455
        %v3462 = vadd.f32 %v3450, %v3456
        %v3463 = vadd.f32 %v3451, %v3457
        %v3464 = vadd.f32 %v3452, %v3458
        %v3465 = vadd.f32 %v3453, %v3459
        %v3466 = vsel %vm958, %v3460, 0.0
        %v3467 = vsel %vm958, %v3462, 0.0
        %v3468 = vadd.f32 %v3466, %v3467
        %v3469 = vsel %vm958, %v3464, 0.0
        %v3470 = vadd.f32 %v3468, %v3469
        %v3471 = vsel %vm958, %v3461, 0.0
        %v3472 = vsel %vm958, %v3463, 0.0
        %v3473 = vadd.f32 %v3471, %v3472
        %v3474 = vsel %vm958, %v3465, 0.0
        %v3475 = vadd.f32 %v3473, %v3474
        %v3476 = vmul.f32 %v3470, 0.33333334
        %v3477 = vmul.f32 %v3475, 0.33333334
        %s3478 = scalar_lea.vmem [#allocation3], 208
        %3479 = vst.msk [vmem:[%s3478] sm:$0xff] %vm958, %v3476
        %3480 = vst.msk [vmem:[%s3478 + $0x8] sm:$0xff] %vm958, %v3477
        %3481 = vrot.lane.b32.xlu0 %v3250, 1
        %v3482 = vpop.permute.xlu0 %3481
        %3483 = vrot.lane.b32.xlu0 %v3252, 1
        %v3484 = vpop.permute.xlu0 %3483
        %3485 = vrot.lane.b32.xlu0 %v3254, 1
        %v3486 = vpop.permute.xlu0 %3485
        %3487 = vrot.lane.b32.xlu0 %v3255, 1
        %v3488 = vpop.permute.xlu0 %3487
        %3489 = vrot.lane.b32.xlu0 %v3257, 1
        %v3490 = vpop.permute.xlu0 %3489
        %3491 = vrot.lane.b32.xlu0 %v3259, 1
        %v3492 = vpop.permute.xlu0 %3491
        %3493 = vrot.lane.b32.xlu0 %v3260, 1
        %v3494 = vpop.permute.xlu0 %3493
        %3495 = vrot.lane.b32.xlu0 %v3262, 1
        %v3496 = vpop.permute.xlu0 %3495
        %3497 = vrot.lane.b32.xlu0 %v3264, 1
        %v3498 = vpop.permute.xlu0 %3497
        %v3508 = vsub.f32 %v190, %v3482
        %v3509 = vsub.f32 %v191, %v3484
        %v3510 = vsub.f32 %v192, %v3486
        %v3511 = vsub.f32 %v193, %v3488
        %v3512 = vsub.f32 %v194, %v3490
        %v3513 = vsub.f32 %v195, %v3492
        %v3514 = vsub.f32 %v196, %v3494
        %v3515 = vsub.f32 %v197, %v3496
        %v3516 = vsub.f32 %v198, %v3498
        %v3517 = vmul.f32 %v3508, %v3508
        %v3518 = vmul.f32 %v3509, %v3509
        %v3519 = vmul.f32 %v3510, %v3510
        %v3520 = vmul.f32 %v3511, %v3511
        %v3521 = vmul.f32 %v3512, %v3512
        %v3522 = vmul.f32 %v3513, %v3513
        %v3523 = vmul.f32 %v3514, %v3514
        %v3524 = vmul.f32 %v3515, %v3515
        %v3525 = vmul.f32 %v3516, %v3516
        %v3535 = vrot.slane %v3517, 3
        %v3536 = vrot.slane %v3518, 3
        %v3537 = vsel %vm652, %v3535, %v3536
        %v3538 = vrot.slane %v3519, 3
        %v3539 = vsel %vm652, %v3536, %v3538
        %v3540 = vrot.slane %v3520, 3
        %v3541 = vrot.slane %v3521, 3
        %v3542 = vsel %vm652, %v3540, %v3541
        %v3543 = vrot.slane %v3522, 3
        %v3544 = vsel %vm652, %v3541, %v3543
        %v3545 = vrot.slane %v3523, 3
        %v3546 = vrot.slane %v3524, 3
        %v3547 = vsel %vm652, %v3545, %v3546
        %v3548 = vrot.slane %v3525, 3
        %v3549 = vsel %vm652, %v3546, %v3548
        %3550 = vrot.lane.b32.xlu0 %v3537, 127
        %v3551 = vpop.permute.xlu0 %3550
        %3552 = vrot.lane.b32.xlu0 %v3539, 127
        %v3553 = vpop.permute.xlu0 %3552
        %3554 = vrot.lane.b32.xlu0 %v3538, 127
        %v3555 = vpop.permute.xlu0 %3554
        %3556 = vrot.lane.b32.xlu0 %v3542, 127
        %v3557 = vpop.permute.xlu0 %3556
        %3558 = vrot.lane.b32.xlu0 %v3544, 127
        %v3559 = vpop.permute.xlu0 %3558
        %3560 = vrot.lane.b32.xlu0 %v3543, 127
        %v3561 = vpop.permute.xlu0 %3560
        %3562 = vrot.lane.b32.xlu0 %v3547, 127
        %v3563 = vpop.permute.xlu0 %3562
        %3564 = vrot.lane.b32.xlu0 %v3549, 127
        %v3565 = vpop.permute.xlu0 %3564
        %3566 = vrot.lane.b32.xlu0 %v3548, 127
        %v3567 = vpop.permute.xlu0 %3566
        %v3577 = vadd.f32 %v3361, %v3551
        %v3578 = vadd.f32 %v3362, %v3553
        %v3579 = vadd.f32 %v3363, %v3555
        %v3580 = vadd.f32 %v3364, %v3557
        %v3581 = vadd.f32 %v3365, %v3559
        %v3582 = vadd.f32 %v3366, %v3561
        %v3583 = vadd.f32 %v3367, %v3563
        %v3584 = vadd.f32 %v3368, %v3565
        %v3585 = vadd.f32 %v3369, %v3567
        %3586 = vrot.lane.b32.xlu0 %v3372, 125
        %v3587 = vpop.permute.xlu0 %3586
        %3588 = vrot.lane.b32.xlu0 %v3374, 125
        %v3589 = vpop.permute.xlu0 %3588
        %3590 = vrot.lane.b32.xlu0 %v3377, 125
        %v3591 = vpop.permute.xlu0 %3590
        %3592 = vrot.lane.b32.xlu0 %v3379, 125
        %v3593 = vpop.permute.xlu0 %3592
        %3594 = vrot.lane.b32.xlu0 %v3382, 125
        %v3595 = vpop.permute.xlu0 %3594
        %3596 = vrot.lane.b32.xlu0 %v3384, 125
        %v3597 = vpop.permute.xlu0 %3596
        %v3604 = vsel %vm831, %v3587, 0.0
        %v3605 = vsel %vm832, %v3589, 0.0
        %v3606 = vsel %vm831, %v3591, 0.0
        %v3607 = vsel %vm832, %v3593, 0.0
        %v3608 = vsel %vm831, %v3595, 0.0
        %v3609 = vsel %vm832, %v3597, 0.0
        %3610 = vrot.lane.b32.xlu0 %v3411, 125
        %v3611 = vpop.permute.xlu0 %3610
        %3612 = vrot.lane.b32.xlu0 %v3413, 125
        %v3613 = vpop.permute.xlu0 %3612
        %3614 = vrot.lane.b32.xlu0 %v3416, 125
        %v3615 = vpop.permute.xlu0 %3614
        %3616 = vrot.lane.b32.xlu0 %v3418, 125
        %v3617 = vpop.permute.xlu0 %3616
        %3618 = vrot.lane.b32.xlu0 %v3421, 125
        %v3619 = vpop.permute.xlu0 %3618
        %3620 = vrot.lane.b32.xlu0 %v3423, 125
        %v3621 = vpop.permute.xlu0 %3620
        %v3628 = vsel %vm891, %v3611, 0.0
        %v3629 = vsel %vm891, %v3613, 0.0
        %v3630 = vsel %vm891, %v3615, 0.0
        %v3631 = vsel %vm891, %v3617, 0.0
        %v3632 = vsel %vm891, %v3619, 0.0
        %v3633 = vsel %vm891, %v3621, 0.0
        %v3634 = vmul.f32 %v3604, %v3604
        %v3635 = vmul.f32 %v3605, %v3605
        %v3636 = vmul.f32 %v3606, %v3606
        %v3637 = vmul.f32 %v3607, %v3607
        %v3638 = vmul.f32 %v3608, %v3608
        %v3639 = vmul.f32 %v3609, %v3609
        %v3640 = vmul.f32 %v3628, %v3628
        %v3641 = vmul.f32 %v3629, %v3629
        %v3642 = vmul.f32 %v3630, %v3630
        %v3643 = vmul.f32 %v3631, %v3631
        %v3644 = vmul.f32 %v3632, %v3632
        %v3645 = vmul.f32 %v3633, %v3633
        %v3646 = vadd.f32 %v3634, %v3640
        %v3647 = vadd.f32 %v3635, %v3641
        %v3648 = vadd.f32 %v3636, %v3642
        %v3649 = vadd.f32 %v3637, %v3643
        %v3650 = vadd.f32 %v3638, %v3644
        %v3651 = vadd.f32 %v3639, %v3645
        %v3652 = vsel %vm958, %v3646, 0.0
        %v3653 = vsel %vm958, %v3648, 0.0
        %v3654 = vadd.f32 %v3652, %v3653
        %v3655 = vsel %vm958, %v3650, 0.0
        %v3656 = vadd.f32 %v3654, %v3655
        %v3657 = vsel %vm958, %v3647, 0.0
        %v3658 = vsel %vm958, %v3649, 0.0
        %v3659 = vadd.f32 %v3657, %v3658
        %v3660 = vsel %vm958, %v3651, 0.0
        %v3661 = vadd.f32 %v3659, %v3660
        %v3662 = vmul.f32 %v3656, 0.33333334
        %v3663 = vmul.f32 %v3661, 0.33333334
        %s3664 = scalar_lea.vmem [#allocation3], 224
        %3665 = vst.msk [vmem:[%s3664] sm:$0xff] %vm958, %v3662
        %3666 = vst.msk [vmem:[%s3664 + $0x8] sm:$0xff] %vm958, %v3663
        %3667 = vrot.lane.b32.xlu0 %v3250, 3
        %v3668 = vpop.permute.xlu0 %3667
        %3669 = vrot.lane.b32.xlu0 %v3252, 3
        %v3670 = vpop.permute.xlu0 %3669
        %3671 = vrot.lane.b32.xlu0 %v3254, 3
        %v3672 = vpop.permute.xlu0 %3671
        %3673 = vrot.lane.b32.xlu0 %v3255, 3
        %v3674 = vpop.permute.xlu0 %3673
        %3675 = vrot.lane.b32.xlu0 %v3257, 3
        %v3676 = vpop.permute.xlu0 %3675
        %3677 = vrot.lane.b32.xlu0 %v3259, 3
        %v3678 = vpop.permute.xlu0 %3677
        %3679 = vrot.lane.b32.xlu0 %v3260, 3
        %v3680 = vpop.permute.xlu0 %3679
        %3681 = vrot.lane.b32.xlu0 %v3262, 3
        %v3682 = vpop.permute.xlu0 %3681
        %3683 = vrot.lane.b32.xlu0 %v3264, 3
        %v3684 = vpop.permute.xlu0 %3683
        %v3694 = vsub.f32 %v190, %v3668
        %v3695 = vsub.f32 %v191, %v3670
        %v3696 = vsub.f32 %v192, %v3672
        %v3697 = vsub.f32 %v193, %v3674
        %v3698 = vsub.f32 %v194, %v3676
        %v3699 = vsub.f32 %v195, %v3678
        %v3700 = vsub.f32 %v196, %v3680
        %v3701 = vsub.f32 %v197, %v3682
        %v3702 = vsub.f32 %v198, %v3684
        %v3703 = vmul.f32 %v3694, %v3694
        %v3704 = vmul.f32 %v3695, %v3695
        %v3705 = vmul.f32 %v3696, %v3696
        %v3706 = vmul.f32 %v3697, %v3697
        %v3707 = vmul.f32 %v3698, %v3698
        %v3708 = vmul.f32 %v3699, %v3699
        %v3709 = vmul.f32 %v3700, %v3700
        %v3710 = vmul.f32 %v3701, %v3701
        %v3711 = vmul.f32 %v3702, %v3702
        %v3721 = vrot.slane %v3703, 3
        %v3722 = vrot.slane %v3704, 3
        %v3723 = vsel %vm652, %v3721, %v3722
        %v3724 = vrot.slane %v3705, 3
        %v3725 = vsel %vm652, %v3722, %v3724
        %v3726 = vrot.slane %v3706, 3
        %v3727 = vrot.slane %v3707, 3
        %v3728 = vsel %vm652, %v3726, %v3727
        %v3729 = vrot.slane %v3708, 3
        %v3730 = vsel %vm652, %v3727, %v3729
        %v3731 = vrot.slane %v3709, 3
        %v3732 = vrot.slane %v3710, 3
        %v3733 = vsel %vm652, %v3731, %v3732
        %v3734 = vrot.slane %v3711, 3
        %v3735 = vsel %vm652, %v3732, %v3734
        %3736 = vrot.lane.b32.xlu0 %v3723, 125
        %v3737 = vpop.permute.xlu0 %3736
        %3738 = vrot.lane.b32.xlu0 %v3725, 125
        %v3739 = vpop.permute.xlu0 %3738
        %3740 = vrot.lane.b32.xlu0 %v3724, 125
        %v3741 = vpop.permute.xlu0 %3740
        %3742 = vrot.lane.b32.xlu0 %v3728, 125
        %v3743 = vpop.permute.xlu0 %3742
        %3744 = vrot.lane.b32.xlu0 %v3730, 125
        %v3745 = vpop.permute.xlu0 %3744
        %3746 = vrot.lane.b32.xlu0 %v3729, 125
        %v3747 = vpop.permute.xlu0 %3746
        %3748 = vrot.lane.b32.xlu0 %v3733, 125
        %v3749 = vpop.permute.xlu0 %3748
        %3750 = vrot.lane.b32.xlu0 %v3735, 125
        %v3751 = vpop.permute.xlu0 %3750
        %3752 = vrot.lane.b32.xlu0 %v3734, 125
        %v3753 = vpop.permute.xlu0 %3752
        %v3763 = vadd.f32 %v3577, %v3737
        %v3764 = vadd.f32 %v3578, %v3739
        %v3765 = vadd.f32 %v3579, %v3741
        %v3766 = vadd.f32 %v3580, %v3743
        %v3767 = vadd.f32 %v3581, %v3745
        %v3768 = vadd.f32 %v3582, %v3747
        %v3769 = vadd.f32 %v3583, %v3749
        %v3770 = vadd.f32 %v3584, %v3751
        %v3771 = vadd.f32 %v3585, %v3753
        %3772 = vrot.lane.b32.xlu0 %v3372, 123
        %v3773 = vpop.permute.xlu0 %3772
        %3774 = vrot.lane.b32.xlu0 %v3374, 123
        %v3775 = vpop.permute.xlu0 %3774
        %3776 = vrot.lane.b32.xlu0 %v3377, 123
        %v3777 = vpop.permute.xlu0 %3776
        %3778 = vrot.lane.b32.xlu0 %v3379, 123
        %v3779 = vpop.permute.xlu0 %3778
        %3780 = vrot.lane.b32.xlu0 %v3382, 123
        %v3781 = vpop.permute.xlu0 %3780
        %3782 = vrot.lane.b32.xlu0 %v3384, 123
        %v3783 = vpop.permute.xlu0 %3782
        %v3790 = vsel %vm831, %v3773, 0.0
        %v3791 = vsel %vm832, %v3775, 0.0
        %v3792 = vsel %vm831, %v3777, 0.0
        %v3793 = vsel %vm832, %v3779, 0.0
        %v3794 = vsel %vm831, %v3781, 0.0
        %v3795 = vsel %vm832, %v3783, 0.0
        %3796 = vrot.lane.b32.xlu0 %v3411, 123
        %v3797 = vpop.permute.xlu0 %3796
        %3798 = vrot.lane.b32.xlu0 %v3413, 123
        %v3799 = vpop.permute.xlu0 %3798
        %3800 = vrot.lane.b32.xlu0 %v3416, 123
        %v3801 = vpop.permute.xlu0 %3800
        %3802 = vrot.lane.b32.xlu0 %v3418, 123
        %v3803 = vpop.permute.xlu0 %3802
        %3804 = vrot.lane.b32.xlu0 %v3421, 123
        %v3805 = vpop.permute.xlu0 %3804
        %3806 = vrot.lane.b32.xlu0 %v3423, 123
        %v3807 = vpop.permute.xlu0 %3806
        %v3814 = vsel %vm891, %v3797, 0.0
        %v3815 = vsel %vm891, %v3799, 0.0
        %v3816 = vsel %vm891, %v3801, 0.0
        %v3817 = vsel %vm891, %v3803, 0.0
        %v3818 = vsel %vm891, %v3805, 0.0
        %v3819 = vsel %vm891, %v3807, 0.0
        %v3820 = vmul.f32 %v3790, %v3790
        %v3821 = vmul.f32 %v3791, %v3791
        %v3822 = vmul.f32 %v3792, %v3792
        %v3823 = vmul.f32 %v3793, %v3793
        %v3824 = vmul.f32 %v3794, %v3794
        %v3825 = vmul.f32 %v3795, %v3795
        %v3826 = vmul.f32 %v3814, %v3814
        %v3827 = vmul.f32 %v3815, %v3815
        %v3828 = vmul.f32 %v3816, %v3816
        %v3829 = vmul.f32 %v3817, %v3817
        %v3830 = vmul.f32 %v3818, %v3818
        %v3831 = vmul.f32 %v3819, %v3819
        %v3832 = vadd.f32 %v3820, %v3826
        %v3833 = vadd.f32 %v3821, %v3827
        %v3834 = vadd.f32 %v3822, %v3828
        %v3835 = vadd.f32 %v3823, %v3829
        %v3836 = vadd.f32 %v3824, %v3830
        %v3837 = vadd.f32 %v3825, %v3831
        %v3838 = vsel %vm958, %v3832, 0.0
        %v3839 = vsel %vm958, %v3834, 0.0
        %v3840 = vadd.f32 %v3838, %v3839
        %v3841 = vsel %vm958, %v3836, 0.0
        %v3842 = vadd.f32 %v3840, %v3841
        %v3843 = vsel %vm958, %v3833, 0.0
        %v3844 = vsel %vm958, %v3835, 0.0
        %v3845 = vadd.f32 %v3843, %v3844
        %v3846 = vsel %vm958, %v3837, 0.0
        %v3847 = vadd.f32 %v3845, %v3846
        %v3848 = vmul.f32 %v3842, 0.33333334
        %v3849 = vmul.f32 %v3847, 0.33333334
        %s3850 = scalar_lea.vmem [#allocation3], 240
        %3851 = vst.msk [vmem:[%s3850] sm:$0xff] %vm958, %v3848
        %3852 = vst.msk [vmem:[%s3850 + $0x8] sm:$0xff] %vm958, %v3849
        %v3853 = vmul.f32 %v3763, 0.06666667
        %v3854 = vmul.f32 %v3764, 0.06666667
        %v3855 = vmul.f32 %v3765, 0.06666667
        %v3856 = vmul.f32 %v3766, 0.06666667
        %v3857 = vmul.f32 %v3767, 0.06666667
        %v3858 = vmul.f32 %v3768, 0.06666667
        %v3859 = vmul.f32 %v3769, 0.06666667
        %v3860 = vmul.f32 %v3770, 0.06666667
        %v3861 = vmul.f32 %v3771, 0.06666667
        %v3862 = vrsqrt.pop %v3853
        %v3863 = vmul.f32 %v3853, %v3862
        %vm3864 = vcmp.eq.f32.partialorder %v3853, inf
        %v3865 = vsel %vm3864, %v3853, %v3863
        %vm3866 = vcmp.eq.f32.partialorder %v3853, 0.0
        %v3867 = vand.u32 %v3853, 2147483648
        %v3868 = vsel %vm3866, %v3867, %v3865
        %v3869 = vrsqrt.pop %v3854
        %v3870 = vmul.f32 %v3854, %v3869
        %vm3871 = vcmp.eq.f32.partialorder %v3854, inf
        %v3872 = vsel %vm3871, %v3854, %v3870
        %vm3873 = vcmp.eq.f32.partialorder %v3854, 0.0
        %v3874 = vand.u32 %v3854, 2147483648
        %v3875 = vsel %vm3873, %v3874, %v3872
        %v3876 = vrsqrt.pop %v3855
        %v3877 = vmul.f32 %v3855, %v3876
        %vm3878 = vcmp.eq.f32.partialorder %v3855, inf
        %v3879 = vsel %vm3878, %v3855, %v3877
        %vm3880 = vcmp.eq.f32.partialorder %v3855, 0.0
        %v3881 = vand.u32 %v3855, 2147483648
        %v3882 = vsel %vm3880, %v3881, %v3879
        %v3883 = vrsqrt.pop %v3856
        %v3884 = vmul.f32 %v3856, %v3883
        %vm3885 = vcmp.eq.f32.partialorder %v3856, inf
        %v3886 = vsel %vm3885, %v3856, %v3884
        %vm3887 = vcmp.eq.f32.partialorder %v3856, 0.0
        %v3888 = vand.u32 %v3856, 2147483648
        %v3889 = vsel %vm3887, %v3888, %v3886
        %v3890 = vrsqrt.pop %v3857
        %v3891 = vmul.f32 %v3857, %v3890
        %vm3892 = vcmp.eq.f32.partialorder %v3857, inf
        %v3893 = vsel %vm3892, %v3857, %v3891
        %vm3894 = vcmp.eq.f32.partialorder %v3857, 0.0
        %v3895 = vand.u32 %v3857, 2147483648
        %v3896 = vsel %vm3894, %v3895, %v3893
        %v3897 = vrsqrt.pop %v3858
        %v3898 = vmul.f32 %v3858, %v3897
        %vm3899 = vcmp.eq.f32.partialorder %v3858, inf
        %v3900 = vsel %vm3899, %v3858, %v3898
        %vm3901 = vcmp.eq.f32.partialorder %v3858, 0.0
        %v3902 = vand.u32 %v3858, 2147483648
        %v3903 = vsel %vm3901, %v3902, %v3900
        %v3904 = vrsqrt.pop %v3859
        %v3905 = vmul.f32 %v3859, %v3904
        %vm3906 = vcmp.eq.f32.partialorder %v3859, inf
        %v3907 = vsel %vm3906, %v3859, %v3905
        %vm3908 = vcmp.eq.f32.partialorder %v3859, 0.0
        %v3909 = vand.u32 %v3859, 2147483648
        %v3910 = vsel %vm3908, %v3909, %v3907
        %v3911 = vrsqrt.pop %v3860
        %v3912 = vmul.f32 %v3860, %v3911
        %vm3913 = vcmp.eq.f32.partialorder %v3860, inf
        %v3914 = vsel %vm3913, %v3860, %v3912
        %vm3915 = vcmp.eq.f32.partialorder %v3860, 0.0
        %v3916 = vand.u32 %v3860, 2147483648
        %v3917 = vsel %vm3915, %v3916, %v3914
        %v3918 = vrsqrt.pop %v3861
        %v3919 = vmul.f32 %v3861, %v3918
        %vm3920 = vcmp.eq.f32.partialorder %v3861, inf
        %v3921 = vsel %vm3920, %v3861, %v3919
        %vm3922 = vcmp.eq.f32.partialorder %v3861, 0.0
        %v3923 = vand.u32 %v3861, 2147483648
        %v3924 = vsel %vm3922, %v3923, %v3921
        %v3925 = vadd.f32 %v3868, 1e-08
        %v3926 = vadd.f32 %v3875, 1e-08
        %v3927 = vadd.f32 %v3882, 1e-08
        %v3928 = vadd.f32 %v3889, 1e-08
        %v3929 = vadd.f32 %v3896, 1e-08
        %v3930 = vadd.f32 %v3903, 1e-08
        %v3931 = vadd.f32 %v3910, 1e-08
        %v3932 = vadd.f32 %v3917, 1e-08
        %v3933 = vadd.f32 %v3924, 1e-08
        %v3934 = vrcp.pop %v3925
        %v3935 = vrcp.pop %v3926
        %v3936 = vrcp.pop %v3927
        %v3937 = vrcp.pop %v3928
        %v3938 = vrcp.pop %v3929
        %v3939 = vrcp.pop %v3930
        %v3940 = vrcp.pop %v3931
        %v3941 = vrcp.pop %v3932
        %v3942 = vrcp.pop %v3933
        %v3943 = vmul.f32 %v3934, 3.3333333
        %v3944 = vmul.f32 %v3935, 3.3333333
        %v3945 = vmul.f32 %v3936, 3.3333333
        %v3946 = vmul.f32 %v3937, 3.3333333
        %v3947 = vmul.f32 %v3938, 3.3333333
        %v3948 = vmul.f32 %v3939, 3.3333333
        %v3949 = vmul.f32 %v3940, 3.3333333
        %v3950 = vmul.f32 %v3941, 3.3333333
        %v3951 = vmul.f32 %v3942, 3.3333333
        %v3952 = vmul.f32 %v3943, %v3943
        %v3953 = vmul.f32 %v3944, %v3944
        %v3954 = vmul.f32 %v3945, %v3945
        %v3955 = vmul.f32 %v3946, %v3946
        %v3956 = vmul.f32 %v3947, %v3947
        %v3957 = vmul.f32 %v3948, %v3948
        %v3958 = vmul.f32 %v3949, %v3949
        %v3959 = vmul.f32 %v3950, %v3950
        %v3960 = vmul.f32 %v3951, %v3951
        %3961 = vrot.lane.b32.xlu0 %v283, 127
        %v3962 = vpop.permute.xlu0 %3961
        %3963 = vrot.lane.b32.xlu0 %v285, 127
        %v3964 = vpop.permute.xlu0 %3963
        %3965 = vrot.lane.b32.xlu0 %v284, 127
        %v3966 = vpop.permute.xlu0 %3965
        %3967 = vrot.lane.b32.xlu0 %v288, 127
        %v3968 = vpop.permute.xlu0 %3967
        %3969 = vrot.lane.b32.xlu0 %v290, 127
        %v3970 = vpop.permute.xlu0 %3969
        %3971 = vrot.lane.b32.xlu0 %v289, 127
        %v3972 = vpop.permute.xlu0 %3971
        %3973 = vrot.lane.b32.xlu0 %v293, 127
        %v3974 = vpop.permute.xlu0 %3973
        %3975 = vrot.lane.b32.xlu0 %v295, 127
        %v3976 = vpop.permute.xlu0 %3975
        %3977 = vrot.lane.b32.xlu0 %v294, 127
        %v3978 = vpop.permute.xlu0 %3977
        %v3988 = vsub.f32 %v190, %v3962
        %v3989 = vsub.f32 %v191, %v3964
        %v3990 = vsub.f32 %v192, %v3966
        %v3991 = vsub.f32 %v193, %v3968
        %v3992 = vsub.f32 %v194, %v3970
        %v3993 = vsub.f32 %v195, %v3972
        %v3994 = vsub.f32 %v196, %v3974
        %v3995 = vsub.f32 %v197, %v3976
        %v3996 = vsub.f32 %v198, %v3978
        %v3997 = vmul.f32 %v3988, %v3988
        %v3998 = vmul.f32 %v3989, %v3989
        %v3999 = vmul.f32 %v3990, %v3990
        %v4000 = vmul.f32 %v3991, %v3991
        %v4001 = vmul.f32 %v3992, %v3992
        %v4002 = vmul.f32 %v3993, %v3993
        %v4003 = vmul.f32 %v3994, %v3994
        %v4004 = vmul.f32 %v3995, %v3995
        %v4005 = vmul.f32 %v3996, %v3996
        %v4006 = vmul.f32 %v3997, %v3952
        %v4007 = vmul.f32 %v3998, %v3953
        %v4008 = vmul.f32 %v3999, %v3954
        %v4009 = vmul.f32 %v4000, %v3955
        %v4010 = vmul.f32 %v4001, %v3956
        %v4011 = vmul.f32 %v4002, %v3957
        %v4012 = vmul.f32 %v4003, %v3958
        %v4013 = vmul.f32 %v4004, %v3959
        %v4014 = vmul.f32 %v4005, %v3960
        %vm4015 = vcmask 146450
        %v4016 = vsel %vm4015, %v4006, 0.0
        %v4017 = vsel %vm4015, %v4009, 0.0
        %v4018 = vadd.f32 %v4016, %v4017
        %v4019 = vsel %vm4015, %v4012, 0.0
        %v4020 = vadd.f32 %v4018, %v4019
        %vm4021 = vcmask 146448
        %v4022 = vsel %vm4021, %v4007, 0.0
        %v4023 = vsel %vm4021, %v4010, 0.0
        %v4024 = vadd.f32 %v4022, %v4023
        %v4025 = vsel %vm4021, %v4013, 0.0
        %v4026 = vadd.f32 %v4024, %v4025
        %vm4027 = vcmask 140304
        %v4028 = vsel %vm4027, %v4008, 0.0
        %v4029 = vsel %vm4027, %v4011, 0.0
        %v4030 = vadd.f32 %v4028, %v4029
        %v4031 = vsel %vm4027, %v4014, 0.0
        %v4032 = vadd.f32 %v4030, %v4031
        %v4033 = vmul.f32 %v4020, 0.33333334
        %v4034 = vmul.f32 %v4026, 0.33333334
        %v4035 = vmul.f32 %v4032, 0.33333334
        %v4036 = vsub.f32 0.0, %v4033
        %v4037 = vsub.f32 0.0, %v4034
        %v4038 = vsub.f32 0.0, %v4035
        %4042 = vrot.lane.b32.xlu0 %v4036, 126
        %v4043 = vpop.permute.xlu0 %4042
        %4044 = vrot.lane.b32.xlu0 %v4037, 126
        %v4045 = vpop.permute.xlu0 %4044
        %4046 = vrot.lane.b32.xlu0 %v4038, 126
        %v4047 = vpop.permute.xlu0 %4046
        %vm4051 = vcmask 130050
        %4052 = vst.msk [vmem:[#allocation2 - $0x2] sm:$0xfc] %vm4051, %v4043
        %4053 = vst.msk [vmem:[#allocation2 + $0x6] sm:$0xff] %vm958, %v4045
        %vm4054 = vcmask 123904
        %4055 = vst.msk [vmem:[#allocation2 + $0xe] sm:$0x3] %vm4054, %v4047
        %v4056 = vmul.f32 %v820, %v820
        %v4057 = vmul.f32 %v821, %v821
        %v4058 = vmul.f32 %v822, %v822
        %v4059 = vmul.f32 %v823, %v823
        %v4060 = vmul.f32 %v824, %v824
        %v4061 = vmul.f32 %v825, %v825
        %v4062 = vmul.f32 %v826, %v826
        %v4063 = vmul.f32 %v827, %v827
        %v4064 = vmul.f32 %v828, %v828
        %4074 = vrot.lane.b32.xlu0 %v3952, 1
        %v4075 = vpop.permute.xlu0 %4074
        %4076 = vrot.lane.b32.xlu0 %v3953, 1
        %v4077 = vpop.permute.xlu0 %4076
        %4078 = vrot.lane.b32.xlu0 %v3954, 1
        %v4079 = vpop.permute.xlu0 %4078
        %4080 = vrot.lane.b32.xlu0 %v3955, 1
        %v4081 = vpop.permute.xlu0 %4080
        %4082 = vrot.lane.b32.xlu0 %v3956, 1
        %v4083 = vpop.permute.xlu0 %4082
        %4084 = vrot.lane.b32.xlu0 %v3957, 1
        %v4085 = vpop.permute.xlu0 %4084
        %4086 = vrot.lane.b32.xlu0 %v3958, 1
        %v4087 = vpop.permute.xlu0 %4086
        %4088 = vrot.lane.b32.xlu0 %v3959, 1
        %v4089 = vpop.permute.xlu0 %4088
        %4090 = vrot.lane.b32.xlu0 %v3960, 1
        %v4091 = vpop.permute.xlu0 %4090
        %v4101 = vmul.f32 %v4056, %v4075
        %v4102 = vmul.f32 %v4057, %v4077
        %v4103 = vmul.f32 %v4058, %v4079
        %v4104 = vmul.f32 %v4059, %v4081
        %v4105 = vmul.f32 %v4060, %v4083
        %v4106 = vmul.f32 %v4061, %v4085
        %v4107 = vmul.f32 %v4062, %v4087
        %v4108 = vmul.f32 %v4063, %v4089
        %v4109 = vmul.f32 %v4064, %v4091
        %vm4110 = vcmask 154650
        %v4111 = vsel %vm4110, %v4101, 0.0
        %v4112 = vsel %vm4110, %v4104, 0.0
        %v4113 = vadd.f32 %v4111, %v4112
        %v4114 = vsel %vm4110, %v4107, 0.0
        %v4115 = vadd.f32 %v4113, %v4114
        %vm4116 = vcmask 154648
        %v4117 = vsel %vm4116, %v4102, 0.0
        %v4118 = vsel %vm4116, %v4105, 0.0
        %v4119 = vadd.f32 %v4117, %v4118
        %v4120 = vsel %vm4116, %v4108, 0.0
        %v4121 = vadd.f32 %v4119, %v4120
        %vm4122 = vcmask 148504
        %v4123 = vsel %vm4122, %v4103, 0.0
        %v4124 = vsel %vm4122, %v4106, 0.0
        %v4125 = vadd.f32 %v4123, %v4124
        %v4126 = vsel %vm4122, %v4109, 0.0
        %v4127 = vadd.f32 %v4125, %v4126
        %v4128 = vmul.f32 %v4115, 0.33333334
        %v4129 = vmul.f32 %v4121, 0.33333334
        %v4130 = vmul.f32 %v4127, 0.33333334
        %v4131 = vsub.f32 0.0, %v4128
        %v4132 = vsub.f32 0.0, %v4129
        %v4133 = vsub.f32 0.0, %v4130
        %4137 = vrot.lane.b32.xlu0 %v4131, 125
        %v4138 = vpop.permute.xlu0 %4137
        %4139 = vrot.lane.b32.xlu0 %v4132, 125
        %v4140 = vpop.permute.xlu0 %4139
        %4141 = vrot.lane.b32.xlu0 %v4133, 125
        %v4142 = vpop.permute.xlu0 %4141
        %s4146 = scalar_lea.vmem [#allocation2], 16
        %4147 = vst.msk [vmem:[%s4146 - $0x2] sm:$0xfc] %vm4051, %v4138
        %4148 = vst.msk [vmem:[%s4146 + $0x6] sm:$0xff] %vm958, %v4140
        %4149 = vst.msk [vmem:[%s4146 + $0xe] sm:$0x3] %vm4054, %v4142
        %v4150 = vsub.f32 %v190, %v581
        %v4151 = vsub.f32 %v191, %v583
        %v4152 = vsub.f32 %v192, %v585
        %v4153 = vsub.f32 %v193, %v587
        %v4154 = vsub.f32 %v194, %v589
        %v4155 = vsub.f32 %v195, %v591
        %v4156 = vsub.f32 %v196, %v593
        %v4157 = vsub.f32 %v197, %v595
        %v4158 = vsub.f32 %v198, %v597
        %v4159 = vmul.f32 %v4150, %v4150
        %v4160 = vmul.f32 %v4151, %v4151
        %v4161 = vmul.f32 %v4152, %v4152
        %v4162 = vmul.f32 %v4153, %v4153
        %v4163 = vmul.f32 %v4154, %v4154
        %v4164 = vmul.f32 %v4155, %v4155
        %v4165 = vmul.f32 %v4156, %v4156
        %v4166 = vmul.f32 %v4157, %v4157
        %v4167 = vmul.f32 %v4158, %v4158
        %4168 = vrot.lane.b32.xlu0 %v3952, 2
        %v4169 = vpop.permute.xlu0 %4168
        %4170 = vrot.lane.b32.xlu0 %v3953, 2
        %v4171 = vpop.permute.xlu0 %4170
        %4172 = vrot.lane.b32.xlu0 %v3954, 2
        %v4173 = vpop.permute.xlu0 %4172
        %4174 = vrot.lane.b32.xlu0 %v3955, 2
        %v4175 = vpop.permute.xlu0 %4174
        %4176 = vrot.lane.b32.xlu0 %v3956, 2
        %v4177 = vpop.permute.xlu0 %4176
        %4178 = vrot.lane.b32.xlu0 %v3957, 2
        %v4179 = vpop.permute.xlu0 %4178
        %4180 = vrot.lane.b32.xlu0 %v3958, 2
        %v4181 = vpop.permute.xlu0 %4180
        %4182 = vrot.lane.b32.xlu0 %v3959, 2
        %v4183 = vpop.permute.xlu0 %4182
        %4184 = vrot.lane.b32.xlu0 %v3960, 2
        %v4185 = vpop.permute.xlu0 %4184
        %v4195 = vmul.f32 %v4159, %v4169
        %v4196 = vmul.f32 %v4160, %v4171
        %v4197 = vmul.f32 %v4161, %v4173
        %v4198 = vmul.f32 %v4162, %v4175
        %v4199 = vmul.f32 %v4163, %v4177
        %v4200 = vmul.f32 %v4164, %v4179
        %v4201 = vmul.f32 %v4165, %v4181
        %v4202 = vmul.f32 %v4166, %v4183
        %v4203 = vmul.f32 %v4167, %v4185
        %vm4204 = vcmask 162850
        %v4205 = vsel %vm4204, %v4195, 0.0
        %v4206 = vsel %vm4204, %v4198, 0.0
        %v4207 = vadd.f32 %v4205, %v4206
        %v4208 = vsel %vm4204, %v4201, 0.0
        %v4209 = vadd.f32 %v4207, %v4208
        %vm4210 = vcmask 162848
        %v4211 = vsel %vm4210, %v4196, 0.0
        %v4212 = vsel %vm4210, %v4199, 0.0
        %v4213 = vadd.f32 %v4211, %v4212
        %v4214 = vsel %vm4210, %v4202, 0.0
        %v4215 = vadd.f32 %v4213, %v4214
        %vm4216 = vcmask 156704
        %v4217 = vsel %vm4216, %v4197, 0.0
        %v4218 = vsel %vm4216, %v4200, 0.0
        %v4219 = vadd.f32 %v4217, %v4218
        %v4220 = vsel %vm4216, %v4203, 0.0
        %v4221 = vadd.f32 %v4219, %v4220
        %v4222 = vmul.f32 %v4209, 0.33333334
        %v4223 = vmul.f32 %v4215, 0.33333334
        %v4224 = vmul.f32 %v4221, 0.33333334
        %v4225 = vsub.f32 0.0, %v4222
        %v4226 = vsub.f32 0.0, %v4223
        %v4227 = vsub.f32 0.0, %v4224
        %4231 = vrot.lane.b32.xlu0 %v4225, 124
        %v4232 = vpop.permute.xlu0 %4231
        %4233 = vrot.lane.b32.xlu0 %v4226, 124
        %v4234 = vpop.permute.xlu0 %4233
        %4235 = vrot.lane.b32.xlu0 %v4227, 124
        %v4236 = vpop.permute.xlu0 %4235
        %s4240 = scalar_lea.vmem [#allocation2], 32
        %4241 = vst.msk [vmem:[%s4240 - $0x2] sm:$0xfc] %vm4051, %v4232
        %4242 = vst.msk [vmem:[%s4240 + $0x6] sm:$0xff] %vm958, %v4234
        %4243 = vst.msk [vmem:[%s4240 + $0xe] sm:$0x3] %vm4054, %v4236
        %v4244 = vmul.f32 %v881, %v881
        %v4245 = vmul.f32 %v882, %v882
        %v4246 = vmul.f32 %v883, %v883
        %v4247 = vmul.f32 %v884, %v884
        %v4248 = vmul.f32 %v885, %v885
        %v4249 = vmul.f32 %v886, %v886
        %v4250 = vmul.f32 %v887, %v887
        %v4251 = vmul.f32 %v888, %v888
        %v4252 = vmul.f32 %v889, %v889
        %v4253 = vrot.slane %v3952, 7
        %v4254 = vrot.slane %v3953, 7
        %v4255 = vsel %vm456, %v4253, %v4254
        %v4256 = vrot.slane %v3954, 7
        %v4257 = vsel %vm456, %v4254, %v4256
        %v4258 = vrot.slane %v3955, 7
        %v4259 = vrot.slane %v3956, 7
        %v4260 = vsel %vm456, %v4258, %v4259
        %v4261 = vrot.slane %v3957, 7
        %v4262 = vsel %vm456, %v4259, %v4261
        %v4263 = vrot.slane %v3958, 7
        %v4264 = vrot.slane %v3959, 7
        %v4265 = vsel %vm456, %v4263, %v4264
        %v4266 = vrot.slane %v3960, 7
        %v4267 = vsel %vm456, %v4264, %v4266
        %v4277 = vmul.f32 %v4244, %v4253
        %v4278 = vmul.f32 %v4245, %v4255
        %v4279 = vmul.f32 %v4246, %v4257
        %v4280 = vmul.f32 %v4247, %v4258
        %v4281 = vmul.f32 %v4248, %v4260
        %v4282 = vmul.f32 %v4249, %v4262
        %v4283 = vmul.f32 %v4250, %v4263
        %v4284 = vmul.f32 %v4251, %v4265
        %v4285 = vmul.f32 %v4252, %v4267
        %vm4286 = vcmask 146451
        %v4287 = vsel %vm4286, %v4277, 0.0
        %v4288 = vsel %vm4286, %v4280, 0.0
        %v4289 = vadd.f32 %v4287, %v4288
        %v4290 = vsel %vm4286, %v4283, 0.0
        %v4291 = vadd.f32 %v4289, %v4290
        %v4292 = vsel %vm4021, %v4278, 0.0
        %v4293 = vsel %vm4021, %v4281, 0.0
        %v4294 = vadd.f32 %v4292, %v4293
        %v4295 = vsel %vm4021, %v4284, 0.0
        %v4296 = vadd.f32 %v4294, %v4295
        %vm4297 = vcmask 141328
        %v4298 = vsel %vm4297, %v4279, 0.0
        %v4299 = vsel %vm4297, %v4282, 0.0
        %v4300 = vadd.f32 %v4298, %v4299
        %v4301 = vsel %vm4297, %v4285, 0.0
        %v4302 = vadd.f32 %v4300, %v4301
        %v4303 = vmul.f32 %v4291, 0.33333334
        %v4304 = vmul.f32 %v4296, 0.33333334
        %v4305 = vmul.f32 %v4302, 0.33333334
        %v4306 = vsub.f32 0.0, %v4303
        %v4307 = vsub.f32 0.0, %v4304
        %v4308 = vsub.f32 0.0, %v4305
        %4312 = vrot.lane.b32.xlu0 %v4306, 126
        %v4313 = vpop.permute.xlu0 %4312
        %4314 = vrot.lane.b32.xlu0 %v4307, 126
        %v4315 = vpop.permute.xlu0 %4314
        %4316 = vrot.lane.b32.xlu0 %v4308, 126
        %v4317 = vpop.permute.xlu0 %4316
        %s4321 = scalar_lea.vmem [#allocation2], 48
        %vm4322 = vcmask 130051
        %4323 = vst.msk [vmem:[%s4321 - $0x3] sm:$0xf8] %vm4322, %v4313
        %4324 = vst.msk [vmem:[%s4321 + $0x5] sm:$0xff] %vm958, %v4315
        %vm4325 = vcmask 124928
        %4326 = vst.msk [vmem:[%s4321 + $0xd] sm:$0x7] %vm4325, %v4317
        %4327 = vrot.lane.b32.xlu0 %v190, 1
        %v4328 = vpop.permute.xlu0 %4327
        %4329 = vrot.lane.b32.xlu0 %v191, 1
        %v4330 = vpop.permute.xlu0 %4329
        %4331 = vrot.lane.b32.xlu0 %v192, 1
        %v4332 = vpop.permute.xlu0 %4331
        %4333 = vrot.lane.b32.xlu0 %v193, 1
        %v4334 = vpop.permute.xlu0 %4333
        %4335 = vrot.lane.b32.xlu0 %v194, 1
        %v4336 = vpop.permute.xlu0 %4335
        %4337 = vrot.lane.b32.xlu0 %v195, 1
        %v4338 = vpop.permute.xlu0 %4337
        %4339 = vrot.lane.b32.xlu0 %v196, 1
        %v4340 = vpop.permute.xlu0 %4339
        %4341 = vrot.lane.b32.xlu0 %v197, 1
        %v4342 = vpop.permute.xlu0 %4341
        %4343 = vrot.lane.b32.xlu0 %v198, 1
        %v4344 = vpop.permute.xlu0 %4343
        %v4354 = vsub.f32 %v190, %v4328
        %v4355 = vsub.f32 %v191, %v4330
        %v4356 = vsub.f32 %v192, %v4332
        %v4357 = vsub.f32 %v193, %v4334
        %v4358 = vsub.f32 %v194, %v4336
        %v4359 = vsub.f32 %v195, %v4338
        %v4360 = vsub.f32 %v196, %v4340
        %v4361 = vsub.f32 %v197, %v4342
        %v4362 = vsub.f32 %v198, %v4344
        %v4363 = vmul.f32 %v4354, %v4354
        %v4364 = vmul.f32 %v4355, %v4355
        %v4365 = vmul.f32 %v4356, %v4356
        %v4366 = vmul.f32 %v4357, %v4357
        %v4367 = vmul.f32 %v4358, %v4358
        %v4368 = vmul.f32 %v4359, %v4359
        %v4369 = vmul.f32 %v4360, %v4360
        %v4370 = vmul.f32 %v4361, %v4361
        %v4371 = vmul.f32 %v4362, %v4362
        %4372 = vrot.lane.b32.xlu0 %v4253, 2
        %v4373 = vpop.permute.xlu0 %4372
        %4374 = vrot.lane.b32.xlu0 %v4255, 2
        %v4375 = vpop.permute.xlu0 %4374
        %4376 = vrot.lane.b32.xlu0 %v4257, 2
        %v4377 = vpop.permute.xlu0 %4376
        %4378 = vrot.lane.b32.xlu0 %v4258, 2
        %v4379 = vpop.permute.xlu0 %4378
        %4380 = vrot.lane.b32.xlu0 %v4260, 2
        %v4381 = vpop.permute.xlu0 %4380
        %4382 = vrot.lane.b32.xlu0 %v4262, 2
        %v4383 = vpop.permute.xlu0 %4382
        %4384 = vrot.lane.b32.xlu0 %v4263, 2
        %v4385 = vpop.permute.xlu0 %4384
        %4386 = vrot.lane.b32.xlu0 %v4265, 2
        %v4387 = vpop.permute.xlu0 %4386
        %4388 = vrot.lane.b32.xlu0 %v4267, 2
        %v4389 = vpop.permute.xlu0 %4388
        %v4399 = vmul.f32 %v4363, %v4373
        %v4400 = vmul.f32 %v4364, %v4375
        %v4401 = vmul.f32 %v4365, %v4377
        %v4402 = vmul.f32 %v4366, %v4379
        %v4403 = vmul.f32 %v4367, %v4381
        %v4404 = vmul.f32 %v4368, %v4383
        %v4405 = vmul.f32 %v4369, %v4385
        %v4406 = vmul.f32 %v4370, %v4387
        %v4407 = vmul.f32 %v4371, %v4389
        %vm4408 = vcmask 162851
        %v4409 = vsel %vm4408, %v4399, 0.0
        %v4410 = vsel %vm4408, %v4402, 0.0
        %v4411 = vadd.f32 %v4409, %v4410
        %v4412 = vsel %vm4408, %v4405, 0.0
        %v4413 = vadd.f32 %v4411, %v4412
        %v4414 = vsel %vm4210, %v4400, 0.0
        %v4415 = vsel %vm4210, %v4403, 0.0
        %v4416 = vadd.f32 %v4414, %v4415
        %v4417 = vsel %vm4210, %v4406, 0.0
        %v4418 = vadd.f32 %v4416, %v4417
        %vm4419 = vcmask 157728
        %v4420 = vsel %vm4419, %v4401, 0.0
        %v4421 = vsel %vm4419, %v4404, 0.0
        %v4422 = vadd.f32 %v4420, %v4421
        %v4423 = vsel %vm4419, %v4407, 0.0
        %v4424 = vadd.f32 %v4422, %v4423
        %v4425 = vmul.f32 %v4413, 0.33333334
        %v4426 = vmul.f32 %v4418, 0.33333334
        %v4427 = vmul.f32 %v4424, 0.33333334
        %v4428 = vsub.f32 0.0, %v4425
        %v4429 = vsub.f32 0.0, %v4426
        %v4430 = vsub.f32 0.0, %v4427
        %4434 = vrot.lane.b32.xlu0 %v4428, 124
        %v4435 = vpop.permute.xlu0 %4434
        %4436 = vrot.lane.b32.xlu0 %v4429, 124
        %v4437 = vpop.permute.xlu0 %4436
        %4438 = vrot.lane.b32.xlu0 %v4430, 124
        %v4439 = vpop.permute.xlu0 %4438
        %s4443 = scalar_lea.vmem [#allocation2], 64
        %4444 = vst.msk [vmem:[%s4443 - $0x3] sm:$0xf8] %vm4322, %v4435
        %4445 = vst.msk [vmem:[%s4443 + $0x5] sm:$0xff] %vm958, %v4437
        %4446 = vst.msk [vmem:[%s4443 + $0xd] sm:$0x7] %vm4325, %v4439
        %v4447 = vsub.f32 %v190, %v509
        %v4448 = vsub.f32 %v191, %v511
        %v4449 = vsub.f32 %v192, %v513
        %v4450 = vsub.f32 %v193, %v515
        %v4451 = vsub.f32 %v194, %v517
        %v4452 = vsub.f32 %v195, %v519
        %v4453 = vsub.f32 %v196, %v521
        %v4454 = vsub.f32 %v197, %v523
        %v4455 = vsub.f32 %v198, %v525
        %v4456 = vmul.f32 %v4447, %v4447
        %v4457 = vmul.f32 %v4448, %v4448
        %v4458 = vmul.f32 %v4449, %v4449
        %v4459 = vmul.f32 %v4450, %v4450
        %v4460 = vmul.f32 %v4451, %v4451
        %v4461 = vmul.f32 %v4452, %v4452
        %v4462 = vmul.f32 %v4453, %v4453
        %v4463 = vmul.f32 %v4454, %v4454
        %v4464 = vmul.f32 %v4455, %v4455
        %v4465 = vrot.slane %v3952, 6
        %v4466 = vrot.slane %v3953, 6
        %v4467 = vsel %vm1705, %v4465, %v4466
        %v4468 = vrot.slane %v3954, 6
        %v4469 = vsel %vm1705, %v4466, %v4468
        %v4470 = vrot.slane %v3955, 6
        %v4471 = vrot.slane %v3956, 6
        %v4472 = vsel %vm1705, %v4470, %v4471
        %v4473 = vrot.slane %v3957, 6
        %v4474 = vsel %vm1705, %v4471, %v4473
        %v4475 = vrot.slane %v3958, 6
        %v4476 = vrot.slane %v3959, 6
        %v4477 = vsel %vm1705, %v4475, %v4476
        %v4478 = vrot.slane %v3960, 6
        %v4479 = vsel %vm1705, %v4476, %v4478
        %v4489 = vmul.f32 %v4456, %v4465
        %v4490 = vmul.f32 %v4457, %v4467
        %v4491 = vmul.f32 %v4458, %v4469
        %v4492 = vmul.f32 %v4459, %v4470
        %v4493 = vmul.f32 %v4460, %v4472
        %v4494 = vmul.f32 %v4461, %v4474
        %v4495 = vmul.f32 %v4462, %v4475
        %v4496 = vmul.f32 %v4463, %v4477
        %v4497 = vmul.f32 %v4464, %v4479
        %vm4498 = vcmask 146452
        %v4499 = vsel %vm4498, %v4489, 0.0
        %v4500 = vsel %vm4498, %v4492, 0.0
        %v4501 = vadd.f32 %v4499, %v4500
        %v4502 = vsel %vm4498, %v4495, 0.0
        %v4503 = vadd.f32 %v4501, %v4502
        %v4504 = vsel %vm4021, %v4490, 0.0
        %v4505 = vsel %vm4021, %v4493, 0.0
        %v4506 = vadd.f32 %v4504, %v4505
        %v4507 = vsel %vm4021, %v4496, 0.0
        %v4508 = vadd.f32 %v4506, %v4507
        %vm4509 = vcmask 142352
        %v4510 = vsel %vm4509, %v4491, 0.0
        %v4511 = vsel %vm4509, %v4494, 0.0
        %v4512 = vadd.f32 %v4510, %v4511
        %v4513 = vsel %vm4509, %v4497, 0.0
        %v4514 = vadd.f32 %v4512, %v4513
        %v4515 = vmul.f32 %v4503, 0.33333334
        %v4516 = vmul.f32 %v4508, 0.33333334
        %v4517 = vmul.f32 %v4514, 0.33333334
        %v4518 = vsub.f32 0.0, %v4515
        %v4519 = vsub.f32 0.0, %v4516
        %v4520 = vsub.f32 0.0, %v4517
        %4524 = vrot.lane.b32.xlu0 %v4518, 126
        %v4525 = vpop.permute.xlu0 %4524
        %4526 = vrot.lane.b32.xlu0 %v4519, 126
        %v4527 = vpop.permute.xlu0 %4526
        %4528 = vrot.lane.b32.xlu0 %v4520, 126
        %v4529 = vpop.permute.xlu0 %4528
        %s4533 = scalar_lea.vmem [#allocation2], 80
        %vm4534 = vcmask 130052
        %4535 = vst.msk [vmem:[%s4533 - $0x4] sm:$0xf0] %vm4534, %v4525
        %4536 = vst.msk [vmem:[%s4533 + $0x4] sm:$0xff] %vm958, %v4527
        %vm4537 = vcmask 125952
        %4538 = vst.msk [vmem:[%s4533 + $0xc] sm:$0xf] %vm4537, %v4529
        %v4548 = vsub.f32 %v190, %v457
        %v4549 = vsub.f32 %v191, %v459
        %v4550 = vsub.f32 %v192, %v461
        %v4551 = vsub.f32 %v193, %v462
        %v4552 = vsub.f32 %v194, %v464
        %v4553 = vsub.f32 %v195, %v466
        %v4554 = vsub.f32 %v196, %v467
        %v4555 = vsub.f32 %v197, %v469
        %v4556 = vsub.f32 %v198, %v471
        %v4557 = vmul.f32 %v4548, %v4548
        %v4558 = vmul.f32 %v4549, %v4549
        %v4559 = vmul.f32 %v4550, %v4550
        %v4560 = vmul.f32 %v4551, %v4551
        %v4561 = vmul.f32 %v4552, %v4552
        %v4562 = vmul.f32 %v4553, %v4553
        %v4563 = vmul.f32 %v4554, %v4554
        %v4564 = vmul.f32 %v4555, %v4555
        %v4565 = vmul.f32 %v4556, %v4556
        %4566 = vrot.lane.b32.xlu0 %v4465, 1
        %v4567 = vpop.permute.xlu0 %4566
        %4568 = vrot.lane.b32.xlu0 %v4467, 1
        %v4569 = vpop.permute.xlu0 %4568
        %4570 = vrot.lane.b32.xlu0 %v4469, 1
        %v4571 = vpop.permute.xlu0 %4570
        %4572 = vrot.lane.b32.xlu0 %v4470, 1
        %v4573 = vpop.permute.xlu0 %4572
        %4574 = vrot.lane.b32.xlu0 %v4472, 1
        %v4575 = vpop.permute.xlu0 %4574
        %4576 = vrot.lane.b32.xlu0 %v4474, 1
        %v4577 = vpop.permute.xlu0 %4576
        %4578 = vrot.lane.b32.xlu0 %v4475, 1
        %v4579 = vpop.permute.xlu0 %4578
        %4580 = vrot.lane.b32.xlu0 %v4477, 1
        %v4581 = vpop.permute.xlu0 %4580
        %4582 = vrot.lane.b32.xlu0 %v4479, 1
        %v4583 = vpop.permute.xlu0 %4582
        %v4593 = vmul.f32 %v4557, %v4567
        %v4594 = vmul.f32 %v4558, %v4569
        %v4595 = vmul.f32 %v4559, %v4571
        %v4596 = vmul.f32 %v4560, %v4573
        %v4597 = vmul.f32 %v4561, %v4575
        %v4598 = vmul.f32 %v4562, %v4577
        %v4599 = vmul.f32 %v4563, %v4579
        %v4600 = vmul.f32 %v4564, %v4581
        %v4601 = vmul.f32 %v4565, %v4583
        %vm4602 = vcmask 154652
        %v4603 = vsel %vm4602, %v4593, 0.0
        %v4604 = vsel %vm4602, %v4596, 0.0
        %v4605 = vadd.f32 %v4603, %v4604
        %v4606 = vsel %vm4602, %v4599, 0.0
        %v4607 = vadd.f32 %v4605, %v4606
        %v4608 = vsel %vm4116, %v4594, 0.0
        %v4609 = vsel %vm4116, %v4597, 0.0
        %v4610 = vadd.f32 %v4608, %v4609
        %v4611 = vsel %vm4116, %v4600, 0.0
        %v4612 = vadd.f32 %v4610, %v4611
        %vm4613 = vcmask 150552
        %v4614 = vsel %vm4613, %v4595, 0.0
        %v4615 = vsel %vm4613, %v4598, 0.0
        %v4616 = vadd.f32 %v4614, %v4615
        %v4617 = vsel %vm4613, %v4601, 0.0
        %v4618 = vadd.f32 %v4616, %v4617
        %v4619 = vmul.f32 %v4607, 0.33333334
        %v4620 = vmul.f32 %v4612, 0.33333334
        %v4621 = vmul.f32 %v4618, 0.33333334
        %v4622 = vsub.f32 0.0, %v4619
        %v4623 = vsub.f32 0.0, %v4620
        %v4624 = vsub.f32 0.0, %v4621
        %4628 = vrot.lane.b32.xlu0 %v4622, 125
        %v4629 = vpop.permute.xlu0 %4628
        %4630 = vrot.lane.b32.xlu0 %v4623, 125
        %v4631 = vpop.permute.xlu0 %4630
        %4632 = vrot.lane.b32.xlu0 %v4624, 125
        %v4633 = vpop.permute.xlu0 %4632
        %s4637 = scalar_lea.vmem [#allocation2], 96
        %4638 = vst.msk [vmem:[%s4637 - $0x4] sm:$0xf0] %vm4534, %v4629
        %4639 = vst.msk [vmem:[%s4637 + $0x4] sm:$0xff] %vm958, %v4631
        %4640 = vst.msk [vmem:[%s4637 + $0xc] sm:$0xf] %vm4537, %v4633
        %v4641 = vsub.f32 %v190, %v473
        %v4642 = vsub.f32 %v191, %v475
        %v4643 = vsub.f32 %v192, %v477
        %v4644 = vsub.f32 %v193, %v479
        %v4645 = vsub.f32 %v194, %v481
        %v4646 = vsub.f32 %v195, %v483
        %v4647 = vsub.f32 %v196, %v485
        %v4648 = vsub.f32 %v197, %v487
        %v4649 = vsub.f32 %v198, %v489
        %v4650 = vmul.f32 %v4641, %v4641
        %v4651 = vmul.f32 %v4642, %v4642
        %v4652 = vmul.f32 %v4643, %v4643
        %v4653 = vmul.f32 %v4644, %v4644
        %v4654 = vmul.f32 %v4645, %v4645
        %v4655 = vmul.f32 %v4646, %v4646
        %v4656 = vmul.f32 %v4647, %v4647
        %v4657 = vmul.f32 %v4648, %v4648
        %v4658 = vmul.f32 %v4649, %v4649
        %4659 = vrot.lane.b32.xlu0 %v4465, 2
        %v4660 = vpop.permute.xlu0 %4659
        %4661 = vrot.lane.b32.xlu0 %v4467, 2
        %v4662 = vpop.permute.xlu0 %4661
        %4663 = vrot.lane.b32.xlu0 %v4469, 2
        %v4664 = vpop.permute.xlu0 %4663
        %4665 = vrot.lane.b32.xlu0 %v4470, 2
        %v4666 = vpop.permute.xlu0 %4665
        %4667 = vrot.lane.b32.xlu0 %v4472, 2
        %v4668 = vpop.permute.xlu0 %4667
        %4669 = vrot.lane.b32.xlu0 %v4474, 2
        %v4670 = vpop.permute.xlu0 %4669
        %4671 = vrot.lane.b32.xlu0 %v4475, 2
        %v4672 = vpop.permute.xlu0 %4671
        %4673 = vrot.lane.b32.xlu0 %v4477, 2
        %v4674 = vpop.permute.xlu0 %4673
        %4675 = vrot.lane.b32.xlu0 %v4479, 2
        %v4676 = vpop.permute.xlu0 %4675
        %v4686 = vmul.f32 %v4650, %v4660
        %v4687 = vmul.f32 %v4651, %v4662
        %v4688 = vmul.f32 %v4652, %v4664
        %v4689 = vmul.f32 %v4653, %v4666
        %v4690 = vmul.f32 %v4654, %v4668
        %v4691 = vmul.f32 %v4655, %v4670
        %v4692 = vmul.f32 %v4656, %v4672
        %v4693 = vmul.f32 %v4657, %v4674
        %v4694 = vmul.f32 %v4658, %v4676
        %vm4695 = vcmask 162852
        %v4696 = vsel %vm4695, %v4686, 0.0
        %v4697 = vsel %vm4695, %v4689, 0.0
        %v4698 = vadd.f32 %v4696, %v4697
        %v4699 = vsel %vm4695, %v4692, 0.0
        %v4700 = vadd.f32 %v4698, %v4699
        %v4701 = vsel %vm4210, %v4687, 0.0
        %v4702 = vsel %vm4210, %v4690, 0.0
        %v4703 = vadd.f32 %v4701, %v4702
        %v4704 = vsel %vm4210, %v4693, 0.0
        %v4705 = vadd.f32 %v4703, %v4704
        %vm4706 = vcmask 158752
        %v4707 = vsel %vm4706, %v4688, 0.0
        %v4708 = vsel %vm4706, %v4691, 0.0
        %v4709 = vadd.f32 %v4707, %v4708
        %v4710 = vsel %vm4706, %v4694, 0.0
        %v4711 = vadd.f32 %v4709, %v4710
        %v4712 = vmul.f32 %v4700, 0.33333334
        %v4713 = vmul.f32 %v4705, 0.33333334
        %v4714 = vmul.f32 %v4711, 0.33333334
        %v4715 = vsub.f32 0.0, %v4712
        %v4716 = vsub.f32 0.0, %v4713
        %v4717 = vsub.f32 0.0, %v4714
        %4721 = vrot.lane.b32.xlu0 %v4715, 124
        %v4722 = vpop.permute.xlu0 %4721
        %4723 = vrot.lane.b32.xlu0 %v4716, 124
        %v4724 = vpop.permute.xlu0 %4723
        %4725 = vrot.lane.b32.xlu0 %v4717, 124
        %v4726 = vpop.permute.xlu0 %4725
        %s4730 = scalar_lea.vmem [#allocation2], 112
        %4731 = vst.msk [vmem:[%s4730 - $0x4] sm:$0xf0] %vm4534, %v4722
        %4732 = vst.msk [vmem:[%s4730 + $0x4] sm:$0xff] %vm958, %v4724
        %4733 = vst.msk [vmem:[%s4730 + $0xc] sm:$0xf] %vm4537, %v4726
        %v4734 = vsub.f32 %v190, %v421
        %v4735 = vsub.f32 %v191, %v423
        %v4736 = vsub.f32 %v192, %v425
        %v4737 = vsub.f32 %v193, %v427
        %v4738 = vsub.f32 %v194, %v429
        %v4739 = vsub.f32 %v195, %v431
        %v4740 = vsub.f32 %v196, %v433
        %v4741 = vsub.f32 %v197, %v435
        %v4742 = vsub.f32 %v198, %v437
        %v4743 = vmul.f32 %v4734, %v4734
        %v4744 = vmul.f32 %v4735, %v4735
        %v4745 = vmul.f32 %v4736, %v4736
        %v4746 = vmul.f32 %v4737, %v4737
        %v4747 = vmul.f32 %v4738, %v4738
        %v4748 = vmul.f32 %v4739, %v4739
        %v4749 = vmul.f32 %v4740, %v4740
        %v4750 = vmul.f32 %v4741, %v4741
        %v4751 = vmul.f32 %v4742, %v4742
        %v4752 = vrot.slane %v3952, 1
        %v4753 = vrot.slane %v3953, 1
        %v4754 = vsel %vm280, %v4752, %v4753
        %v4755 = vrot.slane %v3954, 1
        %v4756 = vsel %vm280, %v4753, %v4755
        %v4757 = vrot.slane %v3955, 1
        %v4758 = vrot.slane %v3956, 1
        %v4759 = vsel %vm280, %v4757, %v4758
        %v4760 = vrot.slane %v3957, 1
        %v4761 = vsel %vm280, %v4758, %v4760
        %v4762 = vrot.slane %v3958, 1
        %v4763 = vrot.slane %v3959, 1
        %v4764 = vsel %vm280, %v4762, %v4763
        %v4765 = vrot.slane %v3960, 1
        %v4766 = vsel %vm280, %v4763, %v4765
        %4767 = vrot.lane.b32.xlu0 %v4754, 127
        %v4768 = vpop.permute.xlu0 %4767
        %4769 = vrot.lane.b32.xlu0 %v4756, 127
        %v4770 = vpop.permute.xlu0 %4769
        %4771 = vrot.lane.b32.xlu0 %v4755, 127
        %v4772 = vpop.permute.xlu0 %4771
        %4773 = vrot.lane.b32.xlu0 %v4759, 127
        %v4774 = vpop.permute.xlu0 %4773
        %4775 = vrot.lane.b32.xlu0 %v4761, 127
        %v4776 = vpop.permute.xlu0 %4775
        %4777 = vrot.lane.b32.xlu0 %v4760, 127
        %v4778 = vpop.permute.xlu0 %4777
        %4779 = vrot.lane.b32.xlu0 %v4764, 127
        %v4780 = vpop.permute.xlu0 %4779
        %4781 = vrot.lane.b32.xlu0 %v4766, 127
        %v4782 = vpop.permute.xlu0 %4781
        %4783 = vrot.lane.b32.xlu0 %v4765, 127
        %v4784 = vpop.permute.xlu0 %4783
        %v4794 = vmul.f32 %v4743, %v4768
        %v4795 = vmul.f32 %v4744, %v4770
        %v4796 = vmul.f32 %v4745, %v4772
        %v4797 = vmul.f32 %v4746, %v4774
        %v4798 = vmul.f32 %v4747, %v4776
        %v4799 = vmul.f32 %v4748, %v4778
        %v4800 = vmul.f32 %v4749, %v4780
        %v4801 = vmul.f32 %v4750, %v4782
        %v4802 = vmul.f32 %v4751, %v4784
        %vm4803 = vcmask 138249
        %v4804 = vsel %vm4803, %v4794, 0.0
        %v4805 = vsel %vm4803, %v4797, 0.0
        %v4806 = vadd.f32 %v4804, %v4805
        %v4807 = vsel %vm4803, %v4800, 0.0
        %v4808 = vadd.f32 %v4806, %v4807
        %vm4809 = vcmask 138248
        %v4810 = vsel %vm4809, %v4795, 0.0
        %v4811 = vsel %vm4809, %v4798, 0.0
        %v4812 = vadd.f32 %v4810, %v4811
        %v4813 = vsel %vm4809, %v4801, 0.0
        %v4814 = vadd.f32 %v4812, %v4813
        %vm4815 = vcmask 131080
        %v4816 = vsel %vm4815, %v4796, 0.0
        %v4817 = vsel %vm4815, %v4799, 0.0
        %v4818 = vadd.f32 %v4816, %v4817
        %v4819 = vsel %vm4815, %v4802, 0.0
        %v4820 = vadd.f32 %v4818, %v4819
        %v4821 = vmul.f32 %v4808, 0.33333334
        %v4822 = vmul.f32 %v4814, 0.33333334
        %v4823 = vmul.f32 %v4820, 0.33333334
        %v4824 = vsub.f32 0.0, %v4821
        %v4825 = vsub.f32 0.0, %v4822
        %v4826 = vsub.f32 0.0, %v4823
        %4830 = vrot.lane.b32.xlu0 %v4824, 127
        %v4831 = vpop.permute.xlu0 %4830
        %4832 = vrot.lane.b32.xlu0 %v4825, 127
        %v4833 = vpop.permute.xlu0 %4832
        %4834 = vrot.lane.b32.xlu0 %v4826, 127
        %v4835 = vpop.permute.xlu0 %4834
        %s4839 = scalar_lea.vmem [#allocation2], 128
        %vm4840 = vcmask 130049
        %4841 = vst.msk [vmem:[%s4839 - $0x1] sm:$0xfe] %vm4840, %v4831
        %4842 = vst.msk [vmem:[%s4839 + $0x7] sm:$0xff] %vm958, %v4833
        %vm4843 = vcmask 122880
        %4844 = vst.msk [vmem:[%s4839 + $0xf] sm:$0x1] %vm4843, %v4835
        %v4845 = vsub.f32 %v190, %v353
        %v4846 = vsub.f32 %v191, %v355
        %v4847 = vsub.f32 %v192, %v354
        %v4848 = vsub.f32 %v193, %v358
        %v4849 = vsub.f32 %v194, %v360
        %v4850 = vsub.f32 %v195, %v359
        %v4851 = vsub.f32 %v196, %v363
        %v4852 = vsub.f32 %v197, %v365
        %v4853 = vsub.f32 %v198, %v364
        %v4854 = vmul.f32 %v4845, %v4845
        %v4855 = vmul.f32 %v4846, %v4846
        %v4856 = vmul.f32 %v4847, %v4847
        %v4857 = vmul.f32 %v4848, %v4848
        %v4858 = vmul.f32 %v4849, %v4849
        %v4859 = vmul.f32 %v4850, %v4850
        %v4860 = vmul.f32 %v4851, %v4851
        %v4861 = vmul.f32 %v4852, %v4852
        %v4862 = vmul.f32 %v4853, %v4853
        %4863 = vrot.lane.b32.xlu0 %v4754, 1
        %v4864 = vpop.permute.xlu0 %4863
        %4865 = vrot.lane.b32.xlu0 %v4756, 1
        %v4866 = vpop.permute.xlu0 %4865
        %4867 = vrot.lane.b32.xlu0 %v4755, 1
        %v4868 = vpop.permute.xlu0 %4867
        %4869 = vrot.lane.b32.xlu0 %v4759, 1
        %v4870 = vpop.permute.xlu0 %4869
        %4871 = vrot.lane.b32.xlu0 %v4761, 1
        %v4872 = vpop.permute.xlu0 %4871
        %4873 = vrot.lane.b32.xlu0 %v4760, 1
        %v4874 = vpop.permute.xlu0 %4873
        %4875 = vrot.lane.b32.xlu0 %v4764, 1
        %v4876 = vpop.permute.xlu0 %4875
        %4877 = vrot.lane.b32.xlu0 %v4766, 1
        %v4878 = vpop.permute.xlu0 %4877
        %4879 = vrot.lane.b32.xlu0 %v4765, 1
        %v4880 = vpop.permute.xlu0 %4879
        %v4890 = vmul.f32 %v4854, %v4864
        %v4891 = vmul.f32 %v4855, %v4866
        %v4892 = vmul.f32 %v4856, %v4868
        %v4893 = vmul.f32 %v4857, %v4870
        %v4894 = vmul.f32 %v4858, %v4872
        %v4895 = vmul.f32 %v4859, %v4874
        %v4896 = vmul.f32 %v4860, %v4876
        %v4897 = vmul.f32 %v4861, %v4878
        %v4898 = vmul.f32 %v4862, %v4880
        %vm4899 = vcmask 154649
        %v4900 = vsel %vm4899, %v4890, 0.0
        %v4901 = vsel %vm4899, %v4893, 0.0
        %v4902 = vadd.f32 %v4900, %v4901
        %v4903 = vsel %vm4899, %v4896, 0.0
        %v4904 = vadd.f32 %v4902, %v4903
        %v4905 = vsel %vm4116, %v4891, 0.0
        %v4906 = vsel %vm4116, %v4894, 0.0
        %v4907 = vadd.f32 %v4905, %v4906
        %v4908 = vsel %vm4116, %v4897, 0.0
        %v4909 = vadd.f32 %v4907, %v4908
        %vm4910 = vcmask 147480
        %v4911 = vsel %vm4910, %v4892, 0.0
        %v4912 = vsel %vm4910, %v4895, 0.0
        %v4913 = vadd.f32 %v4911, %v4912
        %v4914 = vsel %vm4910, %v4898, 0.0
        %v4915 = vadd.f32 %v4913, %v4914
        %v4916 = vmul.f32 %v4904, 0.33333334
        %v4917 = vmul.f32 %v4909, 0.33333334
        %v4918 = vmul.f32 %v4915, 0.33333334
        %v4919 = vsub.f32 0.0, %v4916
        %v4920 = vsub.f32 0.0, %v4917
        %v4921 = vsub.f32 0.0, %v4918
        %4925 = vrot.lane.b32.xlu0 %v4919, 125
        %v4926 = vpop.permute.xlu0 %4925
        %4927 = vrot.lane.b32.xlu0 %v4920, 125
        %v4928 = vpop.permute.xlu0 %4927
        %4929 = vrot.lane.b32.xlu0 %v4921, 125
        %v4930 = vpop.permute.xlu0 %4929
        %s4934 = scalar_lea.vmem [#allocation2], 144
        %4935 = vst.msk [vmem:[%s4934 - $0x1] sm:$0xfe] %vm4840, %v4926
        %4936 = vst.msk [vmem:[%s4934 + $0x7] sm:$0xff] %vm958, %v4928
        %4937 = vst.msk [vmem:[%s4934 + $0xf] sm:$0x1] %vm4843, %v4930
        %4938 = vrot.lane.b32.xlu0 %v353, 2
        %v4939 = vpop.permute.xlu0 %4938
        %4940 = vrot.lane.b32.xlu0 %v355, 2
        %v4941 = vpop.permute.xlu0 %4940
        %4942 = vrot.lane.b32.xlu0 %v354, 2
        %v4943 = vpop.permute.xlu0 %4942
        %4944 = vrot.lane.b32.xlu0 %v358, 2
        %v4945 = vpop.permute.xlu0 %4944
        %4946 = vrot.lane.b32.xlu0 %v360, 2
        %v4947 = vpop.permute.xlu0 %4946
        %4948 = vrot.lane.b32.xlu0 %v359, 2
        %v4949 = vpop.permute.xlu0 %4948
        %4950 = vrot.lane.b32.xlu0 %v363, 2
        %v4951 = vpop.permute.xlu0 %4950
        %4952 = vrot.lane.b32.xlu0 %v365, 2
        %v4953 = vpop.permute.xlu0 %4952
        %4954 = vrot.lane.b32.xlu0 %v364, 2
        %v4955 = vpop.permute.xlu0 %4954
        %v4965 = vsub.f32 %v190, %v4939
        %v4966 = vsub.f32 %v191, %v4941
        %v4967 = vsub.f32 %v192, %v4943
        %v4968 = vsub.f32 %v193, %v4945
        %v4969 = vsub.f32 %v194, %v4947
        %v4970 = vsub.f32 %v195, %v4949
        %v4971 = vsub.f32 %v196, %v4951
        %v4972 = vsub.f32 %v197, %v4953
        %v4973 = vsub.f32 %v198, %v4955
        %v4974 = vmul.f32 %v4965, %v4965
        %v4975 = vmul.f32 %v4966, %v4966
        %v4976 = vmul.f32 %v4967, %v4967
        %v4977 = vmul.f32 %v4968, %v4968
        %v4978 = vmul.f32 %v4969, %v4969
        %v4979 = vmul.f32 %v4970, %v4970
        %v4980 = vmul.f32 %v4971, %v4971
        %v4981 = vmul.f32 %v4972, %v4972
        %v4982 = vmul.f32 %v4973, %v4973
        %4983 = vrot.lane.b32.xlu0 %v4754, 3
        %v4984 = vpop.permute.xlu0 %4983
        %4985 = vrot.lane.b32.xlu0 %v4756, 3
        %v4986 = vpop.permute.xlu0 %4985
        %4987 = vrot.lane.b32.xlu0 %v4755, 3
        %v4988 = vpop.permute.xlu0 %4987
        %4989 = vrot.lane.b32.xlu0 %v4759, 3
        %v4990 = vpop.permute.xlu0 %4989
        %4991 = vrot.lane.b32.xlu0 %v4761, 3
        %v4992 = vpop.permute.xlu0 %4991
        %4993 = vrot.lane.b32.xlu0 %v4760, 3
        %v4994 = vpop.permute.xlu0 %4993
        %4995 = vrot.lane.b32.xlu0 %v4764, 3
        %v4996 = vpop.permute.xlu0 %4995
        %4997 = vrot.lane.b32.xlu0 %v4766, 3
        %v4998 = vpop.permute.xlu0 %4997
        %4999 = vrot.lane.b32.xlu0 %v4765, 3
        %v5000 = vpop.permute.xlu0 %4999
        %v5010 = vmul.f32 %v4974, %v4984
        %v5011 = vmul.f32 %v4975, %v4986
        %v5012 = vmul.f32 %v4976, %v4988
        %v5013 = vmul.f32 %v4977, %v4990
        %v5014 = vmul.f32 %v4978, %v4992
        %v5015 = vmul.f32 %v4979, %v4994
        %v5016 = vmul.f32 %v4980, %v4996
        %v5017 = vmul.f32 %v4981, %v4998
        %v5018 = vmul.f32 %v4982, %v5000
        %vm5019 = vcmask 171049
        %v5020 = vsel %vm5019, %v5010, 0.0
        %v5021 = vsel %vm5019, %v5013, 0.0
        %v5022 = vadd.f32 %v5020, %v5021
        %v5023 = vsel %vm5019, %v5016, 0.0
        %v5024 = vadd.f32 %v5022, %v5023
        %vm5025 = vcmask 171048
        %v5026 = vsel %vm5025, %v5011, 0.0
        %v5027 = vsel %vm5025, %v5014, 0.0
        %v5028 = vadd.f32 %v5026, %v5027
        %v5029 = vsel %vm5025, %v5017, 0.0
        %v5030 = vadd.f32 %v5028, %v5029
        %vm5031 = vcmask 163880
        %v5032 = vsel %vm5031, %v5012, 0.0
        %v5033 = vsel %vm5031, %v5015, 0.0
        %v5034 = vadd.f32 %v5032, %v5033
        %v5035 = vsel %vm5031, %v5018, 0.0
        %v5036 = vadd.f32 %v5034, %v5035
        %v5037 = vmul.f32 %v5024, 0.33333334
        %v5038 = vmul.f32 %v5030, 0.33333334
        %v5039 = vmul.f32 %v5036, 0.33333334
        %v5040 = vsub.f32 0.0, %v5037
        %v5041 = vsub.f32 0.0, %v5038
        %v5042 = vsub.f32 0.0, %v5039
        %5046 = vrot.lane.b32.xlu0 %v5040, 123
        %v5047 = vpop.permute.xlu0 %5046
        %5048 = vrot.lane.b32.xlu0 %v5041, 123
        %v5049 = vpop.permute.xlu0 %5048
        %5050 = vrot.lane.b32.xlu0 %v5042, 123
        %v5051 = vpop.permute.xlu0 %5050
        %s5055 = scalar_lea.vmem [#allocation2], 160
        %5056 = vst.msk [vmem:[%s5055 - $0x1] sm:$0xfe] %vm4840, %v5047
        %5057 = vst.msk [vmem:[%s5055 + $0x7] sm:$0xff] %vm958, %v5049
        %5058 = vst.msk [vmem:[%s5055 + $0xf] sm:$0x1] %vm4843, %v5051
        %v5059 = vsub.f32 %v190, %v245
        %v5060 = vsub.f32 %v191, %v247
        %v5061 = vsub.f32 %v192, %v249
        %v5062 = vsub.f32 %v193, %v251
        %v5063 = vsub.f32 %v194, %v253
        %v5064 = vsub.f32 %v195, %v255
        %v5065 = vsub.f32 %v196, %v257
        %v5066 = vsub.f32 %v197, %v259
        %v5067 = vsub.f32 %v198, %v261
        %v5068 = vmul.f32 %v5059, %v5059
        %v5069 = vmul.f32 %v5060, %v5060
        %v5070 = vmul.f32 %v5061, %v5061
        %v5071 = vmul.f32 %v5062, %v5062
        %v5072 = vmul.f32 %v5063, %v5063
        %v5073 = vmul.f32 %v5064, %v5064
        %v5074 = vmul.f32 %v5065, %v5065
        %v5075 = vmul.f32 %v5066, %v5066
        %v5076 = vmul.f32 %v5067, %v5067
        %5077 = vrot.lane.b32.xlu0 %v4253, 127
        %v5078 = vpop.permute.xlu0 %5077
        %5079 = vrot.lane.b32.xlu0 %v4255, 127
        %v5080 = vpop.permute.xlu0 %5079
        %5081 = vrot.lane.b32.xlu0 %v4257, 127
        %v5082 = vpop.permute.xlu0 %5081
        %5083 = vrot.lane.b32.xlu0 %v4258, 127
        %v5084 = vpop.permute.xlu0 %5083
        %5085 = vrot.lane.b32.xlu0 %v4260, 127
        %v5086 = vpop.permute.xlu0 %5085
        %5087 = vrot.lane.b32.xlu0 %v4262, 127
        %v5088 = vpop.permute.xlu0 %5087
        %5089 = vrot.lane.b32.xlu0 %v4263, 127
        %v5090 = vpop.permute.xlu0 %5089
        %5091 = vrot.lane.b32.xlu0 %v4265, 127
        %v5092 = vpop.permute.xlu0 %5091
        %5093 = vrot.lane.b32.xlu0 %v4267, 127
        %v5094 = vpop.permute.xlu0 %5093
        %v5104 = vmul.f32 %v5068, %v5078
        %v5105 = vmul.f32 %v5069, %v5080
        %v5106 = vmul.f32 %v5070, %v5082
        %v5107 = vmul.f32 %v5071, %v5084
        %v5108 = vmul.f32 %v5072, %v5086
        %v5109 = vmul.f32 %v5073, %v5088
        %v5110 = vmul.f32 %v5074, %v5090
        %v5111 = vmul.f32 %v5075, %v5092
        %v5112 = vmul.f32 %v5076, %v5094
        %vm5113 = vcmask 138251
        %v5114 = vsel %vm5113, %v5104, 0.0
        %v5115 = vsel %vm5113, %v5107, 0.0
        %v5116 = vadd.f32 %v5114, %v5115
        %v5117 = vsel %vm5113, %v5110, 0.0
        %v5118 = vadd.f32 %v5116, %v5117
        %v5119 = vsel %vm4809, %v5105, 0.0
        %v5120 = vsel %vm4809, %v5108, 0.0
        %v5121 = vadd.f32 %v5119, %v5120
        %v5122 = vsel %vm4809, %v5111, 0.0
        %v5123 = vadd.f32 %v5121, %v5122
        %vm5124 = vcmask 133128
        %v5125 = vsel %vm5124, %v5106, 0.0
        %v5126 = vsel %vm5124, %v5109, 0.0
        %v5127 = vadd.f32 %v5125, %v5126
        %v5128 = vsel %vm5124, %v5112, 0.0
        %v5129 = vadd.f32 %v5127, %v5128
        %v5130 = vmul.f32 %v5118, 0.33333334
        %v5131 = vmul.f32 %v5123, 0.33333334
        %v5132 = vmul.f32 %v5129, 0.33333334
        %v5133 = vsub.f32 0.0, %v5130
        %v5134 = vsub.f32 0.0, %v5131
        %v5135 = vsub.f32 0.0, %v5132
        %5139 = vrot.lane.b32.xlu0 %v5133, 127
        %v5140 = vpop.permute.xlu0 %5139
        %5141 = vrot.lane.b32.xlu0 %v5134, 127
        %v5142 = vpop.permute.xlu0 %5141
        %5143 = vrot.lane.b32.xlu0 %v5135, 127
        %v5144 = vpop.permute.xlu0 %5143
        %s5148 = scalar_lea.vmem [#allocation2], 176
        %5149 = vst.msk [vmem:[%s5148 - $0x3] sm:$0xf8] %vm4322, %v5140
        %5150 = vst.msk [vmem:[%s5148 + $0x5] sm:$0xff] %vm958, %v5142
        %5151 = vst.msk [vmem:[%s5148 + $0xd] sm:$0x7] %vm4325, %v5144
        %5152 = vrot.lane.b32.xlu0 %v190, 2
        %v5153 = vpop.permute.xlu0 %5152
        %5154 = vrot.lane.b32.xlu0 %v191, 2
        %v5155 = vpop.permute.xlu0 %5154
        %5156 = vrot.lane.b32.xlu0 %v192, 2
        %v5157 = vpop.permute.xlu0 %5156
        %5158 = vrot.lane.b32.xlu0 %v193, 2
        %v5159 = vpop.permute.xlu0 %5158
        %5160 = vrot.lane.b32.xlu0 %v194, 2
        %v5161 = vpop.permute.xlu0 %5160
        %5162 = vrot.lane.b32.xlu0 %v195, 2
        %v5163 = vpop.permute.xlu0 %5162
        %5164 = vrot.lane.b32.xlu0 %v196, 2
        %v5165 = vpop.permute.xlu0 %5164
        %5166 = vrot.lane.b32.xlu0 %v197, 2
        %v5167 = vpop.permute.xlu0 %5166
        %5168 = vrot.lane.b32.xlu0 %v198, 2
        %v5169 = vpop.permute.xlu0 %5168
        %v5179 = vsub.f32 %v190, %v5153
        %v5180 = vsub.f32 %v191, %v5155
        %v5181 = vsub.f32 %v192, %v5157
        %v5182 = vsub.f32 %v193, %v5159
        %v5183 = vsub.f32 %v194, %v5161
        %v5184 = vsub.f32 %v195, %v5163
        %v5185 = vsub.f32 %v196, %v5165
        %v5186 = vsub.f32 %v197, %v5167
        %v5187 = vsub.f32 %v198, %v5169
        %v5188 = vmul.f32 %v5179, %v5179
        %v5189 = vmul.f32 %v5180, %v5180
        %v5190 = vmul.f32 %v5181, %v5181
        %v5191 = vmul.f32 %v5182, %v5182
        %v5192 = vmul.f32 %v5183, %v5183
        %v5193 = vmul.f32 %v5184, %v5184
        %v5194 = vmul.f32 %v5185, %v5185
        %v5195 = vmul.f32 %v5186, %v5186
        %v5196 = vmul.f32 %v5187, %v5187
        %5197 = vrot.lane.b32.xlu0 %v4253, 3
        %v5198 = vpop.permute.xlu0 %5197
        %5199 = vrot.lane.b32.xlu0 %v4255, 3
        %v5200 = vpop.permute.xlu0 %5199
        %5201 = vrot.lane.b32.xlu0 %v4257, 3
        %v5202 = vpop.permute.xlu0 %5201
        %5203 = vrot.lane.b32.xlu0 %v4258, 3
        %v5204 = vpop.permute.xlu0 %5203
        %5205 = vrot.lane.b32.xlu0 %v4260, 3
        %v5206 = vpop.permute.xlu0 %5205
        %5207 = vrot.lane.b32.xlu0 %v4262, 3
        %v5208 = vpop.permute.xlu0 %5207
        %5209 = vrot.lane.b32.xlu0 %v4263, 3
        %v5210 = vpop.permute.xlu0 %5209
        %5211 = vrot.lane.b32.xlu0 %v4265, 3
        %v5212 = vpop.permute.xlu0 %5211
        %5213 = vrot.lane.b32.xlu0 %v4267, 3
        %v5214 = vpop.permute.xlu0 %5213
        %v5224 = vmul.f32 %v5188, %v5198
        %v5225 = vmul.f32 %v5189, %v5200
        %v5226 = vmul.f32 %v5190, %v5202
        %v5227 = vmul.f32 %v5191, %v5204
        %v5228 = vmul.f32 %v5192, %v5206
        %v5229 = vmul.f32 %v5193, %v5208
        %v5230 = vmul.f32 %v5194, %v5210
        %v5231 = vmul.f32 %v5195, %v5212
        %v5232 = vmul.f32 %v5196, %v5214
        %vm5233 = vcmask 171051
        %v5234 = vsel %vm5233, %v5224, 0.0
        %v5235 = vsel %vm5233, %v5227, 0.0
        %v5236 = vadd.f32 %v5234, %v5235
        %v5237 = vsel %vm5233, %v5230, 0.0
        %v5238 = vadd.f32 %v5236, %v5237
        %v5239 = vsel %vm5025, %v5225, 0.0
        %v5240 = vsel %vm5025, %v5228, 0.0
        %v5241 = vadd.f32 %v5239, %v5240
        %v5242 = vsel %vm5025, %v5231, 0.0
        %v5243 = vadd.f32 %v5241, %v5242
        %vm5244 = vcmask 165928
        %v5245 = vsel %vm5244, %v5226, 0.0
        %v5246 = vsel %vm5244, %v5229, 0.0
        %v5247 = vadd.f32 %v5245, %v5246
        %v5248 = vsel %vm5244, %v5232, 0.0
        %v5249 = vadd.f32 %v5247, %v5248
        %v5250 = vmul.f32 %v5238, 0.33333334
        %v5251 = vmul.f32 %v5243, 0.33333334
        %v5252 = vmul.f32 %v5249, 0.33333334
        %v5253 = vsub.f32 0.0, %v5250
        %v5254 = vsub.f32 0.0, %v5251
        %v5255 = vsub.f32 0.0, %v5252
        %5259 = vrot.lane.b32.xlu0 %v5253, 123
        %v5260 = vpop.permute.xlu0 %5259
        %5261 = vrot.lane.b32.xlu0 %v5254, 123
        %v5262 = vpop.permute.xlu0 %5261
        %5263 = vrot.lane.b32.xlu0 %v5255, 123
        %v5264 = vpop.permute.xlu0 %5263
        %s5268 = scalar_lea.vmem [#allocation2], 192
        %5269 = vst.msk [vmem:[%s5268 - $0x3] sm:$0xf8] %vm4322, %v5260
        %5270 = vst.msk [vmem:[%s5268 + $0x5] sm:$0xff] %vm958, %v5262
        %5271 = vst.msk [vmem:[%s5268 + $0xd] sm:$0x7] %vm4325, %v5264
        %v5272 = vrot.slane %v190, 6
        %v5273 = vrot.slane %v191, 6
        %v5274 = vsel %vm1705, %v5272, %v5273
        %v5275 = vrot.slane %v192, 6
        %v5276 = vsel %vm1705, %v5273, %v5275
        %v5277 = vrot.slane %v193, 6
        %v5278 = vrot.slane %v194, 6
        %v5279 = vsel %vm1705, %v5277, %v5278
        %v5280 = vrot.slane %v195, 6
        %v5281 = vsel %vm1705, %v5278, %v5280
        %v5282 = vrot.slane %v196, 6
        %v5283 = vrot.slane %v197, 6
        %v5284 = vsel %vm1705, %v5282, %v5283
        %v5285 = vrot.slane %v198, 6
        %v5286 = vsel %vm1705, %v5283, %v5285
        %5287 = vrot.lane.b32.xlu0 %v5272, 126
        %v5288 = vpop.permute.xlu0 %5287
        %5289 = vrot.lane.b32.xlu0 %v5274, 126
        %v5290 = vpop.permute.xlu0 %5289
        %5291 = vrot.lane.b32.xlu0 %v5276, 126
        %v5292 = vpop.permute.xlu0 %5291
        %5293 = vrot.lane.b32.xlu0 %v5277, 126
        %v5294 = vpop.permute.xlu0 %5293
        %5295 = vrot.lane.b32.xlu0 %v5279, 126
        %v5296 = vpop.permute.xlu0 %5295
        %5297 = vrot.lane.b32.xlu0 %v5281, 126
        %v5298 = vpop.permute.xlu0 %5297
        %5299 = vrot.lane.b32.xlu0 %v5282, 126
        %v5300 = vpop.permute.xlu0 %5299
        %5301 = vrot.lane.b32.xlu0 %v5284, 126
        %v5302 = vpop.permute.xlu0 %5301
        %5303 = vrot.lane.b32.xlu0 %v5286, 126
        %v5304 = vpop.permute.xlu0 %5303
        %v5314 = vsub.f32 %v190, %v5288
        %v5315 = vsub.f32 %v191, %v5290
        %v5316 = vsub.f32 %v192, %v5292
        %v5317 = vsub.f32 %v193, %v5294
        %v5318 = vsub.f32 %v194, %v5296
        %v5319 = vsub.f32 %v195, %v5298
        %v5320 = vsub.f32 %v196, %v5300
        %v5321 = vsub.f32 %v197, %v5302
        %v5322 = vsub.f32 %v198, %v5304
        %v5323 = vmul.f32 %v5314, %v5314
        %v5324 = vmul.f32 %v5315, %v5315
        %v5325 = vmul.f32 %v5316, %v5316
        %v5326 = vmul.f32 %v5317, %v5317
        %v5327 = vmul.f32 %v5318, %v5318
        %v5328 = vmul.f32 %v5319, %v5319
        %v5329 = vmul.f32 %v5320, %v5320
        %v5330 = vmul.f32 %v5321, %v5321
        %v5331 = vmul.f32 %v5322, %v5322
        %v5332 = vrot.slane %v3952, 5
        %v5333 = vrot.slane %v3953, 5
        %v5334 = vsel %vm3249, %v5332, %v5333
        %v5335 = vrot.slane %v3954, 5
        %v5336 = vsel %vm3249, %v5333, %v5335
        %v5337 = vrot.slane %v3955, 5
        %v5338 = vrot.slane %v3956, 5
        %v5339 = vsel %vm3249, %v5337, %v5338
        %v5340 = vrot.slane %v3957, 5
        %v5341 = vsel %vm3249, %v5338, %v5340
        %v5342 = vrot.slane %v3958, 5
        %v5343 = vrot.slane %v3959, 5
        %v5344 = vsel %vm3249, %v5342, %v5343
        %v5345 = vrot.slane %v3960, 5
        %v5346 = vsel %vm3249, %v5343, %v5345
        %5347 = vrot.lane.b32.xlu0 %v5332, 127
        %v5348 = vpop.permute.xlu0 %5347
        %5349 = vrot.lane.b32.xlu0 %v5334, 127
        %v5350 = vpop.permute.xlu0 %5349
        %5351 = vrot.lane.b32.xlu0 %v5336, 127
        %v5352 = vpop.permute.xlu0 %5351
        %5353 = vrot.lane.b32.xlu0 %v5337, 127
        %v5354 = vpop.permute.xlu0 %5353
        %5355 = vrot.lane.b32.xlu0 %v5339, 127
        %v5356 = vpop.permute.xlu0 %5355
        %5357 = vrot.lane.b32.xlu0 %v5341, 127
        %v5358 = vpop.permute.xlu0 %5357
        %5359 = vrot.lane.b32.xlu0 %v5342, 127
        %v5360 = vpop.permute.xlu0 %5359
        %5361 = vrot.lane.b32.xlu0 %v5344, 127
        %v5362 = vpop.permute.xlu0 %5361
        %5363 = vrot.lane.b32.xlu0 %v5346, 127
        %v5364 = vpop.permute.xlu0 %5363
        %v5374 = vmul.f32 %v5323, %v5348
        %v5375 = vmul.f32 %v5324, %v5350
        %v5376 = vmul.f32 %v5325, %v5352
        %v5377 = vmul.f32 %v5326, %v5354
        %v5378 = vmul.f32 %v5327, %v5356
        %v5379 = vmul.f32 %v5328, %v5358
        %v5380 = vmul.f32 %v5329, %v5360
        %v5381 = vmul.f32 %v5330, %v5362
        %v5382 = vmul.f32 %v5331, %v5364
        %vm5383 = vcmask 138253
        %v5384 = vsel %vm5383, %v5374, 0.0
        %v5385 = vsel %vm5383, %v5377, 0.0
        %v5386 = vadd.f32 %v5384, %v5385
        %v5387 = vsel %vm5383, %v5380, 0.0
        %v5388 = vadd.f32 %v5386, %v5387
        %v5389 = vsel %vm4809, %v5375, 0.0
        %v5390 = vsel %vm4809, %v5378, 0.0
        %v5391 = vadd.f32 %v5389, %v5390
        %v5392 = vsel %vm4809, %v5381, 0.0
        %v5393 = vadd.f32 %v5391, %v5392
        %vm5394 = vcmask 135176
        %v5395 = vsel %vm5394, %v5376, 0.0
        %v5396 = vsel %vm5394, %v5379, 0.0
        %v5397 = vadd.f32 %v5395, %v5396
        %v5398 = vsel %vm5394, %v5382, 0.0
        %v5399 = vadd.f32 %v5397, %v5398
        %v5400 = vmul.f32 %v5388, 0.33333334
        %v5401 = vmul.f32 %v5393, 0.33333334
        %v5402 = vmul.f32 %v5399, 0.33333334
        %v5403 = vsub.f32 0.0, %v5400
        %v5404 = vsub.f32 0.0, %v5401
        %v5405 = vsub.f32 0.0, %v5402
        %5409 = vrot.lane.b32.xlu0 %v5403, 127
        %v5410 = vpop.permute.xlu0 %5409
        %5411 = vrot.lane.b32.xlu0 %v5404, 127
        %v5412 = vpop.permute.xlu0 %5411
        %5413 = vrot.lane.b32.xlu0 %v5405, 127
        %v5414 = vpop.permute.xlu0 %5413
        %s5418 = scalar_lea.vmem [#allocation2], 208
        %vm5419 = vcmask 130053
        %5420 = vst.msk [vmem:[%s5418 - $0x5] sm:$0xe0] %vm5419, %v5410
        %5421 = vst.msk [vmem:[%s5418 + $0x3] sm:$0xff] %vm958, %v5412
        %vm5422 = vcmask 126976
        %5423 = vst.msk [vmem:[%s5418 + $0xb] sm:$0x1f] %vm5422, %v5414
        %v5433 = vsub.f32 %v190, %v5272
        %v5434 = vsub.f32 %v191, %v5274
        %v5435 = vsub.f32 %v192, %v5276
        %v5436 = vsub.f32 %v193, %v5277
        %v5437 = vsub.f32 %v194, %v5279
        %v5438 = vsub.f32 %v195, %v5281
        %v5439 = vsub.f32 %v196, %v5282
        %v5440 = vsub.f32 %v197, %v5284
        %v5441 = vsub.f32 %v198, %v5286
        %v5442 = vmul.f32 %v5433, %v5433
        %v5443 = vmul.f32 %v5434, %v5434
        %v5444 = vmul.f32 %v5435, %v5435
        %v5445 = vmul.f32 %v5436, %v5436
        %v5446 = vmul.f32 %v5437, %v5437
        %v5447 = vmul.f32 %v5438, %v5438
        %v5448 = vmul.f32 %v5439, %v5439
        %v5449 = vmul.f32 %v5440, %v5440
        %v5450 = vmul.f32 %v5441, %v5441
        %5451 = vrot.lane.b32.xlu0 %v5332, 1
        %v5452 = vpop.permute.xlu0 %5451
        %5453 = vrot.lane.b32.xlu0 %v5334, 1
        %v5454 = vpop.permute.xlu0 %5453
        %5455 = vrot.lane.b32.xlu0 %v5336, 1
        %v5456 = vpop.permute.xlu0 %5455
        %5457 = vrot.lane.b32.xlu0 %v5337, 1
        %v5458 = vpop.permute.xlu0 %5457
        %5459 = vrot.lane.b32.xlu0 %v5339, 1
        %v5460 = vpop.permute.xlu0 %5459
        %5461 = vrot.lane.b32.xlu0 %v5341, 1
        %v5462 = vpop.permute.xlu0 %5461
        %5463 = vrot.lane.b32.xlu0 %v5342, 1
        %v5464 = vpop.permute.xlu0 %5463
        %5465 = vrot.lane.b32.xlu0 %v5344, 1
        %v5466 = vpop.permute.xlu0 %5465
        %5467 = vrot.lane.b32.xlu0 %v5346, 1
        %v5468 = vpop.permute.xlu0 %5467
        %v5478 = vmul.f32 %v5442, %v5452
        %v5479 = vmul.f32 %v5443, %v5454
        %v5480 = vmul.f32 %v5444, %v5456
        %v5481 = vmul.f32 %v5445, %v5458
        %v5482 = vmul.f32 %v5446, %v5460
        %v5483 = vmul.f32 %v5447, %v5462
        %v5484 = vmul.f32 %v5448, %v5464
        %v5485 = vmul.f32 %v5449, %v5466
        %v5486 = vmul.f32 %v5450, %v5468
        %vm5487 = vcmask 154653
        %v5488 = vsel %vm5487, %v5478, 0.0
        %v5489 = vsel %vm5487, %v5481, 0.0
        %v5490 = vadd.f32 %v5488, %v5489
        %v5491 = vsel %vm5487, %v5484, 0.0
        %v5492 = vadd.f32 %v5490, %v5491
        %v5493 = vsel %vm4116, %v5479, 0.0
        %v5494 = vsel %vm4116, %v5482, 0.0
        %v5495 = vadd.f32 %v5493, %v5494
        %v5496 = vsel %vm4116, %v5485, 0.0
        %v5497 = vadd.f32 %v5495, %v5496
        %vm5498 = vcmask 151576
        %v5499 = vsel %vm5498, %v5480, 0.0
        %v5500 = vsel %vm5498, %v5483, 0.0
        %v5501 = vadd.f32 %v5499, %v5500
        %v5502 = vsel %vm5498, %v5486, 0.0
        %v5503 = vadd.f32 %v5501, %v5502
        %v5504 = vmul.f32 %v5492, 0.33333334
        %v5505 = vmul.f32 %v5497, 0.33333334
        %v5506 = vmul.f32 %v5503, 0.33333334
        %v5507 = vsub.f32 0.0, %v5504
        %v5508 = vsub.f32 0.0, %v5505
        %v5509 = vsub.f32 0.0, %v5506
        %5513 = vrot.lane.b32.xlu0 %v5507, 125
        %v5514 = vpop.permute.xlu0 %5513
        %5515 = vrot.lane.b32.xlu0 %v5508, 125
        %v5516 = vpop.permute.xlu0 %5515
        %5517 = vrot.lane.b32.xlu0 %v5509, 125
        %v5518 = vpop.permute.xlu0 %5517
        %s5522 = scalar_lea.vmem [#allocation2], 224
        %5523 = vst.msk [vmem:[%s5522 - $0x5] sm:$0xe0] %vm5419, %v5514
        %5524 = vst.msk [vmem:[%s5522 + $0x3] sm:$0xff] %vm958, %v5516
        %5525 = vst.msk [vmem:[%s5522 + $0xb] sm:$0x1f] %vm5422, %v5518
        %5526 = vrot.lane.b32.xlu0 %v5272, 2
        %v5527 = vpop.permute.xlu0 %5526
        %5528 = vrot.lane.b32.xlu0 %v5274, 2
        %v5529 = vpop.permute.xlu0 %5528
        %5530 = vrot.lane.b32.xlu0 %v5276, 2
        %v5531 = vpop.permute.xlu0 %5530
        %5532 = vrot.lane.b32.xlu0 %v5277, 2
        %v5533 = vpop.permute.xlu0 %5532
        %5534 = vrot.lane.b32.xlu0 %v5279, 2
        %v5535 = vpop.permute.xlu0 %5534
        %5536 = vrot.lane.b32.xlu0 %v5281, 2
        %v5537 = vpop.permute.xlu0 %5536
        %5538 = vrot.lane.b32.xlu0 %v5282, 2
        %v5539 = vpop.permute.xlu0 %5538
        %5540 = vrot.lane.b32.xlu0 %v5284, 2
        %v5541 = vpop.permute.xlu0 %5540
        %5542 = vrot.lane.b32.xlu0 %v5286, 2
        %v5543 = vpop.permute.xlu0 %5542
        %v5553 = vsub.f32 %v190, %v5527
        %v5554 = vsub.f32 %v191, %v5529
        %v5555 = vsub.f32 %v192, %v5531
        %v5556 = vsub.f32 %v193, %v5533
        %v5557 = vsub.f32 %v194, %v5535
        %v5558 = vsub.f32 %v195, %v5537
        %v5559 = vsub.f32 %v196, %v5539
        %v5560 = vsub.f32 %v197, %v5541
        %v5561 = vsub.f32 %v198, %v5543
        %v5562 = vmul.f32 %v5553, %v5553
        %v5563 = vmul.f32 %v5554, %v5554
        %v5564 = vmul.f32 %v5555, %v5555
        %v5565 = vmul.f32 %v5556, %v5556
        %v5566 = vmul.f32 %v5557, %v5557
        %v5567 = vmul.f32 %v5558, %v5558
        %v5568 = vmul.f32 %v5559, %v5559
        %v5569 = vmul.f32 %v5560, %v5560
        %v5570 = vmul.f32 %v5561, %v5561
        %5571 = vrot.lane.b32.xlu0 %v5332, 3
        %v5572 = vpop.permute.xlu0 %5571
        %5573 = vrot.lane.b32.xlu0 %v5334, 3
        %v5574 = vpop.permute.xlu0 %5573
        %5575 = vrot.lane.b32.xlu0 %v5336, 3
        %v5576 = vpop.permute.xlu0 %5575
        %5577 = vrot.lane.b32.xlu0 %v5337, 3
        %v5578 = vpop.permute.xlu0 %5577
        %5579 = vrot.lane.b32.xlu0 %v5339, 3
        %v5580 = vpop.permute.xlu0 %5579
        %5581 = vrot.lane.b32.xlu0 %v5341, 3
        %v5582 = vpop.permute.xlu0 %5581
        %5583 = vrot.lane.b32.xlu0 %v5342, 3
        %v5584 = vpop.permute.xlu0 %5583
        %5585 = vrot.lane.b32.xlu0 %v5344, 3
        %v5586 = vpop.permute.xlu0 %5585
        %5587 = vrot.lane.b32.xlu0 %v5346, 3
        %v5588 = vpop.permute.xlu0 %5587
        %v5598 = vmul.f32 %v5562, %v5572
        %v5599 = vmul.f32 %v5563, %v5574
        %v5600 = vmul.f32 %v5564, %v5576
        %v5601 = vmul.f32 %v5565, %v5578
        %v5602 = vmul.f32 %v5566, %v5580
        %v5603 = vmul.f32 %v5567, %v5582
        %v5604 = vmul.f32 %v5568, %v5584
        %v5605 = vmul.f32 %v5569, %v5586
        %v5606 = vmul.f32 %v5570, %v5588
        %vm5607 = vcmask 171053
        %v5608 = vsel %vm5607, %v5598, 0.0
        %v5609 = vsel %vm5607, %v5601, 0.0
        %v5610 = vadd.f32 %v5608, %v5609
        %v5611 = vsel %vm5607, %v5604, 0.0
        %v5612 = vadd.f32 %v5610, %v5611
        %v5613 = vsel %vm5025, %v5599, 0.0
        %v5614 = vsel %vm5025, %v5602, 0.0
        %v5615 = vadd.f32 %v5613, %v5614
        %v5616 = vsel %vm5025, %v5605, 0.0
        %v5617 = vadd.f32 %v5615, %v5616
        %vm5618 = vcmask 167976
        %v5619 = vsel %vm5618, %v5600, 0.0
        %v5620 = vsel %vm5618, %v5603, 0.0
        %v5621 = vadd.f32 %v5619, %v5620
        %v5622 = vsel %vm5618, %v5606, 0.0
        %v5623 = vadd.f32 %v5621, %v5622
        %v5624 = vmul.f32 %v5612, 0.33333334
        %v5625 = vmul.f32 %v5617, 0.33333334
        %v5626 = vmul.f32 %v5623, 0.33333334
        %v5627 = vsub.f32 0.0, %v5624
        %v5628 = vsub.f32 0.0, %v5625
        %v5629 = vsub.f32 0.0, %v5626
        %5633 = vrot.lane.b32.xlu0 %v5627, 123
        %v5634 = vpop.permute.xlu0 %5633
        %5635 = vrot.lane.b32.xlu0 %v5628, 123
        %v5636 = vpop.permute.xlu0 %5635
        %5637 = vrot.lane.b32.xlu0 %v5629, 123
        %v5638 = vpop.permute.xlu0 %5637
        %s5642 = scalar_lea.vmem [#allocation2], 240
        %5643 = vst.msk [vmem:[%s5642 - $0x5] sm:$0xe0] %vm5419, %v5634
        %5644 = vst.msk [vmem:[%s5642 + $0x3] sm:$0xff] %vm958, %v5636
        %5645 = vst.msk [vmem:[%s5642 + $0xb] sm:$0x1f] %vm5422, %v5638
        %s5646 = sld [smem:[#allocation4]]
        %s5647 = sadd.f32 %s5646, 1.0
        %v5648 = vstv %s5647
        %v5649 = vrcp.pop %v5648
        %s5650 = vtos %v5649
        %v5651 = vld [vmem:[#allocation2] sm:$0xff]
        %v5652 = vld [vmem:[#allocation2 + $0x8] sm:$0xff]
        %v5653 = vld [vmem:[#allocation2 + $0x10] sm:$0xff]
        %v5654 = vld [vmem:[#allocation2 + $0x18] sm:$0xff]
        %v5655 = vld [vmem:[#allocation2 + $0x20] sm:$0xff]
        %v5656 = vld [vmem:[#allocation2 + $0x28] sm:$0xff]
        %v5657 = vld [vmem:[#allocation2 + $0x30] sm:$0xff]
        %v5658 = vld [vmem:[#allocation2 + $0x38] sm:$0xff]
        %v5659 = vld [vmem:[#allocation2 + $0x40] sm:$0xff]
        %v5660 = vld [vmem:[#allocation2 + $0x48] sm:$0xff]
        %v5661 = vld [vmem:[#allocation2 + $0x50] sm:$0xff]
        %v5662 = vld [vmem:[#allocation2 + $0x58] sm:$0xff]
        %v5663 = vld [vmem:[#allocation2 + $0x60] sm:$0xff]
        %v5664 = vld [vmem:[#allocation2 + $0x68] sm:$0xff]
        %v5665 = vld [vmem:[#allocation2 + $0x70] sm:$0xff]
        %v5666 = vld [vmem:[#allocation2 + $0x78] sm:$0xff]
        %v5667 = vld [vmem:[#allocation2 + $0x80] sm:$0xff]
        %v5668 = vld [vmem:[#allocation2 + $0x88] sm:$0xff]
        %v5669 = vld [vmem:[#allocation2 + $0x90] sm:$0xff]
        %v5670 = vld [vmem:[#allocation2 + $0x98] sm:$0xff]
        %v5671 = vld [vmem:[#allocation2 + $0xa0] sm:$0xff]
        %v5672 = vld [vmem:[#allocation2 + $0xa8] sm:$0xff]
        %v5673 = vld [vmem:[#allocation2 + $0xb0] sm:$0xff]
        %v5674 = vld [vmem:[#allocation2 + $0xb8] sm:$0xff]
        %v5675 = vld [vmem:[#allocation2 + $0xc0] sm:$0xff]
        %v5676 = vld [vmem:[#allocation2 + $0xc8] sm:$0xff]
        %v5677 = vld [vmem:[#allocation2 + $0xd0] sm:$0xff]
        %v5678 = vld [vmem:[#allocation2 + $0xd8] sm:$0xff]
        %v5679 = vld [vmem:[#allocation2 + $0xe0] sm:$0xff]
        %v5680 = vld [vmem:[#allocation2 + $0xe8] sm:$0xff]
        %v5681 = vld [vmem:[#allocation2 + $0xf0] sm:$0xff]
        %v5682 = vld [vmem:[#allocation2 + $0xf8] sm:$0xff]
        %v5683 = vsel %vm958, %v5651, -inf
        %v5684 = vsel %vm958, %v5653, -inf
        %v5685 = vsel %vm958, %v5655, -inf
        %v5686 = vmax.f32 %v5683, %v5685
        %v5687 = vsel %vm958, %v5657, -inf
        %v5688 = vmax.f32 %v5684, %v5687
        %v5689 = vsel %vm958, %v5659, -inf
        %v5690 = vmax.f32 %v5686, %v5689
        %v5691 = vsel %vm958, %v5661, -inf
        %v5692 = vmax.f32 %v5688, %v5691
        %v5693 = vsel %vm958, %v5663, -inf
        %v5694 = vmax.f32 %v5690, %v5693
        %v5695 = vsel %vm958, %v5665, -inf
        %v5696 = vmax.f32 %v5692, %v5695
        %v5697 = vsel %vm958, %v5667, -inf
        %v5698 = vmax.f32 %v5694, %v5697
        %v5699 = vsel %vm958, %v5669, -inf
        %v5700 = vmax.f32 %v5696, %v5699
        %v5701 = vsel %vm958, %v5671, -inf
        %v5702 = vmax.f32 %v5698, %v5701
        %v5703 = vsel %vm958, %v5673, -inf
        %v5704 = vmax.f32 %v5700, %v5703
        %v5705 = vsel %vm958, %v5675, -inf
        %v5706 = vmax.f32 %v5702, %v5705
        %v5707 = vsel %vm958, %v5677, -inf
        %v5708 = vmax.f32 %v5704, %v5707
        %v5709 = vsel %vm958, %v5679, -inf
        %v5710 = vmax.f32 %v5706, %v5709
        %v5711 = vsel %vm958, %v5681, -inf
        %v5712 = vmax.f32 %v5708, %v5711
        %v5713 = vmax.f32 %v5710, %v5712
        %v5714 = vsel %vm958, %v5652, -inf
        %v5715 = vsel %vm958, %v5654, -inf
        %v5716 = vsel %vm958, %v5656, -inf
        %v5717 = vmax.f32 %v5714, %v5716
        %v5718 = vsel %vm958, %v5658, -inf
        %v5719 = vmax.f32 %v5715, %v5718
        %v5720 = vsel %vm958, %v5660, -inf
        %v5721 = vmax.f32 %v5717, %v5720
        %v5722 = vsel %vm958, %v5662, -inf
        %v5723 = vmax.f32 %v5719, %v5722
        %v5724 = vsel %vm958, %v5664, -inf
        %v5725 = vmax.f32 %v5721, %v5724
        %v5726 = vsel %vm958, %v5666, -inf
        %v5727 = vmax.f32 %v5723, %v5726
        %v5728 = vsel %vm958, %v5668, -inf
        %v5729 = vmax.f32 %v5725, %v5728
        %v5730 = vsel %vm958, %v5670, -inf
        %v5731 = vmax.f32 %v5727, %v5730
        %v5732 = vsel %vm958, %v5672, -inf
        %v5733 = vmax.f32 %v5729, %v5732
        %v5734 = vsel %vm958, %v5674, -inf
        %v5735 = vmax.f32 %v5731, %v5734
        %v5736 = vsel %vm958, %v5676, -inf
        %v5737 = vmax.f32 %v5733, %v5736
        %v5738 = vsel %vm958, %v5678, -inf
        %v5739 = vmax.f32 %v5735, %v5738
        %v5740 = vsel %vm958, %v5680, -inf
        %v5741 = vmax.f32 %v5737, %v5740
        %v5742 = vsel %vm958, %v5682, -inf
        %v5743 = vmax.f32 %v5739, %v5742
        %v5744 = vmax.f32 %v5741, %v5743
        %v5745 = vsub.f32 %v5651, %v5713
        %v5746 = vsub.f32 %v5652, %v5744
        %v5747 = vsub.f32 %v5653, %v5713
        %v5748 = vsub.f32 %v5654, %v5744
        %v5749 = vsub.f32 %v5655, %v5713
        %v5750 = vsub.f32 %v5656, %v5744
        %v5751 = vsub.f32 %v5657, %v5713
        %v5752 = vsub.f32 %v5658, %v5744
        %v5753 = vsub.f32 %v5659, %v5713
        %v5754 = vsub.f32 %v5660, %v5744
        %v5755 = vsub.f32 %v5661, %v5713
        %v5756 = vsub.f32 %v5662, %v5744
        %v5757 = vsub.f32 %v5663, %v5713
        %v5758 = vsub.f32 %v5664, %v5744
        %v5759 = vsub.f32 %v5665, %v5713
        %v5760 = vsub.f32 %v5666, %v5744
        %v5761 = vsub.f32 %v5667, %v5713
        %v5762 = vsub.f32 %v5668, %v5744
        %v5763 = vsub.f32 %v5669, %v5713
        %v5764 = vsub.f32 %v5670, %v5744
        %v5765 = vsub.f32 %v5671, %v5713
        %v5766 = vsub.f32 %v5672, %v5744
        %v5767 = vsub.f32 %v5673, %v5713
        %v5768 = vsub.f32 %v5674, %v5744
        %v5769 = vsub.f32 %v5675, %v5713
        %v5770 = vsub.f32 %v5676, %v5744
        %v5771 = vsub.f32 %v5677, %v5713
        %v5772 = vsub.f32 %v5678, %v5744
        %v5773 = vsub.f32 %v5679, %v5713
        %v5774 = vsub.f32 %v5680, %v5744
        %v5775 = vsub.f32 %v5681, %v5713
        %v5776 = vsub.f32 %v5682, %v5744
        %v5777 = vmul.f32 %v5745, 1.442695
        %v5778 = vpow.pop %v5777
        %v5779 = vmul.f32 %v5746, 1.442695
        %v5780 = vpow.pop %v5779
        %v5781 = vmul.f32 %v5747, 1.442695
        %v5782 = vpow.pop %v5781
        %v5783 = vmul.f32 %v5748, 1.442695
        %v5784 = vpow.pop %v5783
        %v5785 = vmul.f32 %v5749, 1.442695
        %v5786 = vpow.pop %v5785
        %v5787 = vmul.f32 %v5750, 1.442695
        %v5788 = vpow.pop %v5787
        %v5789 = vmul.f32 %v5751, 1.442695
        %v5790 = vpow.pop %v5789
        %v5791 = vmul.f32 %v5752, 1.442695
        %v5792 = vpow.pop %v5791
        %v5793 = vmul.f32 %v5753, 1.442695
        %v5794 = vpow.pop %v5793
        %v5795 = vmul.f32 %v5754, 1.442695
        %v5796 = vpow.pop %v5795
        %v5797 = vmul.f32 %v5755, 1.442695
        %v5798 = vpow.pop %v5797
        %v5799 = vmul.f32 %v5756, 1.442695
        %v5800 = vpow.pop %v5799
        %v5801 = vmul.f32 %v5757, 1.442695
        %v5802 = vpow.pop %v5801
        %v5803 = vmul.f32 %v5758, 1.442695
        %v5804 = vpow.pop %v5803
        %v5805 = vmul.f32 %v5759, 1.442695
        %v5806 = vpow.pop %v5805
        %v5807 = vmul.f32 %v5760, 1.442695
        %v5808 = vpow.pop %v5807
        %v5809 = vmul.f32 %v5761, 1.442695
        %v5810 = vpow.pop %v5809
        %v5811 = vmul.f32 %v5762, 1.442695
        %v5812 = vpow.pop %v5811
        %v5813 = vmul.f32 %v5763, 1.442695
        %v5814 = vpow.pop %v5813
        %v5815 = vmul.f32 %v5764, 1.442695
        %v5816 = vpow.pop %v5815
        %v5817 = vmul.f32 %v5765, 1.442695
        %v5818 = vpow.pop %v5817
        %v5819 = vmul.f32 %v5766, 1.442695
        %v5820 = vpow.pop %v5819
        %v5821 = vmul.f32 %v5767, 1.442695
        %v5822 = vpow.pop %v5821
        %v5823 = vmul.f32 %v5768, 1.442695
        %v5824 = vpow.pop %v5823
        %v5825 = vmul.f32 %v5769, 1.442695
        %v5826 = vpow.pop %v5825
        %v5827 = vmul.f32 %v5770, 1.442695
        %v5828 = vpow.pop %v5827
        %v5829 = vmul.f32 %v5771, 1.442695
        %v5830 = vpow.pop %v5829
        %v5831 = vmul.f32 %v5772, 1.442695
        %v5832 = vpow.pop %v5831
        %v5833 = vmul.f32 %v5773, 1.442695
        %v5834 = vpow.pop %v5833
        %v5835 = vmul.f32 %v5774, 1.442695
        %v5836 = vpow.pop %v5835
        %v5837 = vmul.f32 %v5775, 1.442695
        %v5838 = vpow.pop %v5837
        %v5839 = vmul.f32 %v5776, 1.442695
        %v5840 = vpow.pop %v5839
        %v5841 = vsel %vm958, %v5778, 0.0
        %v5842 = vsel %vm958, %v5782, 0.0
        %v5843 = vadd.f32 %v5841, %v5842
        %v5844 = vsel %vm958, %v5786, 0.0
        %v5845 = vadd.f32 %v5843, %v5844
        %v5846 = vsel %vm958, %v5790, 0.0
        %v5847 = vadd.f32 %v5845, %v5846
        %v5848 = vsel %vm958, %v5794, 0.0
        %v5849 = vadd.f32 %v5847, %v5848
        %v5850 = vsel %vm958, %v5798, 0.0
        %v5851 = vadd.f32 %v5849, %v5850
        %v5852 = vsel %vm958, %v5802, 0.0
        %v5853 = vadd.f32 %v5851, %v5852
        %v5854 = vsel %vm958, %v5806, 0.0
        %v5855 = vadd.f32 %v5853, %v5854
        %v5856 = vsel %vm958, %v5810, 0.0
        %v5857 = vadd.f32 %v5855, %v5856
        %v5858 = vsel %vm958, %v5814, 0.0
        %v5859 = vadd.f32 %v5857, %v5858
        %v5860 = vsel %vm958, %v5818, 0.0
        %v5861 = vadd.f32 %v5859, %v5860
        %v5862 = vsel %vm958, %v5822, 0.0
        %v5863 = vadd.f32 %v5861, %v5862
        %v5864 = vsel %vm958, %v5826, 0.0
        %v5865 = vadd.f32 %v5863, %v5864
        %v5866 = vsel %vm958, %v5830, 0.0
        %v5867 = vadd.f32 %v5865, %v5866
        %v5868 = vsel %vm958, %v5834, 0.0
        %v5869 = vadd.f32 %v5867, %v5868
        %v5870 = vsel %vm958, %v5838, 0.0
        %v5871 = vadd.f32 %v5869, %v5870
        %v5872 = vsel %vm958, %v5780, 0.0
        %v5873 = vsel %vm958, %v5784, 0.0
        %v5874 = vadd.f32 %v5872, %v5873
        %v5875 = vsel %vm958, %v5788, 0.0
        %v5876 = vadd.f32 %v5874, %v5875
        %v5877 = vsel %vm958, %v5792, 0.0
        %v5878 = vadd.f32 %v5876, %v5877
        %v5879 = vsel %vm958, %v5796, 0.0
        %v5880 = vadd.f32 %v5878, %v5879
        %v5881 = vsel %vm958, %v5800, 0.0
        %v5882 = vadd.f32 %v5880, %v5881
        %v5883 = vsel %vm958, %v5804, 0.0
        %v5884 = vadd.f32 %v5882, %v5883
        %v5885 = vsel %vm958, %v5808, 0.0
        %v5886 = vadd.f32 %v5884, %v5885
        %v5887 = vsel %vm958, %v5812, 0.0
        %v5888 = vadd.f32 %v5886, %v5887
        %v5889 = vsel %vm958, %v5816, 0.0
        %v5890 = vadd.f32 %v5888, %v5889
        %v5891 = vsel %vm958, %v5820, 0.0
        %v5892 = vadd.f32 %v5890, %v5891
        %v5893 = vsel %vm958, %v5824, 0.0
        %v5894 = vadd.f32 %v5892, %v5893
        %v5895 = vsel %vm958, %v5828, 0.0
        %v5896 = vadd.f32 %v5894, %v5895
        %v5897 = vsel %vm958, %v5832, 0.0
        %v5898 = vadd.f32 %v5896, %v5897
        %v5899 = vsel %vm958, %v5836, 0.0
        %v5900 = vadd.f32 %v5898, %v5899
        %v5901 = vsel %vm958, %v5840, 0.0
        %v5902 = vadd.f32 %v5900, %v5901
        %v5903 = vrcp.pop %v5871
        %v5904 = vrcp.pop %v5902
        %v5905 = vmul.f32 %v5778, %v5903
        %v5906 = vmul.f32 %v5780, %v5904
        %v5907 = vmul.f32 %v5782, %v5903
        %v5908 = vmul.f32 %v5784, %v5904
        %v5909 = vmul.f32 %v5786, %v5903
        %v5910 = vmul.f32 %v5788, %v5904
        %v5911 = vmul.f32 %v5790, %v5903
        %v5912 = vmul.f32 %v5792, %v5904
        %v5913 = vmul.f32 %v5794, %v5903
        %v5914 = vmul.f32 %v5796, %v5904
        %v5915 = vmul.f32 %v5798, %v5903
        %v5916 = vmul.f32 %v5800, %v5904
        %v5917 = vmul.f32 %v5802, %v5903
        %v5918 = vmul.f32 %v5804, %v5904
        %v5919 = vmul.f32 %v5806, %v5903
        %v5920 = vmul.f32 %v5808, %v5904
        %v5921 = vmul.f32 %v5810, %v5903
        %v5922 = vmul.f32 %v5812, %v5904
        %v5923 = vmul.f32 %v5814, %v5903
        %v5924 = vmul.f32 %v5816, %v5904
        %v5925 = vmul.f32 %v5818, %v5903
        %v5926 = vmul.f32 %v5820, %v5904
        %v5927 = vmul.f32 %v5822, %v5903
        %v5928 = vmul.f32 %v5824, %v5904
        %v5929 = vmul.f32 %v5826, %v5903
        %v5930 = vmul.f32 %v5828, %v5904
        %v5931 = vmul.f32 %v5830, %v5903
        %v5932 = vmul.f32 %v5832, %v5904
        %v5933 = vmul.f32 %v5834, %v5903
        %v5934 = vmul.f32 %v5836, %v5904
        %v5935 = vmul.f32 %v5838, %v5903
        %v5936 = vmul.f32 %v5840, %v5904
        %v5937 = vld [vmem:[#allocation3] sm:$0xff]
        %v5938 = vld [vmem:[#allocation3 + $0x8] sm:$0xff]
        %v5939 = vld [vmem:[#allocation3 + $0x10] sm:$0xff]
        %v5940 = vld [vmem:[#allocation3 + $0x18] sm:$0xff]
        %v5941 = vld [vmem:[#allocation3 + $0x20] sm:$0xff]
        %v5942 = vld [vmem:[#allocation3 + $0x28] sm:$0xff]
        %v5943 = vld [vmem:[#allocation3 + $0x30] sm:$0xff]
        %v5944 = vld [vmem:[#allocation3 + $0x38] sm:$0xff]
        %v5945 = vld [vmem:[#allocation3 + $0x40] sm:$0xff]
        %v5946 = vld [vmem:[#allocation3 + $0x48] sm:$0xff]
        %v5947 = vld [vmem:[#allocation3 + $0x50] sm:$0xff]
        %v5948 = vld [vmem:[#allocation3 + $0x58] sm:$0xff]
        %v5949 = vld [vmem:[#allocation3 + $0x60] sm:$0xff]
        %v5950 = vld [vmem:[#allocation3 + $0x68] sm:$0xff]
        %v5951 = vld [vmem:[#allocation3 + $0x70] sm:$0xff]
        %v5952 = vld [vmem:[#allocation3 + $0x78] sm:$0xff]
        %v5953 = vld [vmem:[#allocation3 + $0x80] sm:$0xff]
        %v5954 = vld [vmem:[#allocation3 + $0x88] sm:$0xff]
        %v5955 = vld [vmem:[#allocation3 + $0x90] sm:$0xff]
        %v5956 = vld [vmem:[#allocation3 + $0x98] sm:$0xff]
        %v5957 = vld [vmem:[#allocation3 + $0xa0] sm:$0xff]
        %v5958 = vld [vmem:[#allocation3 + $0xa8] sm:$0xff]
        %v5959 = vld [vmem:[#allocation3 + $0xb0] sm:$0xff]
        %v5960 = vld [vmem:[#allocation3 + $0xb8] sm:$0xff]
        %v5961 = vld [vmem:[#allocation3 + $0xc0] sm:$0xff]
        %v5962 = vld [vmem:[#allocation3 + $0xc8] sm:$0xff]
        %v5963 = vld [vmem:[#allocation3 + $0xd0] sm:$0xff]
        %v5964 = vld [vmem:[#allocation3 + $0xd8] sm:$0xff]
        %v5965 = vld [vmem:[#allocation3 + $0xe0] sm:$0xff]
        %v5966 = vld [vmem:[#allocation3 + $0xe8] sm:$0xff]
        %v5967 = vld [vmem:[#allocation3 + $0xf0] sm:$0xff]
        %v5968 = vld [vmem:[#allocation3 + $0xf8] sm:$0xff]
        %v5969 = vsel %vm958, %v5937, -inf
        %v5970 = vsel %vm958, %v5939, -inf
        %v5971 = vsel %vm958, %v5941, -inf
        %v5972 = vmax.f32 %v5969, %v5971
        %v5973 = vsel %vm958, %v5943, -inf
        %v5974 = vmax.f32 %v5970, %v5973
        %v5975 = vsel %vm958, %v5945, -inf
        %v5976 = vmax.f32 %v5972, %v5975
        %v5977 = vsel %vm958, %v5947, -inf
        %v5978 = vmax.f32 %v5974, %v5977
        %v5979 = vsel %vm958, %v5949, -inf
        %v5980 = vmax.f32 %v5976, %v5979
        %v5981 = vsel %vm958, %v5951, -inf
        %v5982 = vmax.f32 %v5978, %v5981
        %v5983 = vsel %vm958, %v5953, -inf
        %v5984 = vmax.f32 %v5980, %v5983
        %v5985 = vsel %vm958, %v5955, -inf
        %v5986 = vmax.f32 %v5982, %v5985
        %v5987 = vsel %vm958, %v5957, -inf
        %v5988 = vmax.f32 %v5984, %v5987
        %v5989 = vsel %vm958, %v5959, -inf
        %v5990 = vmax.f32 %v5986, %v5989
        %v5991 = vsel %vm958, %v5961, -inf
        %v5992 = vmax.f32 %v5988, %v5991
        %v5993 = vsel %vm958, %v5963, -inf
        %v5994 = vmax.f32 %v5990, %v5993
        %v5995 = vsel %vm958, %v5965, -inf
        %v5996 = vmax.f32 %v5992, %v5995
        %v5997 = vsel %vm958, %v5967, -inf
        %v5998 = vmax.f32 %v5994, %v5997
        %v5999 = vmax.f32 %v5996, %v5998
        %v6000 = vsel %vm958, %v5938, -inf
        %v6001 = vsel %vm958, %v5940, -inf
        %v6002 = vsel %vm958, %v5942, -inf
        %v6003 = vmax.f32 %v6000, %v6002
        %v6004 = vsel %vm958, %v5944, -inf
        %v6005 = vmax.f32 %v6001, %v6004
        %v6006 = vsel %vm958, %v5946, -inf
        %v6007 = vmax.f32 %v6003, %v6006
        %v6008 = vsel %vm958, %v5948, -inf
        %v6009 = vmax.f32 %v6005, %v6008
        %v6010 = vsel %vm958, %v5950, -inf
        %v6011 = vmax.f32 %v6007, %v6010
        %v6012 = vsel %vm958, %v5952, -inf
        %v6013 = vmax.f32 %v6009, %v6012
        %v6014 = vsel %vm958, %v5954, -inf
        %v6015 = vmax.f32 %v6011, %v6014
        %v6016 = vsel %vm958, %v5956, -inf
        %v6017 = vmax.f32 %v6013, %v6016
        %v6018 = vsel %vm958, %v5958, -inf
        %v6019 = vmax.f32 %v6015, %v6018
        %v6020 = vsel %vm958, %v5960, -inf
        %v6021 = vmax.f32 %v6017, %v6020
        %v6022 = vsel %vm958, %v5962, -inf
        %v6023 = vmax.f32 %v6019, %v6022
        %v6024 = vsel %vm958, %v5964, -inf
        %v6025 = vmax.f32 %v6021, %v6024
        %v6026 = vsel %vm958, %v5966, -inf
        %v6027 = vmax.f32 %v6023, %v6026
        %v6028 = vsel %vm958, %v5968, -inf
        %v6029 = vmax.f32 %v6025, %v6028
        %v6030 = vmax.f32 %v6027, %v6029
        %v6031 = vsub.f32 %v5937, %v5999
        %v6032 = vsub.f32 %v5938, %v6030
        %v6033 = vsub.f32 %v5939, %v5999
        %v6034 = vsub.f32 %v5940, %v6030
        %v6035 = vsub.f32 %v5941, %v5999
        %v6036 = vsub.f32 %v5942, %v6030
        %v6037 = vsub.f32 %v5943, %v5999
        %v6038 = vsub.f32 %v5944, %v6030
        %v6039 = vsub.f32 %v5945, %v5999
        %v6040 = vsub.f32 %v5946, %v6030
        %v6041 = vsub.f32 %v5947, %v5999
        %v6042 = vsub.f32 %v5948, %v6030
        %v6043 = vsub.f32 %v5949, %v5999
        %v6044 = vsub.f32 %v5950, %v6030
        %v6045 = vsub.f32 %v5951, %v5999
        %v6046 = vsub.f32 %v5952, %v6030
        %v6047 = vsub.f32 %v5953, %v5999
        %v6048 = vsub.f32 %v5954, %v6030
        %v6049 = vsub.f32 %v5955, %v5999
        %v6050 = vsub.f32 %v5956, %v6030
        %v6051 = vsub.f32 %v5957, %v5999
        %v6052 = vsub.f32 %v5958, %v6030
        %v6053 = vsub.f32 %v5959, %v5999
        %v6054 = vsub.f32 %v5960, %v6030
        %v6055 = vsub.f32 %v5961, %v5999
        %v6056 = vsub.f32 %v5962, %v6030
        %v6057 = vsub.f32 %v5963, %v5999
        %v6058 = vsub.f32 %v5964, %v6030
        %v6059 = vsub.f32 %v5965, %v5999
        %v6060 = vsub.f32 %v5966, %v6030
        %v6061 = vsub.f32 %v5967, %v5999
        %v6062 = vsub.f32 %v5968, %v6030
        %v6063 = vmul.f32 %v6031, 1.442695
        %v6064 = vpow.pop %v6063
        %v6065 = vmul.f32 %v6032, 1.442695
        %v6066 = vpow.pop %v6065
        %v6067 = vmul.f32 %v6033, 1.442695
        %v6068 = vpow.pop %v6067
        %v6069 = vmul.f32 %v6034, 1.442695
        %v6070 = vpow.pop %v6069
        %v6071 = vmul.f32 %v6035, 1.442695
        %v6072 = vpow.pop %v6071
        %v6073 = vmul.f32 %v6036, 1.442695
        %v6074 = vpow.pop %v6073
        %v6075 = vmul.f32 %v6037, 1.442695
        %v6076 = vpow.pop %v6075
        %v6077 = vmul.f32 %v6038, 1.442695
        %v6078 = vpow.pop %v6077
        %v6079 = vmul.f32 %v6039, 1.442695
        %v6080 = vpow.pop %v6079
        %v6081 = vmul.f32 %v6040, 1.442695
        %v6082 = vpow.pop %v6081
        %v6083 = vmul.f32 %v6041, 1.442695
        %v6084 = vpow.pop %v6083
        %v6085 = vmul.f32 %v6042, 1.442695
        %v6086 = vpow.pop %v6085
        %v6087 = vmul.f32 %v6043, 1.442695
        %v6088 = vpow.pop %v6087
        %v6089 = vmul.f32 %v6044, 1.442695
        %v6090 = vpow.pop %v6089
        %v6091 = vmul.f32 %v6045, 1.442695
        %v6092 = vpow.pop %v6091
        %v6093 = vmul.f32 %v6046, 1.442695
        %v6094 = vpow.pop %v6093
        %v6095 = vmul.f32 %v6047, 1.442695
        %v6096 = vpow.pop %v6095
        %v6097 = vmul.f32 %v6048, 1.442695
        %v6098 = vpow.pop %v6097
        %v6099 = vmul.f32 %v6049, 1.442695
        %v6100 = vpow.pop %v6099
        %v6101 = vmul.f32 %v6050, 1.442695
        %v6102 = vpow.pop %v6101
        %v6103 = vmul.f32 %v6051, 1.442695
        %v6104 = vpow.pop %v6103
        %v6105 = vmul.f32 %v6052, 1.442695
        %v6106 = vpow.pop %v6105
        %v6107 = vmul.f32 %v6053, 1.442695
        %v6108 = vpow.pop %v6107
        %v6109 = vmul.f32 %v6054, 1.442695
        %v6110 = vpow.pop %v6109
        %v6111 = vmul.f32 %v6055, 1.442695
        %v6112 = vpow.pop %v6111
        %v6113 = vmul.f32 %v6056, 1.442695
        %v6114 = vpow.pop %v6113
        %v6115 = vmul.f32 %v6057, 1.442695
        %v6116 = vpow.pop %v6115
        %v6117 = vmul.f32 %v6058, 1.442695
        %v6118 = vpow.pop %v6117
        %v6119 = vmul.f32 %v6059, 1.442695
        %v6120 = vpow.pop %v6119
        %v6121 = vmul.f32 %v6060, 1.442695
        %v6122 = vpow.pop %v6121
        %v6123 = vmul.f32 %v6061, 1.442695
        %v6124 = vpow.pop %v6123
        %v6125 = vmul.f32 %v6062, 1.442695
        %v6126 = vpow.pop %v6125
        %v6127 = vsel %vm958, %v6064, 0.0
        %v6128 = vsel %vm958, %v6068, 0.0
        %v6129 = vadd.f32 %v6127, %v6128
        %v6130 = vsel %vm958, %v6072, 0.0
        %v6131 = vadd.f32 %v6129, %v6130
        %v6132 = vsel %vm958, %v6076, 0.0
        %v6133 = vadd.f32 %v6131, %v6132
        %v6134 = vsel %vm958, %v6080, 0.0
        %v6135 = vadd.f32 %v6133, %v6134
        %v6136 = vsel %vm958, %v6084, 0.0
        %v6137 = vadd.f32 %v6135, %v6136
        %v6138 = vsel %vm958, %v6088, 0.0
        %v6139 = vadd.f32 %v6137, %v6138
        %v6140 = vsel %vm958, %v6092, 0.0
        %v6141 = vadd.f32 %v6139, %v6140
        %v6142 = vsel %vm958, %v6096, 0.0
        %v6143 = vadd.f32 %v6141, %v6142
        %v6144 = vsel %vm958, %v6100, 0.0
        %v6145 = vadd.f32 %v6143, %v6144
        %v6146 = vsel %vm958, %v6104, 0.0
        %v6147 = vadd.f32 %v6145, %v6146
        %v6148 = vsel %vm958, %v6108, 0.0
        %v6149 = vadd.f32 %v6147, %v6148
        %v6150 = vsel %vm958, %v6112, 0.0
        %v6151 = vadd.f32 %v6149, %v6150
        %v6152 = vsel %vm958, %v6116, 0.0
        %v6153 = vadd.f32 %v6151, %v6152
        %v6154 = vsel %vm958, %v6120, 0.0
        %v6155 = vadd.f32 %v6153, %v6154
        %v6156 = vsel %vm958, %v6124, 0.0
        %v6157 = vadd.f32 %v6155, %v6156
        %v6158 = vsel %vm958, %v6066, 0.0
        %v6159 = vsel %vm958, %v6070, 0.0
        %v6160 = vadd.f32 %v6158, %v6159
        %v6161 = vsel %vm958, %v6074, 0.0
        %v6162 = vadd.f32 %v6160, %v6161
        %v6163 = vsel %vm958, %v6078, 0.0
        %v6164 = vadd.f32 %v6162, %v6163
        %v6165 = vsel %vm958, %v6082, 0.0
        %v6166 = vadd.f32 %v6164, %v6165
        %v6167 = vsel %vm958, %v6086, 0.0
        %v6168 = vadd.f32 %v6166, %v6167
        %v6169 = vsel %vm958, %v6090, 0.0
        %v6170 = vadd.f32 %v6168, %v6169
        %v6171 = vsel %vm958, %v6094, 0.0
        %v6172 = vadd.f32 %v6170, %v6171
        %v6173 = vsel %vm958, %v6098, 0.0
        %v6174 = vadd.f32 %v6172, %v6173
        %v6175 = vsel %vm958, %v6102, 0.0
        %v6176 = vadd.f32 %v6174, %v6175
        %v6177 = vsel %vm958, %v6106, 0.0
        %v6178 = vadd.f32 %v6176, %v6177
        %v6179 = vsel %vm958, %v6110, 0.0
        %v6180 = vadd.f32 %v6178, %v6179
        %v6181 = vsel %vm958, %v6114, 0.0
        %v6182 = vadd.f32 %v6180, %v6181
        %v6183 = vsel %vm958, %v6118, 0.0
        %v6184 = vadd.f32 %v6182, %v6183
        %v6185 = vsel %vm958, %v6122, 0.0
        %v6186 = vadd.f32 %v6184, %v6185
        %v6187 = vsel %vm958, %v6126, 0.0
        %v6188 = vadd.f32 %v6186, %v6187
        %v6189 = vrcp.pop %v6157
        %v6190 = vrcp.pop %v6188
        %v6191 = vmul.f32 %v6064, %v6189
        %v6192 = vmul.f32 %v6066, %v6190
        %v6193 = vmul.f32 %v6068, %v6189
        %v6194 = vmul.f32 %v6070, %v6190
        %v6195 = vmul.f32 %v6072, %v6189
        %v6196 = vmul.f32 %v6074, %v6190
        %v6197 = vmul.f32 %v6076, %v6189
        %v6198 = vmul.f32 %v6078, %v6190
        %v6199 = vmul.f32 %v6080, %v6189
        %v6200 = vmul.f32 %v6082, %v6190
        %v6201 = vmul.f32 %v6084, %v6189
        %v6202 = vmul.f32 %v6086, %v6190
        %v6203 = vmul.f32 %v6088, %v6189
        %v6204 = vmul.f32 %v6090, %v6190
        %v6205 = vmul.f32 %v6092, %v6189
        %v6206 = vmul.f32 %v6094, %v6190
        %v6207 = vmul.f32 %v6096, %v6189
        %v6208 = vmul.f32 %v6098, %v6190
        %v6209 = vmul.f32 %v6100, %v6189
        %v6210 = vmul.f32 %v6102, %v6190
        %v6211 = vmul.f32 %v6104, %v6189
        %v6212 = vmul.f32 %v6106, %v6190
        %v6213 = vmul.f32 %v6108, %v6189
        %v6214 = vmul.f32 %v6110, %v6190
        %v6215 = vmul.f32 %v6112, %v6189
        %v6216 = vmul.f32 %v6114, %v6190
        %v6217 = vmul.f32 %v6116, %v6189
        %v6218 = vmul.f32 %v6118, %v6190
        %v6219 = vmul.f32 %v6120, %v6189
        %v6220 = vmul.f32 %v6122, %v6190
        %v6221 = vmul.f32 %v6124, %v6189
        %v6222 = vmul.f32 %v6126, %v6190
        %v6223 = vmul.f32 %v6191, 0.01
        %v6224 = vmul.f32 %v6192, 0.01
        %v6225 = vmul.f32 %v6193, 0.01
        %v6226 = vmul.f32 %v6194, 0.01
        %v6227 = vmul.f32 %v6195, 0.01
        %v6228 = vmul.f32 %v6196, 0.01
        %v6229 = vmul.f32 %v6197, 0.01
        %v6230 = vmul.f32 %v6198, 0.01
        %v6231 = vmul.f32 %v6199, 0.01
        %v6232 = vmul.f32 %v6200, 0.01
        %v6233 = vmul.f32 %v6201, 0.01
        %v6234 = vmul.f32 %v6202, 0.01
        %v6235 = vmul.f32 %v6203, 0.01
        %v6236 = vmul.f32 %v6204, 0.01
        %v6237 = vmul.f32 %v6205, 0.01
        %v6238 = vmul.f32 %v6206, 0.01
        %v6239 = vmul.f32 %v6207, 0.01
        %v6240 = vmul.f32 %v6208, 0.01
        %v6241 = vmul.f32 %v6209, 0.01
        %v6242 = vmul.f32 %v6210, 0.01
        %v6243 = vmul.f32 %v6211, 0.01
        %v6244 = vmul.f32 %v6212, 0.01
        %v6245 = vmul.f32 %v6213, 0.01
        %v6246 = vmul.f32 %v6214, 0.01
        %v6247 = vmul.f32 %v6215, 0.01
        %v6248 = vmul.f32 %v6216, 0.01
        %v6249 = vmul.f32 %v6217, 0.01
        %v6250 = vmul.f32 %v6218, 0.01
        %v6251 = vmul.f32 %v6219, 0.01
        %v6252 = vmul.f32 %v6220, 0.01
        %v6253 = vmul.f32 %v6221, 0.01
        %v6254 = vmul.f32 %v6222, 0.01
        %v6255 = vsub.f32 %v5905, %v6223
        %v6256 = vsub.f32 %v5906, %v6224
        %v6257 = vsub.f32 %v5907, %v6225
        %v6258 = vsub.f32 %v5908, %v6226
        %v6259 = vsub.f32 %v5909, %v6227
        %v6260 = vsub.f32 %v5910, %v6228
        %v6261 = vsub.f32 %v5911, %v6229
        %v6262 = vsub.f32 %v5912, %v6230
        %v6263 = vsub.f32 %v5913, %v6231
        %v6264 = vsub.f32 %v5914, %v6232
        %v6265 = vsub.f32 %v5915, %v6233
        %v6266 = vsub.f32 %v5916, %v6234
        %v6267 = vsub.f32 %v5917, %v6235
        %v6268 = vsub.f32 %v5918, %v6236
        %v6269 = vsub.f32 %v5919, %v6237
        %v6270 = vsub.f32 %v5920, %v6238
        %v6271 = vsub.f32 %v5921, %v6239
        %v6272 = vsub.f32 %v5922, %v6240
        %v6273 = vsub.f32 %v5923, %v6241
        %v6274 = vsub.f32 %v5924, %v6242
        %v6275 = vsub.f32 %v5925, %v6243
        %v6276 = vsub.f32 %v5926, %v6244
        %v6277 = vsub.f32 %v5927, %v6245
        %v6278 = vsub.f32 %v5928, %v6246
        %v6279 = vsub.f32 %v5929, %v6247
        %v6280 = vsub.f32 %v5930, %v6248
        %v6281 = vsub.f32 %v5931, %v6249
        %v6282 = vsub.f32 %v5932, %v6250
        %v6283 = vsub.f32 %v5933, %v6251
        %v6284 = vsub.f32 %v5934, %v6252
        %v6285 = vsub.f32 %v5935, %v6253
        %v6286 = vsub.f32 %v5936, %v6254
        %v6287 = vstv %s5650
        %v6288 = vmul.f32 %v6255, %v6287
        %v6289 = vmul.f32 %v6256, %v6287
        %v6290 = vmul.f32 %v6257, %v6287
        %v6291 = vmul.f32 %v6258, %v6287
        %v6292 = vmul.f32 %v6259, %v6287
        %v6293 = vmul.f32 %v6260, %v6287
        %v6294 = vmul.f32 %v6261, %v6287
        %v6295 = vmul.f32 %v6262, %v6287
        %v6296 = vmul.f32 %v6263, %v6287
        %v6297 = vmul.f32 %v6264, %v6287
        %v6298 = vmul.f32 %v6265, %v6287
        %v6299 = vmul.f32 %v6266, %v6287
        %v6300 = vmul.f32 %v6267, %v6287
        %v6301 = vmul.f32 %v6268, %v6287
        %v6302 = vmul.f32 %v6269, %v6287
        %v6303 = vmul.f32 %v6270, %v6287
        %v6304 = vmul.f32 %v6271, %v6287
        %v6305 = vmul.f32 %v6272, %v6287
        %v6306 = vmul.f32 %v6273, %v6287
        %v6307 = vmul.f32 %v6274, %v6287
        %v6308 = vmul.f32 %v6275, %v6287
        %v6309 = vmul.f32 %v6276, %v6287
        %v6310 = vmul.f32 %v6277, %v6287
        %v6311 = vmul.f32 %v6278, %v6287
        %v6312 = vmul.f32 %v6279, %v6287
        %v6313 = vmul.f32 %v6280, %v6287
        %v6314 = vmul.f32 %v6281, %v6287
        %v6315 = vmul.f32 %v6282, %v6287
        %v6316 = vmul.f32 %v6283, %v6287
        %v6317 = vmul.f32 %v6284, %v6287
        %v6318 = vmul.f32 %v6285, %v6287
        %v6319 = vmul.f32 %v6286, %v6287
        %6320 = vst.msk [vmem:[#allocation2] sm:$0xff] %vm958, %v6288
        %6321 = vst.msk [vmem:[#allocation2 + $0x8] sm:$0xff] %vm958, %v6289
        %6322 = vst.msk [vmem:[#allocation2 + $0x10] sm:$0xff] %vm958, %v6290
        %6323 = vst.msk [vmem:[#allocation2 + $0x18] sm:$0xff] %vm958, %v6291
        %6324 = vst.msk [vmem:[#allocation2 + $0x20] sm:$0xff] %vm958, %v6292
        %6325 = vst.msk [vmem:[#allocation2 + $0x28] sm:$0xff] %vm958, %v6293
        %6326 = vst.msk [vmem:[#allocation2 + $0x30] sm:$0xff] %vm958, %v6294
        %6327 = vst.msk [vmem:[#allocation2 + $0x38] sm:$0xff] %vm958, %v6295
        %6328 = vst.msk [vmem:[#allocation2 + $0x40] sm:$0xff] %vm958, %v6296
        %6329 = vst.msk [vmem:[#allocation2 + $0x48] sm:$0xff] %vm958, %v6297
        %6330 = vst.msk [vmem:[#allocation2 + $0x50] sm:$0xff] %vm958, %v6298
        %6331 = vst.msk [vmem:[#allocation2 + $0x58] sm:$0xff] %vm958, %v6299
        %6332 = vst.msk [vmem:[#allocation2 + $0x60] sm:$0xff] %vm958, %v6300
        %6333 = vst.msk [vmem:[#allocation2 + $0x68] sm:$0xff] %vm958, %v6301
        %6334 = vst.msk [vmem:[#allocation2 + $0x70] sm:$0xff] %vm958, %v6302
        %6335 = vst.msk [vmem:[#allocation2 + $0x78] sm:$0xff] %vm958, %v6303
        %6336 = vst.msk [vmem:[#allocation2 + $0x80] sm:$0xff] %vm958, %v6304
        %6337 = vst.msk [vmem:[#allocation2 + $0x88] sm:$0xff] %vm958, %v6305
        %6338 = vst.msk [vmem:[#allocation2 + $0x90] sm:$0xff] %vm958, %v6306
        %6339 = vst.msk [vmem:[#allocation2 + $0x98] sm:$0xff] %vm958, %v6307
        %6340 = vst.msk [vmem:[#allocation2 + $0xa0] sm:$0xff] %vm958, %v6308
        %6341 = vst.msk [vmem:[#allocation2 + $0xa8] sm:$0xff] %vm958, %v6309
        %6342 = vst.msk [vmem:[#allocation2 + $0xb0] sm:$0xff] %vm958, %v6310
        %6343 = vst.msk [vmem:[#allocation2 + $0xb8] sm:$0xff] %vm958, %v6311
        %6344 = vst.msk [vmem:[#allocation2 + $0xc0] sm:$0xff] %vm958, %v6312
        %6345 = vst.msk [vmem:[#allocation2 + $0xc8] sm:$0xff] %vm958, %v6313
        %6346 = vst.msk [vmem:[#allocation2 + $0xd0] sm:$0xff] %vm958, %v6314
        %6347 = vst.msk [vmem:[#allocation2 + $0xd8] sm:$0xff] %vm958, %v6315
        %6348 = vst.msk [vmem:[#allocation2 + $0xe0] sm:$0xff] %vm958, %v6316
        %6349 = vst.msk [vmem:[#allocation2 + $0xe8] sm:$0xff] %vm958, %v6317
        %6350 = vst.msk [vmem:[#allocation2 + $0xf0] sm:$0xff] %vm958, %v6318
        %6351 = vst.msk [vmem:[#allocation2 + $0xf8] sm:$0xff] %vm958, %v6319
        %v6352 = vld [vmem:[%s189] sm:$0xff]
        %v6353 = vld [vmem:[%s189 + $0x8] sm:$0xff]
        %v6354 = vld [vmem:[%s189 + $0x10] sm:$0xff]
        %v6355 = vld [vmem:[%s189 + $0x18] sm:$0xff]
        %v6356 = vld [vmem:[%s189 + $0x20] sm:$0xff]
        %v6357 = vld [vmem:[%s189 + $0x28] sm:$0xff]
        %v6358 = vld [vmem:[%s189 + $0x30] sm:$0xff]
        %v6359 = vld [vmem:[%s189 + $0x38] sm:$0xff]
        loop: start=0, step=1, limit=2
        $region33: #{par3b1_forward.1} parent=31 // loop_pre_header
          _
        $region34: #{par3b1_forward.1} parent=31 // loop_header
          %s6361 = sphi 0, %s6365
          %p6362 = scmp.ge.s32.totalorder %s6361, 2
          %v6366 = vphi %v6352, %v8157
          %v6367 = vphi %v6353, %v8159
          %v6368 = vphi %v6354, %v8161
          %v6369 = vphi %v6355, %v8163
          %v6370 = vphi %v6356, %v8165
          %v6371 = vphi %v6357, %v8167
          %v6372 = vphi %v6358, %v8169
          %v6373 = vphi %v6359, %v8171
        $region35: #{par3b1_forward.1} parent=31 // loop_header_branch
          %6364 = sbr.rel (%p6362) target = $region39
        $region36: #{par3b1_forward.1} parent=31 // loop_body
          %v6378 = vrot.slane %v6366, 7
          %v6379 = vrot.slane %v6368, 7
          %v6380 = vrot.slane %v6370, 7
          %v6381 = vrot.slane %v6372, 7
          %v6390 = vrot.slane %v6366, 6
          %v6391 = vrot.slane %v6367, 6
          %v6392 = vsel %vm1705, %v6390, %v6391
          %v6393 = vrot.slane %v6368, 6
          %v6394 = vrot.slane %v6369, 6
          %v6395 = vsel %vm1705, %v6393, %v6394
          %v6396 = vrot.slane %v6370, 6
          %v6397 = vrot.slane %v6371, 6
          %v6398 = vsel %vm1705, %v6396, %v6397
          %v6399 = vrot.slane %v6372, 6
          %v6400 = vrot.slane %v6373, 6
          %v6401 = vsel %vm1705, %v6399, %v6400
          %v6414 = vrot.slane %v6367, 5
          %v6415 = vrot.slane %v6369, 5
          %v6416 = vrot.slane %v6371, 5
          %v6417 = vrot.slane %v6373, 5
          %v6422 = vrot.slane %v6367, 4
          %v6423 = vrot.slane %v6369, 4
          %v6424 = vrot.slane %v6371, 4
          %v6425 = vrot.slane %v6373, 4
          %v6430 = vsel %vm456, %v6366, %v6378
          %v6431 = vsel %vm456, %v6368, %v6379
          %v6432 = vsel %vm456, %v6370, %v6380
          %v6433 = vsel %vm456, %v6372, %v6381
          %v6434 = vsel %vm1705, %v6430, %v6390
          %v6435 = vsel %vm1705, %v6431, %v6393
          %v6436 = vsel %vm1705, %v6432, %v6396
          %v6437 = vsel %vm1705, %v6433, %v6399
          %v6438 = vsel %vm1705, %v6391, %v6414
          %v6439 = vsel %vm1705, %v6394, %v6415
          %v6440 = vsel %vm1705, %v6397, %v6416
          %v6441 = vsel %vm1705, %v6400, %v6417
          %v6442 = vsel %vm3249, %v6438, %v6422
          %v6443 = vsel %vm3249, %v6439, %v6423
          %v6444 = vsel %vm3249, %v6440, %v6424
          %v6445 = vsel %vm3249, %v6441, %v6425
          %6454 = vrot.lane.b32.xlu0 %v6434, 1
          %v6455 = vpop.permute.xlu0 %6454
          %6456 = vrot.lane.b32.xlu0 %v6392, 1
          %v6457 = vpop.permute.xlu0 %6456
          %6458 = vrot.lane.b32.xlu0 %v6442, 1
          %v6459 = vpop.permute.xlu0 %6458
          %6460 = vrot.lane.b32.xlu0 %v6435, 1
          %v6461 = vpop.permute.xlu0 %6460
          %6462 = vrot.lane.b32.xlu0 %v6395, 1
          %v6463 = vpop.permute.xlu0 %6462
          %6464 = vrot.lane.b32.xlu0 %v6443, 1
          %v6465 = vpop.permute.xlu0 %6464
          %6466 = vrot.lane.b32.xlu0 %v6436, 1
          %v6467 = vpop.permute.xlu0 %6466
          %6468 = vrot.lane.b32.xlu0 %v6398, 1
          %v6469 = vpop.permute.xlu0 %6468
          %6470 = vrot.lane.b32.xlu0 %v6444, 1
          %v6471 = vpop.permute.xlu0 %6470
          %6472 = vrot.lane.b32.xlu0 %v6437, 1
          %v6473 = vpop.permute.xlu0 %6472
          %6474 = vrot.lane.b32.xlu0 %v6401, 1
          %v6475 = vpop.permute.xlu0 %6474
          %6476 = vrot.lane.b32.xlu0 %v6445, 1
          %v6477 = vpop.permute.xlu0 %6476
          %6490 = vrot.lane.b32.xlu0 %v6434, 2
          %v6491 = vpop.permute.xlu0 %6490
          %6492 = vrot.lane.b32.xlu0 %v6392, 2
          %v6493 = vpop.permute.xlu0 %6492
          %6494 = vrot.lane.b32.xlu0 %v6442, 2
          %v6495 = vpop.permute.xlu0 %6494
          %6496 = vrot.lane.b32.xlu0 %v6435, 2
          %v6497 = vpop.permute.xlu0 %6496
          %6498 = vrot.lane.b32.xlu0 %v6395, 2
          %v6499 = vpop.permute.xlu0 %6498
          %6500 = vrot.lane.b32.xlu0 %v6443, 2
          %v6501 = vpop.permute.xlu0 %6500
          %6502 = vrot.lane.b32.xlu0 %v6436, 2
          %v6503 = vpop.permute.xlu0 %6502
          %6504 = vrot.lane.b32.xlu0 %v6398, 2
          %v6505 = vpop.permute.xlu0 %6504
          %6506 = vrot.lane.b32.xlu0 %v6444, 2
          %v6507 = vpop.permute.xlu0 %6506
          %6508 = vrot.lane.b32.xlu0 %v6437, 2
          %v6509 = vpop.permute.xlu0 %6508
          %6510 = vrot.lane.b32.xlu0 %v6401, 2
          %v6511 = vpop.permute.xlu0 %6510
          %6512 = vrot.lane.b32.xlu0 %v6445, 2
          %v6513 = vpop.permute.xlu0 %6512
          %6526 = vrot.lane.b32.xlu0 %v6434, 3
          %v6527 = vpop.permute.xlu0 %6526
          %6528 = vrot.lane.b32.xlu0 %v6392, 3
          %v6529 = vpop.permute.xlu0 %6528
          %6530 = vrot.lane.b32.xlu0 %v6442, 3
          %v6531 = vpop.permute.xlu0 %6530
          %6532 = vrot.lane.b32.xlu0 %v6435, 3
          %v6533 = vpop.permute.xlu0 %6532
          %6534 = vrot.lane.b32.xlu0 %v6395, 3
          %v6535 = vpop.permute.xlu0 %6534
          %6536 = vrot.lane.b32.xlu0 %v6443, 3
          %v6537 = vpop.permute.xlu0 %6536
          %6538 = vrot.lane.b32.xlu0 %v6436, 3
          %v6539 = vpop.permute.xlu0 %6538
          %6540 = vrot.lane.b32.xlu0 %v6398, 3
          %v6541 = vpop.permute.xlu0 %6540
          %6542 = vrot.lane.b32.xlu0 %v6444, 3
          %v6543 = vpop.permute.xlu0 %6542
          %6544 = vrot.lane.b32.xlu0 %v6437, 3
          %v6545 = vpop.permute.xlu0 %6544
          %6546 = vrot.lane.b32.xlu0 %v6401, 3
          %v6547 = vpop.permute.xlu0 %6546
          %6548 = vrot.lane.b32.xlu0 %v6445, 3
          %v6549 = vpop.permute.xlu0 %6548
          %6562 = vrot.lane.b32.xlu0 %v6434, 4
          %v6563 = vpop.permute.xlu0 %6562
          %6564 = vrot.lane.b32.xlu0 %v6392, 4
          %v6565 = vpop.permute.xlu0 %6564
          %6566 = vrot.lane.b32.xlu0 %v6442, 4
          %v6567 = vpop.permute.xlu0 %6566
          %6568 = vrot.lane.b32.xlu0 %v6435, 4
          %v6569 = vpop.permute.xlu0 %6568
          %6570 = vrot.lane.b32.xlu0 %v6395, 4
          %v6571 = vpop.permute.xlu0 %6570
          %6572 = vrot.lane.b32.xlu0 %v6443, 4
          %v6573 = vpop.permute.xlu0 %6572
          %6574 = vrot.lane.b32.xlu0 %v6436, 4
          %v6575 = vpop.permute.xlu0 %6574
          %6576 = vrot.lane.b32.xlu0 %v6398, 4
          %v6577 = vpop.permute.xlu0 %6576
          %6578 = vrot.lane.b32.xlu0 %v6444, 4
          %v6579 = vpop.permute.xlu0 %6578
          %6580 = vrot.lane.b32.xlu0 %v6437, 4
          %v6581 = vpop.permute.xlu0 %6580
          %6582 = vrot.lane.b32.xlu0 %v6401, 4
          %v6583 = vpop.permute.xlu0 %6582
          %6584 = vrot.lane.b32.xlu0 %v6445, 4
          %v6585 = vpop.permute.xlu0 %6584
          %vm6598 = vcmask 7168
          %v6599 = vsel %vm6598, %v6434, %v6455
          %v6600 = vsel %vm6598, %v6392, %v6457
          %v6601 = vsel %vm6598, %v6442, %v6459
          %v6602 = vsel %vm6598, %v6435, %v6461
          %v6603 = vsel %vm6598, %v6395, %v6463
          %v6604 = vsel %vm6598, %v6443, %v6465
          %v6605 = vsel %vm6598, %v6436, %v6467
          %v6606 = vsel %vm6598, %v6398, %v6469
          %v6607 = vsel %vm6598, %v6444, %v6471
          %v6608 = vsel %vm6598, %v6437, %v6473
          %v6609 = vsel %vm6598, %v6401, %v6475
          %v6610 = vsel %vm6598, %v6445, %v6477
          %vm6611 = vcmask 15360
          %v6612 = vsel %vm6611, %v6599, %v6491
          %v6613 = vsel %vm6611, %v6600, %v6493
          %v6614 = vsel %vm6611, %v6601, %v6495
          %v6615 = vsel %vm6611, %v6602, %v6497
          %v6616 = vsel %vm6611, %v6603, %v6499
          %v6617 = vsel %vm6611, %v6604, %v6501
          %v6618 = vsel %vm6611, %v6605, %v6503
          %v6619 = vsel %vm6611, %v6606, %v6505
          %v6620 = vsel %vm6611, %v6607, %v6507
          %v6621 = vsel %vm6611, %v6608, %v6509
          %v6622 = vsel %vm6611, %v6609, %v6511
          %v6623 = vsel %vm6611, %v6610, %v6513
          %vm6624 = vcmask 146432
          %v6625 = vsel %vm6624, %v6612, %v6527
          %v6626 = vsel %vm6624, %v6613, %v6529
          %v6627 = vsel %vm6624, %v6614, %v6531
          %v6628 = vsel %vm6624, %v6615, %v6533
          %v6629 = vsel %vm6624, %v6616, %v6535
          %v6630 = vsel %vm6624, %v6617, %v6537
          %v6631 = vsel %vm6624, %v6618, %v6539
          %v6632 = vsel %vm6624, %v6619, %v6541
          %v6633 = vsel %vm6624, %v6620, %v6543
          %v6634 = vsel %vm6624, %v6621, %v6545
          %v6635 = vsel %vm6624, %v6622, %v6547
          %v6636 = vsel %vm6624, %v6623, %v6549
          %vm6637 = vcmask 154624
          %v6638 = vsel %vm6637, %v6625, %v6563
          %v6639 = vsel %vm6637, %v6626, %v6565
          %v6640 = vsel %vm6637, %v6627, %v6567
          %v6641 = vsel %vm6637, %v6628, %v6569
          %v6642 = vsel %vm6637, %v6629, %v6571
          %v6643 = vsel %vm6637, %v6630, %v6573
          %v6644 = vsel %vm6637, %v6631, %v6575
          %v6645 = vsel %vm6637, %v6632, %v6577
          %v6646 = vsel %vm6637, %v6633, %v6579
          %v6647 = vsel %vm6637, %v6634, %v6581
          %v6648 = vsel %vm6637, %v6635, %v6583
          %v6649 = vsel %vm6637, %v6636, %v6585
          %v6650 = vld [vmem:[#allocation2] sm:$0xff]
          %v6651 = vld [vmem:[#allocation2 + $0x8] sm:$0xff]
          %v6654 = vrot.slane %v6650, 7
          %v6655 = vrot.slane %v6651, 7
          %v6656 = vsel %vm456, %v6654, %v6655
          %6657 = vrot.lane.b32.xlu0 %v6654, 1
          %v6658 = vpop.permute.xlu0 %6657
          %6659 = vrot.lane.b32.xlu0 %v6656, 1
          %v6660 = vpop.permute.xlu0 %6659
          %6661 = vrot.lane.b32.xlu0 %v6655, 1
          %v6662 = vpop.permute.xlu0 %6661
          %v6666 = vmul.f32 %v6638, %v6658
          %v6667 = vmul.f32 %v6639, %v6660
          %v6668 = vmul.f32 %v6640, %v6662
          %v6669 = vmul.f32 %v6641, %v6658
          %v6670 = vmul.f32 %v6642, %v6660
          %v6671 = vmul.f32 %v6643, %v6662
          %v6672 = vmul.f32 %v6644, %v6658
          %v6673 = vmul.f32 %v6645, %v6660
          %v6674 = vmul.f32 %v6646, %v6662
          %v6675 = vmul.f32 %v6647, %v6658
          %v6676 = vmul.f32 %v6648, %v6660
          %v6677 = vmul.f32 %v6649, %v6662
          %v6678 = vld [vmem:[%s4146] sm:$0xff]
          %v6679 = vld [vmem:[%s4146 + $0x8] sm:$0xff]
          %v6682 = vrot.slane %v6678, 7
          %v6683 = vrot.slane %v6679, 7
          %v6684 = vsel %vm456, %v6682, %v6683
          %6685 = vrot.lane.b32.xlu0 %v6682, 2
          %v6686 = vpop.permute.xlu0 %6685
          %6687 = vrot.lane.b32.xlu0 %v6684, 2
          %v6688 = vpop.permute.xlu0 %6687
          %6689 = vrot.lane.b32.xlu0 %v6683, 2
          %v6690 = vpop.permute.xlu0 %6689
          %v6694 = vmul.f32 %v6638, %v6686
          %v6695 = vmul.f32 %v6639, %v6688
          %v6696 = vmul.f32 %v6640, %v6690
          %v6697 = vmul.f32 %v6641, %v6686
          %v6698 = vmul.f32 %v6642, %v6688
          %v6699 = vmul.f32 %v6643, %v6690
          %v6700 = vmul.f32 %v6644, %v6686
          %v6701 = vmul.f32 %v6645, %v6688
          %v6702 = vmul.f32 %v6646, %v6690
          %v6703 = vmul.f32 %v6647, %v6686
          %v6704 = vmul.f32 %v6648, %v6688
          %v6705 = vmul.f32 %v6649, %v6690
          %6718 = vrot.lane.b32.xlu0 %v6694, 127
          %v6719 = vpop.permute.xlu0 %6718
          %6720 = vrot.lane.b32.xlu0 %v6695, 127
          %v6721 = vpop.permute.xlu0 %6720
          %6722 = vrot.lane.b32.xlu0 %v6696, 127
          %v6723 = vpop.permute.xlu0 %6722
          %6724 = vrot.lane.b32.xlu0 %v6697, 127
          %v6725 = vpop.permute.xlu0 %6724
          %6726 = vrot.lane.b32.xlu0 %v6698, 127
          %v6727 = vpop.permute.xlu0 %6726
          %6728 = vrot.lane.b32.xlu0 %v6699, 127
          %v6729 = vpop.permute.xlu0 %6728
          %6730 = vrot.lane.b32.xlu0 %v6700, 127
          %v6731 = vpop.permute.xlu0 %6730
          %6732 = vrot.lane.b32.xlu0 %v6701, 127
          %v6733 = vpop.permute.xlu0 %6732
          %6734 = vrot.lane.b32.xlu0 %v6702, 127
          %v6735 = vpop.permute.xlu0 %6734
          %6736 = vrot.lane.b32.xlu0 %v6703, 127
          %v6737 = vpop.permute.xlu0 %6736
          %6738 = vrot.lane.b32.xlu0 %v6704, 127
          %v6739 = vpop.permute.xlu0 %6738
          %6740 = vrot.lane.b32.xlu0 %v6705, 127
          %v6741 = vpop.permute.xlu0 %6740
          %v6754 = vadd.f32 %v6666, %v6719
          %v6755 = vadd.f32 %v6667, %v6721
          %v6756 = vadd.f32 %v6668, %v6723
          %v6757 = vadd.f32 %v6669, %v6725
          %v6758 = vadd.f32 %v6670, %v6727
          %v6759 = vadd.f32 %v6671, %v6729
          %v6760 = vadd.f32 %v6672, %v6731
          %v6761 = vadd.f32 %v6673, %v6733
          %v6762 = vadd.f32 %v6674, %v6735
          %v6763 = vadd.f32 %v6675, %v6737
          %v6764 = vadd.f32 %v6676, %v6739
          %v6765 = vadd.f32 %v6677, %v6741
          %v6766 = vld [vmem:[%s4240] sm:$0xff]
          %v6767 = vld [vmem:[%s4240 + $0x8] sm:$0xff]
          %v6770 = vrot.slane %v6766, 7
          %v6771 = vrot.slane %v6767, 7
          %v6772 = vsel %vm456, %v6770, %v6771
          %6773 = vrot.lane.b32.xlu0 %v6770, 3
          %v6774 = vpop.permute.xlu0 %6773
          %6775 = vrot.lane.b32.xlu0 %v6772, 3
          %v6776 = vpop.permute.xlu0 %6775
          %6777 = vrot.lane.b32.xlu0 %v6771, 3
          %v6778 = vpop.permute.xlu0 %6777
          %v6782 = vmul.f32 %v6638, %v6774
          %v6783 = vmul.f32 %v6639, %v6776
          %v6784 = vmul.f32 %v6640, %v6778
          %v6785 = vmul.f32 %v6641, %v6774
          %v6786 = vmul.f32 %v6642, %v6776
          %v6787 = vmul.f32 %v6643, %v6778
          %v6788 = vmul.f32 %v6644, %v6774
          %v6789 = vmul.f32 %v6645, %v6776
          %v6790 = vmul.f32 %v6646, %v6778
          %v6791 = vmul.f32 %v6647, %v6774
          %v6792 = vmul.f32 %v6648, %v6776
          %v6793 = vmul.f32 %v6649, %v6778
          %6806 = vrot.lane.b32.xlu0 %v6782, 126
          %v6807 = vpop.permute.xlu0 %6806
          %6808 = vrot.lane.b32.xlu0 %v6783, 126
          %v6809 = vpop.permute.xlu0 %6808
          %6810 = vrot.lane.b32.xlu0 %v6784, 126
          %v6811 = vpop.permute.xlu0 %6810
          %6812 = vrot.lane.b32.xlu0 %v6785, 126
          %v6813 = vpop.permute.xlu0 %6812
          %6814 = vrot.lane.b32.xlu0 %v6786, 126
          %v6815 = vpop.permute.xlu0 %6814
          %6816 = vrot.lane.b32.xlu0 %v6787, 126
          %v6817 = vpop.permute.xlu0 %6816
          %6818 = vrot.lane.b32.xlu0 %v6788, 126
          %v6819 = vpop.permute.xlu0 %6818
          %6820 = vrot.lane.b32.xlu0 %v6789, 126
          %v6821 = vpop.permute.xlu0 %6820
          %6822 = vrot.lane.b32.xlu0 %v6790, 126
          %v6823 = vpop.permute.xlu0 %6822
          %6824 = vrot.lane.b32.xlu0 %v6791, 126
          %v6825 = vpop.permute.xlu0 %6824
          %6826 = vrot.lane.b32.xlu0 %v6792, 126
          %v6827 = vpop.permute.xlu0 %6826
          %6828 = vrot.lane.b32.xlu0 %v6793, 126
          %v6829 = vpop.permute.xlu0 %6828
          %v6842 = vadd.f32 %v6754, %v6807
          %v6843 = vadd.f32 %v6755, %v6809
          %v6844 = vadd.f32 %v6756, %v6811
          %v6845 = vadd.f32 %v6757, %v6813
          %v6846 = vadd.f32 %v6758, %v6815
          %v6847 = vadd.f32 %v6759, %v6817
          %v6848 = vadd.f32 %v6760, %v6819
          %v6849 = vadd.f32 %v6761, %v6821
          %v6850 = vadd.f32 %v6762, %v6823
          %v6851 = vadd.f32 %v6763, %v6825
          %v6852 = vadd.f32 %v6764, %v6827
          %v6853 = vadd.f32 %v6765, %v6829
          %v6854 = vld [vmem:[%s4321] sm:$0xff]
          %v6855 = vld [vmem:[%s4321 + $0x8] sm:$0xff]
          %v6858 = vrot.slane %v6854, 6
          %v6859 = vrot.slane %v6855, 6
          %v6860 = vsel %vm1705, %v6858, %v6859
          %6861 = vrot.lane.b32.xlu0 %v6858, 1
          %v6862 = vpop.permute.xlu0 %6861
          %6863 = vrot.lane.b32.xlu0 %v6860, 1
          %v6864 = vpop.permute.xlu0 %6863
          %6865 = vrot.lane.b32.xlu0 %v6859, 1
          %v6866 = vpop.permute.xlu0 %6865
          %v6870 = vmul.f32 %v6638, %v6862
          %v6871 = vmul.f32 %v6639, %v6864
          %v6872 = vmul.f32 %v6640, %v6866
          %v6873 = vmul.f32 %v6641, %v6862
          %v6874 = vmul.f32 %v6642, %v6864
          %v6875 = vmul.f32 %v6643, %v6866
          %v6876 = vmul.f32 %v6644, %v6862
          %v6877 = vmul.f32 %v6645, %v6864
          %v6878 = vmul.f32 %v6646, %v6866
          %v6879 = vmul.f32 %v6647, %v6862
          %v6880 = vmul.f32 %v6648, %v6864
          %v6881 = vmul.f32 %v6649, %v6866
          %v6894 = vrot.slane %v6870, 1
          %v6895 = vrot.slane %v6871, 1
          %v6896 = vsel %vm280, %v6894, %v6895
          %v6897 = vrot.slane %v6872, 1
          %v6898 = vsel %vm280, %v6895, %v6897
          %v6899 = vrot.slane %v6873, 1
          %v6900 = vrot.slane %v6874, 1
          %v6901 = vsel %vm280, %v6899, %v6900
          %v6902 = vrot.slane %v6875, 1
          %v6903 = vsel %vm280, %v6900, %v6902
          %v6904 = vrot.slane %v6876, 1
          %v6905 = vrot.slane %v6877, 1
          %v6906 = vsel %vm280, %v6904, %v6905
          %v6907 = vrot.slane %v6878, 1
          %v6908 = vsel %vm280, %v6905, %v6907
          %v6909 = vrot.slane %v6879, 1
          %v6910 = vrot.slane %v6880, 1
          %v6911 = vsel %vm280, %v6909, %v6910
          %v6912 = vrot.slane %v6881, 1
          %v6913 = vsel %vm280, %v6910, %v6912
          %v6926 = vadd.f32 %v6842, %v6896
          %v6927 = vadd.f32 %v6843, %v6898
          %v6928 = vadd.f32 %v6844, %v6897
          %v6929 = vadd.f32 %v6845, %v6901
          %v6930 = vadd.f32 %v6846, %v6903
          %v6931 = vadd.f32 %v6847, %v6902
          %v6932 = vadd.f32 %v6848, %v6906
          %v6933 = vadd.f32 %v6849, %v6908
          %v6934 = vadd.f32 %v6850, %v6907
          %v6935 = vadd.f32 %v6851, %v6911
          %v6936 = vadd.f32 %v6852, %v6913
          %v6937 = vadd.f32 %v6853, %v6912
          %v6938 = vld [vmem:[%s4443] sm:$0xff]
          %v6939 = vld [vmem:[%s4443 + $0x8] sm:$0xff]
          %v6942 = vrot.slane %v6938, 6
          %v6943 = vrot.slane %v6939, 6
          %v6944 = vsel %vm1705, %v6942, %v6943
          %6945 = vrot.lane.b32.xlu0 %v6942, 3
          %v6946 = vpop.permute.xlu0 %6945
          %6947 = vrot.lane.b32.xlu0 %v6944, 3
          %v6948 = vpop.permute.xlu0 %6947
          %6949 = vrot.lane.b32.xlu0 %v6943, 3
          %v6950 = vpop.permute.xlu0 %6949
          %v6954 = vmul.f32 %v6638, %v6946
          %v6955 = vmul.f32 %v6639, %v6948
          %v6956 = vmul.f32 %v6640, %v6950
          %v6957 = vmul.f32 %v6641, %v6946
          %v6958 = vmul.f32 %v6642, %v6948
          %v6959 = vmul.f32 %v6643, %v6950
          %v6960 = vmul.f32 %v6644, %v6946
          %v6961 = vmul.f32 %v6645, %v6948
          %v6962 = vmul.f32 %v6646, %v6950
          %v6963 = vmul.f32 %v6647, %v6946
          %v6964 = vmul.f32 %v6648, %v6948
          %v6965 = vmul.f32 %v6649, %v6950
          %v6978 = vrot.slane %v6954, 1
          %v6979 = vrot.slane %v6955, 1
          %v6980 = vsel %vm280, %v6978, %v6979
          %v6981 = vrot.slane %v6956, 1
          %v6982 = vsel %vm280, %v6979, %v6981
          %v6983 = vrot.slane %v6957, 1
          %v6984 = vrot.slane %v6958, 1
          %v6985 = vsel %vm280, %v6983, %v6984
          %v6986 = vrot.slane %v6959, 1
          %v6987 = vsel %vm280, %v6984, %v6986
          %v6988 = vrot.slane %v6960, 1
          %v6989 = vrot.slane %v6961, 1
          %v6990 = vsel %vm280, %v6988, %v6989
          %v6991 = vrot.slane %v6962, 1
          %v6992 = vsel %vm280, %v6989, %v6991
          %v6993 = vrot.slane %v6963, 1
          %v6994 = vrot.slane %v6964, 1
          %v6995 = vsel %vm280, %v6993, %v6994
          %v6996 = vrot.slane %v6965, 1
          %v6997 = vsel %vm280, %v6994, %v6996
          %6998 = vrot.lane.b32.xlu0 %v6980, 126
          %v6999 = vpop.permute.xlu0 %6998
          %7000 = vrot.lane.b32.xlu0 %v6982, 126
          %v7001 = vpop.permute.xlu0 %7000
          %7002 = vrot.lane.b32.xlu0 %v6981, 126
          %v7003 = vpop.permute.xlu0 %7002
          %7004 = vrot.lane.b32.xlu0 %v6985, 126
          %v7005 = vpop.permute.xlu0 %7004
          %7006 = vrot.lane.b32.xlu0 %v6987, 126
          %v7007 = vpop.permute.xlu0 %7006
          %7008 = vrot.lane.b32.xlu0 %v6986, 126
          %v7009 = vpop.permute.xlu0 %7008
          %7010 = vrot.lane.b32.xlu0 %v6990, 126
          %v7011 = vpop.permute.xlu0 %7010
          %7012 = vrot.lane.b32.xlu0 %v6992, 126
          %v7013 = vpop.permute.xlu0 %7012
          %7014 = vrot.lane.b32.xlu0 %v6991, 126
          %v7015 = vpop.permute.xlu0 %7014
          %7016 = vrot.lane.b32.xlu0 %v6995, 126
          %v7017 = vpop.permute.xlu0 %7016
          %7018 = vrot.lane.b32.xlu0 %v6997, 126
          %v7019 = vpop.permute.xlu0 %7018
          %7020 = vrot.lane.b32.xlu0 %v6996, 126
          %v7021 = vpop.permute.xlu0 %7020
          %v7034 = vadd.f32 %v6926, %v6999
          %v7035 = vadd.f32 %v6927, %v7001
          %v7036 = vadd.f32 %v6928, %v7003
          %v7037 = vadd.f32 %v6929, %v7005
          %v7038 = vadd.f32 %v6930, %v7007
          %v7039 = vadd.f32 %v6931, %v7009
          %v7040 = vadd.f32 %v6932, %v7011
          %v7041 = vadd.f32 %v6933, %v7013
          %v7042 = vadd.f32 %v6934, %v7015
          %v7043 = vadd.f32 %v6935, %v7017
          %v7044 = vadd.f32 %v6936, %v7019
          %v7045 = vadd.f32 %v6937, %v7021
          %v7046 = vld [vmem:[%s4533] sm:$0xff]
          %v7047 = vld [vmem:[%s4533 + $0x8] sm:$0xff]
          %v7050 = vrot.slane %v7046, 5
          %v7051 = vrot.slane %v7047, 5
          %v7052 = vsel %vm3249, %v7050, %v7051
          %7053 = vrot.lane.b32.xlu0 %v7050, 1
          %v7054 = vpop.permute.xlu0 %7053
          %7055 = vrot.lane.b32.xlu0 %v7052, 1
          %v7056 = vpop.permute.xlu0 %7055
          %7057 = vrot.lane.b32.xlu0 %v7051, 1
          %v7058 = vpop.permute.xlu0 %7057
          %v7062 = vmul.f32 %v6638, %v7054
          %v7063 = vmul.f32 %v6639, %v7056
          %v7064 = vmul.f32 %v6640, %v7058
          %v7065 = vmul.f32 %v6641, %v7054
          %v7066 = vmul.f32 %v6642, %v7056
          %v7067 = vmul.f32 %v6643, %v7058
          %v7068 = vmul.f32 %v6644, %v7054
          %v7069 = vmul.f32 %v6645, %v7056
          %v7070 = vmul.f32 %v6646, %v7058
          %v7071 = vmul.f32 %v6647, %v7054
          %v7072 = vmul.f32 %v6648, %v7056
          %v7073 = vmul.f32 %v6649, %v7058
          %v7086 = vrot.slane %v7062, 2
          %v7087 = vrot.slane %v7063, 2
          %v7088 = vsel %vm350, %v7086, %v7087
          %v7089 = vrot.slane %v7064, 2
          %v7090 = vsel %vm350, %v7087, %v7089
          %v7091 = vrot.slane %v7065, 2
          %v7092 = vrot.slane %v7066, 2
          %v7093 = vsel %vm350, %v7091, %v7092
          %v7094 = vrot.slane %v7067, 2
          %v7095 = vsel %vm350, %v7092, %v7094
          %v7096 = vrot.slane %v7068, 2
          %v7097 = vrot.slane %v7069, 2
          %v7098 = vsel %vm350, %v7096, %v7097
          %v7099 = vrot.slane %v7070, 2
          %v7100 = vsel %vm350, %v7097, %v7099
          %v7101 = vrot.slane %v7071, 2
          %v7102 = vrot.slane %v7072, 2
          %v7103 = vsel %vm350, %v7101, %v7102
          %v7104 = vrot.slane %v7073, 2
          %v7105 = vsel %vm350, %v7102, %v7104
          %v7118 = vadd.f32 %v7034, %v7088
          %v7119 = vadd.f32 %v7035, %v7090
          %v7120 = vadd.f32 %v7036, %v7089
          %v7121 = vadd.f32 %v7037, %v7093
          %v7122 = vadd.f32 %v7038, %v7095
          %v7123 = vadd.f32 %v7039, %v7094
          %v7124 = vadd.f32 %v7040, %v7098
          %v7125 = vadd.f32 %v7041, %v7100
          %v7126 = vadd.f32 %v7042, %v7099
          %v7127 = vadd.f32 %v7043, %v7103
          %v7128 = vadd.f32 %v7044, %v7105
          %v7129 = vadd.f32 %v7045, %v7104
          %v7130 = vld [vmem:[%s4637] sm:$0xff]
          %v7131 = vld [vmem:[%s4637 + $0x8] sm:$0xff]
          %v7134 = vrot.slane %v7130, 5
          %v7135 = vrot.slane %v7131, 5
          %v7136 = vsel %vm3249, %v7134, %v7135
          %7137 = vrot.lane.b32.xlu0 %v7134, 2
          %v7138 = vpop.permute.xlu0 %7137
          %7139 = vrot.lane.b32.xlu0 %v7136, 2
          %v7140 = vpop.permute.xlu0 %7139
          %7141 = vrot.lane.b32.xlu0 %v7135, 2
          %v7142 = vpop.permute.xlu0 %7141
          %v7146 = vmul.f32 %v6638, %v7138
          %v7147 = vmul.f32 %v6639, %v7140
          %v7148 = vmul.f32 %v6640, %v7142
          %v7149 = vmul.f32 %v6641, %v7138
          %v7150 = vmul.f32 %v6642, %v7140
          %v7151 = vmul.f32 %v6643, %v7142
          %v7152 = vmul.f32 %v6644, %v7138
          %v7153 = vmul.f32 %v6645, %v7140
          %v7154 = vmul.f32 %v6646, %v7142
          %v7155 = vmul.f32 %v6647, %v7138
          %v7156 = vmul.f32 %v6648, %v7140
          %v7157 = vmul.f32 %v6649, %v7142
          %v7170 = vrot.slane %v7146, 2
          %v7171 = vrot.slane %v7147, 2
          %v7172 = vsel %vm350, %v7170, %v7171
          %v7173 = vrot.slane %v7148, 2
          %v7174 = vsel %vm350, %v7171, %v7173
          %v7175 = vrot.slane %v7149, 2
          %v7176 = vrot.slane %v7150, 2
          %v7177 = vsel %vm350, %v7175, %v7176
          %v7178 = vrot.slane %v7151, 2
          %v7179 = vsel %vm350, %v7176, %v7178
          %v7180 = vrot.slane %v7152, 2
          %v7181 = vrot.slane %v7153, 2
          %v7182 = vsel %vm350, %v7180, %v7181
          %v7183 = vrot.slane %v7154, 2
          %v7184 = vsel %vm350, %v7181, %v7183
          %v7185 = vrot.slane %v7155, 2
          %v7186 = vrot.slane %v7156, 2
          %v7187 = vsel %vm350, %v7185, %v7186
          %v7188 = vrot.slane %v7157, 2
          %v7189 = vsel %vm350, %v7186, %v7188
          %7190 = vrot.lane.b32.xlu0 %v7172, 127
          %v7191 = vpop.permute.xlu0 %7190
          %7192 = vrot.lane.b32.xlu0 %v7174, 127
          %v7193 = vpop.permute.xlu0 %7192
          %7194 = vrot.lane.b32.xlu0 %v7173, 127
          %v7195 = vpop.permute.xlu0 %7194
          %7196 = vrot.lane.b32.xlu0 %v7177, 127
          %v7197 = vpop.permute.xlu0 %7196
          %7198 = vrot.lane.b32.xlu0 %v7179, 127
          %v7199 = vpop.permute.xlu0 %7198
          %7200 = vrot.lane.b32.xlu0 %v7178, 127
          %v7201 = vpop.permute.xlu0 %7200
          %7202 = vrot.lane.b32.xlu0 %v7182, 127
          %v7203 = vpop.permute.xlu0 %7202
          %7204 = vrot.lane.b32.xlu0 %v7184, 127
          %v7205 = vpop.permute.xlu0 %7204
          %7206 = vrot.lane.b32.xlu0 %v7183, 127
          %v7207 = vpop.permute.xlu0 %7206
          %7208 = vrot.lane.b32.xlu0 %v7187, 127
          %v7209 = vpop.permute.xlu0 %7208
          %7210 = vrot.lane.b32.xlu0 %v7189, 127
          %v7211 = vpop.permute.xlu0 %7210
          %7212 = vrot.lane.b32.xlu0 %v7188, 127
          %v7213 = vpop.permute.xlu0 %7212
          %v7226 = vadd.f32 %v7118, %v7191
          %v7227 = vadd.f32 %v7119, %v7193
          %v7228 = vadd.f32 %v7120, %v7195
          %v7229 = vadd.f32 %v7121, %v7197
          %v7230 = vadd.f32 %v7122, %v7199
          %v7231 = vadd.f32 %v7123, %v7201
          %v7232 = vadd.f32 %v7124, %v7203
          %v7233 = vadd.f32 %v7125, %v7205
          %v7234 = vadd.f32 %v7126, %v7207
          %v7235 = vadd.f32 %v7127, %v7209
          %v7236 = vadd.f32 %v7128, %v7211
          %v7237 = vadd.f32 %v7129, %v7213
          %v7238 = vld [vmem:[%s4730] sm:$0xff]
          %v7239 = vld [vmem:[%s4730 + $0x8] sm:$0xff]
          %v7242 = vrot.slane %v7238, 5
          %v7243 = vrot.slane %v7239, 5
          %v7244 = vsel %vm3249, %v7242, %v7243
          %7245 = vrot.lane.b32.xlu0 %v7242, 3
          %v7246 = vpop.permute.xlu0 %7245
          %7247 = vrot.lane.b32.xlu0 %v7244, 3
          %v7248 = vpop.permute.xlu0 %7247
          %7249 = vrot.lane.b32.xlu0 %v7243, 3
          %v7250 = vpop.permute.xlu0 %7249
          %v7254 = vmul.f32 %v6638, %v7246
          %v7255 = vmul.f32 %v6639, %v7248
          %v7256 = vmul.f32 %v6640, %v7250
          %v7257 = vmul.f32 %v6641, %v7246
          %v7258 = vmul.f32 %v6642, %v7248
          %v7259 = vmul.f32 %v6643, %v7250
          %v7260 = vmul.f32 %v6644, %v7246
          %v7261 = vmul.f32 %v6645, %v7248
          %v7262 = vmul.f32 %v6646, %v7250
          %v7263 = vmul.f32 %v6647, %v7246
          %v7264 = vmul.f32 %v6648, %v7248
          %v7265 = vmul.f32 %v6649, %v7250
          %v7278 = vrot.slane %v7254, 2
          %v7279 = vrot.slane %v7255, 2
          %v7280 = vsel %vm350, %v7278, %v7279
          %v7281 = vrot.slane %v7256, 2
          %v7282 = vsel %vm350, %v7279, %v7281
          %v7283 = vrot.slane %v7257, 2
          %v7284 = vrot.slane %v7258, 2
          %v7285 = vsel %vm350, %v7283, %v7284
          %v7286 = vrot.slane %v7259, 2
          %v7287 = vsel %vm350, %v7284, %v7286
          %v7288 = vrot.slane %v7260, 2
          %v7289 = vrot.slane %v7261, 2
          %v7290 = vsel %vm350, %v7288, %v7289
          %v7291 = vrot.slane %v7262, 2
          %v7292 = vsel %vm350, %v7289, %v7291
          %v7293 = vrot.slane %v7263, 2
          %v7294 = vrot.slane %v7264, 2
          %v7295 = vsel %vm350, %v7293, %v7294
          %v7296 = vrot.slane %v7265, 2
          %v7297 = vsel %vm350, %v7294, %v7296
          %7298 = vrot.lane.b32.xlu0 %v7280, 126
          %v7299 = vpop.permute.xlu0 %7298
          %7300 = vrot.lane.b32.xlu0 %v7282, 126
          %v7301 = vpop.permute.xlu0 %7300
          %7302 = vrot.lane.b32.xlu0 %v7281, 126
          %v7303 = vpop.permute.xlu0 %7302
          %7304 = vrot.lane.b32.xlu0 %v7285, 126
          %v7305 = vpop.permute.xlu0 %7304
          %7306 = vrot.lane.b32.xlu0 %v7287, 126
          %v7307 = vpop.permute.xlu0 %7306
          %7308 = vrot.lane.b32.xlu0 %v7286, 126
          %v7309 = vpop.permute.xlu0 %7308
          %7310 = vrot.lane.b32.xlu0 %v7290, 126
          %v7311 = vpop.permute.xlu0 %7310
          %7312 = vrot.lane.b32.xlu0 %v7292, 126
          %v7313 = vpop.permute.xlu0 %7312
          %7314 = vrot.lane.b32.xlu0 %v7291, 126
          %v7315 = vpop.permute.xlu0 %7314
          %7316 = vrot.lane.b32.xlu0 %v7295, 126
          %v7317 = vpop.permute.xlu0 %7316
          %7318 = vrot.lane.b32.xlu0 %v7297, 126
          %v7319 = vpop.permute.xlu0 %7318
          %7320 = vrot.lane.b32.xlu0 %v7296, 126
          %v7321 = vpop.permute.xlu0 %7320
          %v7334 = vadd.f32 %v7226, %v7299
          %v7335 = vadd.f32 %v7227, %v7301
          %v7336 = vadd.f32 %v7228, %v7303
          %v7337 = vadd.f32 %v7229, %v7305
          %v7338 = vadd.f32 %v7230, %v7307
          %v7339 = vadd.f32 %v7231, %v7309
          %v7340 = vadd.f32 %v7232, %v7311
          %v7341 = vadd.f32 %v7233, %v7313
          %v7342 = vadd.f32 %v7234, %v7315
          %v7343 = vadd.f32 %v7235, %v7317
          %v7344 = vadd.f32 %v7236, %v7319
          %v7345 = vadd.f32 %v7237, %v7321
          %v7346 = vld [vmem:[%s4839] sm:$0xff]
          %v7347 = vld [vmem:[%s4839 + $0x8] sm:$0xff]
          %v7348 = vmul.f32 %v6638, %v7346
          %v7349 = vmul.f32 %v6639, %v7347
          %v7350 = vmul.f32 %v6641, %v7346
          %v7351 = vmul.f32 %v6642, %v7347
          %v7352 = vmul.f32 %v6644, %v7346
          %v7353 = vmul.f32 %v6645, %v7347
          %v7354 = vmul.f32 %v6647, %v7346
          %v7355 = vmul.f32 %v6648, %v7347
          %v7364 = vrot.slane %v7348, 7
          %v7365 = vrot.slane %v7349, 7
          %v7366 = vsel %vm456, %v7364, %v7365
          %v7367 = vrot.slane %v7350, 7
          %v7368 = vrot.slane %v7351, 7
          %v7369 = vsel %vm456, %v7367, %v7368
          %v7370 = vrot.slane %v7352, 7
          %v7371 = vrot.slane %v7353, 7
          %v7372 = vsel %vm456, %v7370, %v7371
          %v7373 = vrot.slane %v7354, 7
          %v7374 = vrot.slane %v7355, 7
          %v7375 = vsel %vm456, %v7373, %v7374
          %7376 = vrot.lane.b32.xlu0 %v7364, 1
          %v7377 = vpop.permute.xlu0 %7376
          %7378 = vrot.lane.b32.xlu0 %v7366, 1
          %v7379 = vpop.permute.xlu0 %7378
          %7380 = vrot.lane.b32.xlu0 %v7365, 1
          %v7381 = vpop.permute.xlu0 %7380
          %7382 = vrot.lane.b32.xlu0 %v7367, 1
          %v7383 = vpop.permute.xlu0 %7382
          %7384 = vrot.lane.b32.xlu0 %v7369, 1
          %v7385 = vpop.permute.xlu0 %7384
          %7386 = vrot.lane.b32.xlu0 %v7368, 1
          %v7387 = vpop.permute.xlu0 %7386
          %7388 = vrot.lane.b32.xlu0 %v7370, 1
          %v7389 = vpop.permute.xlu0 %7388
          %7390 = vrot.lane.b32.xlu0 %v7372, 1
          %v7391 = vpop.permute.xlu0 %7390
          %7392 = vrot.lane.b32.xlu0 %v7371, 1
          %v7393 = vpop.permute.xlu0 %7392
          %7394 = vrot.lane.b32.xlu0 %v7373, 1
          %v7395 = vpop.permute.xlu0 %7394
          %7396 = vrot.lane.b32.xlu0 %v7375, 1
          %v7397 = vpop.permute.xlu0 %7396
          %7398 = vrot.lane.b32.xlu0 %v7374, 1
          %v7399 = vpop.permute.xlu0 %7398
          %v7412 = vadd.f32 %v7334, %v7377
          %v7413 = vadd.f32 %v7335, %v7379
          %v7414 = vadd.f32 %v7336, %v7381
          %v7415 = vadd.f32 %v7337, %v7383
          %v7416 = vadd.f32 %v7338, %v7385
          %v7417 = vadd.f32 %v7339, %v7387
          %v7418 = vadd.f32 %v7340, %v7389
          %v7419 = vadd.f32 %v7341, %v7391
          %v7420 = vadd.f32 %v7342, %v7393
          %v7421 = vadd.f32 %v7343, %v7395
          %v7422 = vadd.f32 %v7344, %v7397
          %v7423 = vadd.f32 %v7345, %v7399
          %v7424 = vld [vmem:[%s4934] sm:$0xff]
          %v7425 = vld [vmem:[%s4934 + $0x8] sm:$0xff]
          %7428 = vrot.lane.b32.xlu0 %v7424, 2
          %v7429 = vpop.permute.xlu0 %7428
          %7430 = vrot.lane.b32.xlu0 %v7425, 2
          %v7431 = vpop.permute.xlu0 %7430
          %v7434 = vmul.f32 %v6638, %v7429
          %v7435 = vmul.f32 %v6639, %v7431
          %v7436 = vmul.f32 %v6641, %v7429
          %v7437 = vmul.f32 %v6642, %v7431
          %v7438 = vmul.f32 %v6644, %v7429
          %v7439 = vmul.f32 %v6645, %v7431
          %v7440 = vmul.f32 %v6647, %v7429
          %v7441 = vmul.f32 %v6648, %v7431
          %v7450 = vrot.slane %v7434, 7
          %v7451 = vrot.slane %v7435, 7
          %v7452 = vsel %vm456, %v7450, %v7451
          %v7453 = vrot.slane %v7436, 7
          %v7454 = vrot.slane %v7437, 7
          %v7455 = vsel %vm456, %v7453, %v7454
          %v7456 = vrot.slane %v7438, 7
          %v7457 = vrot.slane %v7439, 7
          %v7458 = vsel %vm456, %v7456, %v7457
          %v7459 = vrot.slane %v7440, 7
          %v7460 = vrot.slane %v7441, 7
          %v7461 = vsel %vm456, %v7459, %v7460
          %7462 = vrot.lane.b32.xlu0 %v7450, 127
          %v7463 = vpop.permute.xlu0 %7462
          %7464 = vrot.lane.b32.xlu0 %v7452, 127
          %v7465 = vpop.permute.xlu0 %7464
          %7466 = vrot.lane.b32.xlu0 %v7451, 127
          %v7467 = vpop.permute.xlu0 %7466
          %7468 = vrot.lane.b32.xlu0 %v7453, 127
          %v7469 = vpop.permute.xlu0 %7468
          %7470 = vrot.lane.b32.xlu0 %v7455, 127
          %v7471 = vpop.permute.xlu0 %7470
          %7472 = vrot.lane.b32.xlu0 %v7454, 127
          %v7473 = vpop.permute.xlu0 %7472
          %7474 = vrot.lane.b32.xlu0 %v7456, 127
          %v7475 = vpop.permute.xlu0 %7474
          %7476 = vrot.lane.b32.xlu0 %v7458, 127
          %v7477 = vpop.permute.xlu0 %7476
          %7478 = vrot.lane.b32.xlu0 %v7457, 127
          %v7479 = vpop.permute.xlu0 %7478
          %7480 = vrot.lane.b32.xlu0 %v7459, 127
          %v7481 = vpop.permute.xlu0 %7480
          %7482 = vrot.lane.b32.xlu0 %v7461, 127
          %v7483 = vpop.permute.xlu0 %7482
          %7484 = vrot.lane.b32.xlu0 %v7460, 127
          %v7485 = vpop.permute.xlu0 %7484
          %v7498 = vadd.f32 %v7412, %v7463
          %v7499 = vadd.f32 %v7413, %v7465
          %v7500 = vadd.f32 %v7414, %v7467
          %v7501 = vadd.f32 %v7415, %v7469
          %v7502 = vadd.f32 %v7416, %v7471
          %v7503 = vadd.f32 %v7417, %v7473
          %v7504 = vadd.f32 %v7418, %v7475
          %v7505 = vadd.f32 %v7419, %v7477
          %v7506 = vadd.f32 %v7420, %v7479
          %v7507 = vadd.f32 %v7421, %v7481
          %v7508 = vadd.f32 %v7422, %v7483
          %v7509 = vadd.f32 %v7423, %v7485
          %v7510 = vld [vmem:[%s5055] sm:$0xff]
          %v7511 = vld [vmem:[%s5055 + $0x8] sm:$0xff]
          %7514 = vrot.lane.b32.xlu0 %v7510, 4
          %v7515 = vpop.permute.xlu0 %7514
          %7516 = vrot.lane.b32.xlu0 %v7511, 4
          %v7517 = vpop.permute.xlu0 %7516
          %v7520 = vmul.f32 %v6638, %v7515
          %v7521 = vmul.f32 %v6639, %v7517
          %v7522 = vmul.f32 %v6641, %v7515
          %v7523 = vmul.f32 %v6642, %v7517
          %v7524 = vmul.f32 %v6644, %v7515
          %v7525 = vmul.f32 %v6645, %v7517
          %v7526 = vmul.f32 %v6647, %v7515
          %v7527 = vmul.f32 %v6648, %v7517
          %v7536 = vrot.slane %v7520, 7
          %v7537 = vrot.slane %v7521, 7
          %v7538 = vsel %vm456, %v7536, %v7537
          %v7539 = vrot.slane %v7522, 7
          %v7540 = vrot.slane %v7523, 7
          %v7541 = vsel %vm456, %v7539, %v7540
          %v7542 = vrot.slane %v7524, 7
          %v7543 = vrot.slane %v7525, 7
          %v7544 = vsel %vm456, %v7542, %v7543
          %v7545 = vrot.slane %v7526, 7
          %v7546 = vrot.slane %v7527, 7
          %v7547 = vsel %vm456, %v7545, %v7546
          %7548 = vrot.lane.b32.xlu0 %v7536, 125
          %v7549 = vpop.permute.xlu0 %7548
          %7550 = vrot.lane.b32.xlu0 %v7538, 125
          %v7551 = vpop.permute.xlu0 %7550
          %7552 = vrot.lane.b32.xlu0 %v7537, 125
          %v7553 = vpop.permute.xlu0 %7552
          %7554 = vrot.lane.b32.xlu0 %v7539, 125
          %v7555 = vpop.permute.xlu0 %7554
          %7556 = vrot.lane.b32.xlu0 %v7541, 125
          %v7557 = vpop.permute.xlu0 %7556
          %7558 = vrot.lane.b32.xlu0 %v7540, 125
          %v7559 = vpop.permute.xlu0 %7558
          %7560 = vrot.lane.b32.xlu0 %v7542, 125
          %v7561 = vpop.permute.xlu0 %7560
          %7562 = vrot.lane.b32.xlu0 %v7544, 125
          %v7563 = vpop.permute.xlu0 %7562
          %7564 = vrot.lane.b32.xlu0 %v7543, 125
          %v7565 = vpop.permute.xlu0 %7564
          %7566 = vrot.lane.b32.xlu0 %v7545, 125
          %v7567 = vpop.permute.xlu0 %7566
          %7568 = vrot.lane.b32.xlu0 %v7547, 125
          %v7569 = vpop.permute.xlu0 %7568
          %7570 = vrot.lane.b32.xlu0 %v7546, 125
          %v7571 = vpop.permute.xlu0 %7570
          %v7584 = vadd.f32 %v7498, %v7549
          %v7585 = vadd.f32 %v7499, %v7551
          %v7586 = vadd.f32 %v7500, %v7553
          %v7587 = vadd.f32 %v7501, %v7555
          %v7588 = vadd.f32 %v7502, %v7557
          %v7589 = vadd.f32 %v7503, %v7559
          %v7590 = vadd.f32 %v7504, %v7561
          %v7591 = vadd.f32 %v7505, %v7563
          %v7592 = vadd.f32 %v7506, %v7565
          %v7593 = vadd.f32 %v7507, %v7567
          %v7594 = vadd.f32 %v7508, %v7569
          %v7595 = vadd.f32 %v7509, %v7571
          %v7596 = vld [vmem:[%s5148] sm:$0xff]
          %v7597 = vld [vmem:[%s5148 + $0x8] sm:$0xff]
          %v7600 = vrot.slane %v7596, 6
          %v7601 = vrot.slane %v7597, 6
          %v7602 = vsel %vm1705, %v7600, %v7601
          %v7606 = vmul.f32 %v6638, %v7600
          %v7607 = vmul.f32 %v6639, %v7602
          %v7608 = vmul.f32 %v6640, %v7601
          %v7609 = vmul.f32 %v6641, %v7600
          %v7610 = vmul.f32 %v6642, %v7602
          %v7611 = vmul.f32 %v6643, %v7601
          %v7612 = vmul.f32 %v6644, %v7600
          %v7613 = vmul.f32 %v6645, %v7602
          %v7614 = vmul.f32 %v6646, %v7601
          %v7615 = vmul.f32 %v6647, %v7600
          %v7616 = vmul.f32 %v6648, %v7602
          %v7617 = vmul.f32 %v6649, %v7601
          %v7630 = vrot.slane %v7606, 1
          %v7631 = vrot.slane %v7607, 1
          %v7632 = vsel %vm280, %v7630, %v7631
          %v7633 = vrot.slane %v7608, 1
          %v7634 = vsel %vm280, %v7631, %v7633
          %v7635 = vrot.slane %v7609, 1
          %v7636 = vrot.slane %v7610, 1
          %v7637 = vsel %vm280, %v7635, %v7636
          %v7638 = vrot.slane %v7611, 1
          %v7639 = vsel %vm280, %v7636, %v7638
          %v7640 = vrot.slane %v7612, 1
          %v7641 = vrot.slane %v7613, 1
          %v7642 = vsel %vm280, %v7640, %v7641
          %v7643 = vrot.slane %v7614, 1
          %v7644 = vsel %vm280, %v7641, %v7643
          %v7645 = vrot.slane %v7615, 1
          %v7646 = vrot.slane %v7616, 1
          %v7647 = vsel %vm280, %v7645, %v7646
          %v7648 = vrot.slane %v7617, 1
          %v7649 = vsel %vm280, %v7646, %v7648
          %7650 = vrot.lane.b32.xlu0 %v7632, 1
          %v7651 = vpop.permute.xlu0 %7650
          %7652 = vrot.lane.b32.xlu0 %v7634, 1
          %v7653 = vpop.permute.xlu0 %7652
          %7654 = vrot.lane.b32.xlu0 %v7633, 1
          %v7655 = vpop.permute.xlu0 %7654
          %7656 = vrot.lane.b32.xlu0 %v7637, 1
          %v7657 = vpop.permute.xlu0 %7656
          %7658 = vrot.lane.b32.xlu0 %v7639, 1
          %v7659 = vpop.permute.xlu0 %7658
          %7660 = vrot.lane.b32.xlu0 %v7638, 1
          %v7661 = vpop.permute.xlu0 %7660
          %7662 = vrot.lane.b32.xlu0 %v7642, 1
          %v7663 = vpop.permute.xlu0 %7662
          %7664 = vrot.lane.b32.xlu0 %v7644, 1
          %v7665 = vpop.permute.xlu0 %7664
          %7666 = vrot.lane.b32.xlu0 %v7643, 1
          %v7667 = vpop.permute.xlu0 %7666
          %7668 = vrot.lane.b32.xlu0 %v7647, 1
          %v7669 = vpop.permute.xlu0 %7668
          %7670 = vrot.lane.b32.xlu0 %v7649, 1
          %v7671 = vpop.permute.xlu0 %7670
          %7672 = vrot.lane.b32.xlu0 %v7648, 1
          %v7673 = vpop.permute.xlu0 %7672
          %v7686 = vadd.f32 %v7584, %v7651
          %v7687 = vadd.f32 %v7585, %v7653
          %v7688 = vadd.f32 %v7586, %v7655
          %v7689 = vadd.f32 %v7587, %v7657
          %v7690 = vadd.f32 %v7588, %v7659
          %v7691 = vadd.f32 %v7589, %v7661
          %v7692 = vadd.f32 %v7590, %v7663
          %v7693 = vadd.f32 %v7591, %v7665
          %v7694 = vadd.f32 %v7592, %v7667
          %v7695 = vadd.f32 %v7593, %v7669
          %v7696 = vadd.f32 %v7594, %v7671
          %v7697 = vadd.f32 %v7595, %v7673
          %v7698 = vld [vmem:[%s5268] sm:$0xff]
          %v7699 = vld [vmem:[%s5268 + $0x8] sm:$0xff]
          %v7702 = vrot.slane %v7698, 6
          %v7703 = vrot.slane %v7699, 6
          %v7704 = vsel %vm1705, %v7702, %v7703
          %7705 = vrot.lane.b32.xlu0 %v7702, 4
          %v7706 = vpop.permute.xlu0 %7705
          %7707 = vrot.lane.b32.xlu0 %v7704, 4
          %v7708 = vpop.permute.xlu0 %7707
          %7709 = vrot.lane.b32.xlu0 %v7703, 4
          %v7710 = vpop.permute.xlu0 %7709
          %v7714 = vmul.f32 %v6638, %v7706
          %v7715 = vmul.f32 %v6639, %v7708
          %v7716 = vmul.f32 %v6640, %v7710
          %v7717 = vmul.f32 %v6641, %v7706
          %v7718 = vmul.f32 %v6642, %v7708
          %v7719 = vmul.f32 %v6643, %v7710
          %v7720 = vmul.f32 %v6644, %v7706
          %v7721 = vmul.f32 %v6645, %v7708
          %v7722 = vmul.f32 %v6646, %v7710
          %v7723 = vmul.f32 %v6647, %v7706
          %v7724 = vmul.f32 %v6648, %v7708
          %v7725 = vmul.f32 %v6649, %v7710
          %v7738 = vrot.slane %v7714, 1
          %v7739 = vrot.slane %v7715, 1
          %v7740 = vsel %vm280, %v7738, %v7739
          %v7741 = vrot.slane %v7716, 1
          %v7742 = vsel %vm280, %v7739, %v7741
          %v7743 = vrot.slane %v7717, 1
          %v7744 = vrot.slane %v7718, 1
          %v7745 = vsel %vm280, %v7743, %v7744
          %v7746 = vrot.slane %v7719, 1
          %v7747 = vsel %vm280, %v7744, %v7746
          %v7748 = vrot.slane %v7720, 1
          %v7749 = vrot.slane %v7721, 1
          %v7750 = vsel %vm280, %v7748, %v7749
          %v7751 = vrot.slane %v7722, 1
          %v7752 = vsel %vm280, %v7749, %v7751
          %v7753 = vrot.slane %v7723, 1
          %v7754 = vrot.slane %v7724, 1
          %v7755 = vsel %vm280, %v7753, %v7754
          %v7756 = vrot.slane %v7725, 1
          %v7757 = vsel %vm280, %v7754, %v7756
          %7758 = vrot.lane.b32.xlu0 %v7740, 125
          %v7759 = vpop.permute.xlu0 %7758
          %7760 = vrot.lane.b32.xlu0 %v7742, 125
          %v7761 = vpop.permute.xlu0 %7760
          %7762 = vrot.lane.b32.xlu0 %v7741, 125
          %v7763 = vpop.permute.xlu0 %7762
          %7764 = vrot.lane.b32.xlu0 %v7745, 125
          %v7765 = vpop.permute.xlu0 %7764
          %7766 = vrot.lane.b32.xlu0 %v7747, 125
          %v7767 = vpop.permute.xlu0 %7766
          %7768 = vrot.lane.b32.xlu0 %v7746, 125
          %v7769 = vpop.permute.xlu0 %7768
          %7770 = vrot.lane.b32.xlu0 %v7750, 125
          %v7771 = vpop.permute.xlu0 %7770
          %7772 = vrot.lane.b32.xlu0 %v7752, 125
          %v7773 = vpop.permute.xlu0 %7772
          %7774 = vrot.lane.b32.xlu0 %v7751, 125
          %v7775 = vpop.permute.xlu0 %7774
          %7776 = vrot.lane.b32.xlu0 %v7755, 125
          %v7777 = vpop.permute.xlu0 %7776
          %7778 = vrot.lane.b32.xlu0 %v7757, 125
          %v7779 = vpop.permute.xlu0 %7778
          %7780 = vrot.lane.b32.xlu0 %v7756, 125
          %v7781 = vpop.permute.xlu0 %7780
          %v7794 = vadd.f32 %v7686, %v7759
          %v7795 = vadd.f32 %v7687, %v7761
          %v7796 = vadd.f32 %v7688, %v7763
          %v7797 = vadd.f32 %v7689, %v7765
          %v7798 = vadd.f32 %v7690, %v7767
          %v7799 = vadd.f32 %v7691, %v7769
          %v7800 = vadd.f32 %v7692, %v7771
          %v7801 = vadd.f32 %v7693, %v7773
          %v7802 = vadd.f32 %v7694, %v7775
          %v7803 = vadd.f32 %v7695, %v7777
          %v7804 = vadd.f32 %v7696, %v7779
          %v7805 = vadd.f32 %v7697, %v7781
          %v7806 = vld [vmem:[%s5418] sm:$0xff]
          %v7807 = vld [vmem:[%s5418 + $0x8] sm:$0xff]
          %v7810 = vrot.slane %v7806, 4
          %v7811 = vrot.slane %v7807, 4
          %v7812 = vsel %vm1790, %v7810, %v7811
          %v7816 = vmul.f32 %v6638, %v7810
          %v7817 = vmul.f32 %v6639, %v7812
          %v7818 = vmul.f32 %v6640, %v7811
          %v7819 = vmul.f32 %v6641, %v7810
          %v7820 = vmul.f32 %v6642, %v7812
          %v7821 = vmul.f32 %v6643, %v7811
          %v7822 = vmul.f32 %v6644, %v7810
          %v7823 = vmul.f32 %v6645, %v7812
          %v7824 = vmul.f32 %v6646, %v7811
          %v7825 = vmul.f32 %v6647, %v7810
          %v7826 = vmul.f32 %v6648, %v7812
          %v7827 = vmul.f32 %v6649, %v7811
          %v7840 = vrot.slane %v7816, 3
          %v7841 = vrot.slane %v7817, 3
          %v7842 = vsel %vm652, %v7840, %v7841
          %v7843 = vrot.slane %v7818, 3
          %v7844 = vsel %vm652, %v7841, %v7843
          %v7845 = vrot.slane %v7819, 3
          %v7846 = vrot.slane %v7820, 3
          %v7847 = vsel %vm652, %v7845, %v7846
          %v7848 = vrot.slane %v7821, 3
          %v7849 = vsel %vm652, %v7846, %v7848
          %v7850 = vrot.slane %v7822, 3
          %v7851 = vrot.slane %v7823, 3
          %v7852 = vsel %vm652, %v7850, %v7851
          %v7853 = vrot.slane %v7824, 3
          %v7854 = vsel %vm652, %v7851, %v7853
          %v7855 = vrot.slane %v7825, 3
          %v7856 = vrot.slane %v7826, 3
          %v7857 = vsel %vm652, %v7855, %v7856
          %v7858 = vrot.slane %v7827, 3
          %v7859 = vsel %vm652, %v7856, %v7858
          %7860 = vrot.lane.b32.xlu0 %v7842, 1
          %v7861 = vpop.permute.xlu0 %7860
          %7862 = vrot.lane.b32.xlu0 %v7844, 1
          %v7863 = vpop.permute.xlu0 %7862
          %7864 = vrot.lane.b32.xlu0 %v7843, 1
          %v7865 = vpop.permute.xlu0 %7864
          %7866 = vrot.lane.b32.xlu0 %v7847, 1
          %v7867 = vpop.permute.xlu0 %7866
          %7868 = vrot.lane.b32.xlu0 %v7849, 1
          %v7869 = vpop.permute.xlu0 %7868
          %7870 = vrot.lane.b32.xlu0 %v7848, 1
          %v7871 = vpop.permute.xlu0 %7870
          %7872 = vrot.lane.b32.xlu0 %v7852, 1
          %v7873 = vpop.permute.xlu0 %7872
          %7874 = vrot.lane.b32.xlu0 %v7854, 1
          %v7875 = vpop.permute.xlu0 %7874
          %7876 = vrot.lane.b32.xlu0 %v7853, 1
          %v7877 = vpop.permute.xlu0 %7876
          %7878 = vrot.lane.b32.xlu0 %v7857, 1
          %v7879 = vpop.permute.xlu0 %7878
          %7880 = vrot.lane.b32.xlu0 %v7859, 1
          %v7881 = vpop.permute.xlu0 %7880
          %7882 = vrot.lane.b32.xlu0 %v7858, 1
          %v7883 = vpop.permute.xlu0 %7882
          %v7896 = vadd.f32 %v7794, %v7861
          %v7897 = vadd.f32 %v7795, %v7863
          %v7898 = vadd.f32 %v7796, %v7865
          %v7899 = vadd.f32 %v7797, %v7867
          %v7900 = vadd.f32 %v7798, %v7869
          %v7901 = vadd.f32 %v7799, %v7871
          %v7902 = vadd.f32 %v7800, %v7873
          %v7903 = vadd.f32 %v7801, %v7875
          %v7904 = vadd.f32 %v7802, %v7877
          %v7905 = vadd.f32 %v7803, %v7879
          %v7906 = vadd.f32 %v7804, %v7881
          %v7907 = vadd.f32 %v7805, %v7883
          %v7908 = vld [vmem:[%s5522] sm:$0xff]
          %v7909 = vld [vmem:[%s5522 + $0x8] sm:$0xff]
          %v7912 = vrot.slane %v7908, 4
          %v7913 = vrot.slane %v7909, 4
          %v7914 = vsel %vm1790, %v7912, %v7913
          %7915 = vrot.lane.b32.xlu0 %v7912, 2
          %v7916 = vpop.permute.xlu0 %7915
          %7917 = vrot.lane.b32.xlu0 %v7914, 2
          %v7918 = vpop.permute.xlu0 %7917
          %7919 = vrot.lane.b32.xlu0 %v7913, 2
          %v7920 = vpop.permute.xlu0 %7919
          %v7924 = vmul.f32 %v6638, %v7916
          %v7925 = vmul.f32 %v6639, %v7918
          %v7926 = vmul.f32 %v6640, %v7920
          %v7927 = vmul.f32 %v6641, %v7916
          %v7928 = vmul.f32 %v6642, %v7918
          %v7929 = vmul.f32 %v6643, %v7920
          %v7930 = vmul.f32 %v6644, %v7916
          %v7931 = vmul.f32 %v6645, %v7918
          %v7932 = vmul.f32 %v6646, %v7920
          %v7933 = vmul.f32 %v6647, %v7916
          %v7934 = vmul.f32 %v6648, %v7918
          %v7935 = vmul.f32 %v6649, %v7920
          %v7948 = vrot.slane %v7924, 3
          %v7949 = vrot.slane %v7925, 3
          %v7950 = vsel %vm652, %v7948, %v7949
          %v7951 = vrot.slane %v7926, 3
          %v7952 = vsel %vm652, %v7949, %v7951
          %v7953 = vrot.slane %v7927, 3
          %v7954 = vrot.slane %v7928, 3
          %v7955 = vsel %vm652, %v7953, %v7954
          %v7956 = vrot.slane %v7929, 3
          %v7957 = vsel %vm652, %v7954, %v7956
          %v7958 = vrot.slane %v7930, 3
          %v7959 = vrot.slane %v7931, 3
          %v7960 = vsel %vm652, %v7958, %v7959
          %v7961 = vrot.slane %v7932, 3
          %v7962 = vsel %vm652, %v7959, %v7961
          %v7963 = vrot.slane %v7933, 3
          %v7964 = vrot.slane %v7934, 3
          %v7965 = vsel %vm652, %v7963, %v7964
          %v7966 = vrot.slane %v7935, 3
          %v7967 = vsel %vm652, %v7964, %v7966
          %7968 = vrot.lane.b32.xlu0 %v7950, 127
          %v7969 = vpop.permute.xlu0 %7968
          %7970 = vrot.lane.b32.xlu0 %v7952, 127
          %v7971 = vpop.permute.xlu0 %7970
          %7972 = vrot.lane.b32.xlu0 %v7951, 127
          %v7973 = vpop.permute.xlu0 %7972
          %7974 = vrot.lane.b32.xlu0 %v7955, 127
          %v7975 = vpop.permute.xlu0 %7974
          %7976 = vrot.lane.b32.xlu0 %v7957, 127
          %v7977 = vpop.permute.xlu0 %7976
          %7978 = vrot.lane.b32.xlu0 %v7956, 127
          %v7979 = vpop.permute.xlu0 %7978
          %7980 = vrot.lane.b32.xlu0 %v7960, 127
          %v7981 = vpop.permute.xlu0 %7980
          %7982 = vrot.lane.b32.xlu0 %v7962, 127
          %v7983 = vpop.permute.xlu0 %7982
          %7984 = vrot.lane.b32.xlu0 %v7961, 127
          %v7985 = vpop.permute.xlu0 %7984
          %7986 = vrot.lane.b32.xlu0 %v7965, 127
          %v7987 = vpop.permute.xlu0 %7986
          %7988 = vrot.lane.b32.xlu0 %v7967, 127
          %v7989 = vpop.permute.xlu0 %7988
          %7990 = vrot.lane.b32.xlu0 %v7966, 127
          %v7991 = vpop.permute.xlu0 %7990
          %v8004 = vadd.f32 %v7896, %v7969
          %v8005 = vadd.f32 %v7897, %v7971
          %v8006 = vadd.f32 %v7898, %v7973
          %v8007 = vadd.f32 %v7899, %v7975
          %v8008 = vadd.f32 %v7900, %v7977
          %v8009 = vadd.f32 %v7901, %v7979
          %v8010 = vadd.f32 %v7902, %v7981
          %v8011 = vadd.f32 %v7903, %v7983
          %v8012 = vadd.f32 %v7904, %v7985
          %v8013 = vadd.f32 %v7905, %v7987
          %v8014 = vadd.f32 %v7906, %v7989
          %v8015 = vadd.f32 %v7907, %v7991
          %v8016 = vld [vmem:[%s5642] sm:$0xff]
          %v8017 = vld [vmem:[%s5642 + $0x8] sm:$0xff]
          %v8020 = vrot.slane %v8016, 4
          %v8021 = vrot.slane %v8017, 4
          %v8022 = vsel %vm1790, %v8020, %v8021
          %8023 = vrot.lane.b32.xlu0 %v8020, 4
          %v8024 = vpop.permute.xlu0 %8023
          %8025 = vrot.lane.b32.xlu0 %v8022, 4
          %v8026 = vpop.permute.xlu0 %8025
          %8027 = vrot.lane.b32.xlu0 %v8021, 4
          %v8028 = vpop.permute.xlu0 %8027
          %v8032 = vmul.f32 %v6638, %v8024
          %v8033 = vmul.f32 %v6639, %v8026
          %v8034 = vmul.f32 %v6640, %v8028
          %v8035 = vmul.f32 %v6641, %v8024
          %v8036 = vmul.f32 %v6642, %v8026
          %v8037 = vmul.f32 %v6643, %v8028
          %v8038 = vmul.f32 %v6644, %v8024
          %v8039 = vmul.f32 %v6645, %v8026
          %v8040 = vmul.f32 %v6646, %v8028
          %v8041 = vmul.f32 %v6647, %v8024
          %v8042 = vmul.f32 %v6648, %v8026
          %v8043 = vmul.f32 %v6649, %v8028
          %v8056 = vrot.slane %v8032, 3
          %v8057 = vrot.slane %v8033, 3
          %v8058 = vsel %vm652, %v8056, %v8057
          %v8059 = vrot.slane %v8034, 3
          %v8060 = vsel %vm652, %v8057, %v8059
          %v8061 = vrot.slane %v8035, 3
          %v8062 = vrot.slane %v8036, 3
          %v8063 = vsel %vm652, %v8061, %v8062
          %v8064 = vrot.slane %v8037, 3
          %v8065 = vsel %vm652, %v8062, %v8064
          %v8066 = vrot.slane %v8038, 3
          %v8067 = vrot.slane %v8039, 3
          %v8068 = vsel %vm652, %v8066, %v8067
          %v8069 = vrot.slane %v8040, 3
          %v8070 = vsel %vm652, %v8067, %v8069
          %v8071 = vrot.slane %v8041, 3
          %v8072 = vrot.slane %v8042, 3
          %v8073 = vsel %vm652, %v8071, %v8072
          %v8074 = vrot.slane %v8043, 3
          %v8075 = vsel %vm652, %v8072, %v8074
          %8076 = vrot.lane.b32.xlu0 %v8058, 125
          %v8077 = vpop.permute.xlu0 %8076
          %8078 = vrot.lane.b32.xlu0 %v8060, 125
          %v8079 = vpop.permute.xlu0 %8078
          %8080 = vrot.lane.b32.xlu0 %v8059, 125
          %v8081 = vpop.permute.xlu0 %8080
          %8082 = vrot.lane.b32.xlu0 %v8063, 125
          %v8083 = vpop.permute.xlu0 %8082
          %8084 = vrot.lane.b32.xlu0 %v8065, 125
          %v8085 = vpop.permute.xlu0 %8084
          %8086 = vrot.lane.b32.xlu0 %v8064, 125
          %v8087 = vpop.permute.xlu0 %8086
          %8088 = vrot.lane.b32.xlu0 %v8068, 125
          %v8089 = vpop.permute.xlu0 %8088
          %8090 = vrot.lane.b32.xlu0 %v8070, 125
          %v8091 = vpop.permute.xlu0 %8090
          %8092 = vrot.lane.b32.xlu0 %v8069, 125
          %v8093 = vpop.permute.xlu0 %8092
          %8094 = vrot.lane.b32.xlu0 %v8073, 125
          %v8095 = vpop.permute.xlu0 %8094
          %8096 = vrot.lane.b32.xlu0 %v8075, 125
          %v8097 = vpop.permute.xlu0 %8096
          %8098 = vrot.lane.b32.xlu0 %v8074, 125
          %v8099 = vpop.permute.xlu0 %8098
          %v8112 = vadd.f32 %v8004, %v8077
          %v8113 = vadd.f32 %v8005, %v8079
          %v8114 = vadd.f32 %v8006, %v8081
          %v8115 = vadd.f32 %v8007, %v8083
          %v8116 = vadd.f32 %v8008, %v8085
          %v8117 = vadd.f32 %v8009, %v8087
          %v8118 = vadd.f32 %v8010, %v8089
          %v8119 = vadd.f32 %v8011, %v8091
          %v8120 = vadd.f32 %v8012, %v8093
          %v8121 = vadd.f32 %v8013, %v8095
          %v8122 = vadd.f32 %v8014, %v8097
          %v8123 = vadd.f32 %v8015, %v8099
          %v8136 = vrot.slane %v8112, 1
          %v8137 = vrot.slane %v8113, 1
          %v8138 = vsel %vm280, %v8136, %v8137
          %v8139 = vrot.slane %v8114, 1
          %v8140 = vsel %vm280, %v8137, %v8139
          %v8141 = vrot.slane %v8115, 1
          %v8142 = vrot.slane %v8116, 1
          %v8143 = vsel %vm280, %v8141, %v8142
          %v8144 = vrot.slane %v8117, 1
          %v8145 = vsel %vm280, %v8142, %v8144
          %v8146 = vrot.slane %v8118, 1
          %v8147 = vrot.slane %v8119, 1
          %v8148 = vsel %vm280, %v8146, %v8147
          %v8149 = vrot.slane %v8120, 1
          %v8150 = vsel %vm280, %v8147, %v8149
          %v8151 = vrot.slane %v8121, 1
          %v8152 = vrot.slane %v8122, 1
          %v8153 = vsel %vm280, %v8151, %v8152
          %v8154 = vrot.slane %v8123, 1
          %v8155 = vsel %vm280, %v8152, %v8154
          %8156 = vrot.lane.b32.xlu0 %v8138, 127
          %v8157 = vpop.permute.xlu0 %8156
          %8158 = vrot.lane.b32.xlu0 %v8140, 127
          %v8159 = vpop.permute.xlu0 %8158
          %8160 = vrot.lane.b32.xlu0 %v8143, 127
          %v8161 = vpop.permute.xlu0 %8160
          %8162 = vrot.lane.b32.xlu0 %v8145, 127
          %v8163 = vpop.permute.xlu0 %8162
          %8164 = vrot.lane.b32.xlu0 %v8148, 127
          %v8165 = vpop.permute.xlu0 %8164
          %8166 = vrot.lane.b32.xlu0 %v8150, 127
          %v8167 = vpop.permute.xlu0 %8166
          %8168 = vrot.lane.b32.xlu0 %v8153, 127
          %v8169 = vpop.permute.xlu0 %8168
          %8170 = vrot.lane.b32.xlu0 %v8155, 127
          %v8171 = vpop.permute.xlu0 %8170
        $region37: #{par3b1_forward.1} parent=31 // loop_footer
          %s6365 = sadd.s32 1, %s6361
        $region38: #{par3b1_forward.1} parent=31 // loop_footer_branch
          %6360 = sbr.rel target = $region34
        $region39: #{par3b1_forward.1} parent=31 // loop_exit
          _
        %8180 = vst.msk [vmem:[%s179] sm:$0xff] %vm958, %v6366
        %8181 = vst.msk [vmem:[%s179 + $0x8] sm:$0xff] %vm958, %v6367
        %8182 = vst.msk [vmem:[%s179 + $0x10] sm:$0xff] %vm958, %v6368
        %8183 = vst.msk [vmem:[%s179 + $0x18] sm:$0xff] %vm958, %v6369
        %8184 = vst.msk [vmem:[%s179 + $0x20] sm:$0xff] %vm958, %v6370
        %8185 = vst.msk [vmem:[%s179 + $0x28] sm:$0xff] %vm958, %v6371
        %8186 = vst.msk [vmem:[%s179 + $0x30] sm:$0xff] %vm958, %v6372
        %8187 = vst.msk [vmem:[%s179 + $0x38] sm:$0xff] %vm958, %v6373
        %s8188 = sand.u32 %s99, 1
        %s8189 = scalar_lea.sflag [#allocation6], %s8188
        %s8190 = sand.u32 %s99, 1
        %s8191 = smul.addr %s8190, 64
        %s8192 = scalar_lea.vmem [#allocation5], %s8191
        // Predicated region
        $region40: #{par3b1_forward.1} parent=31 // pred_check
          %p8193 = pneg %p109
        $region41: #{par3b1_forward.1} parent=31 // pred_check_branch
          %8195 = sbr.rel (%p8193) target = $region43
        $region42: #{par3b1_forward.1} parent=31 // pred_region
          %s8197 = ssub.s32 1024, 1024
          %8198 = vsyncadd %s8189, %s8197
          %s8199 = smul.addr %s18, 8
          %s8200 = smul.addr %s8199, 128
          %s8201 = scalar_lea.hbm %s3, %s8200
          %s8202 = sshll.u32 %s8192, 4
          %s8203 = int_to_ptr.vmem [resolvable:$true] %s8202
          %8208 = dma.vmem_to_hbm [thread:$0]  %s8203, 1024, %s8201, %s8189, 128, 128, 8
        $region43: #{par3b1_forward.1} parent=31 // pred_fallthru
          _
      $region32: #{par3b1_forward.1} parent=5 // pred_fallthru
        _
      %p8209 = scmp.le.s32.totalorder 2, %s13
      // Predicated region
      $region44: #{par3b1_forward.1} parent=5 // pred_check
        %p8210 = pneg %p8209
      $region45: #{par3b1_forward.1} parent=5 // pred_check_branch
        %8212 = sbr.rel (%p8210) target = $region47
      $region46: #{par3b1_forward.1} parent=5 // pred_region
        %s8213 = ssub.s32 %s13, 2
        // Predicated region
        $region48: #{par3b1_forward.1} parent=46 // pred_check
          %p8214 = pneg %p115
        $region49: #{par3b1_forward.1} parent=46 // pred_check_branch
          %8216 = sbr.rel (%p8214) target = $region51
        $region50: #{par3b1_forward.1} parent=46 // pred_region
          %s8217 = sand.u32 %s100, 1
          %s8218 = scalar_lea.sflag [#allocation6], %s8217
          %s8219 = sand.u32 %s100, 1
          %s8220 = smul.addr %s8219, 64
          %s8221 = scalar_lea.vmem [#allocation5], %s8220
          %8222 = dma.done %s8218, 1024
        $region51: #{par3b1_forward.1} parent=46 // pred_fallthru
          _
      $region47: #{par3b1_forward.1} parent=5 // pred_fallthru
        _
    $region6: #{par3b1_forward.1} parent=1 // loop_footer
      %s17 = sadd.s32 1, %s13
    $region7: #{par3b1_forward.1} parent=1 // loop_footer_branch
      %12 = sbr.rel target = $region3
    $region8: #{par3b1_forward.1} parent=1 // loop_exit
      _
    %8223 = vsyncpa [#allocation6], 1
    %s8224 = scalar_lea.sflag [#allocation6], 1
    %8225 = vsyncpa %s8224, 1

</llo_original>
